<compile_context>
chip_gen: v7x
topology: tpu7x:2x2x1
jax: 0.10.0
libtpu: 0.0.40
codegen_flags: <defaults>
</compile_context>

<pallas_src>
import functools
import math

import jax
import jax.numpy as jnp
from jax.experimental import pallas as pl
from jax.experimental.pallas import tpu as pltpu


def _round_up(x, m):
    return ((x + m - 1) // m) * m


# -----------------------------------------------------------------------------
# Kernel: fc1 K-tiled accumulation + (on last K step) fc2 -> fc3 -> fused heads
# -----------------------------------------------------------------------------
def _depth_mlp_kernel(
    x_ref,      # (B, tk)        flattened visual features, K tile
    l_ref,      # (B, proj)      language encoding
    w1x_ref,    # (tk, 3H)       fc1 weight, visual part, K tile   (bf16)
    w1l_ref,    # (proj, 3H)     fc1 weight, language part         (bf16)
    b1_ref,     # (1, 3H)        f32
    w2h_ref,    # (3H, 2H)       bf16
    w2l_ref,    # (proj, 2H)     bf16
    b2_ref,     # (1, 2H)        f32
    w3_ref,     # (2H, H)        bf16
    b3_ref,     # (1, H)         f32
    wh_ref,     # (H, 2)         fused [depth_mu | depth_sigma] weight
    bh_ref,     # (1, 2)         fused bias
    out_ref,    # out: (B, 2)    [mu | sigma]
    acc_ref,    # scratch: (B, 3H) f32 fc1 accumulator
):
    k = pl.program_id(0)
    nk = pl.num_programs(0)

    # --- fc1 accumulation over the K grid ------------------------------------
    # Seed the accumulator with the language projection + bias on the first
    # K step, then add the x-tile contribution every step.
    @pl.when(k == 0)
    def _():
        l = l_ref[...].astype(jnp.bfloat16)
        acc_ref[...] = (
            jnp.dot(l, w1l_ref[...].astype(jnp.bfloat16),
                    preferred_element_type=jnp.float32)
            + b1_ref[...].astype(jnp.float32)
        )

    acc_ref[...] += jnp.dot(
        x_ref[...].astype(jnp.bfloat16),
        w1x_ref[...].astype(jnp.bfloat16),
        preferred_element_type=jnp.float32,
    )

    # --- rest of the (small) MLP, only on the last K step --------------------
    @pl.when(k == nk - 1)
    def _():
        l = l_ref[...].astype(jnp.bfloat16)

        # x1 = relu(fc1(cat([x, l])))
        h1 = jnp.maximum(acc_ref[...], 0.0).astype(jnp.bfloat16)

        # x2 = relu(fc2(cat([x1, l])))
        h2 = jnp.maximum(
            jnp.dot(h1, w2h_ref[...].astype(jnp.bfloat16),
                    preferred_element_type=jnp.float32)
            + jnp.dot(l, w2l_ref[...].astype(jnp.bfloat16),
                      preferred_element_type=jnp.float32)
            + b2_ref[...].astype(jnp.float32),
            0.0,
        ).astype(jnp.bfloat16)

        # x3 = relu(fc3(x2))
        h3 = jnp.maximum(
            jnp.dot(h2, w3_ref[...].astype(jnp.bfloat16),
                    preferred_element_type=jnp.float32)
            + b3_ref[...].astype(jnp.float32),
            0.0,
        ).astype(jnp.bfloat16)

        # Fused heads: one (H, 2) matmul -> [mu | log_sigma]
        heads = (
            jnp.dot(h3, wh_ref[...].astype(jnp.bfloat16),
                    preferred_element_type=jnp.float32)
            + bh_ref[...].astype(jnp.float32)
        )
        # column 0 = mu (raw), column 1 = sigma = exp(clamp(log_sigma, -20, 2))
        col = jax.lax.broadcasted_iota(jnp.int32, heads.shape, 1)
        sig = jnp.exp(jnp.clip(heads, -20.0, 2.0))
        out_ref[...] = jnp.where(col == 0, heads, sig).astype(out_ref.dtype)


# -----------------------------------------------------------------------------
# Parameters (shapes mirror the nn.Linear layers of the module)
# -----------------------------------------------------------------------------
def init_params(key, input_shape, proj_input_dim=1024, hidden_dim=256,
                weight_dtype=jnp.bfloat16):
    """Deterministic synthetic parameters.

    Weights are stored in bf16 (halves HBM traffic of this weight-streaming-
    bound kernel); pass weight_dtype=jnp.float32 for exact f32-parity storage.
    Biases are kept in f32.
    """
    linear_in = int(math.prod(input_shape))
    d1, d2, d3 = hidden_dim * 3, hidden_dim * 2, hidden_dim

    ks = jax.random.split(key, 12)
    scale = 0.02

    def w(k, shape):
        return (scale * jax.random.normal(k, shape, jnp.float32)).astype(weight_dtype)

    def b(k, shape):
        return 0.01 * jax.random.normal(k, shape, jnp.float32)

    return {
        # fc1: (linear_in + proj) -> 3H, split into visual / language blocks
        "w1x": w(ks[0], (linear_in, d1)),
        "w1l": w(ks[1], (proj_input_dim, d1)),
        "b1": b(ks[2], (1, d1)),
        # fc2: (3H + proj) -> 2H
        "w2h": w(ks[3], (d1, d2)),
        "w2l": w(ks[4], (proj_input_dim, d2)),
        "b2": b(ks[5], (1, d2)),
        # fc3: 2H -> H
        "w3": w(ks[6], (d2, d3)),
        "b3": b(ks[7], (1, d3)),
        # heads: H -> 1 each (fused to (H, 2) / (1, 2) in the wrapper)
        "wmu": w(ks[8], (d3, 1)),
        "bmu": b(ks[9], (1, 1)),
        "wsig": w(ks[10], (d3, 1)),
        "bsig": b(ks[11], (1, 1)),
    }


# -----------------------------------------------------------------------------
# Wrapper
# -----------------------------------------------------------------------------
@functools.partial(jax.jit, static_argnames=("k_tile",))
def depth_estimation_gaussian_forward(x, l_enc, params, k_tile=None):
    """Forward pass of DepthEstimationGaussian.

    x:     (B, C, H, W)  visual features (NCHW, like PyTorch)
    l_enc: (B, 1024)     language encoding (l_enc element of the text_enc tuple)
    returns (mu, sigma), each (B, 1) -- the Normal(mu, sigma) parameters.
    """
    B = x.shape[0]
    x_flat = x.reshape(B, -1).astype(jnp.float32)   # same order as torch reshape
    l = l_enc.astype(jnp.float32)
    linear_in = x_flat.shape[1]
    proj = l.shape[1]

    d1 = params["w1x"].shape[1]
    d2 = params["w2h"].shape[1]
    d3 = params["w3"].shape[1]

    # K tile for the fc1 reduction: lane-aligned (multiple of 128) and capped
    # so the double-buffered (k_tile, 3H) bf16 weight tile stays a few MiB.
    if k_tile is None:
        k_tile = min(2048, _round_up(linear_in, 128))
    k_pad = _round_up(linear_in, k_tile)
    if k_pad != linear_in:
        # Zero-pad the reduction dim (padded terms contribute exactly 0).
        x_flat = jnp.pad(x_flat, ((0, 0), (0, k_pad - linear_in)))
        w1x = jnp.pad(params["w1x"], ((0, k_pad - linear_in), (0, 0)))
    else:
        w1x = params["w1x"]
    num_k = k_pad // k_tile

    # Fuse the two 1-wide heads into one (H, 2) matmul + (1, 2) bias.
    wh = jnp.concatenate([params["wmu"], params["wsig"]], axis=1)
    bh = jnp.concatenate([params["bmu"], params["bsig"]], axis=1)

    def full(shape):
        return pl.BlockSpec(shape, lambda k: (0, 0))

    out = pl.pallas_call(
        _depth_mlp_kernel,
        out_shape=jax.ShapeDtypeStruct((B, 2), jnp.float32),
        grid_spec=pltpu.PrefetchScalarGridSpec(
            num_scalar_prefetch=0,
            grid=(num_k,),
            in_specs=[
                pl.BlockSpec((B, k_tile), lambda k: (0, k)),   # x K-tile
                full((B, proj)),                               # l
                pl.BlockSpec((k_tile, d1), lambda k: (k, 0)),  # w1x K-tile
                full((proj, d1)),                              # w1l
                full((1, d1)),                                 # b1
                full((d1, d2)),                                # w2h
                full((proj, d2)),                              # w2l
                full((1, d2)),                                 # b2
                full((d2, d3)),                                # w3
                full((1, d3)),                                 # b3
                full((d3, 2)),                                 # fused head W
                full((1, 2)),                                  # fused head b
            ],
            out_specs=pl.BlockSpec((B, 2), lambda k: (0, 0)),
            scratch_shapes=[pltpu.VMEM((B, d1), jnp.float32)],
        ),
        compiler_params=pltpu.CompilerParams(
            # K axis is a reduction (accumulator persists across it).
            dimension_semantics=("arbitrary",),
            # Well under v7x's 64 MiB physical VMEM; kernel needs only a few MiB.
            vmem_limit_bytes=32 << 20,
        ),
    )(
        x_flat, l,
        w1x, params["w1l"], params["b1"],
        params["w2h"], params["w2l"], params["b2"],
        params["w3"], params["b3"],
        wh, bh,
    )

    mu = out[:, 0:1]
    sigma = out[:, 1:2]
    # TODO(synk): torch.distributions.Independent(Normal(mu, sigma), 1) has no
    # Pallas equivalent; downstream rsample() is mu + sigma * eps in JAX.
    return mu, sigma


# -----------------------------------------------------------------------------
# Pure-JAX reference (same bf16-weight / f32-accumulate math as the kernel)
# -----------------------------------------------------------------------------
def _reference_forward(x, l_enc, params):
    B = x.shape[0]
    xf = x.reshape(B, -1).astype(jnp.bfloat16)
    l = l_enc.astype(jnp.bfloat16)

    def bdot(a, w):
        return jnp.dot(a, w.astype(jnp.bfloat16), preferred_element_type=jnp.float32)

    h1 = jax.nn.relu(bdot(xf, params["w1x"]) + bdot(l, params["w1l"])
                     + params["b1"].astype(jnp.float32))
    h2 = jax.nn.relu(bdot(h1.astype(jnp.bfloat16), params["w2h"])
                     + bdot(l, params["w2l"]) + params["b2"].astype(jnp.float32))
    h3 = jax.nn.relu(bdot(h2.astype(jnp.bfloat16), params["w3"])
                     + params["b3"].astype(jnp.float32))
    h3b = h3.astype(jnp.bfloat16)
    mu = bdot(h3b, params["wmu"]) + params["bmu"].astype(jnp.float32)
    log_sigma = bdot(h3b, params["wsig"]) + params["bsig"].astype(jnp.float32)
    sigma = jnp.exp(jnp.clip(log_sigma, -20.0, 2.0))
    return mu, sigma


if __name__ == "__main__":
    key = jax.random.PRNGKey(0)
    k_x, k_l, k_p = jax.random.split(key, 3)

    # Small shapes: B=2, C=4, H=W=16  =>  linear_in = 1024 ; proj_input_dim = 1024
    B, C, H, W = 2, 4, 16, 16
    PROJ = 1024

    x = jax.random.normal(k_x, (B, C, H, W), dtype=jnp.float32)
    l_enc = jax.random.normal(k_l, (B, PROJ), dtype=jnp.float32)
    params = init_params(k_p, (C, H, W), proj_input_dim=PROJ, hidden_dim=256)

    # k_tile=512 forces a 2-step K grid on this toy shape so the accumulator /
    # K-tiling path is exercised (auto-pick would use a single full-K step).
    mu, sigma = depth_estimation_gaussian_forward(x, l_enc, params, k_tile=512)
    jax.block_until_ready((mu, sigma))

    mu_ref, sigma_ref = _reference_forward(x, l_enc, params)
    assert mu.shape == (B, 1) and sigma.shape == (B, 1)
    assert jnp.allclose(mu, mu_ref, atol=2e-3, rtol=2e-3)
    assert jnp.allclose(sigma, sigma_ref, atol=2e-3, rtol=2e-3)
    assert bool(jnp.all(sigma > 0.0))

    print("KERNEL_OK")
</pallas_src>

<mosaic_0001>
module attributes {stable_mosaic.version = 11 : i64} {
  func.func @_depth_mlp_kernel(%arg0: i32, %arg1: memref<2x512xf32, #tpu.memory_space<vmem>>, %arg2: memref<2x1024xf32, #tpu.memory_space<vmem>>, %arg3: memref<512x768xbf16, #tpu.memory_space<vmem>>, %arg4: memref<1024x768xbf16, #tpu.memory_space<vmem>>, %arg5: memref<1x768xf32, #tpu.memory_space<vmem>>, %arg6: memref<768x512xbf16, #tpu.memory_space<vmem>>, %arg7: memref<1024x512xbf16, #tpu.memory_space<vmem>>, %arg8: memref<1x512xf32, #tpu.memory_space<vmem>>, %arg9: memref<512x256xbf16, #tpu.memory_space<vmem>>, %arg10: memref<1x256xf32, #tpu.memory_space<vmem>>, %arg11: memref<256x2xbf16, #tpu.memory_space<vmem>>, %arg12: memref<1x2xf32, #tpu.memory_space<vmem>>, %arg13: memref<2x2xf32, #tpu.memory_space<vmem>>, %arg14: memref<2x768xf32, #tpu.memory_space<vmem>>) attributes {dimension_semantics = [#tpu.dimension_semantics<arbitrary>], iteration_bounds = array<i64: 2>, scalar_prefetch = 0 : i64, scratch_operands = 1 : i64, tpu.core_type = #tpu.core_type<tc>, window_params = [{transform_indices = @transform_0, window_bounds = array<i64: 2, 512>}, {pipeline_mode = #tpu.pipeline_mode<synchronous>, transform_indices = @transform_1, window_bounds = array<i64: 2, 1024>}, {transform_indices = @transform_2, window_bounds = array<i64: 512, 768>}, {pipeline_mode = #tpu.pipeline_mode<synchronous>, transform_indices = @transform_3, window_bounds = array<i64: 1024, 768>}, {pipeline_mode = #tpu.pipeline_mode<synchronous>, transform_indices = @transform_4, window_bounds = array<i64: 1, 768>}, {pipeline_mode = #tpu.pipeline_mode<synchronous>, transform_indices = @transform_5, window_bounds = array<i64: 768, 512>}, {pipeline_mode = #tpu.pipeline_mode<synchronous>, transform_indices = @transform_6, window_bounds = array<i64: 1024, 512>}, {pipeline_mode = #tpu.pipeline_mode<synchronous>, transform_indices = @transform_7, window_bounds = array<i64: 1, 512>}, {pipeline_mode = #tpu.pipeline_mode<synchronous>, transform_indices = @transform_8, window_bounds = array<i64: 512, 256>}, {pipeline_mode = #tpu.pipeline_mode<synchronous>, transform_indices = @transform_9, window_bounds = array<i64: 1, 256>}, {pipeline_mode = #tpu.pipeline_mode<synchronous>, transform_indices = @transform_10, window_bounds = array<i64: 256, 2>}, {pipeline_mode = #tpu.pipeline_mode<synchronous>, transform_indices = @transform_11, window_bounds = array<i64: 1, 2>}, {pipeline_mode = #tpu.pipeline_mode<synchronous>, transform_indices = @transform_12, window_bounds = array<i64: 2, 2>}]} {
    %c0_i32 = arith.constant 0 : i32
    %0 = arith.cmpi eq, %arg0, %c0_i32 : i32
    %1 = arith.extui %0 : i1 to i32
    %c0_i32_0 = arith.constant 0 : i32
    %2 = arith.cmpi ne, %1, %c0_i32_0 : i32
    scf.if %2 {
      %c0_9 = arith.constant 0 : index
      %c0_10 = arith.constant 0 : index
      %13 = vector.load %arg2[%c0_9, %c0_10] : memref<2x1024xf32, #tpu.memory_space<vmem>>, vector<2x1024xf32>
      %14 = arith.truncf %13 : vector<2x1024xf32> to vector<2x1024xbf16>
      %c0_11 = arith.constant 0 : index
      %c0_12 = arith.constant 0 : index
      %15 = vector.load %arg4[%c0_11, %c0_12] : memref<1024x768xbf16, #tpu.memory_space<vmem>>, vector<1024x768xbf16>
      %cst_13 = arith.constant dense<0.000000e+00> : vector<2x768xf32>
      %16 = tpu.matmul %14, %15, %cst_13 {dimension_numbers = #tpu.dot_dimension_numbers<[1], [0], [0], [1], [0, 0, 1, 1], [], []>} : vector<2x1024xbf16>, vector<1024x768xbf16>, vector<2x768xf32> -> vector<2x768xf32>
      %c0_14 = arith.constant 0 : index
      %c0_15 = arith.constant 0 : index
      %17 = vector.load %arg5[%c0_14, %c0_15] : memref<1x768xf32, #tpu.memory_space<vmem>>, vector<1x768xf32>
      %18 = vector.broadcast %17 : vector<1x768xf32> to vector<2x768xf32>
      %19 = arith.addf %16, %18 : vector<2x768xf32>
      %c0_16 = arith.constant 0 : index
      %c0_17 = arith.constant 0 : index
      %20 = vector.load %arg14[%c0_16, %c0_17] : memref<2x768xf32, #tpu.memory_space<vmem>>, vector<2x768xf32>
      tpu.vector_store %arg14[%c0_16, %c0_17], %19 {strides = array<i32>} : memref<2x768xf32, #tpu.memory_space<vmem>>, vector<2x768xf32>,
    } else {
    }
    %c0 = arith.constant 0 : index
    %c0_1 = arith.constant 0 : index
    %3 = vector.load %arg14[%c0, %c0_1] : memref<2x768xf32, #tpu.memory_space<vmem>>, vector<2x768xf32>
    %c0_2 = arith.constant 0 : index
    %c0_3 = arith.constant 0 : index
    %4 = vector.load %arg1[%c0_2, %c0_3] : memref<2x512xf32, #tpu.memory_space<vmem>>, vector<2x512xf32>
    %5 = arith.truncf %4 : vector<2x512xf32> to vector<2x512xbf16>
    %c0_4 = arith.constant 0 : index
    %c0_5 = arith.constant 0 : index
    %6 = vector.load %arg3[%c0_4, %c0_5] : memref<512x768xbf16, #tpu.memory_space<vmem>>, vector<512x768xbf16>
    %cst = arith.constant dense<0.000000e+00> : vector<2x768xf32>
    %7 = tpu.matmul %5, %6, %cst {dimension_numbers = #tpu.dot_dimension_numbers<[1], [0], [0], [1], [0, 0, 1, 1], [], []>} : vector<2x512xbf16>, vector<512x768xbf16>, vector<2x768xf32> -> vector<2x768xf32>
    %8 = arith.addf %3, %7 : vector<2x768xf32>
    %c0_6 = arith.constant 0 : index
    %c0_7 = arith.constant 0 : index
    %9 = vector.load %arg14[%c0_6, %c0_7] : memref<2x768xf32, #tpu.memory_space<vmem>>, vector<2x768xf32>
    tpu.vector_store %arg14[%c0_6, %c0_7], %8 {strides = array<i32>} : memref<2x768xf32, #tpu.memory_space<vmem>>, vector<2x768xf32>,
    %c1_i32 = arith.constant 1 : i32
    %10 = arith.cmpi eq, %arg0, %c1_i32 : i32
    %11 = arith.extui %10 : i1 to i32
    %c0_i32_8 = arith.constant 0 : i32
    %12 = arith.cmpi ne, %11, %c0_i32_8 : i32
    scf.if %12 {
      %c0_9 = arith.constant 0 : index
      %c0_10 = arith.constant 0 : index
      %13 = vector.load %arg2[%c0_9, %c0_10] : memref<2x1024xf32, #tpu.memory_space<vmem>>, vector<2x1024xf32>
      %14 = arith.truncf %13 : vector<2x1024xf32> to vector<2x1024xbf16>
      %c0_11 = arith.constant 0 : index
      %c0_12 = arith.constant 0 : index
      %15 = vector.load %arg14[%c0_11, %c0_12] : memref<2x768xf32, #tpu.memory_space<vmem>>, vector<2x768xf32>
      %cst_13 = arith.constant 0.000000e+00 : f32
      %16 = vector.broadcast %cst_13 : f32 to vector<2x768xf32>
      %17 = arith.maximumf %15, %16 : vector<2x768xf32>
      %18 = arith.truncf %17 : vector<2x768xf32> to vector<2x768xbf16>
      %c0_14 = arith.constant 0 : index
      %c0_15 = arith.constant 0 : index
      %19 = vector.load %arg6[%c0_14, %c0_15] : memref<768x512xbf16, #tpu.memory_space<vmem>>, vector<768x512xbf16>
      %cst_16 = arith.constant dense<0.000000e+00> : vector<2x512xf32>
      %20 = tpu.matmul %18, %19, %cst_16 {dimension_numbers = #tpu.dot_dimension_numbers<[1], [0], [0], [1], [0, 0, 1, 1], [], []>} : vector<2x768xbf16>, vector<768x512xbf16>, vector<2x512xf32> -> vector<2x512xf32>
      %c0_17 = arith.constant 0 : index
      %c0_18 = arith.constant 0 : index
      %21 = vector.load %arg7[%c0_17, %c0_18] : memref<1024x512xbf16, #tpu.memory_space<vmem>>, vector<1024x512xbf16>
      %cst_19 = arith.constant dense<0.000000e+00> : vector<2x512xf32>
      %22 = tpu.matmul %14, %21, %cst_19 {dimension_numbers = #tpu.dot_dimension_numbers<[1], [0], [0], [1], [0, 0, 1, 1], [], []>} : vector<2x1024xbf16>, vector<1024x512xbf16>, vector<2x512xf32> -> vector<2x512xf32>
      %23 = arith.addf %20, %22 : vector<2x512xf32>
      %c0_20 = arith.constant 0 : index
      %c0_21 = arith.constant 0 : index
      %24 = vector.load %arg8[%c0_20, %c0_21] : memref<1x512xf32, #tpu.memory_space<vmem>>, vector<1x512xf32>
      %25 = vector.broadcast %24 : vector<1x512xf32> to vector<2x512xf32>
      %26 = arith.addf %23, %25 : vector<2x512xf32>
      %cst_22 = arith.constant 0.000000e+00 : f32
      %27 = vector.broadcast %cst_22 : f32 to vector<2x512xf32>
      %28 = arith.maximumf %26, %27 : vector<2x512xf32>
      %29 = arith.truncf %28 : vector<2x512xf32> to vector<2x512xbf16>
      %c0_23 = arith.constant 0 : index
      %c0_24 = arith.constant 0 : index
      %30 = vector.load %arg9[%c0_23, %c0_24] : memref<512x256xbf16, #tpu.memory_space<vmem>>, vector<512x256xbf16>
      %cst_25 = arith.constant dense<0.000000e+00> : vector<2x256xf32>
      %31 = tpu.matmul %29, %30, %cst_25 {dimension_numbers = #tpu.dot_dimension_numbers<[1], [0], [0], [1], [0, 0, 1, 1], [], []>} : vector<2x512xbf16>, vector<512x256xbf16>, vector<2x256xf32> -> vector<2x256xf32>
      %c0_26 = arith.constant 0 : index
      %c0_27 = arith.constant 0 : index
      %32 = vector.load %arg10[%c0_26, %c0_27] : memref<1x256xf32, #tpu.memory_space<vmem>>, vector<1x256xf32>
      %33 = vector.broadcast %32 : vector<1x256xf32> to vector<2x256xf32>
      %34 = arith.addf %31, %33 : vector<2x256xf32>
      %cst_28 = arith.constant 0.000000e+00 : f32
      %35 = vector.broadcast %cst_28 : f32 to vector<2x256xf32>
      %36 = arith.maximumf %34, %35 : vector<2x256xf32>
      %37 = arith.truncf %36 : vector<2x256xf32> to vector<2x256xbf16>
      %c0_29 = arith.constant 0 : index
      %c0_30 = arith.constant 0 : index
      %38 = vector.load %arg11[%c0_29, %c0_30] : memref<256x2xbf16, #tpu.memory_space<vmem>>, vector<256x2xbf16>
      %cst_31 = arith.constant dense<0.000000e+00> : vector<2x2xf32>
      %39 = tpu.matmul %37, %38, %cst_31 {dimension_numbers = #tpu.dot_dimension_numbers<[1], [0], [0], [1], [0, 0, 1, 1], [], []>} : vector<2x256xbf16>, vector<256x2xbf16>, vector<2x2xf32> -> vector<2x2xf32>
      %c0_32 = arith.constant 0 : index
      %c0_33 = arith.constant 0 : index
      %40 = vector.load %arg12[%c0_32, %c0_33] : memref<1x2xf32, #tpu.memory_space<vmem>>, vector<1x2xf32>
      %41 = vector.broadcast %40 : vector<1x2xf32> to vector<2x2xf32>
      %42 = arith.addf %39, %41 : vector<2x2xf32>
      %43 = tpu.iota {dimensions = array<i32: 1>} : vector<2x2xi32>
      %cst_34 = arith.constant -2.000000e+01 : f32
      %cst_35 = arith.constant 2.000000e+00 : f32
      %44 = vector.broadcast %cst_34 : f32 to vector<2x2xf32>
      %45 = arith.maximumf %44, %42 : vector<2x2xf32>
      %46 = vector.broadcast %cst_35 : f32 to vector<2x2xf32>
      %47 = arith.minimumf %46, %45 : vector<2x2xf32>
      %48 = math.exp %47 : vector<2x2xf32>
      %c0_i32_36 = arith.constant 0 : i32
      %49 = vector.broadcast %c0_i32_36 : i32 to vector<2x2xi32>
      %50 = arith.cmpi eq, %43, %49 : vector<2x2xi32>
      %51 = arith.select %50, %42, %48 : vector<2x2xi1>, vector<2x2xf32>
      %c0_37 = arith.constant 0 : index
      %c0_38 = arith.constant 0 : index
      %52 = vector.load %arg13[%c0_37, %c0_38] : memref<2x2xf32, #tpu.memory_space<vmem>>, vector<2x2xf32>
      tpu.vector_store %arg13[%c0_37, %c0_38], %51 {strides = array<i32>} : memref<2x2xf32, #tpu.memory_space<vmem>>, vector<2x2xf32>,
    } else {
    }
    return
  }
  func.func @transform_0(%arg0: i32) -> (i32, i32) {
    %c0_i32 = arith.constant 0 : i32
    %c0_i32_0 = arith.constant 0 : i32
    return %c0_i32, %arg0 : i32, i32
  }
  func.func @transform_1(%arg0: i32) -> (i32, i32) {
    %c0_i32 = arith.constant 0 : i32
    %c0_i32_0 = arith.constant 0 : i32
    %c0_i32_1 = arith.constant 0 : i32
    return %c0_i32, %c0_i32_0 : i32, i32
  }
  func.func @transform_2(%arg0: i32) -> (i32, i32) {
    %c0_i32 = arith.constant 0 : i32
    %c0_i32_0 = arith.constant 0 : i32
    return %arg0, %c0_i32 : i32, i32
  }
  func.func @transform_3(%arg0: i32) -> (i32, i32) {
    %c0_i32 = arith.constant 0 : i32
    %c0_i32_0 = arith.constant 0 : i32
    %c0_i32_1 = arith.constant 0 : i32
    return %c0_i32, %c0_i32_0 : i32, i32
  }
  func.func @transform_4(%arg0: i32) -> (i32, i32) {
    %c0_i32 = arith.constant 0 : i32
    %c0_i32_0 = arith.constant 0 : i32
    %c0_i32_1 = arith.constant 0 : i32
    return %c0_i32, %c0_i32_0 : i32, i32
  }
  func.func @transform_5(%arg0: i32) -> (i32, i32) {
    %c0_i32 = arith.constant 0 : i32
    %c0_i32_0 = arith.constant 0 : i32
    %c0_i32_1 = arith.constant 0 : i32
    return %c0_i32, %c0_i32_0 : i32, i32
  }
  func.func @transform_6(%arg0: i32) -> (i32, i32) {
    %c0_i32 = arith.constant 0 : i32
    %c0_i32_0 = arith.constant 0 : i32
    %c0_i32_1 = arith.constant 0 : i32
    return %c0_i32, %c0_i32_0 : i32, i32
  }
  func.func @transform_7(%arg0: i32) -> (i32, i32) {
    %c0_i32 = arith.constant 0 : i32
    %c0_i32_0 = arith.constant 0 : i32
    %c0_i32_1 = arith.constant 0 : i32
    return %c0_i32, %c0_i32_0 : i32, i32
  }
  func.func @transform_8(%arg0: i32) -> (i32, i32) {
    %c0_i32 = arith.constant 0 : i32
    %c0_i32_0 = arith.constant 0 : i32
    %c0_i32_1 = arith.constant 0 : i32
    return %c0_i32, %c0_i32_0 : i32, i32
  }
  func.func @transform_9(%arg0: i32) -> (i32, i32) {
    %c0_i32 = arith.constant 0 : i32
    %c0_i32_0 = arith.constant 0 : i32
    %c0_i32_1 = arith.constant 0 : i32
    return %c0_i32, %c0_i32_0 : i32, i32
  }
  func.func @transform_10(%arg0: i32) -> (i32, i32) {
    %c0_i32 = arith.constant 0 : i32
    %c0_i32_0 = arith.constant 0 : i32
    %c0_i32_1 = arith.constant 0 : i32
    return %c0_i32, %c0_i32_0 : i32, i32
  }
  func.func @transform_11(%arg0: i32) -> (i32, i32) {
    %c0_i32 = arith.constant 0 : i32
    %c0_i32_0 = arith.constant 0 : i32
    %c0_i32_1 = arith.constant 0 : i32
    return %c0_i32, %c0_i32_0 : i32, i32
  }
  func.func @transform_12(%arg0: i32) -> (i32, i32) {
    %c0_i32 = arith.constant 0 : i32
    %c0_i32_0 = arith.constant 0 : i32
    %c0_i32_1 = arith.constant 0 : i32
    return %c0_i32, %c0_i32_0 : i32, i32
  }
}

</mosaic_0001>

<llo_original>
// kernel: depth_estimation_gaussian_forward.1
$region0: #{depth_estimation_gaussian_forward.1}
  #allocation0 [shape = 'u32[]', space=smem, size = 0x4, offset = 0x4, fixed_abs, tag = 'smem constant byte address 0x4 - core index']
  #allocation1 [shape = 'u32[144,128]{1,0:T(1,128)}', space=vmem, size = 0x12000, scoped, tag = 'internal scratch']
  #allocation2 [shape = 'f32[2,768]{1,0:T(2,128)}', space=vmem, size = 0x1800, scoped, tag = 'scratch operand']
  %s0 = inlined_call_operand.vmem [shape: f32[2,1024], index: 0, kind: input, shape index: {}]
  %s1 = inlined_call_operand.hbm [shape: f32[2,1024], index: 1, kind: input, shape index: {}]
  %s2 = inlined_call_operand.hbm [shape: bf16[1024,768], index: 2, kind: input, shape index: {}]
  %s3 = inlined_call_operand.hbm [shape: bf16[1024,768], index: 3, kind: input, shape index: {}]
  %s4 = inlined_call_operand.hbm [shape: f32[1,768], index: 4, kind: input, shape index: {}]
  %s5 = inlined_call_operand.hbm [shape: bf16[768,512], index: 5, kind: input, shape index: {}]
  %s6 = inlined_call_operand.hbm [shape: bf16[1024,512], index: 6, kind: input, shape index: {}]
  %s7 = inlined_call_operand.hbm [shape: f32[1,512], index: 7, kind: input, shape index: {}]
  %s8 = inlined_call_operand.hbm [shape: bf16[512,256], index: 8, kind: input, shape index: {}]
  %s9 = inlined_call_operand.hbm [shape: f32[1,256], index: 9, kind: input, shape index: {}]
  %s10 = inlined_call_operand.vmem [shape: bf16[256,2], index: 10, kind: input, shape index: {}]
  %s11 = inlined_call_operand.vmem [shape: f32[1,2], index: 11, kind: input, shape index: {}]
  %s12 = inlined_call_operand.vmem [shape: f32[2,2], index: 12, kind: output, shape index: {}]
  %s13 = sld [smem:[#allocation0]]
  $region125: #{depth_estimation_gaussian_forward.1} parent=0
    _
  %s15 = ssub.s32 1, %s13
  %s16 = scalar_select 0, %s15, %s13
  $region1: #{depth_estimation_gaussian_forward.1} parent=0
    #allocation3 [shape = 'u8[8192]{0}', space=vmem, size = 0x2000, scoped, tag = 'input window, operand 1, single buffered']
    #allocation4 [shape = 's32[2]{0}', space=sflag, size = 0x8, scoped, tag = 'scoped memory for depth_estimation_gaussian_forward.1']
    #allocation5 [shape = 'u8[1572864]{0}', space=vmem, size = 0x180000, scoped, tag = 'input window, operand 2']
    #allocation6 [shape = 's32[2]{0}', space=sflag, size = 0x8, scoped, tag = 'scoped memory for depth_estimation_gaussian_forward.1']
    #allocation7 [shape = 'u8[1572864]{0}', space=vmem, size = 0x180000, scoped, tag = 'input window, operand 3, single buffered']
    #allocation8 [shape = 'u8[3072]{0}', space=vmem, size = 0xc00, scoped, tag = 'input window, operand 4, single buffered']
    #allocation9 [shape = 's32[1]{0}', space=sflag, size = 0x4, scoped, tag = 'scoped memory for depth_estimation_gaussian_forward.1']
    #allocation10 [shape = 'u8[786432]{0}', space=vmem, size = 0xc0000, scoped, tag = 'input window, operand 5, single buffered']
    #allocation11 [shape = 'u8[1048576]{0}', space=vmem, size = 0x100000, scoped, tag = 'input window, operand 6, single buffered']
    #allocation12 [shape = 's32[1]{0}', space=sflag, size = 0x4, scoped, tag = 'scoped memory for depth_estimation_gaussian_forward.1']
    #allocation13 [shape = 'u8[2048]{0}', space=vmem, size = 0x800, scoped, tag = 'input window, operand 7, single buffered']
    #allocation14 [shape = 'u8[262144]{0}', space=vmem, size = 0x40000, scoped, tag = 'input window, operand 8, single buffered']
    #allocation15 [shape = 's32[1]{0}', space=sflag, size = 0x4, scoped, tag = 'scoped memory for depth_estimation_gaussian_forward.1']
    #allocation16 [shape = 'u8[1024]{0}', space=vmem, size = 0x400, scoped, tag = 'input window, operand 9, single buffered']
    %17 = vsyncpa [#allocation4], 0
    %18 = vsyncpa [#allocation6], 0
    %s19 = scalar_lea.sflag [#allocation6], 1
    %20 = vsyncpa %s19, 0
    %21 = vsyncpa [#allocation9], 0
    %22 = vsyncpa [#allocation12], 0
    %23 = vsyncpa [#allocation15], 0
    loop: start=0, step=1, limit=4
    $region2: #{depth_estimation_gaussian_forward.1} parent=1 // loop_pre_header
      _
    $region3: #{depth_estimation_gaussian_forward.1} parent=1 // loop_header
      %s25 = sphi 0, %s29
      %p26 = scmp.ge.s32.totalorder %s25, 4
      %s35 = sphi 0, %s37
      %s38 = sphi 0, %s35
      %s39 = sphi 0, %s38
      %s55 = sphi 0, %s39
      %s59 = sphi 0, %s59
      %s61 = sphi 0, %s59
      %s62 = sphi 0, %s61
      %s76 = sphi 0, %s62
      %s82 = sphi 0, %s84
      %s85 = sphi 0, %s82
      %s86 = sphi 0, %s85
      %s102 = sphi 0, %s86
      %s106 = sphi 0, %s106
      %s108 = sphi 0, %s106
      %s109 = sphi 0, %s108
      %s123 = sphi 0, %s109
      %s127 = sphi 0, %s127
      %s129 = sphi 0, %s127
      %s130 = sphi 0, %s129
      %s144 = sphi 0, %s130
      %s148 = sphi 0, %s148
      %s150 = sphi 0, %s148
      %s151 = sphi 0, %s150
      %s165 = sphi 0, %s151
      %s169 = sphi 0, %s169
      %s171 = sphi 0, %s169
      %s172 = sphi 0, %s171
      %s186 = sphi 0, %s172
      %s190 = sphi 0, %s190
      %s192 = sphi 0, %s190
      %s193 = sphi 0, %s192
      %s207 = sphi 0, %s193
      %s211 = sphi 0, %s211
      %s213 = sphi 0, %s211
      %s214 = sphi 0, %s213
      %s228 = sphi 0, %s214
      %s232 = sphi 0, %s232
      %s234 = sphi 0, %s232
      %s235 = sphi 0, %s234
      %s249 = sphi 0, %s235
      %s253 = sphi 0, %s253
      %s255 = sphi 0, %s253
      %s256 = sphi 0, %s255
      %s270 = sphi 0, %s256
      %s274 = sphi 0, %s274
      %s276 = sphi 0, %s274
      %s277 = sphi 0, %s276
      %s291 = sphi 0, %s277
      %s295 = sphi 0, %s295
      %s297 = sphi 0, %s295
      %s298 = sphi 0, %s297
      %s312 = sphi 0, %s298
    $region4: #{depth_estimation_gaussian_forward.1} parent=1 // loop_header_branch
      %28 = sbr.rel (%p26) target = $region8
    $region5: #{depth_estimation_gaussian_forward.1} parent=1 // loop_body
      %s30 = ssub.s32 %s25, 1
      %s31 = ssub.s32 %s25, 2
      %s32 = sadd.s32 %s25, 1
      %s33 = ssub.s32 %s25, %s32
      %p34 = scmp.eq.s32.totalorder %s33, 0
      %s36 = sadd.s32 %s35, 1
      %s37 = scalar_select %p34, %s35, %s36
      %p40 = pneg %p34
      %p41 = scmp.eq.s32.totalorder %s25, 1
      %p42 = por %p40, %p41
      %p43 = scmp.ne.s32.totalorder %s35, %s38
      %p44 = scmp.eq.s32.totalorder %s25, 0
      %p45 = por %p43, %p44
      %p46 = scmp.ne.s32.totalorder %s35, %s38
      %p47 = scmp.eq.s32.totalorder %s30, 1
      %p48 = por %p46, %p47
      %p49 = scmp.ne.s32.totalorder %s38, %s39
      %p50 = scmp.eq.s32.totalorder %s30, 0
      %p51 = por %p49, %p50
      %p52 = scmp.ne.s32.totalorder %s38, %s39
      %p53 = scmp.eq.s32.totalorder %s31, 1
      %p54 = por %p52, %p53
      %p56 = scmp.ne.s32.totalorder %s39, %s55
      %p57 = scmp.eq.s32.totalorder %s31, 0
      %p58 = por %p56, %p57
      %s60 = sadd.s32 %s59, 1
      %p63 = scmp.eq.s32.totalorder %s25, 1
      %p64 = scmp.ne.s32.totalorder %s59, %s61
      %p65 = scmp.eq.s32.totalorder %s25, 0
      %p66 = por %p64, %p65
      %p67 = scmp.ne.s32.totalorder %s59, %s61
      %p68 = scmp.eq.s32.totalorder %s30, 1
      %p69 = por %p67, %p68
      %p70 = scmp.ne.s32.totalorder %s61, %s62
      %p71 = scmp.eq.s32.totalorder %s30, 0
      %p72 = por %p70, %p71
      %p73 = scmp.ne.s32.totalorder %s61, %s62
      %p74 = scmp.eq.s32.totalorder %s31, 1
      %p75 = por %p73, %p74
      %p77 = scmp.ne.s32.totalorder %s62, %s76
      %p78 = scmp.eq.s32.totalorder %s31, 0
      %p79 = por %p77, %p78
      %s80 = ssub.s32 %s25, %s32
      %p81 = scmp.eq.s32.totalorder %s80, 0
      %s83 = sadd.s32 %s82, 1
      %s84 = scalar_select %p81, %s82, %s83
      %p87 = pneg %p81
      %p88 = scmp.eq.s32.totalorder %s25, 1
      %p89 = por %p87, %p88
      %p90 = scmp.ne.s32.totalorder %s82, %s85
      %p91 = scmp.eq.s32.totalorder %s25, 0
      %p92 = por %p90, %p91
      %p93 = scmp.ne.s32.totalorder %s82, %s85
      %p94 = scmp.eq.s32.totalorder %s30, 1
      %p95 = por %p93, %p94
      %p96 = scmp.ne.s32.totalorder %s85, %s86
      %p97 = scmp.eq.s32.totalorder %s30, 0
      %p98 = por %p96, %p97
      %p99 = scmp.ne.s32.totalorder %s85, %s86
      %p100 = scmp.eq.s32.totalorder %s31, 1
      %p101 = por %p99, %p100
      %p103 = scmp.ne.s32.totalorder %s86, %s102
      %p104 = scmp.eq.s32.totalorder %s31, 0
      %p105 = por %p103, %p104
      %s107 = sadd.s32 %s106, 1
      %p110 = scmp.eq.s32.totalorder %s25, 1
      %p111 = scmp.ne.s32.totalorder %s106, %s108
      %p112 = scmp.eq.s32.totalorder %s25, 0
      %p113 = por %p111, %p112
      %p114 = scmp.ne.s32.totalorder %s106, %s108
      %p115 = scmp.eq.s32.totalorder %s30, 1
      %p116 = por %p114, %p115
      %p117 = scmp.ne.s32.totalorder %s108, %s109
      %p118 = scmp.eq.s32.totalorder %s30, 0
      %p119 = por %p117, %p118
      %p120 = scmp.ne.s32.totalorder %s108, %s109
      %p121 = scmp.eq.s32.totalorder %s31, 1
      %p122 = por %p120, %p121
      %p124 = scmp.ne.s32.totalorder %s109, %s123
      %p125 = scmp.eq.s32.totalorder %s31, 0
      %p126 = por %p124, %p125
      %s128 = sadd.s32 %s127, 1
      %p131 = scmp.eq.s32.totalorder %s25, 1
      %p132 = scmp.ne.s32.totalorder %s127, %s129
      %p133 = scmp.eq.s32.totalorder %s25, 0
      %p134 = por %p132, %p133
      %p135 = scmp.ne.s32.totalorder %s127, %s129
      %p136 = scmp.eq.s32.totalorder %s30, 1
      %p137 = por %p135, %p136
      %p138 = scmp.ne.s32.totalorder %s129, %s130
      %p139 = scmp.eq.s32.totalorder %s30, 0
      %p140 = por %p138, %p139
      %p141 = scmp.ne.s32.totalorder %s129, %s130
      %p142 = scmp.eq.s32.totalorder %s31, 1
      %p143 = por %p141, %p142
      %p145 = scmp.ne.s32.totalorder %s130, %s144
      %p146 = scmp.eq.s32.totalorder %s31, 0
      %p147 = por %p145, %p146
      %s149 = sadd.s32 %s148, 1
      %p152 = scmp.eq.s32.totalorder %s25, 1
      %p153 = scmp.ne.s32.totalorder %s148, %s150
      %p154 = scmp.eq.s32.totalorder %s25, 0
      %p155 = por %p153, %p154
      %p156 = scmp.ne.s32.totalorder %s148, %s150
      %p157 = scmp.eq.s32.totalorder %s30, 1
      %p158 = por %p156, %p157
      %p159 = scmp.ne.s32.totalorder %s150, %s151
      %p160 = scmp.eq.s32.totalorder %s30, 0
      %p161 = por %p159, %p160
      %p162 = scmp.ne.s32.totalorder %s150, %s151
      %p163 = scmp.eq.s32.totalorder %s31, 1
      %p164 = por %p162, %p163
      %p166 = scmp.ne.s32.totalorder %s151, %s165
      %p167 = scmp.eq.s32.totalorder %s31, 0
      %p168 = por %p166, %p167
      %s170 = sadd.s32 %s169, 1
      %p173 = scmp.eq.s32.totalorder %s25, 1
      %p174 = scmp.ne.s32.totalorder %s169, %s171
      %p175 = scmp.eq.s32.totalorder %s25, 0
      %p176 = por %p174, %p175
      %p177 = scmp.ne.s32.totalorder %s169, %s171
      %p178 = scmp.eq.s32.totalorder %s30, 1
      %p179 = por %p177, %p178
      %p180 = scmp.ne.s32.totalorder %s171, %s172
      %p181 = scmp.eq.s32.totalorder %s30, 0
      %p182 = por %p180, %p181
      %p183 = scmp.ne.s32.totalorder %s171, %s172
      %p184 = scmp.eq.s32.totalorder %s31, 1
      %p185 = por %p183, %p184
      %p187 = scmp.ne.s32.totalorder %s172, %s186
      %p188 = scmp.eq.s32.totalorder %s31, 0
      %p189 = por %p187, %p188
      %s191 = sadd.s32 %s190, 1
      %p194 = scmp.eq.s32.totalorder %s25, 1
      %p195 = scmp.ne.s32.totalorder %s190, %s192
      %p196 = scmp.eq.s32.totalorder %s25, 0
      %p197 = por %p195, %p196
      %p198 = scmp.ne.s32.totalorder %s190, %s192
      %p199 = scmp.eq.s32.totalorder %s30, 1
      %p200 = por %p198, %p199
      %p201 = scmp.ne.s32.totalorder %s192, %s193
      %p202 = scmp.eq.s32.totalorder %s30, 0
      %p203 = por %p201, %p202
      %p204 = scmp.ne.s32.totalorder %s192, %s193
      %p205 = scmp.eq.s32.totalorder %s31, 1
      %p206 = por %p204, %p205
      %p208 = scmp.ne.s32.totalorder %s193, %s207
      %p209 = scmp.eq.s32.totalorder %s31, 0
      %p210 = por %p208, %p209
      %s212 = sadd.s32 %s211, 1
      %p215 = scmp.eq.s32.totalorder %s25, 1
      %p216 = scmp.ne.s32.totalorder %s211, %s213
      %p217 = scmp.eq.s32.totalorder %s25, 0
      %p218 = por %p216, %p217
      %p219 = scmp.ne.s32.totalorder %s211, %s213
      %p220 = scmp.eq.s32.totalorder %s30, 1
      %p221 = por %p219, %p220
      %p222 = scmp.ne.s32.totalorder %s213, %s214
      %p223 = scmp.eq.s32.totalorder %s30, 0
      %p224 = por %p222, %p223
      %p225 = scmp.ne.s32.totalorder %s213, %s214
      %p226 = scmp.eq.s32.totalorder %s31, 1
      %p227 = por %p225, %p226
      %p229 = scmp.ne.s32.totalorder %s214, %s228
      %p230 = scmp.eq.s32.totalorder %s31, 0
      %p231 = por %p229, %p230
      %s233 = sadd.s32 %s232, 1
      %p236 = scmp.eq.s32.totalorder %s25, 1
      %p237 = scmp.ne.s32.totalorder %s232, %s234
      %p238 = scmp.eq.s32.totalorder %s25, 0
      %p239 = por %p237, %p238
      %p240 = scmp.ne.s32.totalorder %s232, %s234
      %p241 = scmp.eq.s32.totalorder %s30, 1
      %p242 = por %p240, %p241
      %p243 = scmp.ne.s32.totalorder %s234, %s235
      %p244 = scmp.eq.s32.totalorder %s30, 0
      %p245 = por %p243, %p244
      %p246 = scmp.ne.s32.totalorder %s234, %s235
      %p247 = scmp.eq.s32.totalorder %s31, 1
      %p248 = por %p246, %p247
      %p250 = scmp.ne.s32.totalorder %s235, %s249
      %p251 = scmp.eq.s32.totalorder %s31, 0
      %p252 = por %p250, %p251
      %s254 = sadd.s32 %s253, 1
      %p257 = scmp.eq.s32.totalorder %s25, 1
      %p258 = scmp.ne.s32.totalorder %s253, %s255
      %p259 = scmp.eq.s32.totalorder %s25, 0
      %p260 = por %p258, %p259
      %p261 = scmp.ne.s32.totalorder %s253, %s255
      %p262 = scmp.eq.s32.totalorder %s30, 1
      %p263 = por %p261, %p262
      %p264 = scmp.ne.s32.totalorder %s255, %s256
      %p265 = scmp.eq.s32.totalorder %s30, 0
      %p266 = por %p264, %p265
      %p267 = scmp.ne.s32.totalorder %s255, %s256
      %p268 = scmp.eq.s32.totalorder %s31, 1
      %p269 = por %p267, %p268
      %p271 = scmp.ne.s32.totalorder %s256, %s270
      %p272 = scmp.eq.s32.totalorder %s31, 0
      %p273 = por %p271, %p272
      %s275 = sadd.s32 %s274, 1
      %p278 = scmp.eq.s32.totalorder %s25, 1
      %p279 = scmp.ne.s32.totalorder %s274, %s276
      %p280 = scmp.eq.s32.totalorder %s25, 0
      %p281 = por %p279, %p280
      %p282 = scmp.ne.s32.totalorder %s274, %s276
      %p283 = scmp.eq.s32.totalorder %s30, 1
      %p284 = por %p282, %p283
      %p285 = scmp.ne.s32.totalorder %s276, %s277
      %p286 = scmp.eq.s32.totalorder %s30, 0
      %p287 = por %p285, %p286
      %p288 = scmp.ne.s32.totalorder %s276, %s277
      %p289 = scmp.eq.s32.totalorder %s31, 1
      %p290 = por %p288, %p289
      %p292 = scmp.ne.s32.totalorder %s277, %s291
      %p293 = scmp.eq.s32.totalorder %s31, 0
      %p294 = por %p292, %p293
      %s296 = sadd.s32 %s295, 1
      %p299 = scmp.eq.s32.totalorder %s25, 1
      %p300 = scmp.ne.s32.totalorder %s295, %s297
      %p301 = scmp.eq.s32.totalorder %s25, 0
      %p302 = por %p300, %p301
      %p303 = scmp.ne.s32.totalorder %s295, %s297
      %p304 = scmp.eq.s32.totalorder %s30, 1
      %p305 = por %p303, %p304
      %p306 = scmp.ne.s32.totalorder %s297, %s298
      %p307 = scmp.eq.s32.totalorder %s30, 0
      %p308 = por %p306, %p307
      %p309 = scmp.ne.s32.totalorder %s297, %s298
      %p310 = scmp.eq.s32.totalorder %s31, 1
      %p311 = por %p309, %p310
      %p313 = scmp.ne.s32.totalorder %s298, %s312
      %p314 = scmp.eq.s32.totalorder %s31, 0
      %p315 = por %p313, %p314
      %p316 = scmp.le.s32.totalorder 1, %s25
      %p317 = scmp.lt.s32.totalorder %s25, 3
      %p318 = pnand %p316, %p317
      %p319 = pneg %p318
      // Predicated region
      $region9: #{depth_estimation_gaussian_forward.1} parent=5 // pred_check
        _
      $region10: #{depth_estimation_gaussian_forward.1} parent=5 // pred_check_branch
        %321 = sbr.rel (%p318) target = $region12
      $region11: #{depth_estimation_gaussian_forward.1} parent=5 // pred_region
        %s322 = ssub.s32 %s25, 1
        // Predicated region
        $region13: #{depth_estimation_gaussian_forward.1} parent=11 // pred_check
          %p323 = pneg %p72
        $region14: #{depth_estimation_gaussian_forward.1} parent=11 // pred_check_branch
          %325 = sbr.rel (%p323) target = $region16
        $region15: #{depth_estimation_gaussian_forward.1} parent=11 // pred_region
          %s327 = ssub.s32 256, 256
          %328 = vsyncadd [#allocation4], %s327
          %s330 = sshll.u32 [#allocation3], 4
          %s331 = int_to_ptr.vmem [resolvable:$true] %s330
          %333 = dma.hbm_to_vmem [thread:$0]  %s1, 256, %s331, [#allocation4]
        $region16: #{depth_estimation_gaussian_forward.1} parent=11 // pred_fallthru
          _
        // Predicated region
        $region17: #{depth_estimation_gaussian_forward.1} parent=11 // pred_check
          %p334 = pneg %p119
        $region18: #{depth_estimation_gaussian_forward.1} parent=11 // pred_check_branch
          %336 = sbr.rel (%p334) target = $region20
        $region19: #{depth_estimation_gaussian_forward.1} parent=11 // pred_region
          %s338 = ssub.s32 49152, 49152
          %339 = vsyncadd [#allocation6], %s338
          %s340 = sshll.u32 [#allocation7], 4
          %s341 = int_to_ptr.vmem [resolvable:$true] %s340
          %346 = dma.hbm_to_vmem [thread:$0]  %s3, 49152, %s341, [#allocation6], 384, 384, 24
        $region20: #{depth_estimation_gaussian_forward.1} parent=11 // pred_fallthru
          _
        // Predicated region
        $region21: #{depth_estimation_gaussian_forward.1} parent=11 // pred_check
          %p347 = pneg %p140
        $region22: #{depth_estimation_gaussian_forward.1} parent=11 // pred_check_branch
          %349 = sbr.rel (%p347) target = $region24
        $region23: #{depth_estimation_gaussian_forward.1} parent=11 // pred_region
          %s351 = ssub.s32 96, 96
          %352 = vsyncadd [#allocation9], %s351
          %s354 = sshll.u32 [#allocation8], 4
          %s355 = int_to_ptr.vmem [resolvable:$true] %s354
          %357 = dma.hbm_to_vmem [thread:$0]  %s4, 96, %s355, [#allocation9]
        $region24: #{depth_estimation_gaussian_forward.1} parent=11 // pred_fallthru
          _
        // Predicated region
        $region25: #{depth_estimation_gaussian_forward.1} parent=11 // pred_check
          %p358 = pneg %p161
        $region26: #{depth_estimation_gaussian_forward.1} parent=11 // pred_check_branch
          %360 = sbr.rel (%p358) target = $region28
        $region27: #{depth_estimation_gaussian_forward.1} parent=11 // pred_region
          %s362 = ssub.s32 24576, 24576
          %363 = vsyncadd [#allocation9], %s362
          %s364 = sshll.u32 [#allocation10], 4
          %s365 = int_to_ptr.vmem [resolvable:$true] %s364
          %370 = dma.hbm_to_vmem [thread:$0]  %s5, 24576, %s365, [#allocation9], 256, 256, 16
        $region28: #{depth_estimation_gaussian_forward.1} parent=11 // pred_fallthru
          _
        // Predicated region
        $region29: #{depth_estimation_gaussian_forward.1} parent=11 // pred_check
          %p371 = pneg %p182
        $region30: #{depth_estimation_gaussian_forward.1} parent=11 // pred_check_branch
          %373 = sbr.rel (%p371) target = $region32
        $region31: #{depth_estimation_gaussian_forward.1} parent=11 // pred_region
          %s375 = ssub.s32 32768, 32768
          %376 = vsyncadd [#allocation12], %s375
          %s377 = sshll.u32 [#allocation11], 4
          %s378 = int_to_ptr.vmem [resolvable:$true] %s377
          %383 = dma.hbm_to_vmem [thread:$0]  %s6, 32768, %s378, [#allocation12], 256, 256, 16
        $region32: #{depth_estimation_gaussian_forward.1} parent=11 // pred_fallthru
          _
        // Predicated region
        $region33: #{depth_estimation_gaussian_forward.1} parent=11 // pred_check
          %p384 = pneg %p203
        $region34: #{depth_estimation_gaussian_forward.1} parent=11 // pred_check_branch
          %386 = sbr.rel (%p384) target = $region36
        $region35: #{depth_estimation_gaussian_forward.1} parent=11 // pred_region
          %s388 = ssub.s32 64, 64
          %389 = vsyncadd [#allocation12], %s388
          %s391 = sshll.u32 [#allocation13], 4
          %s392 = int_to_ptr.vmem [resolvable:$true] %s391
          %394 = dma.hbm_to_vmem [thread:$0]  %s7, 64, %s392, [#allocation12]
        $region36: #{depth_estimation_gaussian_forward.1} parent=11 // pred_fallthru
          _
        // Predicated region
        $region37: #{depth_estimation_gaussian_forward.1} parent=11 // pred_check
          %p395 = pneg %p224
        $region38: #{depth_estimation_gaussian_forward.1} parent=11 // pred_check_branch
          %397 = sbr.rel (%p395) target = $region40
        $region39: #{depth_estimation_gaussian_forward.1} parent=11 // pred_region
          %s399 = ssub.s32 8192, 8192
          %400 = vsyncadd [#allocation15], %s399
          %s401 = sshll.u32 [#allocation14], 4
          %s402 = int_to_ptr.vmem [resolvable:$true] %s401
          %407 = dma.hbm_to_vmem [thread:$0]  %s8, 8192, %s402, [#allocation15], 128, 128, 8
        $region40: #{depth_estimation_gaussian_forward.1} parent=11 // pred_fallthru
          _
        // Predicated region
        $region41: #{depth_estimation_gaussian_forward.1} parent=11 // pred_check
          %p408 = pneg %p245
        $region42: #{depth_estimation_gaussian_forward.1} parent=11 // pred_check_branch
          %410 = sbr.rel (%p408) target = $region44
        $region43: #{depth_estimation_gaussian_forward.1} parent=11 // pred_region
          %s412 = ssub.s32 32, 32
          %413 = vsyncadd [#allocation15], %s412
          %s415 = sshll.u32 [#allocation16], 4
          %s416 = int_to_ptr.vmem [resolvable:$true] %s415
          %418 = dma.hbm_to_vmem [thread:$0]  %s9, 32, %s416, [#allocation15]
        $region44: #{depth_estimation_gaussian_forward.1} parent=11 // pred_fallthru
          _
        // Predicated region
        $region45: #{depth_estimation_gaussian_forward.1} parent=11 // pred_check
          %p419 = pneg %p266
        $region46: #{depth_estimation_gaussian_forward.1} parent=11 // pred_check_branch
          %421 = sbr.rel (%p419) target = $region48
        $region47: #{depth_estimation_gaussian_forward.1} parent=11 // pred_region
          _
        $region48: #{depth_estimation_gaussian_forward.1} parent=11 // pred_fallthru
          _
        // Predicated region
        $region49: #{depth_estimation_gaussian_forward.1} parent=11 // pred_check
          %p422 = pneg %p287
        $region50: #{depth_estimation_gaussian_forward.1} parent=11 // pred_check_branch
          %424 = sbr.rel (%p422) target = $region52
        $region51: #{depth_estimation_gaussian_forward.1} parent=11 // pred_region
          _
        $region52: #{depth_estimation_gaussian_forward.1} parent=11 // pred_fallthru
          _
      $region12: #{depth_estimation_gaussian_forward.1} parent=5 // pred_fallthru
        _
      %p425 = scmp.lt.s32.totalorder %s25, 2
      // Predicated region
      $region53: #{depth_estimation_gaussian_forward.1} parent=5 // pred_check
        %p426 = pneg %p425
      $region54: #{depth_estimation_gaussian_forward.1} parent=5 // pred_check_branch
        %428 = sbr.rel (%p426) target = $region56
      $region55: #{depth_estimation_gaussian_forward.1} parent=5 // pred_region
        // Predicated region
        $region57: #{depth_estimation_gaussian_forward.1} parent=55 // pred_check
          %p429 = pneg %p45
        $region58: #{depth_estimation_gaussian_forward.1} parent=55 // pred_check_branch
          %431 = sbr.rel (%p429) target = $region60
        $region59: #{depth_estimation_gaussian_forward.1} parent=55 // pred_region
          %s432 = smul.u32 4, %s25
          %p433 = scmp.lt.s32.totalorder %s432, 7
          %s434 = scalar_select %p433, %s432, 7
          %s435 = smul.addr %s434, 2
          %s436 = scalar_lea.vmem %s0, %s435
          %s437 = smul.u32 4, %s25
        $region60: #{depth_estimation_gaussian_forward.1} parent=55 // pred_fallthru
          _
        // Predicated region
        $region61: #{depth_estimation_gaussian_forward.1} parent=55 // pred_check
          %p438 = pneg %p92
        $region62: #{depth_estimation_gaussian_forward.1} parent=55 // pred_check_branch
          %440 = sbr.rel (%p438) target = $region64
        $region63: #{depth_estimation_gaussian_forward.1} parent=55 // pred_region
          %s441 = sand.u32 %s25, 1
          %s442 = scalar_lea.sflag [#allocation6], %s441
          %s443 = sand.u32 %s82, 1
          %s444 = smul.addr %s443, 1536
          %s445 = scalar_lea.vmem [#allocation5], %s444
          %s446 = smul.u32 64, %s25
          %s448 = ssub.s32 24576, 24576
          %449 = vsyncadd %s442, %s448
          %s450 = smul.addr %s446, 6
          %s451 = smul.addr %s450, 64
          %s452 = scalar_lea.hbm %s2, %s451
          %s453 = sshll.u32 %s445, 4
          %s454 = int_to_ptr.vmem [resolvable:$true] %s453
          %459 = dma.hbm_to_vmem [thread:$0]  %s452, 24576, %s454, %s442, 384, 384, 24
        $region64: #{depth_estimation_gaussian_forward.1} parent=55 // pred_fallthru
          _
      $region56: #{depth_estimation_gaussian_forward.1} parent=5 // pred_fallthru
        _
      %p460 = scmp.le.s32.totalorder 1, %s25
      %p461 = scmp.lt.s32.totalorder %s25, 3
      %p462 = pnand %p460, %p461
      %p463 = pneg %p462
      // Predicated region
      $region65: #{depth_estimation_gaussian_forward.1} parent=5 // pred_check
        _
      $region66: #{depth_estimation_gaussian_forward.1} parent=5 // pred_check_branch
        %465 = sbr.rel (%p462) target = $region68
      $region67: #{depth_estimation_gaussian_forward.1} parent=5 // pred_region
        %s466 = ssub.s32 %s25, 1
        // Predicated region
        $region69: #{depth_estimation_gaussian_forward.1} parent=67 // pred_check
          %p467 = pneg %p72
        $region70: #{depth_estimation_gaussian_forward.1} parent=67 // pred_check_branch
          %469 = sbr.rel (%p467) target = $region72
        $region71: #{depth_estimation_gaussian_forward.1} parent=67 // pred_region
          %470 = dma.done [#allocation4], 256
        $region72: #{depth_estimation_gaussian_forward.1} parent=67 // pred_fallthru
          _
        %s471 = sand.u32 %s30, 1
        %s472 = scalar_lea.sflag [#allocation6], %s471
        %s473 = sand.u32 %s85, 1
        %s474 = smul.addr %s473, 1536
        %s475 = scalar_lea.vmem [#allocation5], %s474
        // Predicated region
        $region73: #{depth_estimation_gaussian_forward.1} parent=67 // pred_check
          %p476 = pneg %p98
        $region74: #{depth_estimation_gaussian_forward.1} parent=67 // pred_check_branch
          %478 = sbr.rel (%p476) target = $region76
        $region75: #{depth_estimation_gaussian_forward.1} parent=67 // pred_region
          %479 = dma.done %s472, 24576
        $region76: #{depth_estimation_gaussian_forward.1} parent=67 // pred_fallthru
          _
        // Predicated region
        $region77: #{depth_estimation_gaussian_forward.1} parent=67 // pred_check
          %p480 = pneg %p119
        $region78: #{depth_estimation_gaussian_forward.1} parent=67 // pred_check_branch
          %482 = sbr.rel (%p480) target = $region80
        $region79: #{depth_estimation_gaussian_forward.1} parent=67 // pred_region
          %483 = dma.done [#allocation6], 49152
        $region80: #{depth_estimation_gaussian_forward.1} parent=67 // pred_fallthru
          _
        // Predicated region
        $region81: #{depth_estimation_gaussian_forward.1} parent=67 // pred_check
          %p484 = pneg %p140
        $region82: #{depth_estimation_gaussian_forward.1} parent=67 // pred_check_branch
          %486 = sbr.rel (%p484) target = $region84
        $region83: #{depth_estimation_gaussian_forward.1} parent=67 // pred_region
          %487 = dma.done [#allocation9], 96
        $region84: #{depth_estimation_gaussian_forward.1} parent=67 // pred_fallthru
          _
        // Predicated region
        $region85: #{depth_estimation_gaussian_forward.1} parent=67 // pred_check
          %p488 = pneg %p161
        $region86: #{depth_estimation_gaussian_forward.1} parent=67 // pred_check_branch
          %490 = sbr.rel (%p488) target = $region88
        $region87: #{depth_estimation_gaussian_forward.1} parent=67 // pred_region
          %491 = dma.done [#allocation9], 24576
        $region88: #{depth_estimation_gaussian_forward.1} parent=67 // pred_fallthru
          _
        // Predicated region
        $region89: #{depth_estimation_gaussian_forward.1} parent=67 // pred_check
          %p492 = pneg %p182
        $region90: #{depth_estimation_gaussian_forward.1} parent=67 // pred_check_branch
          %494 = sbr.rel (%p492) target = $region92
        $region91: #{depth_estimation_gaussian_forward.1} parent=67 // pred_region
          %495 = dma.done [#allocation12], 32768
        $region92: #{depth_estimation_gaussian_forward.1} parent=67 // pred_fallthru
          _
        // Predicated region
        $region93: #{depth_estimation_gaussian_forward.1} parent=67 // pred_check
          %p496 = pneg %p203
        $region94: #{depth_estimation_gaussian_forward.1} parent=67 // pred_check_branch
          %498 = sbr.rel (%p496) target = $region96
        $region95: #{depth_estimation_gaussian_forward.1} parent=67 // pred_region
          %499 = dma.done [#allocation12], 64
        $region96: #{depth_estimation_gaussian_forward.1} parent=67 // pred_fallthru
          _
        // Predicated region
        $region97: #{depth_estimation_gaussian_forward.1} parent=67 // pred_check
          %p500 = pneg %p224
        $region98: #{depth_estimation_gaussian_forward.1} parent=67 // pred_check_branch
          %502 = sbr.rel (%p500) target = $region100
        $region99: #{depth_estimation_gaussian_forward.1} parent=67 // pred_region
          %503 = dma.done [#allocation15], 8192
        $region100: #{depth_estimation_gaussian_forward.1} parent=67 // pred_fallthru
          _
        // Predicated region
        $region101: #{depth_estimation_gaussian_forward.1} parent=67 // pred_check
          %p504 = pneg %p245
        $region102: #{depth_estimation_gaussian_forward.1} parent=67 // pred_check_branch
          %506 = sbr.rel (%p504) target = $region104
        $region103: #{depth_estimation_gaussian_forward.1} parent=67 // pred_region
          %507 = dma.done [#allocation15], 32
        $region104: #{depth_estimation_gaussian_forward.1} parent=67 // pred_fallthru
          _
        %s508 = smul.u32 4, %s30
        %p509 = scmp.lt.s32.totalorder %s508, 7
        %s510 = scalar_select %p509, %s508, 7
        %s511 = smul.addr %s510, 2
        %s512 = scalar_lea.vmem %s0, %s511
        %p513 = pneg %p51
        %p514 = pneg %p48
        %p515 = pneg %p72
        %p516 = pneg %p69
        %s517 = sand.u32 %s30, 1
        %s518 = scalar_lea.sflag [#allocation6], %s517
        %s519 = sand.u32 %s85, 1
        %s520 = smul.addr %s519, 1536
        %s521 = scalar_lea.vmem [#allocation5], %s520
        %p522 = pneg %p98
        %p523 = pneg %p95
        %p524 = pneg %p119
        %p525 = pneg %p116
        %p526 = pneg %p140
        %p527 = pneg %p137
        %p528 = pneg %p161
        %p529 = pneg %p158
        %p530 = pneg %p182
        %p531 = pneg %p179
        %p532 = pneg %p203
        %p533 = pneg %p200
        %p534 = pneg %p224
        %p535 = pneg %p221
        %p536 = pneg %p245
        %p537 = pneg %p242
        %p538 = pneg %p266
        %p539 = pneg %p263
        %p540 = pneg %p287
        %p541 = pneg %p284
        %p542 = pneg %p308
        %p543 = pneg %p305
        %s544 = smul.u32 4, %s30
        %p545 = scmp.lt.s32.totalorder %s544, 7
        %s546 = scalar_select %p545, %s544, 7
        %s547 = smul.addr %s546, 2
        %s548 = scalar_lea.vmem %s0, %s547
        %s549 = smul.u32 4, %s30
        %s550 = smul.u32 64, %s30
        %p552 = scmp.eq.s32.totalorder %s30, 0
        // Predicated region
        $region105: #{depth_estimation_gaussian_forward.1} parent=67 // pred_check
          %p553 = pneg %p552
        $region106: #{depth_estimation_gaussian_forward.1} parent=67 // pred_check_branch
          %555 = sbr.rel (%p553) target = $region108
        $region107: #{depth_estimation_gaussian_forward.1} parent=67 // pred_region
          %v556 = vld [vmem:[#allocation3] sm:$0xff]
          %v557 = vld [vmem:[#allocation3 + $0x8] sm:$0xff]
          %v560 = vcombine.high %v556, %v556
          %v562 = vunpack.c.l.s4 1983009808
          %v563 = vunpack.c.0.s8 %v562
          %v564 = vlaneseq
          %v565 = vshrl.u32 %v564, 7
          %v566 = vsub.s32 %v563, %v565
          %v567 = vrot.slane %v556, %v566
          %v569 = vunpack.c.l.s4 1983009808
          %v570 = vunpack.c.0.s8 %v569
          %v571 = vlaneseq
          %v572 = vshrl.u32 %v571, 7
          %v573 = vsub.s32 %v570, %v572
          %v574 = vrot.slane %v560, %v573
          %v575 = vcombine.high %v567, %v567
          %v576 = vcombine.high %v574, %v574
          %v577 = vcombine.high %v557, %v557
          %v579 = vunpack.c.l.s4 1983009808
          %v580 = vunpack.c.0.s8 %v579
          %v581 = vlaneseq
          %v582 = vshrl.u32 %v581, 7
          %v583 = vsub.s32 %v580, %v582
          %v584 = vrot.slane %v557, %v583
          %v586 = vunpack.c.l.s4 1983009808
          %v587 = vunpack.c.0.s8 %v586
          %v588 = vlaneseq
          %v589 = vshrl.u32 %v588, 7
          %v590 = vsub.s32 %v587, %v589
          %v591 = vrot.slane %v577, %v590
          %v592 = vcombine.high %v584, %v584
          %v593 = vcombine.high %v591, %v591
          %v602 = vpack.c.bf16 %v567, %v567
          %v603 = vpack.c.bf16 %v575, %v575
          %v604 = vpack.c.bf16 %v574, %v574
          %v605 = vpack.c.bf16 %v576, %v576
          %v606 = vpack.c.bf16 %v584, %v584
          %v607 = vpack.c.bf16 %v592, %v592
          %v608 = vpack.c.bf16 %v591, %v591
          %v609 = vpack.c.bf16 %v593, %v593
          %v610 = vld [vmem:[#allocation7] sm:$0xff]
          %v611 = vld [vmem:[#allocation7 + $0x8] sm:$0xff]
          %v612 = vld [vmem:[#allocation7 + $0x10] sm:$0xff]
          %v613 = vld [vmem:[#allocation7 + $0x18] sm:$0xff]
          %v614 = vld [vmem:[#allocation7 + $0x20] sm:$0xff]
          %v615 = vld [vmem:[#allocation7 + $0x28] sm:$0xff]
          %v616 = vld [vmem:[#allocation7 + $0x30] sm:$0xff]
          %v617 = vld [vmem:[#allocation7 + $0x38] sm:$0xff]
          %v618 = vld [vmem:[#allocation7 + $0x40] sm:$0xff]
          %v619 = vld [vmem:[#allocation7 + $0x48] sm:$0xff]
          %v620 = vld [vmem:[#allocation7 + $0x50] sm:$0xff]
          %v621 = vld [vmem:[#allocation7 + $0x58] sm:$0xff]
          %v622 = vld [vmem:[#allocation7 + $0x60] sm:$0xff]
          %v623 = vld [vmem:[#allocation7 + $0x68] sm:$0xff]
          %v624 = vld [vmem:[#allocation7 + $0x70] sm:$0xff]
          %v625 = vld [vmem:[#allocation7 + $0x78] sm:$0xff]
          %v626 = vld [vmem:[#allocation7 + $0x80] sm:$0xff]
          %v627 = vld [vmem:[#allocation7 + $0x88] sm:$0xff]
          %v628 = vld [vmem:[#allocation7 + $0x90] sm:$0xff]
          %v629 = vld [vmem:[#allocation7 + $0x98] sm:$0xff]
          %v630 = vld [vmem:[#allocation7 + $0xa0] sm:$0xff]
          %v631 = vld [vmem:[#allocation7 + $0xa8] sm:$0xff]
          %v632 = vld [vmem:[#allocation7 + $0xb0] sm:$0xff]
          %v633 = vld [vmem:[#allocation7 + $0xb8] sm:$0xff]
          %v634 = vld [vmem:[#allocation7 + $0xc0] sm:$0xff]
          %v635 = vld [vmem:[#allocation7 + $0xc8] sm:$0xff]
          %v636 = vld [vmem:[#allocation7 + $0xd0] sm:$0xff]
          %v637 = vld [vmem:[#allocation7 + $0xd8] sm:$0xff]
          %v638 = vld [vmem:[#allocation7 + $0xe0] sm:$0xff]
          %v639 = vld [vmem:[#allocation7 + $0xe8] sm:$0xff]
          %v640 = vld [vmem:[#allocation7 + $0xf0] sm:$0xff]
          %v641 = vld [vmem:[#allocation7 + $0xf8] sm:$0xff]
          %v642 = vld [vmem:[#allocation7 + $0x100] sm:$0xff]
          %v643 = vld [vmem:[#allocation7 + $0x108] sm:$0xff]
          %v644 = vld [vmem:[#allocation7 + $0x110] sm:$0xff]
          %v645 = vld [vmem:[#allocation7 + $0x118] sm:$0xff]
          %v646 = vld [vmem:[#allocation7 + $0x120] sm:$0xff]
          %v647 = vld [vmem:[#allocation7 + $0x128] sm:$0xff]
          %v648 = vld [vmem:[#allocation7 + $0x130] sm:$0xff]
          %v649 = vld [vmem:[#allocation7 + $0x138] sm:$0xff]
          %v650 = vld [vmem:[#allocation7 + $0x140] sm:$0xff]
          %v651 = vld [vmem:[#allocation7 + $0x148] sm:$0xff]
          %v652 = vld [vmem:[#allocation7 + $0x150] sm:$0xff]
          %v653 = vld [vmem:[#allocation7 + $0x158] sm:$0xff]
          %v654 = vld [vmem:[#allocation7 + $0x160] sm:$0xff]
          %v655 = vld [vmem:[#allocation7 + $0x168] sm:$0xff]
          %v656 = vld [vmem:[#allocation7 + $0x170] sm:$0xff]
          %v657 = vld [vmem:[#allocation7 + $0x178] sm:$0xff]
          %v658 = vld [vmem:[#allocation7 + $0x180] sm:$0xff]
          %v659 = vld [vmem:[#allocation7 + $0x188] sm:$0xff]
          %v660 = vld [vmem:[#allocation7 + $0x190] sm:$0xff]
          %v661 = vld [vmem:[#allocation7 + $0x198] sm:$0xff]
          %v662 = vld [vmem:[#allocation7 + $0x1a0] sm:$0xff]
          %v663 = vld [vmem:[#allocation7 + $0x1a8] sm:$0xff]
          %v664 = vld [vmem:[#allocation7 + $0x1b0] sm:$0xff]
          %v665 = vld [vmem:[#allocation7 + $0x1b8] sm:$0xff]
          %v666 = vld [vmem:[#allocation7 + $0x1c0] sm:$0xff]
          %v667 = vld [vmem:[#allocation7 + $0x1c8] sm:$0xff]
          %v668 = vld [vmem:[#allocation7 + $0x1d0] sm:$0xff]
          %v669 = vld [vmem:[#allocation7 + $0x1d8] sm:$0xff]
          %v670 = vld [vmem:[#allocation7 + $0x1e0] sm:$0xff]
          %v671 = vld [vmem:[#allocation7 + $0x1e8] sm:$0xff]
          %v672 = vld [vmem:[#allocation7 + $0x1f0] sm:$0xff]
          %v673 = vld [vmem:[#allocation7 + $0x1f8] sm:$0xff]
          %v674 = vld [vmem:[#allocation7 + $0x200] sm:$0xff]
          %v675 = vld [vmem:[#allocation7 + $0x208] sm:$0xff]
          %v676 = vld [vmem:[#allocation7 + $0x210] sm:$0xff]
          %v677 = vld [vmem:[#allocation7 + $0x218] sm:$0xff]
          %v678 = vld [vmem:[#allocation7 + $0x220] sm:$0xff]
          %v679 = vld [vmem:[#allocation7 + $0x228] sm:$0xff]
          %v680 = vld [vmem:[#allocation7 + $0x230] sm:$0xff]
          %v681 = vld [vmem:[#allocation7 + $0x238] sm:$0xff]
          %v682 = vld [vmem:[#allocation7 + $0x240] sm:$0xff]
          %v683 = vld [vmem:[#allocation7 + $0x248] sm:$0xff]
          %v684 = vld [vmem:[#allocation7 + $0x250] sm:$0xff]
          %v685 = vld [vmem:[#allocation7 + $0x258] sm:$0xff]
          %v686 = vld [vmem:[#allocation7 + $0x260] sm:$0xff]
          %v687 = vld [vmem:[#allocation7 + $0x268] sm:$0xff]
          %v688 = vld [vmem:[#allocation7 + $0x270] sm:$0xff]
          %v689 = vld [vmem:[#allocation7 + $0x278] sm:$0xff]
          %v690 = vld [vmem:[#allocation7 + $0x280] sm:$0xff]
          %v691 = vld [vmem:[#allocation7 + $0x288] sm:$0xff]
          %v692 = vld [vmem:[#allocation7 + $0x290] sm:$0xff]
          %v693 = vld [vmem:[#allocation7 + $0x298] sm:$0xff]
          %v694 = vld [vmem:[#allocation7 + $0x2a0] sm:$0xff]
          %v695 = vld [vmem:[#allocation7 + $0x2a8] sm:$0xff]
          %v696 = vld [vmem:[#allocation7 + $0x2b0] sm:$0xff]
          %v697 = vld [vmem:[#allocation7 + $0x2b8] sm:$0xff]
          %v698 = vld [vmem:[#allocation7 + $0x2c0] sm:$0xff]
          %v699 = vld [vmem:[#allocation7 + $0x2c8] sm:$0xff]
          %v700 = vld [vmem:[#allocation7 + $0x2d0] sm:$0xff]
          %v701 = vld [vmem:[#allocation7 + $0x2d8] sm:$0xff]
          %v702 = vld [vmem:[#allocation7 + $0x2e0] sm:$0xff]
          %v703 = vld [vmem:[#allocation7 + $0x2e8] sm:$0xff]
          %v704 = vld [vmem:[#allocation7 + $0x2f0] sm:$0xff]
          %v705 = vld [vmem:[#allocation7 + $0x2f8] sm:$0xff]
          %v706 = vld [vmem:[#allocation7 + $0x300] sm:$0xff]
          %v707 = vld [vmem:[#allocation7 + $0x308] sm:$0xff]
          %v708 = vld [vmem:[#allocation7 + $0x310] sm:$0xff]
          %v709 = vld [vmem:[#allocation7 + $0x318] sm:$0xff]
          %v710 = vld [vmem:[#allocation7 + $0x320] sm:$0xff]
          %v711 = vld [vmem:[#allocation7 + $0x328] sm:$0xff]
          %v712 = vld [vmem:[#allocation7 + $0x330] sm:$0xff]
          %v713 = vld [vmem:[#allocation7 + $0x338] sm:$0xff]
          %v714 = vld [vmem:[#allocation7 + $0x340] sm:$0xff]
          %v715 = vld [vmem:[#allocation7 + $0x348] sm:$0xff]
          %v716 = vld [vmem:[#allocation7 + $0x350] sm:$0xff]
          %v717 = vld [vmem:[#allocation7 + $0x358] sm:$0xff]
          %v718 = vld [vmem:[#allocation7 + $0x360] sm:$0xff]
          %v719 = vld [vmem:[#allocation7 + $0x368] sm:$0xff]
          %v720 = vld [vmem:[#allocation7 + $0x370] sm:$0xff]
          %v721 = vld [vmem:[#allocation7 + $0x378] sm:$0xff]
          %v722 = vld [vmem:[#allocation7 + $0x380] sm:$0xff]
          %v723 = vld [vmem:[#allocation7 + $0x388] sm:$0xff]
          %v724 = vld [vmem:[#allocation7 + $0x390] sm:$0xff]
          %v725 = vld [vmem:[#allocation7 + $0x398] sm:$0xff]
          %v726 = vld [vmem:[#allocation7 + $0x3a0] sm:$0xff]
          %v727 = vld [vmem:[#allocation7 + $0x3a8] sm:$0xff]
          %v728 = vld [vmem:[#allocation7 + $0x3b0] sm:$0xff]
          %v729 = vld [vmem:[#allocation7 + $0x3b8] sm:$0xff]
          %v730 = vld [vmem:[#allocation7 + $0x3c0] sm:$0xff]
          %v731 = vld [vmem:[#allocation7 + $0x3c8] sm:$0xff]
          %v732 = vld [vmem:[#allocation7 + $0x3d0] sm:$0xff]
          %v733 = vld [vmem:[#allocation7 + $0x3d8] sm:$0xff]
          %v734 = vld [vmem:[#allocation7 + $0x3e0] sm:$0xff]
          %v735 = vld [vmem:[#allocation7 + $0x3e8] sm:$0xff]
          %v736 = vld [vmem:[#allocation7 + $0x3f0] sm:$0xff]
          %v737 = vld [vmem:[#allocation7 + $0x3f8] sm:$0xff]
          %v738 = vld [vmem:[#allocation7 + $0x400] sm:$0xff]
          %v739 = vld [vmem:[#allocation7 + $0x408] sm:$0xff]
          %v740 = vld [vmem:[#allocation7 + $0x410] sm:$0xff]
          %v741 = vld [vmem:[#allocation7 + $0x418] sm:$0xff]
          %v742 = vld [vmem:[#allocation7 + $0x420] sm:$0xff]
          %v743 = vld [vmem:[#allocation7 + $0x428] sm:$0xff]
          %v744 = vld [vmem:[#allocation7 + $0x430] sm:$0xff]
          %v745 = vld [vmem:[#allocation7 + $0x438] sm:$0xff]
          %v746 = vld [vmem:[#allocation7 + $0x440] sm:$0xff]
          %v747 = vld [vmem:[#allocation7 + $0x448] sm:$0xff]
          %v748 = vld [vmem:[#allocation7 + $0x450] sm:$0xff]
          %v749 = vld [vmem:[#allocation7 + $0x458] sm:$0xff]
          %v750 = vld [vmem:[#allocation7 + $0x460] sm:$0xff]
          %v751 = vld [vmem:[#allocation7 + $0x468] sm:$0xff]
          %v752 = vld [vmem:[#allocation7 + $0x470] sm:$0xff]
          %v753 = vld [vmem:[#allocation7 + $0x478] sm:$0xff]
          %v754 = vld [vmem:[#allocation7 + $0x480] sm:$0xff]
          %v755 = vld [vmem:[#allocation7 + $0x488] sm:$0xff]
          %v756 = vld [vmem:[#allocation7 + $0x490] sm:$0xff]
          %v757 = vld [vmem:[#allocation7 + $0x498] sm:$0xff]
          %v758 = vld [vmem:[#allocation7 + $0x4a0] sm:$0xff]
          %v759 = vld [vmem:[#allocation7 + $0x4a8] sm:$0xff]
          %v760 = vld [vmem:[#allocation7 + $0x4b0] sm:$0xff]
          %v761 = vld [vmem:[#allocation7 + $0x4b8] sm:$0xff]
          %v762 = vld [vmem:[#allocation7 + $0x4c0] sm:$0xff]
          %v763 = vld [vmem:[#allocation7 + $0x4c8] sm:$0xff]
          %v764 = vld [vmem:[#allocation7 + $0x4d0] sm:$0xff]
          %v765 = vld [vmem:[#allocation7 + $0x4d8] sm:$0xff]
          %v766 = vld [vmem:[#allocation7 + $0x4e0] sm:$0xff]
          %v767 = vld [vmem:[#allocation7 + $0x4e8] sm:$0xff]
          %v768 = vld [vmem:[#allocation7 + $0x4f0] sm:$0xff]
          %v769 = vld [vmem:[#allocation7 + $0x4f8] sm:$0xff]
          %v770 = vld [vmem:[#allocation7 + $0x500] sm:$0xff]
          %v771 = vld [vmem:[#allocation7 + $0x508] sm:$0xff]
          %v772 = vld [vmem:[#allocation7 + $0x510] sm:$0xff]
          %v773 = vld [vmem:[#allocation7 + $0x518] sm:$0xff]
          %v774 = vld [vmem:[#allocation7 + $0x520] sm:$0xff]
          %v775 = vld [vmem:[#allocation7 + $0x528] sm:$0xff]
          %v776 = vld [vmem:[#allocation7 + $0x530] sm:$0xff]
          %v777 = vld [vmem:[#allocation7 + $0x538] sm:$0xff]
          %v778 = vld [vmem:[#allocation7 + $0x540] sm:$0xff]
          %v779 = vld [vmem:[#allocation7 + $0x548] sm:$0xff]
          %v780 = vld [vmem:[#allocation7 + $0x550] sm:$0xff]
          %v781 = vld [vmem:[#allocation7 + $0x558] sm:$0xff]
          %v782 = vld [vmem:[#allocation7 + $0x560] sm:$0xff]
          %v783 = vld [vmem:[#allocation7 + $0x568] sm:$0xff]
          %v784 = vld [vmem:[#allocation7 + $0x570] sm:$0xff]
          %v785 = vld [vmem:[#allocation7 + $0x578] sm:$0xff]
          %v786 = vld [vmem:[#allocation7 + $0x580] sm:$0xff]
          %v787 = vld [vmem:[#allocation7 + $0x588] sm:$0xff]
          %v788 = vld [vmem:[#allocation7 + $0x590] sm:$0xff]
          %v789 = vld [vmem:[#allocation7 + $0x598] sm:$0xff]
          %v790 = vld [vmem:[#allocation7 + $0x5a0] sm:$0xff]
          %v791 = vld [vmem:[#allocation7 + $0x5a8] sm:$0xff]
          %v792 = vld [vmem:[#allocation7 + $0x5b0] sm:$0xff]
          %v793 = vld [vmem:[#allocation7 + $0x5b8] sm:$0xff]
          %v794 = vld [vmem:[#allocation7 + $0x5c0] sm:$0xff]
          %v795 = vld [vmem:[#allocation7 + $0x5c8] sm:$0xff]
          %v796 = vld [vmem:[#allocation7 + $0x5d0] sm:$0xff]
          %v797 = vld [vmem:[#allocation7 + $0x5d8] sm:$0xff]
          %v798 = vld [vmem:[#allocation7 + $0x5e0] sm:$0xff]
          %v799 = vld [vmem:[#allocation7 + $0x5e8] sm:$0xff]
          %v800 = vld [vmem:[#allocation7 + $0x5f0] sm:$0xff]
          %v801 = vld [vmem:[#allocation7 + $0x5f8] sm:$0xff]
          %v802 = vld [vmem:[#allocation7 + $0x600] sm:$0xff]
          %v803 = vld [vmem:[#allocation7 + $0x608] sm:$0xff]
          %v804 = vld [vmem:[#allocation7 + $0x610] sm:$0xff]
          %v805 = vld [vmem:[#allocation7 + $0x618] sm:$0xff]
          %v806 = vld [vmem:[#allocation7 + $0x620] sm:$0xff]
          %v807 = vld [vmem:[#allocation7 + $0x628] sm:$0xff]
          %v808 = vld [vmem:[#allocation7 + $0x630] sm:$0xff]
          %v809 = vld [vmem:[#allocation7 + $0x638] sm:$0xff]
          %v810 = vld [vmem:[#allocation7 + $0x640] sm:$0xff]
          %v811 = vld [vmem:[#allocation7 + $0x648] sm:$0xff]
          %v812 = vld [vmem:[#allocation7 + $0x650] sm:$0xff]
          %v813 = vld [vmem:[#allocation7 + $0x658] sm:$0xff]
          %v814 = vld [vmem:[#allocation7 + $0x660] sm:$0xff]
          %v815 = vld [vmem:[#allocation7 + $0x668] sm:$0xff]
          %v816 = vld [vmem:[#allocation7 + $0x670] sm:$0xff]
          %v817 = vld [vmem:[#allocation7 + $0x678] sm:$0xff]
          %v818 = vld [vmem:[#allocation7 + $0x680] sm:$0xff]
          %v819 = vld [vmem:[#allocation7 + $0x688] sm:$0xff]
          %v820 = vld [vmem:[#allocation7 + $0x690] sm:$0xff]
          %v821 = vld [vmem:[#allocation7 + $0x698] sm:$0xff]
          %v822 = vld [vmem:[#allocation7 + $0x6a0] sm:$0xff]
          %v823 = vld [vmem:[#allocation7 + $0x6a8] sm:$0xff]
          %v824 = vld [vmem:[#allocation7 + $0x6b0] sm:$0xff]
          %v825 = vld [vmem:[#allocation7 + $0x6b8] sm:$0xff]
          %v826 = vld [vmem:[#allocation7 + $0x6c0] sm:$0xff]
          %v827 = vld [vmem:[#allocation7 + $0x6c8] sm:$0xff]
          %v828 = vld [vmem:[#allocation7 + $0x6d0] sm:$0xff]
          %v829 = vld [vmem:[#allocation7 + $0x6d8] sm:$0xff]
          %v830 = vld [vmem:[#allocation7 + $0x6e0] sm:$0xff]
          %v831 = vld [vmem:[#allocation7 + $0x6e8] sm:$0xff]
          %v832 = vld [vmem:[#allocation7 + $0x6f0] sm:$0xff]
          %v833 = vld [vmem:[#allocation7 + $0x6f8] sm:$0xff]
          %v834 = vld [vmem:[#allocation7 + $0x700] sm:$0xff]
          %v835 = vld [vmem:[#allocation7 + $0x708] sm:$0xff]
          %v836 = vld [vmem:[#allocation7 + $0x710] sm:$0xff]
          %v837 = vld [vmem:[#allocation7 + $0x718] sm:$0xff]
          %v838 = vld [vmem:[#allocation7 + $0x720] sm:$0xff]
          %v839 = vld [vmem:[#allocation7 + $0x728] sm:$0xff]
          %v840 = vld [vmem:[#allocation7 + $0x730] sm:$0xff]
          %v841 = vld [vmem:[#allocation7 + $0x738] sm:$0xff]
          %v842 = vld [vmem:[#allocation7 + $0x740] sm:$0xff]
          %v843 = vld [vmem:[#allocation7 + $0x748] sm:$0xff]
          %v844 = vld [vmem:[#allocation7 + $0x750] sm:$0xff]
          %v845 = vld [vmem:[#allocation7 + $0x758] sm:$0xff]
          %v846 = vld [vmem:[#allocation7 + $0x760] sm:$0xff]
          %v847 = vld [vmem:[#allocation7 + $0x768] sm:$0xff]
          %v848 = vld [vmem:[#allocation7 + $0x770] sm:$0xff]
          %v849 = vld [vmem:[#allocation7 + $0x778] sm:$0xff]
          %v850 = vld [vmem:[#allocation7 + $0x780] sm:$0xff]
          %v851 = vld [vmem:[#allocation7 + $0x788] sm:$0xff]
          %v852 = vld [vmem:[#allocation7 + $0x790] sm:$0xff]
          %v853 = vld [vmem:[#allocation7 + $0x798] sm:$0xff]
          %v854 = vld [vmem:[#allocation7 + $0x7a0] sm:$0xff]
          %v855 = vld [vmem:[#allocation7 + $0x7a8] sm:$0xff]
          %v856 = vld [vmem:[#allocation7 + $0x7b0] sm:$0xff]
          %v857 = vld [vmem:[#allocation7 + $0x7b8] sm:$0xff]
          %v858 = vld [vmem:[#allocation7 + $0x7c0] sm:$0xff]
          %v859 = vld [vmem:[#allocation7 + $0x7c8] sm:$0xff]
          %v860 = vld [vmem:[#allocation7 + $0x7d0] sm:$0xff]
          %v861 = vld [vmem:[#allocation7 + $0x7d8] sm:$0xff]
          %v862 = vld [vmem:[#allocation7 + $0x7e0] sm:$0xff]
          %v863 = vld [vmem:[#allocation7 + $0x7e8] sm:$0xff]
          %v864 = vld [vmem:[#allocation7 + $0x7f0] sm:$0xff]
          %v865 = vld [vmem:[#allocation7 + $0x7f8] sm:$0xff]
          %v866 = vld [vmem:[#allocation7 + $0x800] sm:$0xff]
          %v867 = vld [vmem:[#allocation7 + $0x808] sm:$0xff]
          %v868 = vld [vmem:[#allocation7 + $0x810] sm:$0xff]
          %v869 = vld [vmem:[#allocation7 + $0x818] sm:$0xff]
          %v870 = vld [vmem:[#allocation7 + $0x820] sm:$0xff]
          %v871 = vld [vmem:[#allocation7 + $0x828] sm:$0xff]
          %v872 = vld [vmem:[#allocation7 + $0x830] sm:$0xff]
          %v873 = vld [vmem:[#allocation7 + $0x838] sm:$0xff]
          %v874 = vld [vmem:[#allocation7 + $0x840] sm:$0xff]
          %v875 = vld [vmem:[#allocation7 + $0x848] sm:$0xff]
          %v876 = vld [vmem:[#allocation7 + $0x850] sm:$0xff]
          %v877 = vld [vmem:[#allocation7 + $0x858] sm:$0xff]
          %v878 = vld [vmem:[#allocation7 + $0x860] sm:$0xff]
          %v879 = vld [vmem:[#allocation7 + $0x868] sm:$0xff]
          %v880 = vld [vmem:[#allocation7 + $0x870] sm:$0xff]
          %v881 = vld [vmem:[#allocation7 + $0x878] sm:$0xff]
          %v882 = vld [vmem:[#allocation7 + $0x880] sm:$0xff]
          %v883 = vld [vmem:[#allocation7 + $0x888] sm:$0xff]
          %v884 = vld [vmem:[#allocation7 + $0x890] sm:$0xff]
          %v885 = vld [vmem:[#allocation7 + $0x898] sm:$0xff]
          %v886 = vld [vmem:[#allocation7 + $0x8a0] sm:$0xff]
          %v887 = vld [vmem:[#allocation7 + $0x8a8] sm:$0xff]
          %v888 = vld [vmem:[#allocation7 + $0x8b0] sm:$0xff]
          %v889 = vld [vmem:[#allocation7 + $0x8b8] sm:$0xff]
          %v890 = vld [vmem:[#allocation7 + $0x8c0] sm:$0xff]
          %v891 = vld [vmem:[#allocation7 + $0x8c8] sm:$0xff]
          %v892 = vld [vmem:[#allocation7 + $0x8d0] sm:$0xff]
          %v893 = vld [vmem:[#allocation7 + $0x8d8] sm:$0xff]
          %v894 = vld [vmem:[#allocation7 + $0x8e0] sm:$0xff]
          %v895 = vld [vmem:[#allocation7 + $0x8e8] sm:$0xff]
          %v896 = vld [vmem:[#allocation7 + $0x8f0] sm:$0xff]
          %v897 = vld [vmem:[#allocation7 + $0x8f8] sm:$0xff]
          %v898 = vld [vmem:[#allocation7 + $0x900] sm:$0xff]
          %v899 = vld [vmem:[#allocation7 + $0x908] sm:$0xff]
          %v900 = vld [vmem:[#allocation7 + $0x910] sm:$0xff]
          %v901 = vld [vmem:[#allocation7 + $0x918] sm:$0xff]
          %v902 = vld [vmem:[#allocation7 + $0x920] sm:$0xff]
          %v903 = vld [vmem:[#allocation7 + $0x928] sm:$0xff]
          %v904 = vld [vmem:[#allocation7 + $0x930] sm:$0xff]
          %v905 = vld [vmem:[#allocation7 + $0x938] sm:$0xff]
          %v906 = vld [vmem:[#allocation7 + $0x940] sm:$0xff]
          %v907 = vld [vmem:[#allocation7 + $0x948] sm:$0xff]
          %v908 = vld [vmem:[#allocation7 + $0x950] sm:$0xff]
          %v909 = vld [vmem:[#allocation7 + $0x958] sm:$0xff]
          %v910 = vld [vmem:[#allocation7 + $0x960] sm:$0xff]
          %v911 = vld [vmem:[#allocation7 + $0x968] sm:$0xff]
          %v912 = vld [vmem:[#allocation7 + $0x970] sm:$0xff]
          %v913 = vld [vmem:[#allocation7 + $0x978] sm:$0xff]
          %v914 = vld [vmem:[#allocation7 + $0x980] sm:$0xff]
          %v915 = vld [vmem:[#allocation7 + $0x988] sm:$0xff]
          %v916 = vld [vmem:[#allocation7 + $0x990] sm:$0xff]
          %v917 = vld [vmem:[#allocation7 + $0x998] sm:$0xff]
          %v918 = vld [vmem:[#allocation7 + $0x9a0] sm:$0xff]
          %v919 = vld [vmem:[#allocation7 + $0x9a8] sm:$0xff]
          %v920 = vld [vmem:[#allocation7 + $0x9b0] sm:$0xff]
          %v921 = vld [vmem:[#allocation7 + $0x9b8] sm:$0xff]
          %v922 = vld [vmem:[#allocation7 + $0x9c0] sm:$0xff]
          %v923 = vld [vmem:[#allocation7 + $0x9c8] sm:$0xff]
          %v924 = vld [vmem:[#allocation7 + $0x9d0] sm:$0xff]
          %v925 = vld [vmem:[#allocation7 + $0x9d8] sm:$0xff]
          %v926 = vld [vmem:[#allocation7 + $0x9e0] sm:$0xff]
          %v927 = vld [vmem:[#allocation7 + $0x9e8] sm:$0xff]
          %v928 = vld [vmem:[#allocation7 + $0x9f0] sm:$0xff]
          %v929 = vld [vmem:[#allocation7 + $0x9f8] sm:$0xff]
          %v930 = vld [vmem:[#allocation7 + $0xa00] sm:$0xff]
          %v931 = vld [vmem:[#allocation7 + $0xa08] sm:$0xff]
          %v932 = vld [vmem:[#allocation7 + $0xa10] sm:$0xff]
          %v933 = vld [vmem:[#allocation7 + $0xa18] sm:$0xff]
          %v934 = vld [vmem:[#allocation7 + $0xa20] sm:$0xff]
          %v935 = vld [vmem:[#allocation7 + $0xa28] sm:$0xff]
          %v936 = vld [vmem:[#allocation7 + $0xa30] sm:$0xff]
          %v937 = vld [vmem:[#allocation7 + $0xa38] sm:$0xff]
          %v938 = vld [vmem:[#allocation7 + $0xa40] sm:$0xff]
          %v939 = vld [vmem:[#allocation7 + $0xa48] sm:$0xff]
          %v940 = vld [vmem:[#allocation7 + $0xa50] sm:$0xff]
          %v941 = vld [vmem:[#allocation7 + $0xa58] sm:$0xff]
          %v942 = vld [vmem:[#allocation7 + $0xa60] sm:$0xff]
          %v943 = vld [vmem:[#allocation7 + $0xa68] sm:$0xff]
          %v944 = vld [vmem:[#allocation7 + $0xa70] sm:$0xff]
          %v945 = vld [vmem:[#allocation7 + $0xa78] sm:$0xff]
          %v946 = vld [vmem:[#allocation7 + $0xa80] sm:$0xff]
          %v947 = vld [vmem:[#allocation7 + $0xa88] sm:$0xff]
          %v948 = vld [vmem:[#allocation7 + $0xa90] sm:$0xff]
          %v949 = vld [vmem:[#allocation7 + $0xa98] sm:$0xff]
          %v950 = vld [vmem:[#allocation7 + $0xaa0] sm:$0xff]
          %v951 = vld [vmem:[#allocation7 + $0xaa8] sm:$0xff]
          %v952 = vld [vmem:[#allocation7 + $0xab0] sm:$0xff]
          %v953 = vld [vmem:[#allocation7 + $0xab8] sm:$0xff]
          %v954 = vld [vmem:[#allocation7 + $0xac0] sm:$0xff]
          %v955 = vld [vmem:[#allocation7 + $0xac8] sm:$0xff]
          %v956 = vld [vmem:[#allocation7 + $0xad0] sm:$0xff]
          %v957 = vld [vmem:[#allocation7 + $0xad8] sm:$0xff]
          %v958 = vld [vmem:[#allocation7 + $0xae0] sm:$0xff]
          %v959 = vld [vmem:[#allocation7 + $0xae8] sm:$0xff]
          %v960 = vld [vmem:[#allocation7 + $0xaf0] sm:$0xff]
          %v961 = vld [vmem:[#allocation7 + $0xaf8] sm:$0xff]
          %v962 = vld [vmem:[#allocation7 + $0xb00] sm:$0xff]
          %v963 = vld [vmem:[#allocation7 + $0xb08] sm:$0xff]
          %v964 = vld [vmem:[#allocation7 + $0xb10] sm:$0xff]
          %v965 = vld [vmem:[#allocation7 + $0xb18] sm:$0xff]
          %v966 = vld [vmem:[#allocation7 + $0xb20] sm:$0xff]
          %v967 = vld [vmem:[#allocation7 + $0xb28] sm:$0xff]
          %v968 = vld [vmem:[#allocation7 + $0xb30] sm:$0xff]
          %v969 = vld [vmem:[#allocation7 + $0xb38] sm:$0xff]
          %v970 = vld [vmem:[#allocation7 + $0xb40] sm:$0xff]
          %v971 = vld [vmem:[#allocation7 + $0xb48] sm:$0xff]
          %v972 = vld [vmem:[#allocation7 + $0xb50] sm:$0xff]
          %v973 = vld [vmem:[#allocation7 + $0xb58] sm:$0xff]
          %v974 = vld [vmem:[#allocation7 + $0xb60] sm:$0xff]
          %v975 = vld [vmem:[#allocation7 + $0xb68] sm:$0xff]
          %v976 = vld [vmem:[#allocation7 + $0xb70] sm:$0xff]
          %v977 = vld [vmem:[#allocation7 + $0xb78] sm:$0xff]
          %v978 = vld [vmem:[#allocation7 + $0xb80] sm:$0xff]
          %v979 = vld [vmem:[#allocation7 + $0xb88] sm:$0xff]
          %v980 = vld [vmem:[#allocation7 + $0xb90] sm:$0xff]
          %v981 = vld [vmem:[#allocation7 + $0xb98] sm:$0xff]
          %v982 = vld [vmem:[#allocation7 + $0xba0] sm:$0xff]
          %v983 = vld [vmem:[#allocation7 + $0xba8] sm:$0xff]
          %v984 = vld [vmem:[#allocation7 + $0xbb0] sm:$0xff]
          %v985 = vld [vmem:[#allocation7 + $0xbb8] sm:$0xff]
          %v986 = vld [vmem:[#allocation7 + $0xbc0] sm:$0xff]
          %v987 = vld [vmem:[#allocation7 + $0xbc8] sm:$0xff]
          %v988 = vld [vmem:[#allocation7 + $0xbd0] sm:$0xff]
          %v989 = vld [vmem:[#allocation7 + $0xbd8] sm:$0xff]
          %v990 = vld [vmem:[#allocation7 + $0xbe0] sm:$0xff]
          %v991 = vld [vmem:[#allocation7 + $0xbe8] sm:$0xff]
          %v992 = vld [vmem:[#allocation7 + $0xbf0] sm:$0xff]
          %v993 = vld [vmem:[#allocation7 + $0xbf8] sm:$0xff]
          %v994 = vld [vmem:[#allocation8] sm:$0x3f]
          %v996 = vlaneseq
          %v997 = vshrl.u32 %v996, 7
          %v998 = vsub.s32 0, %v997
          %v999 = vrot.slane %v994, %v998
          %v1000 = vlaneseq
          %v1001 = vshrl.u32 %v1000, 7
          %v1002 = vsub.s32 1, %v1001
          %v1003 = vrot.slane %v994, %v1002
          %v1004 = vlaneseq
          %v1005 = vshrl.u32 %v1004, 7
          %v1006 = vsub.s32 2, %v1005
          %v1007 = vrot.slane %v994, %v1006
          %v1008 = vlaneseq
          %v1009 = vshrl.u32 %v1008, 7
          %v1010 = vsub.s32 3, %v1009
          %v1011 = vrot.slane %v994, %v1010
          %v1012 = vlaneseq
          %v1013 = vshrl.u32 %v1012, 7
          %v1014 = vsub.s32 4, %v1013
          %v1015 = vrot.slane %v994, %v1014
          %v1016 = vlaneseq
          %v1017 = vshrl.u32 %v1016, 7
          %v1018 = vsub.s32 5, %v1017
          %v1019 = vrot.slane %v994, %v1018
          %v1410 = vunpack.c.l.b16 %v610
          %v1411 = vunpack.c.h.b16 %v610
          %v1412 = vunpack.c.l.b16 %v611
          %v1413 = vunpack.c.h.b16 %v611
          %v1414 = vunpack.c.l.b16 %v612
          %v1415 = vunpack.c.h.b16 %v612
          %v1416 = vunpack.c.l.b16 %v613
          %v1417 = vunpack.c.h.b16 %v613
          %v1418 = vunpack.c.l.b16 %v614
          %v1419 = vunpack.c.h.b16 %v614
          %v1420 = vunpack.c.l.b16 %v615
          %v1421 = vunpack.c.h.b16 %v615
          %v1422 = vunpack.c.l.b16 %v616
          %v1423 = vunpack.c.h.b16 %v616
          %v1424 = vunpack.c.l.b16 %v617
          %v1425 = vunpack.c.h.b16 %v617
          %v1426 = vunpack.c.l.b16 %v618
          %v1427 = vunpack.c.h.b16 %v618
          %v1428 = vunpack.c.l.b16 %v619
          %v1429 = vunpack.c.h.b16 %v619
          %v1430 = vunpack.c.l.b16 %v620
          %v1431 = vunpack.c.h.b16 %v620
          %v1432 = vunpack.c.l.b16 %v621
          %v1433 = vunpack.c.h.b16 %v621
          %v1434 = vunpack.c.l.b16 %v622
          %v1435 = vunpack.c.h.b16 %v622
          %v1436 = vunpack.c.l.b16 %v623
          %v1437 = vunpack.c.h.b16 %v623
          %v1438 = vunpack.c.l.b16 %v624
          %v1439 = vunpack.c.h.b16 %v624
          %v1440 = vunpack.c.l.b16 %v625
          %v1441 = vunpack.c.h.b16 %v625
          %v1442 = vunpack.c.l.b16 %v626
          %v1443 = vunpack.c.h.b16 %v626
          %v1444 = vunpack.c.l.b16 %v627
          %v1445 = vunpack.c.h.b16 %v627
          %v1446 = vunpack.c.l.b16 %v628
          %v1447 = vunpack.c.h.b16 %v628
          %v1448 = vunpack.c.l.b16 %v629
          %v1449 = vunpack.c.h.b16 %v629
          %v1450 = vunpack.c.l.b16 %v630
          %v1451 = vunpack.c.h.b16 %v630
          %v1452 = vunpack.c.l.b16 %v631
          %v1453 = vunpack.c.h.b16 %v631
          %v1454 = vunpack.c.l.b16 %v632
          %v1455 = vunpack.c.h.b16 %v632
          %v1456 = vunpack.c.l.b16 %v633
          %v1457 = vunpack.c.h.b16 %v633
          %v1458 = vunpack.c.l.b16 %v634
          %v1459 = vunpack.c.h.b16 %v634
          %v1460 = vunpack.c.l.b16 %v635
          %v1461 = vunpack.c.h.b16 %v635
          %v1462 = vunpack.c.l.b16 %v636
          %v1463 = vunpack.c.h.b16 %v636
          %v1464 = vunpack.c.l.b16 %v637
          %v1465 = vunpack.c.h.b16 %v637
          %v1466 = vunpack.c.l.b16 %v638
          %v1467 = vunpack.c.h.b16 %v638
          %v1468 = vunpack.c.l.b16 %v639
          %v1469 = vunpack.c.h.b16 %v639
          %v1470 = vunpack.c.l.b16 %v640
          %v1471 = vunpack.c.h.b16 %v640
          %v1472 = vunpack.c.l.b16 %v641
          %v1473 = vunpack.c.h.b16 %v641
          %v1474 = vunpack.c.l.b16 %v642
          %v1475 = vunpack.c.h.b16 %v642
          %v1476 = vunpack.c.l.b16 %v643
          %v1477 = vunpack.c.h.b16 %v643
          %v1478 = vunpack.c.l.b16 %v644
          %v1479 = vunpack.c.h.b16 %v644
          %v1480 = vunpack.c.l.b16 %v645
          %v1481 = vunpack.c.h.b16 %v645
          %v1482 = vunpack.c.l.b16 %v646
          %v1483 = vunpack.c.h.b16 %v646
          %v1484 = vunpack.c.l.b16 %v647
          %v1485 = vunpack.c.h.b16 %v647
          %v1486 = vunpack.c.l.b16 %v648
          %v1487 = vunpack.c.h.b16 %v648
          %v1488 = vunpack.c.l.b16 %v649
          %v1489 = vunpack.c.h.b16 %v649
          %v1490 = vunpack.c.l.b16 %v650
          %v1491 = vunpack.c.h.b16 %v650
          %v1492 = vunpack.c.l.b16 %v651
          %v1493 = vunpack.c.h.b16 %v651
          %v1494 = vunpack.c.l.b16 %v652
          %v1495 = vunpack.c.h.b16 %v652
          %v1496 = vunpack.c.l.b16 %v653
          %v1497 = vunpack.c.h.b16 %v653
          %v1498 = vunpack.c.l.b16 %v654
          %v1499 = vunpack.c.h.b16 %v654
          %v1500 = vunpack.c.l.b16 %v655
          %v1501 = vunpack.c.h.b16 %v655
          %v1502 = vunpack.c.l.b16 %v656
          %v1503 = vunpack.c.h.b16 %v656
          %v1504 = vunpack.c.l.b16 %v657
          %v1505 = vunpack.c.h.b16 %v657
          %v1506 = vunpack.c.l.b16 %v658
          %v1507 = vunpack.c.h.b16 %v658
          %v1508 = vunpack.c.l.b16 %v659
          %v1509 = vunpack.c.h.b16 %v659
          %v1510 = vunpack.c.l.b16 %v660
          %v1511 = vunpack.c.h.b16 %v660
          %v1512 = vunpack.c.l.b16 %v661
          %v1513 = vunpack.c.h.b16 %v661
          %v1514 = vunpack.c.l.b16 %v662
          %v1515 = vunpack.c.h.b16 %v662
          %v1516 = vunpack.c.l.b16 %v663
          %v1517 = vunpack.c.h.b16 %v663
          %v1518 = vunpack.c.l.b16 %v664
          %v1519 = vunpack.c.h.b16 %v664
          %v1520 = vunpack.c.l.b16 %v665
          %v1521 = vunpack.c.h.b16 %v665
          %v1522 = vunpack.c.l.b16 %v666
          %v1523 = vunpack.c.h.b16 %v666
          %v1524 = vunpack.c.l.b16 %v667
          %v1525 = vunpack.c.h.b16 %v667
          %v1526 = vunpack.c.l.b16 %v668
          %v1527 = vunpack.c.h.b16 %v668
          %v1528 = vunpack.c.l.b16 %v669
          %v1529 = vunpack.c.h.b16 %v669
          %v1530 = vunpack.c.l.b16 %v670
          %v1531 = vunpack.c.h.b16 %v670
          %v1532 = vunpack.c.l.b16 %v671
          %v1533 = vunpack.c.h.b16 %v671
          %v1534 = vunpack.c.l.b16 %v672
          %v1535 = vunpack.c.h.b16 %v672
          %v1536 = vunpack.c.l.b16 %v673
          %v1537 = vunpack.c.h.b16 %v673
          %v1538 = vunpack.c.l.b16 %v674
          %v1539 = vunpack.c.h.b16 %v674
          %v1540 = vunpack.c.l.b16 %v675
          %v1541 = vunpack.c.h.b16 %v675
          %v1542 = vunpack.c.l.b16 %v676
          %v1543 = vunpack.c.h.b16 %v676
          %v1544 = vunpack.c.l.b16 %v677
          %v1545 = vunpack.c.h.b16 %v677
          %v1546 = vunpack.c.l.b16 %v678
          %v1547 = vunpack.c.h.b16 %v678
          %v1548 = vunpack.c.l.b16 %v679
          %v1549 = vunpack.c.h.b16 %v679
          %v1550 = vunpack.c.l.b16 %v680
          %v1551 = vunpack.c.h.b16 %v680
          %v1552 = vunpack.c.l.b16 %v681
          %v1553 = vunpack.c.h.b16 %v681
          %v1554 = vunpack.c.l.b16 %v682
          %v1555 = vunpack.c.h.b16 %v682
          %v1556 = vunpack.c.l.b16 %v683
          %v1557 = vunpack.c.h.b16 %v683
          %v1558 = vunpack.c.l.b16 %v684
          %v1559 = vunpack.c.h.b16 %v684
          %v1560 = vunpack.c.l.b16 %v685
          %v1561 = vunpack.c.h.b16 %v685
          %v1562 = vunpack.c.l.b16 %v686
          %v1563 = vunpack.c.h.b16 %v686
          %v1564 = vunpack.c.l.b16 %v687
          %v1565 = vunpack.c.h.b16 %v687
          %v1566 = vunpack.c.l.b16 %v688
          %v1567 = vunpack.c.h.b16 %v688
          %v1568 = vunpack.c.l.b16 %v689
          %v1569 = vunpack.c.h.b16 %v689
          %v1570 = vunpack.c.l.b16 %v690
          %v1571 = vunpack.c.h.b16 %v690
          %v1572 = vunpack.c.l.b16 %v691
          %v1573 = vunpack.c.h.b16 %v691
          %v1574 = vunpack.c.l.b16 %v692
          %v1575 = vunpack.c.h.b16 %v692
          %v1576 = vunpack.c.l.b16 %v693
          %v1577 = vunpack.c.h.b16 %v693
          %v1578 = vunpack.c.l.b16 %v694
          %v1579 = vunpack.c.h.b16 %v694
          %v1580 = vunpack.c.l.b16 %v695
          %v1581 = vunpack.c.h.b16 %v695
          %v1582 = vunpack.c.l.b16 %v696
          %v1583 = vunpack.c.h.b16 %v696
          %v1584 = vunpack.c.l.b16 %v697
          %v1585 = vunpack.c.h.b16 %v697
          %v1586 = vunpack.c.l.b16 %v698
          %v1587 = vunpack.c.h.b16 %v698
          %v1588 = vunpack.c.l.b16 %v699
          %v1589 = vunpack.c.h.b16 %v699
          %v1590 = vunpack.c.l.b16 %v700
          %v1591 = vunpack.c.h.b16 %v700
          %v1592 = vunpack.c.l.b16 %v701
          %v1593 = vunpack.c.h.b16 %v701
          %v1594 = vunpack.c.l.b16 %v702
          %v1595 = vunpack.c.h.b16 %v702
          %v1596 = vunpack.c.l.b16 %v703
          %v1597 = vunpack.c.h.b16 %v703
          %v1598 = vunpack.c.l.b16 %v704
          %v1599 = vunpack.c.h.b16 %v704
          %v1600 = vunpack.c.l.b16 %v705
          %v1601 = vunpack.c.h.b16 %v705
          %v1602 = vunpack.c.l.b16 %v706
          %v1603 = vunpack.c.h.b16 %v706
          %v1604 = vunpack.c.l.b16 %v707
          %v1605 = vunpack.c.h.b16 %v707
          %v1606 = vunpack.c.l.b16 %v708
          %v1607 = vunpack.c.h.b16 %v708
          %v1608 = vunpack.c.l.b16 %v709
          %v1609 = vunpack.c.h.b16 %v709
          %v1610 = vunpack.c.l.b16 %v710
          %v1611 = vunpack.c.h.b16 %v710
          %v1612 = vunpack.c.l.b16 %v711
          %v1613 = vunpack.c.h.b16 %v711
          %v1614 = vunpack.c.l.b16 %v712
          %v1615 = vunpack.c.h.b16 %v712
          %v1616 = vunpack.c.l.b16 %v713
          %v1617 = vunpack.c.h.b16 %v713
          %v1618 = vunpack.c.l.b16 %v714
          %v1619 = vunpack.c.h.b16 %v714
          %v1620 = vunpack.c.l.b16 %v715
          %v1621 = vunpack.c.h.b16 %v715
          %v1622 = vunpack.c.l.b16 %v716
          %v1623 = vunpack.c.h.b16 %v716
          %v1624 = vunpack.c.l.b16 %v717
          %v1625 = vunpack.c.h.b16 %v717
          %v1626 = vunpack.c.l.b16 %v718
          %v1627 = vunpack.c.h.b16 %v718
          %v1628 = vunpack.c.l.b16 %v719
          %v1629 = vunpack.c.h.b16 %v719
          %v1630 = vunpack.c.l.b16 %v720
          %v1631 = vunpack.c.h.b16 %v720
          %v1632 = vunpack.c.l.b16 %v721
          %v1633 = vunpack.c.h.b16 %v721
          %v1634 = vunpack.c.l.b16 %v722
          %v1635 = vunpack.c.h.b16 %v722
          %v1636 = vunpack.c.l.b16 %v723
          %v1637 = vunpack.c.h.b16 %v723
          %v1638 = vunpack.c.l.b16 %v724
          %v1639 = vunpack.c.h.b16 %v724
          %v1640 = vunpack.c.l.b16 %v725
          %v1641 = vunpack.c.h.b16 %v725
          %v1642 = vunpack.c.l.b16 %v726
          %v1643 = vunpack.c.h.b16 %v726
          %v1644 = vunpack.c.l.b16 %v727
          %v1645 = vunpack.c.h.b16 %v727
          %v1646 = vunpack.c.l.b16 %v728
          %v1647 = vunpack.c.h.b16 %v728
          %v1648 = vunpack.c.l.b16 %v729
          %v1649 = vunpack.c.h.b16 %v729
          %v1650 = vunpack.c.l.b16 %v730
          %v1651 = vunpack.c.h.b16 %v730
          %v1652 = vunpack.c.l.b16 %v731
          %v1653 = vunpack.c.h.b16 %v731
          %v1654 = vunpack.c.l.b16 %v732
          %v1655 = vunpack.c.h.b16 %v732
          %v1656 = vunpack.c.l.b16 %v733
          %v1657 = vunpack.c.h.b16 %v733
          %v1658 = vunpack.c.l.b16 %v734
          %v1659 = vunpack.c.h.b16 %v734
          %v1660 = vunpack.c.l.b16 %v735
          %v1661 = vunpack.c.h.b16 %v735
          %v1662 = vunpack.c.l.b16 %v736
          %v1663 = vunpack.c.h.b16 %v736
          %v1664 = vunpack.c.l.b16 %v737
          %v1665 = vunpack.c.h.b16 %v737
          %v1666 = vunpack.c.l.b16 %v738
          %v1667 = vunpack.c.h.b16 %v738
          %v1668 = vunpack.c.l.b16 %v739
          %v1669 = vunpack.c.h.b16 %v739
          %v1670 = vunpack.c.l.b16 %v740
          %v1671 = vunpack.c.h.b16 %v740
          %v1672 = vunpack.c.l.b16 %v741
          %v1673 = vunpack.c.h.b16 %v741
          %v1674 = vunpack.c.l.b16 %v742
          %v1675 = vunpack.c.h.b16 %v742
          %v1676 = vunpack.c.l.b16 %v743
          %v1677 = vunpack.c.h.b16 %v743
          %v1678 = vunpack.c.l.b16 %v744
          %v1679 = vunpack.c.h.b16 %v744
          %v1680 = vunpack.c.l.b16 %v745
          %v1681 = vunpack.c.h.b16 %v745
          %v1682 = vunpack.c.l.b16 %v746
          %v1683 = vunpack.c.h.b16 %v746
          %v1684 = vunpack.c.l.b16 %v747
          %v1685 = vunpack.c.h.b16 %v747
          %v1686 = vunpack.c.l.b16 %v748
          %v1687 = vunpack.c.h.b16 %v748
          %v1688 = vunpack.c.l.b16 %v749
          %v1689 = vunpack.c.h.b16 %v749
          %v1690 = vunpack.c.l.b16 %v750
          %v1691 = vunpack.c.h.b16 %v750
          %v1692 = vunpack.c.l.b16 %v751
          %v1693 = vunpack.c.h.b16 %v751
          %v1694 = vunpack.c.l.b16 %v752
          %v1695 = vunpack.c.h.b16 %v752
          %v1696 = vunpack.c.l.b16 %v753
          %v1697 = vunpack.c.h.b16 %v753
          %v1698 = vunpack.c.l.b16 %v754
          %v1699 = vunpack.c.h.b16 %v754
          %v1700 = vunpack.c.l.b16 %v755
          %v1701 = vunpack.c.h.b16 %v755
          %v1702 = vunpack.c.l.b16 %v756
          %v1703 = vunpack.c.h.b16 %v756
          %v1704 = vunpack.c.l.b16 %v757
          %v1705 = vunpack.c.h.b16 %v757
          %v1706 = vunpack.c.l.b16 %v758
          %v1707 = vunpack.c.h.b16 %v758
          %v1708 = vunpack.c.l.b16 %v759
          %v1709 = vunpack.c.h.b16 %v759
          %v1710 = vunpack.c.l.b16 %v760
          %v1711 = vunpack.c.h.b16 %v760
          %v1712 = vunpack.c.l.b16 %v761
          %v1713 = vunpack.c.h.b16 %v761
          %v1714 = vunpack.c.l.b16 %v762
          %v1715 = vunpack.c.h.b16 %v762
          %v1716 = vunpack.c.l.b16 %v763
          %v1717 = vunpack.c.h.b16 %v763
          %v1718 = vunpack.c.l.b16 %v764
          %v1719 = vunpack.c.h.b16 %v764
          %v1720 = vunpack.c.l.b16 %v765
          %v1721 = vunpack.c.h.b16 %v765
          %v1722 = vunpack.c.l.b16 %v766
          %v1723 = vunpack.c.h.b16 %v766
          %v1724 = vunpack.c.l.b16 %v767
          %v1725 = vunpack.c.h.b16 %v767
          %v1726 = vunpack.c.l.b16 %v768
          %v1727 = vunpack.c.h.b16 %v768
          %v1728 = vunpack.c.l.b16 %v769
          %v1729 = vunpack.c.h.b16 %v769
          %v1730 = vunpack.c.l.b16 %v770
          %v1731 = vunpack.c.h.b16 %v770
          %v1732 = vunpack.c.l.b16 %v771
          %v1733 = vunpack.c.h.b16 %v771
          %v1734 = vunpack.c.l.b16 %v772
          %v1735 = vunpack.c.h.b16 %v772
          %v1736 = vunpack.c.l.b16 %v773
          %v1737 = vunpack.c.h.b16 %v773
          %v1738 = vunpack.c.l.b16 %v774
          %v1739 = vunpack.c.h.b16 %v774
          %v1740 = vunpack.c.l.b16 %v775
          %v1741 = vunpack.c.h.b16 %v775
          %v1742 = vunpack.c.l.b16 %v776
          %v1743 = vunpack.c.h.b16 %v776
          %v1744 = vunpack.c.l.b16 %v777
          %v1745 = vunpack.c.h.b16 %v777
          %v1746 = vunpack.c.l.b16 %v778
          %v1747 = vunpack.c.h.b16 %v778
          %v1748 = vunpack.c.l.b16 %v779
          %v1749 = vunpack.c.h.b16 %v779
          %v1750 = vunpack.c.l.b16 %v780
          %v1751 = vunpack.c.h.b16 %v780
          %v1752 = vunpack.c.l.b16 %v781
          %v1753 = vunpack.c.h.b16 %v781
          %v1754 = vunpack.c.l.b16 %v782
          %v1755 = vunpack.c.h.b16 %v782
          %v1756 = vunpack.c.l.b16 %v783
          %v1757 = vunpack.c.h.b16 %v783
          %v1758 = vunpack.c.l.b16 %v784
          %v1759 = vunpack.c.h.b16 %v784
          %v1760 = vunpack.c.l.b16 %v785
          %v1761 = vunpack.c.h.b16 %v785
          %v1762 = vunpack.c.l.b16 %v786
          %v1763 = vunpack.c.h.b16 %v786
          %v1764 = vunpack.c.l.b16 %v787
          %v1765 = vunpack.c.h.b16 %v787
          %v1766 = vunpack.c.l.b16 %v788
          %v1767 = vunpack.c.h.b16 %v788
          %v1768 = vunpack.c.l.b16 %v789
          %v1769 = vunpack.c.h.b16 %v789
          %v1770 = vunpack.c.l.b16 %v790
          %v1771 = vunpack.c.h.b16 %v790
          %v1772 = vunpack.c.l.b16 %v791
          %v1773 = vunpack.c.h.b16 %v791
          %v1774 = vunpack.c.l.b16 %v792
          %v1775 = vunpack.c.h.b16 %v792
          %v1776 = vunpack.c.l.b16 %v793
          %v1777 = vunpack.c.h.b16 %v793
          %v1778 = vunpack.c.l.b16 %v794
          %v1779 = vunpack.c.h.b16 %v794
          %v1780 = vunpack.c.l.b16 %v795
          %v1781 = vunpack.c.h.b16 %v795
          %v1782 = vunpack.c.l.b16 %v796
          %v1783 = vunpack.c.h.b16 %v796
          %v1784 = vunpack.c.l.b16 %v797
          %v1785 = vunpack.c.h.b16 %v797
          %v1786 = vunpack.c.l.b16 %v798
          %v1787 = vunpack.c.h.b16 %v798
          %v1788 = vunpack.c.l.b16 %v799
          %v1789 = vunpack.c.h.b16 %v799
          %v1790 = vunpack.c.l.b16 %v800
          %v1791 = vunpack.c.h.b16 %v800
          %v1792 = vunpack.c.l.b16 %v801
          %v1793 = vunpack.c.h.b16 %v801
          %v1794 = vunpack.c.l.b16 %v802
          %v1795 = vunpack.c.h.b16 %v802
          %v1796 = vunpack.c.l.b16 %v803
          %v1797 = vunpack.c.h.b16 %v803
          %v1798 = vunpack.c.l.b16 %v804
          %v1799 = vunpack.c.h.b16 %v804
          %v1800 = vunpack.c.l.b16 %v805
          %v1801 = vunpack.c.h.b16 %v805
          %v1802 = vunpack.c.l.b16 %v806
          %v1803 = vunpack.c.h.b16 %v806
          %v1804 = vunpack.c.l.b16 %v807
          %v1805 = vunpack.c.h.b16 %v807
          %v1806 = vunpack.c.l.b16 %v808
          %v1807 = vunpack.c.h.b16 %v808
          %v1808 = vunpack.c.l.b16 %v809
          %v1809 = vunpack.c.h.b16 %v809
          %v1810 = vunpack.c.l.b16 %v810
          %v1811 = vunpack.c.h.b16 %v810
          %v1812 = vunpack.c.l.b16 %v811
          %v1813 = vunpack.c.h.b16 %v811
          %v1814 = vunpack.c.l.b16 %v812
          %v1815 = vunpack.c.h.b16 %v812
          %v1816 = vunpack.c.l.b16 %v813
          %v1817 = vunpack.c.h.b16 %v813
          %v1818 = vunpack.c.l.b16 %v814
          %v1819 = vunpack.c.h.b16 %v814
          %v1820 = vunpack.c.l.b16 %v815
          %v1821 = vunpack.c.h.b16 %v815
          %v1822 = vunpack.c.l.b16 %v816
          %v1823 = vunpack.c.h.b16 %v816
          %v1824 = vunpack.c.l.b16 %v817
          %v1825 = vunpack.c.h.b16 %v817
          %v1826 = vunpack.c.l.b16 %v818
          %v1827 = vunpack.c.h.b16 %v818
          %v1828 = vunpack.c.l.b16 %v819
          %v1829 = vunpack.c.h.b16 %v819
          %v1830 = vunpack.c.l.b16 %v820
          %v1831 = vunpack.c.h.b16 %v820
          %v1832 = vunpack.c.l.b16 %v821
          %v1833 = vunpack.c.h.b16 %v821
          %v1834 = vunpack.c.l.b16 %v822
          %v1835 = vunpack.c.h.b16 %v822
          %v1836 = vunpack.c.l.b16 %v823
          %v1837 = vunpack.c.h.b16 %v823
          %v1838 = vunpack.c.l.b16 %v824
          %v1839 = vunpack.c.h.b16 %v824
          %v1840 = vunpack.c.l.b16 %v825
          %v1841 = vunpack.c.h.b16 %v825
          %v1842 = vunpack.c.l.b16 %v826
          %v1843 = vunpack.c.h.b16 %v826
          %v1844 = vunpack.c.l.b16 %v827
          %v1845 = vunpack.c.h.b16 %v827
          %v1846 = vunpack.c.l.b16 %v828
          %v1847 = vunpack.c.h.b16 %v828
          %v1848 = vunpack.c.l.b16 %v829
          %v1849 = vunpack.c.h.b16 %v829
          %v1850 = vunpack.c.l.b16 %v830
          %v1851 = vunpack.c.h.b16 %v830
          %v1852 = vunpack.c.l.b16 %v831
          %v1853 = vunpack.c.h.b16 %v831
          %v1854 = vunpack.c.l.b16 %v832
          %v1855 = vunpack.c.h.b16 %v832
          %v1856 = vunpack.c.l.b16 %v833
          %v1857 = vunpack.c.h.b16 %v833
          %v1858 = vunpack.c.l.b16 %v834
          %v1859 = vunpack.c.h.b16 %v834
          %v1860 = vunpack.c.l.b16 %v835
          %v1861 = vunpack.c.h.b16 %v835
          %v1862 = vunpack.c.l.b16 %v836
          %v1863 = vunpack.c.h.b16 %v836
          %v1864 = vunpack.c.l.b16 %v837
          %v1865 = vunpack.c.h.b16 %v837
          %v1866 = vunpack.c.l.b16 %v838
          %v1867 = vunpack.c.h.b16 %v838
          %v1868 = vunpack.c.l.b16 %v839
          %v1869 = vunpack.c.h.b16 %v839
          %v1870 = vunpack.c.l.b16 %v840
          %v1871 = vunpack.c.h.b16 %v840
          %v1872 = vunpack.c.l.b16 %v841
          %v1873 = vunpack.c.h.b16 %v841
          %v1874 = vunpack.c.l.b16 %v842
          %v1875 = vunpack.c.h.b16 %v842
          %v1876 = vunpack.c.l.b16 %v843
          %v1877 = vunpack.c.h.b16 %v843
          %v1878 = vunpack.c.l.b16 %v844
          %v1879 = vunpack.c.h.b16 %v844
          %v1880 = vunpack.c.l.b16 %v845
          %v1881 = vunpack.c.h.b16 %v845
          %v1882 = vunpack.c.l.b16 %v846
          %v1883 = vunpack.c.h.b16 %v846
          %v1884 = vunpack.c.l.b16 %v847
          %v1885 = vunpack.c.h.b16 %v847
          %v1886 = vunpack.c.l.b16 %v848
          %v1887 = vunpack.c.h.b16 %v848
          %v1888 = vunpack.c.l.b16 %v849
          %v1889 = vunpack.c.h.b16 %v849
          %v1890 = vunpack.c.l.b16 %v850
          %v1891 = vunpack.c.h.b16 %v850
          %v1892 = vunpack.c.l.b16 %v851
          %v1893 = vunpack.c.h.b16 %v851
          %v1894 = vunpack.c.l.b16 %v852
          %v1895 = vunpack.c.h.b16 %v852
          %v1896 = vunpack.c.l.b16 %v853
          %v1897 = vunpack.c.h.b16 %v853
          %v1898 = vunpack.c.l.b16 %v854
          %v1899 = vunpack.c.h.b16 %v854
          %v1900 = vunpack.c.l.b16 %v855
          %v1901 = vunpack.c.h.b16 %v855
          %v1902 = vunpack.c.l.b16 %v856
          %v1903 = vunpack.c.h.b16 %v856
          %v1904 = vunpack.c.l.b16 %v857
          %v1905 = vunpack.c.h.b16 %v857
          %v1906 = vunpack.c.l.b16 %v858
          %v1907 = vunpack.c.h.b16 %v858
          %v1908 = vunpack.c.l.b16 %v859
          %v1909 = vunpack.c.h.b16 %v859
          %v1910 = vunpack.c.l.b16 %v860
          %v1911 = vunpack.c.h.b16 %v860
          %v1912 = vunpack.c.l.b16 %v861
          %v1913 = vunpack.c.h.b16 %v861
          %v1914 = vunpack.c.l.b16 %v862
          %v1915 = vunpack.c.h.b16 %v862
          %v1916 = vunpack.c.l.b16 %v863
          %v1917 = vunpack.c.h.b16 %v863
          %v1918 = vunpack.c.l.b16 %v864
          %v1919 = vunpack.c.h.b16 %v864
          %v1920 = vunpack.c.l.b16 %v865
          %v1921 = vunpack.c.h.b16 %v865
          %v1922 = vunpack.c.l.b16 %v866
          %v1923 = vunpack.c.h.b16 %v866
          %v1924 = vunpack.c.l.b16 %v867
          %v1925 = vunpack.c.h.b16 %v867
          %v1926 = vunpack.c.l.b16 %v868
          %v1927 = vunpack.c.h.b16 %v868
          %v1928 = vunpack.c.l.b16 %v869
          %v1929 = vunpack.c.h.b16 %v869
          %v1930 = vunpack.c.l.b16 %v870
          %v1931 = vunpack.c.h.b16 %v870
          %v1932 = vunpack.c.l.b16 %v871
          %v1933 = vunpack.c.h.b16 %v871
          %v1934 = vunpack.c.l.b16 %v872
          %v1935 = vunpack.c.h.b16 %v872
          %v1936 = vunpack.c.l.b16 %v873
          %v1937 = vunpack.c.h.b16 %v873
          %v1938 = vunpack.c.l.b16 %v874
          %v1939 = vunpack.c.h.b16 %v874
          %v1940 = vunpack.c.l.b16 %v875
          %v1941 = vunpack.c.h.b16 %v875
          %v1942 = vunpack.c.l.b16 %v876
          %v1943 = vunpack.c.h.b16 %v876
          %v1944 = vunpack.c.l.b16 %v877
          %v1945 = vunpack.c.h.b16 %v877
          %v1946 = vunpack.c.l.b16 %v878
          %v1947 = vunpack.c.h.b16 %v878
          %v1948 = vunpack.c.l.b16 %v879
          %v1949 = vunpack.c.h.b16 %v879
          %v1950 = vunpack.c.l.b16 %v880
          %v1951 = vunpack.c.h.b16 %v880
          %v1952 = vunpack.c.l.b16 %v881
          %v1953 = vunpack.c.h.b16 %v881
          %v1954 = vunpack.c.l.b16 %v882
          %v1955 = vunpack.c.h.b16 %v882
          %v1956 = vunpack.c.l.b16 %v883
          %v1957 = vunpack.c.h.b16 %v883
          %v1958 = vunpack.c.l.b16 %v884
          %v1959 = vunpack.c.h.b16 %v884
          %v1960 = vunpack.c.l.b16 %v885
          %v1961 = vunpack.c.h.b16 %v885
          %v1962 = vunpack.c.l.b16 %v886
          %v1963 = vunpack.c.h.b16 %v886
          %v1964 = vunpack.c.l.b16 %v887
          %v1965 = vunpack.c.h.b16 %v887
          %v1966 = vunpack.c.l.b16 %v888
          %v1967 = vunpack.c.h.b16 %v888
          %v1968 = vunpack.c.l.b16 %v889
          %v1969 = vunpack.c.h.b16 %v889
          %v1970 = vunpack.c.l.b16 %v890
          %v1971 = vunpack.c.h.b16 %v890
          %v1972 = vunpack.c.l.b16 %v891
          %v1973 = vunpack.c.h.b16 %v891
          %v1974 = vunpack.c.l.b16 %v892
          %v1975 = vunpack.c.h.b16 %v892
          %v1976 = vunpack.c.l.b16 %v893
          %v1977 = vunpack.c.h.b16 %v893
          %v1978 = vunpack.c.l.b16 %v894
          %v1979 = vunpack.c.h.b16 %v894
          %v1980 = vunpack.c.l.b16 %v895
          %v1981 = vunpack.c.h.b16 %v895
          %v1982 = vunpack.c.l.b16 %v896
          %v1983 = vunpack.c.h.b16 %v896
          %v1984 = vunpack.c.l.b16 %v897
          %v1985 = vunpack.c.h.b16 %v897
          %v1986 = vunpack.c.l.b16 %v898
          %v1987 = vunpack.c.h.b16 %v898
          %v1988 = vunpack.c.l.b16 %v899
          %v1989 = vunpack.c.h.b16 %v899
          %v1990 = vunpack.c.l.b16 %v900
          %v1991 = vunpack.c.h.b16 %v900
          %v1992 = vunpack.c.l.b16 %v901
          %v1993 = vunpack.c.h.b16 %v901
          %v1994 = vunpack.c.l.b16 %v902
          %v1995 = vunpack.c.h.b16 %v902
          %v1996 = vunpack.c.l.b16 %v903
          %v1997 = vunpack.c.h.b16 %v903
          %v1998 = vunpack.c.l.b16 %v904
          %v1999 = vunpack.c.h.b16 %v904
          %v2000 = vunpack.c.l.b16 %v905
          %v2001 = vunpack.c.h.b16 %v905
          %v2002 = vunpack.c.l.b16 %v906
          %v2003 = vunpack.c.h.b16 %v906
          %v2004 = vunpack.c.l.b16 %v907
          %v2005 = vunpack.c.h.b16 %v907
          %v2006 = vunpack.c.l.b16 %v908
          %v2007 = vunpack.c.h.b16 %v908
          %v2008 = vunpack.c.l.b16 %v909
          %v2009 = vunpack.c.h.b16 %v909
          %v2010 = vunpack.c.l.b16 %v910
          %v2011 = vunpack.c.h.b16 %v910
          %v2012 = vunpack.c.l.b16 %v911
          %v2013 = vunpack.c.h.b16 %v911
          %v2014 = vunpack.c.l.b16 %v912
          %v2015 = vunpack.c.h.b16 %v912
          %v2016 = vunpack.c.l.b16 %v913
          %v2017 = vunpack.c.h.b16 %v913
          %v2018 = vunpack.c.l.b16 %v914
          %v2019 = vunpack.c.h.b16 %v914
          %v2020 = vunpack.c.l.b16 %v915
          %v2021 = vunpack.c.h.b16 %v915
          %v2022 = vunpack.c.l.b16 %v916
          %v2023 = vunpack.c.h.b16 %v916
          %v2024 = vunpack.c.l.b16 %v917
          %v2025 = vunpack.c.h.b16 %v917
          %v2026 = vunpack.c.l.b16 %v918
          %v2027 = vunpack.c.h.b16 %v918
          %v2028 = vunpack.c.l.b16 %v919
          %v2029 = vunpack.c.h.b16 %v919
          %v2030 = vunpack.c.l.b16 %v920
          %v2031 = vunpack.c.h.b16 %v920
          %v2032 = vunpack.c.l.b16 %v921
          %v2033 = vunpack.c.h.b16 %v921
          %v2034 = vunpack.c.l.b16 %v922
          %v2035 = vunpack.c.h.b16 %v922
          %v2036 = vunpack.c.l.b16 %v923
          %v2037 = vunpack.c.h.b16 %v923
          %v2038 = vunpack.c.l.b16 %v924
          %v2039 = vunpack.c.h.b16 %v924
          %v2040 = vunpack.c.l.b16 %v925
          %v2041 = vunpack.c.h.b16 %v925
          %v2042 = vunpack.c.l.b16 %v926
          %v2043 = vunpack.c.h.b16 %v926
          %v2044 = vunpack.c.l.b16 %v927
          %v2045 = vunpack.c.h.b16 %v927
          %v2046 = vunpack.c.l.b16 %v928
          %v2047 = vunpack.c.h.b16 %v928
          %v2048 = vunpack.c.l.b16 %v929
          %v2049 = vunpack.c.h.b16 %v929
          %v2050 = vunpack.c.l.b16 %v930
          %v2051 = vunpack.c.h.b16 %v930
          %v2052 = vunpack.c.l.b16 %v931
          %v2053 = vunpack.c.h.b16 %v931
          %v2054 = vunpack.c.l.b16 %v932
          %v2055 = vunpack.c.h.b16 %v932
          %v2056 = vunpack.c.l.b16 %v933
          %v2057 = vunpack.c.h.b16 %v933
          %v2058 = vunpack.c.l.b16 %v934
          %v2059 = vunpack.c.h.b16 %v934
          %v2060 = vunpack.c.l.b16 %v935
          %v2061 = vunpack.c.h.b16 %v935
          %v2062 = vunpack.c.l.b16 %v936
          %v2063 = vunpack.c.h.b16 %v936
          %v2064 = vunpack.c.l.b16 %v937
          %v2065 = vunpack.c.h.b16 %v937
          %v2066 = vunpack.c.l.b16 %v938
          %v2067 = vunpack.c.h.b16 %v938
          %v2068 = vunpack.c.l.b16 %v939
          %v2069 = vunpack.c.h.b16 %v939
          %v2070 = vunpack.c.l.b16 %v940
          %v2071 = vunpack.c.h.b16 %v940
          %v2072 = vunpack.c.l.b16 %v941
          %v2073 = vunpack.c.h.b16 %v941
          %v2074 = vunpack.c.l.b16 %v942
          %v2075 = vunpack.c.h.b16 %v942
          %v2076 = vunpack.c.l.b16 %v943
          %v2077 = vunpack.c.h.b16 %v943
          %v2078 = vunpack.c.l.b16 %v944
          %v2079 = vunpack.c.h.b16 %v944
          %v2080 = vunpack.c.l.b16 %v945
          %v2081 = vunpack.c.h.b16 %v945
          %v2082 = vunpack.c.l.b16 %v946
          %v2083 = vunpack.c.h.b16 %v946
          %v2084 = vunpack.c.l.b16 %v947
          %v2085 = vunpack.c.h.b16 %v947
          %v2086 = vunpack.c.l.b16 %v948
          %v2087 = vunpack.c.h.b16 %v948
          %v2088 = vunpack.c.l.b16 %v949
          %v2089 = vunpack.c.h.b16 %v949
          %v2090 = vunpack.c.l.b16 %v950
          %v2091 = vunpack.c.h.b16 %v950
          %v2092 = vunpack.c.l.b16 %v951
          %v2093 = vunpack.c.h.b16 %v951
          %v2094 = vunpack.c.l.b16 %v952
          %v2095 = vunpack.c.h.b16 %v952
          %v2096 = vunpack.c.l.b16 %v953
          %v2097 = vunpack.c.h.b16 %v953
          %v2098 = vunpack.c.l.b16 %v954
          %v2099 = vunpack.c.h.b16 %v954
          %v2100 = vunpack.c.l.b16 %v955
          %v2101 = vunpack.c.h.b16 %v955
          %v2102 = vunpack.c.l.b16 %v956
          %v2103 = vunpack.c.h.b16 %v956
          %v2104 = vunpack.c.l.b16 %v957
          %v2105 = vunpack.c.h.b16 %v957
          %v2106 = vunpack.c.l.b16 %v958
          %v2107 = vunpack.c.h.b16 %v958
          %v2108 = vunpack.c.l.b16 %v959
          %v2109 = vunpack.c.h.b16 %v959
          %v2110 = vunpack.c.l.b16 %v960
          %v2111 = vunpack.c.h.b16 %v960
          %v2112 = vunpack.c.l.b16 %v961
          %v2113 = vunpack.c.h.b16 %v961
          %v2114 = vunpack.c.l.b16 %v962
          %v2115 = vunpack.c.h.b16 %v962
          %v2116 = vunpack.c.l.b16 %v963
          %v2117 = vunpack.c.h.b16 %v963
          %v2118 = vunpack.c.l.b16 %v964
          %v2119 = vunpack.c.h.b16 %v964
          %v2120 = vunpack.c.l.b16 %v965
          %v2121 = vunpack.c.h.b16 %v965
          %v2122 = vunpack.c.l.b16 %v966
          %v2123 = vunpack.c.h.b16 %v966
          %v2124 = vunpack.c.l.b16 %v967
          %v2125 = vunpack.c.h.b16 %v967
          %v2126 = vunpack.c.l.b16 %v968
          %v2127 = vunpack.c.h.b16 %v968
          %v2128 = vunpack.c.l.b16 %v969
          %v2129 = vunpack.c.h.b16 %v969
          %v2130 = vunpack.c.l.b16 %v970
          %v2131 = vunpack.c.h.b16 %v970
          %v2132 = vunpack.c.l.b16 %v971
          %v2133 = vunpack.c.h.b16 %v971
          %v2134 = vunpack.c.l.b16 %v972
          %v2135 = vunpack.c.h.b16 %v972
          %v2136 = vunpack.c.l.b16 %v973
          %v2137 = vunpack.c.h.b16 %v973
          %v2138 = vunpack.c.l.b16 %v974
          %v2139 = vunpack.c.h.b16 %v974
          %v2140 = vunpack.c.l.b16 %v975
          %v2141 = vunpack.c.h.b16 %v975
          %v2142 = vunpack.c.l.b16 %v976
          %v2143 = vunpack.c.h.b16 %v976
          %v2144 = vunpack.c.l.b16 %v977
          %v2145 = vunpack.c.h.b16 %v977
          %v2146 = vunpack.c.l.b16 %v978
          %v2147 = vunpack.c.h.b16 %v978
          %v2148 = vunpack.c.l.b16 %v979
          %v2149 = vunpack.c.h.b16 %v979
          %v2150 = vunpack.c.l.b16 %v980
          %v2151 = vunpack.c.h.b16 %v980
          %v2152 = vunpack.c.l.b16 %v981
          %v2153 = vunpack.c.h.b16 %v981
          %v2154 = vunpack.c.l.b16 %v982
          %v2155 = vunpack.c.h.b16 %v982
          %v2156 = vunpack.c.l.b16 %v983
          %v2157 = vunpack.c.h.b16 %v983
          %v2158 = vunpack.c.l.b16 %v984
          %v2159 = vunpack.c.h.b16 %v984
          %v2160 = vunpack.c.l.b16 %v985
          %v2161 = vunpack.c.h.b16 %v985
          %v2162 = vunpack.c.l.b16 %v986
          %v2163 = vunpack.c.h.b16 %v986
          %v2164 = vunpack.c.l.b16 %v987
          %v2165 = vunpack.c.h.b16 %v987
          %v2166 = vunpack.c.l.b16 %v988
          %v2167 = vunpack.c.h.b16 %v988
          %v2168 = vunpack.c.l.b16 %v989
          %v2169 = vunpack.c.h.b16 %v989
          %v2170 = vunpack.c.l.b16 %v990
          %v2171 = vunpack.c.h.b16 %v990
          %v2172 = vunpack.c.l.b16 %v991
          %v2173 = vunpack.c.h.b16 %v991
          %v2174 = vunpack.c.l.b16 %v992
          %v2175 = vunpack.c.h.b16 %v992
          %v2176 = vunpack.c.l.b16 %v993
          %v2177 = vunpack.c.h.b16 %v993
          %v2178 = vpack.c.b16 %v1416, %v1410
          %v2179 = vpack.c.b16 %v1417, %v1411
          %v2180 = vpack.c.b16 %v1418, %v1412
          %v2181 = vpack.c.b16 %v1419, %v1413
          %v2182 = vpack.c.b16 %v1420, %v1414
          %v2183 = vpack.c.b16 %v1421, %v1415
          %v2184 = vpack.c.b16 %v1428, %v1422
          %v2185 = vpack.c.b16 %v1429, %v1423
          %v2186 = vpack.c.b16 %v1430, %v1424
          %v2187 = vpack.c.b16 %v1431, %v1425
          %v2188 = vpack.c.b16 %v1432, %v1426
          %v2189 = vpack.c.b16 %v1433, %v1427
          %v2190 = vpack.c.b16 %v1440, %v1434
          %v2191 = vpack.c.b16 %v1441, %v1435
          %v2192 = vpack.c.b16 %v1442, %v1436
          %v2193 = vpack.c.b16 %v1443, %v1437
          %v2194 = vpack.c.b16 %v1444, %v1438
          %v2195 = vpack.c.b16 %v1445, %v1439
          %v2196 = vpack.c.b16 %v1452, %v1446
          %v2197 = vpack.c.b16 %v1453, %v1447
          %v2198 = vpack.c.b16 %v1454, %v1448
          %v2199 = vpack.c.b16 %v1455, %v1449
          %v2200 = vpack.c.b16 %v1456, %v1450
          %v2201 = vpack.c.b16 %v1457, %v1451
          %v2202 = vpack.c.b16 %v1464, %v1458
          %v2203 = vpack.c.b16 %v1465, %v1459
          %v2204 = vpack.c.b16 %v1466, %v1460
          %v2205 = vpack.c.b16 %v1467, %v1461
          %v2206 = vpack.c.b16 %v1468, %v1462
          %v2207 = vpack.c.b16 %v1469, %v1463
          %v2208 = vpack.c.b16 %v1476, %v1470
          %v2209 = vpack.c.b16 %v1477, %v1471
          %v2210 = vpack.c.b16 %v1478, %v1472
          %v2211 = vpack.c.b16 %v1479, %v1473
          %v2212 = vpack.c.b16 %v1480, %v1474
          %v2213 = vpack.c.b16 %v1481, %v1475
          %v2214 = vpack.c.b16 %v1488, %v1482
          %v2215 = vpack.c.b16 %v1489, %v1483
          %v2216 = vpack.c.b16 %v1490, %v1484
          %v2217 = vpack.c.b16 %v1491, %v1485
          %v2218 = vpack.c.b16 %v1492, %v1486
          %v2219 = vpack.c.b16 %v1493, %v1487
          %v2220 = vpack.c.b16 %v1500, %v1494
          %v2221 = vpack.c.b16 %v1501, %v1495
          %v2222 = vpack.c.b16 %v1502, %v1496
          %v2223 = vpack.c.b16 %v1503, %v1497
          %v2224 = vpack.c.b16 %v1504, %v1498
          %v2225 = vpack.c.b16 %v1505, %v1499
          %v2226 = vpack.c.b16 %v1512, %v1506
          %v2227 = vpack.c.b16 %v1513, %v1507
          %v2228 = vpack.c.b16 %v1514, %v1508
          %v2229 = vpack.c.b16 %v1515, %v1509
          %v2230 = vpack.c.b16 %v1516, %v1510
          %v2231 = vpack.c.b16 %v1517, %v1511
          %v2232 = vpack.c.b16 %v1524, %v1518
          %v2233 = vpack.c.b16 %v1525, %v1519
          %v2234 = vpack.c.b16 %v1526, %v1520
          %v2235 = vpack.c.b16 %v1527, %v1521
          %v2236 = vpack.c.b16 %v1528, %v1522
          %v2237 = vpack.c.b16 %v1529, %v1523
          %v2238 = vpack.c.b16 %v1536, %v1530
          %v2239 = vpack.c.b16 %v1537, %v1531
          %v2240 = vpack.c.b16 %v1538, %v1532
          %v2241 = vpack.c.b16 %v1539, %v1533
          %v2242 = vpack.c.b16 %v1540, %v1534
          %v2243 = vpack.c.b16 %v1541, %v1535
          %v2244 = vpack.c.b16 %v1548, %v1542
          %v2245 = vpack.c.b16 %v1549, %v1543
          %v2246 = vpack.c.b16 %v1550, %v1544
          %v2247 = vpack.c.b16 %v1551, %v1545
          %v2248 = vpack.c.b16 %v1552, %v1546
          %v2249 = vpack.c.b16 %v1553, %v1547
          %v2250 = vpack.c.b16 %v1560, %v1554
          %v2251 = vpack.c.b16 %v1561, %v1555
          %v2252 = vpack.c.b16 %v1562, %v1556
          %v2253 = vpack.c.b16 %v1563, %v1557
          %v2254 = vpack.c.b16 %v1564, %v1558
          %v2255 = vpack.c.b16 %v1565, %v1559
          %v2256 = vpack.c.b16 %v1572, %v1566
          %v2257 = vpack.c.b16 %v1573, %v1567
          %v2258 = vpack.c.b16 %v1574, %v1568
          %v2259 = vpack.c.b16 %v1575, %v1569
          %v2260 = vpack.c.b16 %v1576, %v1570
          %v2261 = vpack.c.b16 %v1577, %v1571
          %v2262 = vpack.c.b16 %v1584, %v1578
          %v2263 = vpack.c.b16 %v1585, %v1579
          %v2264 = vpack.c.b16 %v1586, %v1580
          %v2265 = vpack.c.b16 %v1587, %v1581
          %v2266 = vpack.c.b16 %v1588, %v1582
          %v2267 = vpack.c.b16 %v1589, %v1583
          %v2268 = vpack.c.b16 %v1596, %v1590
          %v2269 = vpack.c.b16 %v1597, %v1591
          %v2270 = vpack.c.b16 %v1598, %v1592
          %v2271 = vpack.c.b16 %v1599, %v1593
          %v2272 = vpack.c.b16 %v1600, %v1594
          %v2273 = vpack.c.b16 %v1601, %v1595
          %v2274 = vpack.c.b16 %v1608, %v1602
          %v2275 = vpack.c.b16 %v1609, %v1603
          %v2276 = vpack.c.b16 %v1610, %v1604
          %v2277 = vpack.c.b16 %v1611, %v1605
          %v2278 = vpack.c.b16 %v1612, %v1606
          %v2279 = vpack.c.b16 %v1613, %v1607
          %v2280 = vpack.c.b16 %v1620, %v1614
          %v2281 = vpack.c.b16 %v1621, %v1615
          %v2282 = vpack.c.b16 %v1622, %v1616
          %v2283 = vpack.c.b16 %v1623, %v1617
          %v2284 = vpack.c.b16 %v1624, %v1618
          %v2285 = vpack.c.b16 %v1625, %v1619
          %v2286 = vpack.c.b16 %v1632, %v1626
          %v2287 = vpack.c.b16 %v1633, %v1627
          %v2288 = vpack.c.b16 %v1634, %v1628
          %v2289 = vpack.c.b16 %v1635, %v1629
          %v2290 = vpack.c.b16 %v1636, %v1630
          %v2291 = vpack.c.b16 %v1637, %v1631
          %v2292 = vpack.c.b16 %v1644, %v1638
          %v2293 = vpack.c.b16 %v1645, %v1639
          %v2294 = vpack.c.b16 %v1646, %v1640
          %v2295 = vpack.c.b16 %v1647, %v1641
          %v2296 = vpack.c.b16 %v1648, %v1642
          %v2297 = vpack.c.b16 %v1649, %v1643
          %v2298 = vpack.c.b16 %v1656, %v1650
          %v2299 = vpack.c.b16 %v1657, %v1651
          %v2300 = vpack.c.b16 %v1658, %v1652
          %v2301 = vpack.c.b16 %v1659, %v1653
          %v2302 = vpack.c.b16 %v1660, %v1654
          %v2303 = vpack.c.b16 %v1661, %v1655
          %v2304 = vpack.c.b16 %v1668, %v1662
          %v2305 = vpack.c.b16 %v1669, %v1663
          %v2306 = vpack.c.b16 %v1670, %v1664
          %v2307 = vpack.c.b16 %v1671, %v1665
          %v2308 = vpack.c.b16 %v1672, %v1666
          %v2309 = vpack.c.b16 %v1673, %v1667
          %v2310 = vpack.c.b16 %v1680, %v1674
          %v2311 = vpack.c.b16 %v1681, %v1675
          %v2312 = vpack.c.b16 %v1682, %v1676
          %v2313 = vpack.c.b16 %v1683, %v1677
          %v2314 = vpack.c.b16 %v1684, %v1678
          %v2315 = vpack.c.b16 %v1685, %v1679
          %v2316 = vpack.c.b16 %v1692, %v1686
          %v2317 = vpack.c.b16 %v1693, %v1687
          %v2318 = vpack.c.b16 %v1694, %v1688
          %v2319 = vpack.c.b16 %v1695, %v1689
          %v2320 = vpack.c.b16 %v1696, %v1690
          %v2321 = vpack.c.b16 %v1697, %v1691
          %v2322 = vpack.c.b16 %v1704, %v1698
          %v2323 = vpack.c.b16 %v1705, %v1699
          %v2324 = vpack.c.b16 %v1706, %v1700
          %v2325 = vpack.c.b16 %v1707, %v1701
          %v2326 = vpack.c.b16 %v1708, %v1702
          %v2327 = vpack.c.b16 %v1709, %v1703
          %v2328 = vpack.c.b16 %v1716, %v1710
          %v2329 = vpack.c.b16 %v1717, %v1711
          %v2330 = vpack.c.b16 %v1718, %v1712
          %v2331 = vpack.c.b16 %v1719, %v1713
          %v2332 = vpack.c.b16 %v1720, %v1714
          %v2333 = vpack.c.b16 %v1721, %v1715
          %v2334 = vpack.c.b16 %v1728, %v1722
          %v2335 = vpack.c.b16 %v1729, %v1723
          %v2336 = vpack.c.b16 %v1730, %v1724
          %v2337 = vpack.c.b16 %v1731, %v1725
          %v2338 = vpack.c.b16 %v1732, %v1726
          %v2339 = vpack.c.b16 %v1733, %v1727
          %v2340 = vpack.c.b16 %v1740, %v1734
          %v2341 = vpack.c.b16 %v1741, %v1735
          %v2342 = vpack.c.b16 %v1742, %v1736
          %v2343 = vpack.c.b16 %v1743, %v1737
          %v2344 = vpack.c.b16 %v1744, %v1738
          %v2345 = vpack.c.b16 %v1745, %v1739
          %v2346 = vpack.c.b16 %v1752, %v1746
          %v2347 = vpack.c.b16 %v1753, %v1747
          %v2348 = vpack.c.b16 %v1754, %v1748
          %v2349 = vpack.c.b16 %v1755, %v1749
          %v2350 = vpack.c.b16 %v1756, %v1750
          %v2351 = vpack.c.b16 %v1757, %v1751
          %v2352 = vpack.c.b16 %v1764, %v1758
          %v2353 = vpack.c.b16 %v1765, %v1759
          %v2354 = vpack.c.b16 %v1766, %v1760
          %v2355 = vpack.c.b16 %v1767, %v1761
          %v2356 = vpack.c.b16 %v1768, %v1762
          %v2357 = vpack.c.b16 %v1769, %v1763
          %v2358 = vpack.c.b16 %v1776, %v1770
          %v2359 = vpack.c.b16 %v1777, %v1771
          %v2360 = vpack.c.b16 %v1778, %v1772
          %v2361 = vpack.c.b16 %v1779, %v1773
          %v2362 = vpack.c.b16 %v1780, %v1774
          %v2363 = vpack.c.b16 %v1781, %v1775
          %v2364 = vpack.c.b16 %v1788, %v1782
          %v2365 = vpack.c.b16 %v1789, %v1783
          %v2366 = vpack.c.b16 %v1790, %v1784
          %v2367 = vpack.c.b16 %v1791, %v1785
          %v2368 = vpack.c.b16 %v1792, %v1786
          %v2369 = vpack.c.b16 %v1793, %v1787
          %v2370 = vpack.c.b16 %v1800, %v1794
          %v2371 = vpack.c.b16 %v1801, %v1795
          %v2372 = vpack.c.b16 %v1802, %v1796
          %v2373 = vpack.c.b16 %v1803, %v1797
          %v2374 = vpack.c.b16 %v1804, %v1798
          %v2375 = vpack.c.b16 %v1805, %v1799
          %v2376 = vpack.c.b16 %v1812, %v1806
          %v2377 = vpack.c.b16 %v1813, %v1807
          %v2378 = vpack.c.b16 %v1814, %v1808
          %v2379 = vpack.c.b16 %v1815, %v1809
          %v2380 = vpack.c.b16 %v1816, %v1810
          %v2381 = vpack.c.b16 %v1817, %v1811
          %v2382 = vpack.c.b16 %v1824, %v1818
          %v2383 = vpack.c.b16 %v1825, %v1819
          %v2384 = vpack.c.b16 %v1826, %v1820
          %v2385 = vpack.c.b16 %v1827, %v1821
          %v2386 = vpack.c.b16 %v1828, %v1822
          %v2387 = vpack.c.b16 %v1829, %v1823
          %v2388 = vpack.c.b16 %v1836, %v1830
          %v2389 = vpack.c.b16 %v1837, %v1831
          %v2390 = vpack.c.b16 %v1838, %v1832
          %v2391 = vpack.c.b16 %v1839, %v1833
          %v2392 = vpack.c.b16 %v1840, %v1834
          %v2393 = vpack.c.b16 %v1841, %v1835
          %v2394 = vpack.c.b16 %v1848, %v1842
          %v2395 = vpack.c.b16 %v1849, %v1843
          %v2396 = vpack.c.b16 %v1850, %v1844
          %v2397 = vpack.c.b16 %v1851, %v1845
          %v2398 = vpack.c.b16 %v1852, %v1846
          %v2399 = vpack.c.b16 %v1853, %v1847
          %v2400 = vpack.c.b16 %v1860, %v1854
          %v2401 = vpack.c.b16 %v1861, %v1855
          %v2402 = vpack.c.b16 %v1862, %v1856
          %v2403 = vpack.c.b16 %v1863, %v1857
          %v2404 = vpack.c.b16 %v1864, %v1858
          %v2405 = vpack.c.b16 %v1865, %v1859
          %v2406 = vpack.c.b16 %v1872, %v1866
          %v2407 = vpack.c.b16 %v1873, %v1867
          %v2408 = vpack.c.b16 %v1874, %v1868
          %v2409 = vpack.c.b16 %v1875, %v1869
          %v2410 = vpack.c.b16 %v1876, %v1870
          %v2411 = vpack.c.b16 %v1877, %v1871
          %v2412 = vpack.c.b16 %v1884, %v1878
          %v2413 = vpack.c.b16 %v1885, %v1879
          %v2414 = vpack.c.b16 %v1886, %v1880
          %v2415 = vpack.c.b16 %v1887, %v1881
          %v2416 = vpack.c.b16 %v1888, %v1882
          %v2417 = vpack.c.b16 %v1889, %v1883
          %v2418 = vpack.c.b16 %v1896, %v1890
          %v2419 = vpack.c.b16 %v1897, %v1891
          %v2420 = vpack.c.b16 %v1898, %v1892
          %v2421 = vpack.c.b16 %v1899, %v1893
          %v2422 = vpack.c.b16 %v1900, %v1894
          %v2423 = vpack.c.b16 %v1901, %v1895
          %v2424 = vpack.c.b16 %v1908, %v1902
          %v2425 = vpack.c.b16 %v1909, %v1903
          %v2426 = vpack.c.b16 %v1910, %v1904
          %v2427 = vpack.c.b16 %v1911, %v1905
          %v2428 = vpack.c.b16 %v1912, %v1906
          %v2429 = vpack.c.b16 %v1913, %v1907
          %v2430 = vpack.c.b16 %v1920, %v1914
          %v2431 = vpack.c.b16 %v1921, %v1915
          %v2432 = vpack.c.b16 %v1922, %v1916
          %v2433 = vpack.c.b16 %v1923, %v1917
          %v2434 = vpack.c.b16 %v1924, %v1918
          %v2435 = vpack.c.b16 %v1925, %v1919
          %v2436 = vpack.c.b16 %v1932, %v1926
          %v2437 = vpack.c.b16 %v1933, %v1927
          %v2438 = vpack.c.b16 %v1934, %v1928
          %v2439 = vpack.c.b16 %v1935, %v1929
          %v2440 = vpack.c.b16 %v1936, %v1930
          %v2441 = vpack.c.b16 %v1937, %v1931
          %v2442 = vpack.c.b16 %v1944, %v1938
          %v2443 = vpack.c.b16 %v1945, %v1939
          %v2444 = vpack.c.b16 %v1946, %v1940
          %v2445 = vpack.c.b16 %v1947, %v1941
          %v2446 = vpack.c.b16 %v1948, %v1942
          %v2447 = vpack.c.b16 %v1949, %v1943
          %v2448 = vpack.c.b16 %v1956, %v1950
          %v2449 = vpack.c.b16 %v1957, %v1951
          %v2450 = vpack.c.b16 %v1958, %v1952
          %v2451 = vpack.c.b16 %v1959, %v1953
          %v2452 = vpack.c.b16 %v1960, %v1954
          %v2453 = vpack.c.b16 %v1961, %v1955
          %v2454 = vpack.c.b16 %v1968, %v1962
          %v2455 = vpack.c.b16 %v1969, %v1963
          %v2456 = vpack.c.b16 %v1970, %v1964
          %v2457 = vpack.c.b16 %v1971, %v1965
          %v2458 = vpack.c.b16 %v1972, %v1966
          %v2459 = vpack.c.b16 %v1973, %v1967
          %v2460 = vpack.c.b16 %v1980, %v1974
          %v2461 = vpack.c.b16 %v1981, %v1975
          %v2462 = vpack.c.b16 %v1982, %v1976
          %v2463 = vpack.c.b16 %v1983, %v1977
          %v2464 = vpack.c.b16 %v1984, %v1978
          %v2465 = vpack.c.b16 %v1985, %v1979
          %v2466 = vpack.c.b16 %v1992, %v1986
          %v2467 = vpack.c.b16 %v1993, %v1987
          %v2468 = vpack.c.b16 %v1994, %v1988
          %v2469 = vpack.c.b16 %v1995, %v1989
          %v2470 = vpack.c.b16 %v1996, %v1990
          %v2471 = vpack.c.b16 %v1997, %v1991
          %v2472 = vpack.c.b16 %v2004, %v1998
          %v2473 = vpack.c.b16 %v2005, %v1999
          %v2474 = vpack.c.b16 %v2006, %v2000
          %v2475 = vpack.c.b16 %v2007, %v2001
          %v2476 = vpack.c.b16 %v2008, %v2002
          %v2477 = vpack.c.b16 %v2009, %v2003
          %v2478 = vpack.c.b16 %v2016, %v2010
          %v2479 = vpack.c.b16 %v2017, %v2011
          %v2480 = vpack.c.b16 %v2018, %v2012
          %v2481 = vpack.c.b16 %v2019, %v2013
          %v2482 = vpack.c.b16 %v2020, %v2014
          %v2483 = vpack.c.b16 %v2021, %v2015
          %v2484 = vpack.c.b16 %v2028, %v2022
          %v2485 = vpack.c.b16 %v2029, %v2023
          %v2486 = vpack.c.b16 %v2030, %v2024
          %v2487 = vpack.c.b16 %v2031, %v2025
          %v2488 = vpack.c.b16 %v2032, %v2026
          %v2489 = vpack.c.b16 %v2033, %v2027
          %v2490 = vpack.c.b16 %v2040, %v2034
          %v2491 = vpack.c.b16 %v2041, %v2035
          %v2492 = vpack.c.b16 %v2042, %v2036
          %v2493 = vpack.c.b16 %v2043, %v2037
          %v2494 = vpack.c.b16 %v2044, %v2038
          %v2495 = vpack.c.b16 %v2045, %v2039
          %v2496 = vpack.c.b16 %v2052, %v2046
          %v2497 = vpack.c.b16 %v2053, %v2047
          %v2498 = vpack.c.b16 %v2054, %v2048
          %v2499 = vpack.c.b16 %v2055, %v2049
          %v2500 = vpack.c.b16 %v2056, %v2050
          %v2501 = vpack.c.b16 %v2057, %v2051
          %v2502 = vpack.c.b16 %v2064, %v2058
          %v2503 = vpack.c.b16 %v2065, %v2059
          %v2504 = vpack.c.b16 %v2066, %v2060
          %v2505 = vpack.c.b16 %v2067, %v2061
          %v2506 = vpack.c.b16 %v2068, %v2062
          %v2507 = vpack.c.b16 %v2069, %v2063
          %v2508 = vpack.c.b16 %v2076, %v2070
          %v2509 = vpack.c.b16 %v2077, %v2071
          %v2510 = vpack.c.b16 %v2078, %v2072
          %v2511 = vpack.c.b16 %v2079, %v2073
          %v2512 = vpack.c.b16 %v2080, %v2074
          %v2513 = vpack.c.b16 %v2081, %v2075
          %v2514 = vpack.c.b16 %v2088, %v2082
          %v2515 = vpack.c.b16 %v2089, %v2083
          %v2516 = vpack.c.b16 %v2090, %v2084
          %v2517 = vpack.c.b16 %v2091, %v2085
          %v2518 = vpack.c.b16 %v2092, %v2086
          %v2519 = vpack.c.b16 %v2093, %v2087
          %v2520 = vpack.c.b16 %v2100, %v2094
          %v2521 = vpack.c.b16 %v2101, %v2095
          %v2522 = vpack.c.b16 %v2102, %v2096
          %v2523 = vpack.c.b16 %v2103, %v2097
          %v2524 = vpack.c.b16 %v2104, %v2098
          %v2525 = vpack.c.b16 %v2105, %v2099
          %v2526 = vpack.c.b16 %v2112, %v2106
          %v2527 = vpack.c.b16 %v2113, %v2107
          %v2528 = vpack.c.b16 %v2114, %v2108
          %v2529 = vpack.c.b16 %v2115, %v2109
          %v2530 = vpack.c.b16 %v2116, %v2110
          %v2531 = vpack.c.b16 %v2117, %v2111
          %v2532 = vpack.c.b16 %v2124, %v2118
          %v2533 = vpack.c.b16 %v2125, %v2119
          %v2534 = vpack.c.b16 %v2126, %v2120
          %v2535 = vpack.c.b16 %v2127, %v2121
          %v2536 = vpack.c.b16 %v2128, %v2122
          %v2537 = vpack.c.b16 %v2129, %v2123
          %v2538 = vpack.c.b16 %v2136, %v2130
          %v2539 = vpack.c.b16 %v2137, %v2131
          %v2540 = vpack.c.b16 %v2138, %v2132
          %v2541 = vpack.c.b16 %v2139, %v2133
          %v2542 = vpack.c.b16 %v2140, %v2134
          %v2543 = vpack.c.b16 %v2141, %v2135
          %v2544 = vpack.c.b16 %v2148, %v2142
          %v2545 = vpack.c.b16 %v2149, %v2143
          %v2546 = vpack.c.b16 %v2150, %v2144
          %v2547 = vpack.c.b16 %v2151, %v2145
          %v2548 = vpack.c.b16 %v2152, %v2146
          %v2549 = vpack.c.b16 %v2153, %v2147
          %v2550 = vpack.c.b16 %v2160, %v2154
          %v2551 = vpack.c.b16 %v2161, %v2155
          %v2552 = vpack.c.b16 %v2162, %v2156
          %v2553 = vpack.c.b16 %v2163, %v2157
          %v2554 = vpack.c.b16 %v2164, %v2158
          %v2555 = vpack.c.b16 %v2165, %v2159
          %v2556 = vpack.c.b16 %v2172, %v2166
          %v2557 = vpack.c.b16 %v2173, %v2167
          %v2558 = vpack.c.b16 %v2174, %v2168
          %v2559 = vpack.c.b16 %v2175, %v2169
          %v2560 = vpack.c.b16 %v2176, %v2170
          %v2561 = vpack.c.b16 %v2177, %v2171
          %2946 = vmatprep.subr.bf16.mxu0 %v2179
          %2947 = vmatpush1.bf16.msra.mxu0 %v2178
          %2948 = vmatprep.subr.bf16.mxu0 %v2185
          %2949 = vmatpush1.bf16.msra.mxu0 %v2184
          %2950 = vmatprep.subr.bf16.mxu0 %v2191
          %2951 = vmatpush1.bf16.msra.mxu0 %v2190
          %2952 = vmatprep.subr.bf16.mxu0 %v2197
          %2953 = vmatpush1.bf16.msra.mxu0 %v2196
          %2954 = vmatprep.subr.bf16.mxu0 %v2203
          %2955 = vmatpush1.bf16.msra.mxu0 %v2202
          %2956 = vmatprep.subr.bf16.mxu0 %v2209
          %2957 = vmatpush1.bf16.msra.mxu0 %v2208
          %2958 = vmatprep.subr.bf16.mxu0 %v2215
          %2959 = vmatpush1.bf16.msra.mxu0 %v2214
          %2960 = vmatprep.subr.bf16.mxu0 %v2221
          %2961 = vmatpush1.bf16.msra.mxu0 %v2220
          %2962 = vmatprep.subr.bf16.mxu0 %v2227
          %2963 = vmatpush1.bf16.msra.mxu0 %v2226
          %2964 = vmatprep.subr.bf16.mxu0 %v2233
          %2965 = vmatpush1.bf16.msra.mxu0 %v2232
          %2966 = vmatprep.subr.bf16.mxu0 %v2239
          %2967 = vmatpush1.bf16.msra.mxu0 %v2238
          %2968 = vmatprep.subr.bf16.mxu0 %v2245
          %2969 = vmatpush1.bf16.msra.mxu0 %v2244
          %2970 = vmatprep.subr.bf16.mxu0 %v2251
          %2971 = vmatpush1.bf16.msra.mxu0 %v2250
          %2972 = vmatprep.subr.bf16.mxu0 %v2257
          %2973 = vmatpush1.bf16.msra.mxu0 %v2256
          %2974 = vmatprep.subr.bf16.mxu0 %v2263
          %2975 = vmatpush1.bf16.msra.mxu0 %v2262
          %2976 = vmatprep.subr.bf16.mxu0 %v2269
          %2977 = vmatpush1.bf16.msra.mxu0 %v2268
          %2978 = vmatprep.mubr.bf16.mxu0 %v603
          %2979 = vmatmul.mubr.bf16.gmra.mrb[0].mxu0 %v602
          %v2980 = vpop.f32.mrb[0].mxu0
          %v2981 = vadd.f32 %v999, %v2980
          %v2982 = vpop.f32.mrb[0].mxu0
          %v2983 = vadd.f32 %v1003, %v2982
          %v2984 = vpop.f32.mrb[0].mxu0
          %v2985 = vpop.f32.mrb[0].mxu0
          %2986 = vdwg.mxu0
          %2987 = vmatprep.subr.bf16.mxu0 %v2275
          %2988 = vmatpush1.bf16.msra.mxu0 %v2274
          %2989 = vmatprep.subr.bf16.mxu0 %v2281
          %2990 = vmatpush1.bf16.msra.mxu0 %v2280
          %2991 = vmatprep.subr.bf16.mxu0 %v2287
          %2992 = vmatpush1.bf16.msra.mxu0 %v2286
          %2993 = vmatprep.subr.bf16.mxu0 %v2293
          %2994 = vmatpush1.bf16.msra.mxu0 %v2292
          %2995 = vmatprep.subr.bf16.mxu0 %v2299
          %2996 = vmatpush1.bf16.msra.mxu0 %v2298
          %2997 = vmatprep.subr.bf16.mxu0 %v2305
          %2998 = vmatpush1.bf16.msra.mxu0 %v2304
          %2999 = vmatprep.subr.bf16.mxu0 %v2311
          %3000 = vmatpush1.bf16.msra.mxu0 %v2310
          %3001 = vmatprep.subr.bf16.mxu0 %v2317
          %3002 = vmatpush1.bf16.msra.mxu0 %v2316
          %3003 = vmatprep.subr.bf16.mxu0 %v2323
          %3004 = vmatpush1.bf16.msra.mxu0 %v2322
          %3005 = vmatprep.subr.bf16.mxu0 %v2329
          %3006 = vmatpush1.bf16.msra.mxu0 %v2328
          %3007 = vmatprep.subr.bf16.mxu0 %v2335
          %3008 = vmatpush1.bf16.msra.mxu0 %v2334
          %3009 = vmatprep.subr.bf16.mxu0 %v2341
          %3010 = vmatpush1.bf16.msra.mxu0 %v2340
          %3011 = vmatprep.subr.bf16.mxu0 %v2347
          %3012 = vmatpush1.bf16.msra.mxu0 %v2346
          %3013 = vmatprep.subr.bf16.mxu0 %v2353
          %3014 = vmatpush1.bf16.msra.mxu0 %v2352
          %3015 = vmatprep.subr.bf16.mxu0 %v2359
          %3016 = vmatpush1.bf16.msra.mxu0 %v2358
          %3017 = vmatprep.subr.bf16.mxu0 %v2365
          %3018 = vmatpush1.bf16.msra.mxu0 %v2364
          %3019 = vmatprep.mubr.bf16.mxu0 %v605
          %3020 = vmatmul.mubr.bf16.gmra.mrb[0].mxu0 %v604
          %v3021 = vpop.f32.mrb[0].mxu0
          %v3022 = vadd.f32 %v2981, %v3021
          %v3023 = vpop.f32.mrb[0].mxu0
          %v3024 = vadd.f32 %v2983, %v3023
          %v3025 = vpop.f32.mrb[0].mxu0
          %v3026 = vpop.f32.mrb[0].mxu0
          %3027 = vdwg.mxu0
          %3028 = vmatprep.subr.bf16.mxu0 %v2371
          %3029 = vmatpush1.bf16.msra.mxu0 %v2370
          %3030 = vmatprep.subr.bf16.mxu0 %v2377
          %3031 = vmatpush1.bf16.msra.mxu0 %v2376
          %3032 = vmatprep.subr.bf16.mxu0 %v2383
          %3033 = vmatpush1.bf16.msra.mxu0 %v2382
          %3034 = vmatprep.subr.bf16.mxu0 %v2389
          %3035 = vmatpush1.bf16.msra.mxu0 %v2388
          %3036 = vmatprep.subr.bf16.mxu0 %v2395
          %3037 = vmatpush1.bf16.msra.mxu0 %v2394
          %3038 = vmatprep.subr.bf16.mxu0 %v2401
          %3039 = vmatpush1.bf16.msra.mxu0 %v2400
          %3040 = vmatprep.subr.bf16.mxu0 %v2407
          %3041 = vmatpush1.bf16.msra.mxu0 %v2406
          %3042 = vmatprep.subr.bf16.mxu0 %v2413
          %3043 = vmatpush1.bf16.msra.mxu0 %v2412
          %3044 = vmatprep.subr.bf16.mxu0 %v2419
          %3045 = vmatpush1.bf16.msra.mxu0 %v2418
          %3046 = vmatprep.subr.bf16.mxu0 %v2425
          %3047 = vmatpush1.bf16.msra.mxu0 %v2424
          %3048 = vmatprep.subr.bf16.mxu0 %v2431
          %3049 = vmatpush1.bf16.msra.mxu0 %v2430
          %3050 = vmatprep.subr.bf16.mxu0 %v2437
          %3051 = vmatpush1.bf16.msra.mxu0 %v2436
          %3052 = vmatprep.subr.bf16.mxu0 %v2443
          %3053 = vmatpush1.bf16.msra.mxu0 %v2442
          %3054 = vmatprep.subr.bf16.mxu0 %v2449
          %3055 = vmatpush1.bf16.msra.mxu0 %v2448
          %3056 = vmatprep.subr.bf16.mxu0 %v2455
          %3057 = vmatpush1.bf16.msra.mxu0 %v2454
          %3058 = vmatprep.subr.bf16.mxu0 %v2461
          %3059 = vmatpush1.bf16.msra.mxu0 %v2460
          %3060 = vmatprep.mubr.bf16.mxu0 %v607
          %3061 = vmatmul.mubr.bf16.gmra.mrb[0].mxu0 %v606
          %v3062 = vpop.f32.mrb[0].mxu0
          %v3063 = vadd.f32 %v3022, %v3062
          %v3064 = vpop.f32.mrb[0].mxu0
          %v3065 = vadd.f32 %v3024, %v3064
          %v3066 = vpop.f32.mrb[0].mxu0
          %v3067 = vpop.f32.mrb[0].mxu0
          %3068 = vdwg.mxu0
          %3069 = vmatprep.subr.bf16.mxu0 %v2467
          %3070 = vmatpush1.bf16.msra.mxu0 %v2466
          %3071 = vmatprep.subr.bf16.mxu0 %v2473
          %3072 = vmatpush1.bf16.msra.mxu0 %v2472
          %3073 = vmatprep.subr.bf16.mxu0 %v2479
          %3074 = vmatpush1.bf16.msra.mxu0 %v2478
          %3075 = vmatprep.subr.bf16.mxu0 %v2485
          %3076 = vmatpush1.bf16.msra.mxu0 %v2484
          %3077 = vmatprep.subr.bf16.mxu0 %v2491
          %3078 = vmatpush1.bf16.msra.mxu0 %v2490
          %3079 = vmatprep.subr.bf16.mxu0 %v2497
          %3080 = vmatpush1.bf16.msra.mxu0 %v2496
          %3081 = vmatprep.subr.bf16.mxu0 %v2503
          %3082 = vmatpush1.bf16.msra.mxu0 %v2502
          %3083 = vmatprep.subr.bf16.mxu0 %v2509
          %3084 = vmatpush1.bf16.msra.mxu0 %v2508
          %3085 = vmatprep.subr.bf16.mxu0 %v2515
          %3086 = vmatpush1.bf16.msra.mxu0 %v2514
          %3087 = vmatprep.subr.bf16.mxu0 %v2521
          %3088 = vmatpush1.bf16.msra.mxu0 %v2520
          %3089 = vmatprep.subr.bf16.mxu0 %v2527
          %3090 = vmatpush1.bf16.msra.mxu0 %v2526
          %3091 = vmatprep.subr.bf16.mxu0 %v2533
          %3092 = vmatpush1.bf16.msra.mxu0 %v2532
          %3093 = vmatprep.subr.bf16.mxu0 %v2539
          %3094 = vmatpush1.bf16.msra.mxu0 %v2538
          %3095 = vmatprep.subr.bf16.mxu0 %v2545
          %3096 = vmatpush1.bf16.msra.mxu0 %v2544
          %3097 = vmatprep.subr.bf16.mxu0 %v2551
          %3098 = vmatpush1.bf16.msra.mxu0 %v2550
          %3099 = vmatprep.subr.bf16.mxu0 %v2557
          %3100 = vmatpush1.bf16.msra.mxu0 %v2556
          %3101 = vmatprep.mubr.bf16.mxu0 %v609
          %3102 = vmatmul.mubr.bf16.gmra.mrb[0].mxu0 %v608
          %v3103 = vpop.f32.mrb[0].mxu0
          %v3104 = vadd.f32 %v3063, %v3103
          %v3105 = vpop.f32.mrb[0].mxu0
          %v3106 = vadd.f32 %v3065, %v3105
          %v3107 = vpop.f32.mrb[0].mxu0
          %v3108 = vpop.f32.mrb[0].mxu0
          %3109 = vdwg.mxu0
          %3110 = vmatprep.subr.bf16.mxu0 %v2181
          %3111 = vmatpush1.bf16.msra.mxu0 %v2180
          %3112 = vmatprep.subr.bf16.mxu0 %v2187
          %3113 = vmatpush1.bf16.msra.mxu0 %v2186
          %3114 = vmatprep.subr.bf16.mxu0 %v2193
          %3115 = vmatpush1.bf16.msra.mxu0 %v2192
          %3116 = vmatprep.subr.bf16.mxu0 %v2199
          %3117 = vmatpush1.bf16.msra.mxu0 %v2198
          %3118 = vmatprep.subr.bf16.mxu0 %v2205
          %3119 = vmatpush1.bf16.msra.mxu0 %v2204
          %3120 = vmatprep.subr.bf16.mxu0 %v2211
          %3121 = vmatpush1.bf16.msra.mxu0 %v2210
          %3122 = vmatprep.subr.bf16.mxu0 %v2217
          %3123 = vmatpush1.bf16.msra.mxu0 %v2216
          %3124 = vmatprep.subr.bf16.mxu0 %v2223
          %3125 = vmatpush1.bf16.msra.mxu0 %v2222
          %3126 = vmatprep.subr.bf16.mxu0 %v2229
          %3127 = vmatpush1.bf16.msra.mxu0 %v2228
          %3128 = vmatprep.subr.bf16.mxu0 %v2235
          %3129 = vmatpush1.bf16.msra.mxu0 %v2234
          %3130 = vmatprep.subr.bf16.mxu0 %v2241
          %3131 = vmatpush1.bf16.msra.mxu0 %v2240
          %3132 = vmatprep.subr.bf16.mxu0 %v2247
          %3133 = vmatpush1.bf16.msra.mxu0 %v2246
          %3134 = vmatprep.subr.bf16.mxu0 %v2253
          %3135 = vmatpush1.bf16.msra.mxu0 %v2252
          %3136 = vmatprep.subr.bf16.mxu0 %v2259
          %3137 = vmatpush1.bf16.msra.mxu0 %v2258
          %3138 = vmatprep.subr.bf16.mxu0 %v2265
          %3139 = vmatpush1.bf16.msra.mxu0 %v2264
          %3140 = vmatprep.subr.bf16.mxu0 %v2271
          %3141 = vmatpush1.bf16.msra.mxu0 %v2270
          %3142 = vmatprep.mubr.bf16.mxu0 %v603
          %3143 = vmatmul.mubr.bf16.gmra.mrb[0].mxu0 %v602
          %v3144 = vpop.f32.mrb[0].mxu0
          %v3145 = vadd.f32 %v1007, %v3144
          %v3146 = vpop.f32.mrb[0].mxu0
          %v3147 = vadd.f32 %v1011, %v3146
          %v3148 = vpop.f32.mrb[0].mxu0
          %v3149 = vpop.f32.mrb[0].mxu0
          %3150 = vdwg.mxu0
          %3151 = vmatprep.subr.bf16.mxu0 %v2277
          %3152 = vmatpush1.bf16.msra.mxu0 %v2276
          %3153 = vmatprep.subr.bf16.mxu0 %v2283
          %3154 = vmatpush1.bf16.msra.mxu0 %v2282
          %3155 = vmatprep.subr.bf16.mxu0 %v2289
          %3156 = vmatpush1.bf16.msra.mxu0 %v2288
          %3157 = vmatprep.subr.bf16.mxu0 %v2295
          %3158 = vmatpush1.bf16.msra.mxu0 %v2294
          %3159 = vmatprep.subr.bf16.mxu0 %v2301
          %3160 = vmatpush1.bf16.msra.mxu0 %v2300
          %3161 = vmatprep.subr.bf16.mxu0 %v2307
          %3162 = vmatpush1.bf16.msra.mxu0 %v2306
          %3163 = vmatprep.subr.bf16.mxu0 %v2313
          %3164 = vmatpush1.bf16.msra.mxu0 %v2312
          %3165 = vmatprep.subr.bf16.mxu0 %v2319
          %3166 = vmatpush1.bf16.msra.mxu0 %v2318
          %3167 = vmatprep.subr.bf16.mxu0 %v2325
          %3168 = vmatpush1.bf16.msra.mxu0 %v2324
          %3169 = vmatprep.subr.bf16.mxu0 %v2331
          %3170 = vmatpush1.bf16.msra.mxu0 %v2330
          %3171 = vmatprep.subr.bf16.mxu0 %v2337
          %3172 = vmatpush1.bf16.msra.mxu0 %v2336
          %3173 = vmatprep.subr.bf16.mxu0 %v2343
          %3174 = vmatpush1.bf16.msra.mxu0 %v2342
          %3175 = vmatprep.subr.bf16.mxu0 %v2349
          %3176 = vmatpush1.bf16.msra.mxu0 %v2348
          %3177 = vmatprep.subr.bf16.mxu0 %v2355
          %3178 = vmatpush1.bf16.msra.mxu0 %v2354
          %3179 = vmatprep.subr.bf16.mxu0 %v2361
          %3180 = vmatpush1.bf16.msra.mxu0 %v2360
          %3181 = vmatprep.subr.bf16.mxu0 %v2367
          %3182 = vmatpush1.bf16.msra.mxu0 %v2366
          %3183 = vmatprep.mubr.bf16.mxu0 %v605
          %3184 = vmatmul.mubr.bf16.gmra.mrb[0].mxu0 %v604
          %v3185 = vpop.f32.mrb[0].mxu0
          %v3186 = vadd.f32 %v3145, %v3185
          %v3187 = vpop.f32.mrb[0].mxu0
          %v3188 = vadd.f32 %v3147, %v3187
          %v3189 = vpop.f32.mrb[0].mxu0
          %v3190 = vpop.f32.mrb[0].mxu0
          %3191 = vdwg.mxu0
          %3192 = vmatprep.subr.bf16.mxu0 %v2373
          %3193 = vmatpush1.bf16.msra.mxu0 %v2372
          %3194 = vmatprep.subr.bf16.mxu0 %v2379
          %3195 = vmatpush1.bf16.msra.mxu0 %v2378
          %3196 = vmatprep.subr.bf16.mxu0 %v2385
          %3197 = vmatpush1.bf16.msra.mxu0 %v2384
          %3198 = vmatprep.subr.bf16.mxu0 %v2391
          %3199 = vmatpush1.bf16.msra.mxu0 %v2390
          %3200 = vmatprep.subr.bf16.mxu0 %v2397
          %3201 = vmatpush1.bf16.msra.mxu0 %v2396
          %3202 = vmatprep.subr.bf16.mxu0 %v2403
          %3203 = vmatpush1.bf16.msra.mxu0 %v2402
          %3204 = vmatprep.subr.bf16.mxu0 %v2409
          %3205 = vmatpush1.bf16.msra.mxu0 %v2408
          %3206 = vmatprep.subr.bf16.mxu0 %v2415
          %3207 = vmatpush1.bf16.msra.mxu0 %v2414
          %3208 = vmatprep.subr.bf16.mxu0 %v2421
          %3209 = vmatpush1.bf16.msra.mxu0 %v2420
          %3210 = vmatprep.subr.bf16.mxu0 %v2427
          %3211 = vmatpush1.bf16.msra.mxu0 %v2426
          %3212 = vmatprep.subr.bf16.mxu0 %v2433
          %3213 = vmatpush1.bf16.msra.mxu0 %v2432
          %3214 = vmatprep.subr.bf16.mxu0 %v2439
          %3215 = vmatpush1.bf16.msra.mxu0 %v2438
          %3216 = vmatprep.subr.bf16.mxu0 %v2445
          %3217 = vmatpush1.bf16.msra.mxu0 %v2444
          %3218 = vmatprep.subr.bf16.mxu0 %v2451
          %3219 = vmatpush1.bf16.msra.mxu0 %v2450
          %3220 = vmatprep.subr.bf16.mxu0 %v2457
          %3221 = vmatpush1.bf16.msra.mxu0 %v2456
          %3222 = vmatprep.subr.bf16.mxu0 %v2463
          %3223 = vmatpush1.bf16.msra.mxu0 %v2462
          %3224 = vmatprep.mubr.bf16.mxu0 %v607
          %3225 = vmatmul.mubr.bf16.gmra.mrb[0].mxu0 %v606
          %v3226 = vpop.f32.mrb[0].mxu0
          %v3227 = vadd.f32 %v3186, %v3226
          %v3228 = vpop.f32.mrb[0].mxu0
          %v3229 = vadd.f32 %v3188, %v3228
          %v3230 = vpop.f32.mrb[0].mxu0
          %v3231 = vpop.f32.mrb[0].mxu0
          %3232 = vdwg.mxu0
          %3233 = vmatprep.subr.bf16.mxu0 %v2469
          %3234 = vmatpush1.bf16.msra.mxu0 %v2468
          %3235 = vmatprep.subr.bf16.mxu0 %v2475
          %3236 = vmatpush1.bf16.msra.mxu0 %v2474
          %3237 = vmatprep.subr.bf16.mxu0 %v2481
          %3238 = vmatpush1.bf16.msra.mxu0 %v2480
          %3239 = vmatprep.subr.bf16.mxu0 %v2487
          %3240 = vmatpush1.bf16.msra.mxu0 %v2486
          %3241 = vmatprep.subr.bf16.mxu0 %v2493
          %3242 = vmatpush1.bf16.msra.mxu0 %v2492
          %3243 = vmatprep.subr.bf16.mxu0 %v2499
          %3244 = vmatpush1.bf16.msra.mxu0 %v2498
          %3245 = vmatprep.subr.bf16.mxu0 %v2505
          %3246 = vmatpush1.bf16.msra.mxu0 %v2504
          %3247 = vmatprep.subr.bf16.mxu0 %v2511
          %3248 = vmatpush1.bf16.msra.mxu0 %v2510
          %3249 = vmatprep.subr.bf16.mxu0 %v2517
          %3250 = vmatpush1.bf16.msra.mxu0 %v2516
          %3251 = vmatprep.subr.bf16.mxu0 %v2523
          %3252 = vmatpush1.bf16.msra.mxu0 %v2522
          %3253 = vmatprep.subr.bf16.mxu0 %v2529
          %3254 = vmatpush1.bf16.msra.mxu0 %v2528
          %3255 = vmatprep.subr.bf16.mxu0 %v2535
          %3256 = vmatpush1.bf16.msra.mxu0 %v2534
          %3257 = vmatprep.subr.bf16.mxu0 %v2541
          %3258 = vmatpush1.bf16.msra.mxu0 %v2540
          %3259 = vmatprep.subr.bf16.mxu0 %v2547
          %3260 = vmatpush1.bf16.msra.mxu0 %v2546
          %3261 = vmatprep.subr.bf16.mxu0 %v2553
          %3262 = vmatpush1.bf16.msra.mxu0 %v2552
          %3263 = vmatprep.subr.bf16.mxu0 %v2559
          %3264 = vmatpush1.bf16.msra.mxu0 %v2558
          %3265 = vmatprep.mubr.bf16.mxu0 %v609
          %3266 = vmatmul.mubr.bf16.gmra.mrb[0].mxu0 %v608
          %v3267 = vpop.f32.mrb[0].mxu0
          %v3268 = vadd.f32 %v3227, %v3267
          %v3269 = vpop.f32.mrb[0].mxu0
          %v3270 = vadd.f32 %v3229, %v3269
          %v3271 = vpop.f32.mrb[0].mxu0
          %v3272 = vpop.f32.mrb[0].mxu0
          %3273 = vdwg.mxu0
          %3274 = vmatprep.subr.bf16.mxu0 %v2183
          %3275 = vmatpush1.bf16.msra.mxu0 %v2182
          %3276 = vmatprep.subr.bf16.mxu0 %v2189
          %3277 = vmatpush1.bf16.msra.mxu0 %v2188
          %3278 = vmatprep.subr.bf16.mxu0 %v2195
          %3279 = vmatpush1.bf16.msra.mxu0 %v2194
          %3280 = vmatprep.subr.bf16.mxu0 %v2201
          %3281 = vmatpush1.bf16.msra.mxu0 %v2200
          %3282 = vmatprep.subr.bf16.mxu0 %v2207
          %3283 = vmatpush1.bf16.msra.mxu0 %v2206
          %3284 = vmatprep.subr.bf16.mxu0 %v2213
          %3285 = vmatpush1.bf16.msra.mxu0 %v2212
          %3286 = vmatprep.subr.bf16.mxu0 %v2219
          %3287 = vmatpush1.bf16.msra.mxu0 %v2218
          %3288 = vmatprep.subr.bf16.mxu0 %v2225
          %3289 = vmatpush1.bf16.msra.mxu0 %v2224
          %3290 = vmatprep.subr.bf16.mxu0 %v2231
          %3291 = vmatpush1.bf16.msra.mxu0 %v2230
          %3292 = vmatprep.subr.bf16.mxu0 %v2237
          %3293 = vmatpush1.bf16.msra.mxu0 %v2236
          %3294 = vmatprep.subr.bf16.mxu0 %v2243
          %3295 = vmatpush1.bf16.msra.mxu0 %v2242
          %3296 = vmatprep.subr.bf16.mxu0 %v2249
          %3297 = vmatpush1.bf16.msra.mxu0 %v2248
          %3298 = vmatprep.subr.bf16.mxu0 %v2255
          %3299 = vmatpush1.bf16.msra.mxu0 %v2254
          %3300 = vmatprep.subr.bf16.mxu0 %v2261
          %3301 = vmatpush1.bf16.msra.mxu0 %v2260
          %3302 = vmatprep.subr.bf16.mxu0 %v2267
          %3303 = vmatpush1.bf16.msra.mxu0 %v2266
          %3304 = vmatprep.subr.bf16.mxu0 %v2273
          %3305 = vmatpush1.bf16.msra.mxu0 %v2272
          %3306 = vmatprep.mubr.bf16.mxu0 %v603
          %3307 = vmatmul.mubr.bf16.gmra.mrb[0].mxu0 %v602
          %v3308 = vpop.f32.mrb[0].mxu0
          %v3309 = vadd.f32 %v1015, %v3308
          %v3310 = vpop.f32.mrb[0].mxu0
          %v3311 = vadd.f32 %v1019, %v3310
          %v3312 = vpop.f32.mrb[0].mxu0
          %v3313 = vpop.f32.mrb[0].mxu0
          %3314 = vdwg.mxu0
          %3315 = vmatprep.subr.bf16.mxu0 %v2279
          %3316 = vmatpush1.bf16.msra.mxu0 %v2278
          %3317 = vmatprep.subr.bf16.mxu0 %v2285
          %3318 = vmatpush1.bf16.msra.mxu0 %v2284
          %3319 = vmatprep.subr.bf16.mxu0 %v2291
          %3320 = vmatpush1.bf16.msra.mxu0 %v2290
          %3321 = vmatprep.subr.bf16.mxu0 %v2297
          %3322 = vmatpush1.bf16.msra.mxu0 %v2296
          %3323 = vmatprep.subr.bf16.mxu0 %v2303
          %3324 = vmatpush1.bf16.msra.mxu0 %v2302
          %3325 = vmatprep.subr.bf16.mxu0 %v2309
          %3326 = vmatpush1.bf16.msra.mxu0 %v2308
          %3327 = vmatprep.subr.bf16.mxu0 %v2315
          %3328 = vmatpush1.bf16.msra.mxu0 %v2314
          %3329 = vmatprep.subr.bf16.mxu0 %v2321
          %3330 = vmatpush1.bf16.msra.mxu0 %v2320
          %3331 = vmatprep.subr.bf16.mxu0 %v2327
          %3332 = vmatpush1.bf16.msra.mxu0 %v2326
          %3333 = vmatprep.subr.bf16.mxu0 %v2333
          %3334 = vmatpush1.bf16.msra.mxu0 %v2332
          %3335 = vmatprep.subr.bf16.mxu0 %v2339
          %3336 = vmatpush1.bf16.msra.mxu0 %v2338
          %3337 = vmatprep.subr.bf16.mxu0 %v2345
          %3338 = vmatpush1.bf16.msra.mxu0 %v2344
          %3339 = vmatprep.subr.bf16.mxu0 %v2351
          %3340 = vmatpush1.bf16.msra.mxu0 %v2350
          %3341 = vmatprep.subr.bf16.mxu0 %v2357
          %3342 = vmatpush1.bf16.msra.mxu0 %v2356
          %3343 = vmatprep.subr.bf16.mxu0 %v2363
          %3344 = vmatpush1.bf16.msra.mxu0 %v2362
          %3345 = vmatprep.subr.bf16.mxu0 %v2369
          %3346 = vmatpush1.bf16.msra.mxu0 %v2368
          %3347 = vmatprep.mubr.bf16.mxu0 %v605
          %3348 = vmatmul.mubr.bf16.gmra.mrb[0].mxu0 %v604
          %v3349 = vpop.f32.mrb[0].mxu0
          %v3350 = vadd.f32 %v3309, %v3349
          %v3351 = vpop.f32.mrb[0].mxu0
          %v3352 = vadd.f32 %v3311, %v3351
          %v3353 = vpop.f32.mrb[0].mxu0
          %v3354 = vpop.f32.mrb[0].mxu0
          %3355 = vdwg.mxu0
          %3356 = vmatprep.subr.bf16.mxu0 %v2375
          %3357 = vmatpush1.bf16.msra.mxu0 %v2374
          %3358 = vmatprep.subr.bf16.mxu0 %v2381
          %3359 = vmatpush1.bf16.msra.mxu0 %v2380
          %3360 = vmatprep.subr.bf16.mxu0 %v2387
          %3361 = vmatpush1.bf16.msra.mxu0 %v2386
          %3362 = vmatprep.subr.bf16.mxu0 %v2393
          %3363 = vmatpush1.bf16.msra.mxu0 %v2392
          %3364 = vmatprep.subr.bf16.mxu0 %v2399
          %3365 = vmatpush1.bf16.msra.mxu0 %v2398
          %3366 = vmatprep.subr.bf16.mxu0 %v2405
          %3367 = vmatpush1.bf16.msra.mxu0 %v2404
          %3368 = vmatprep.subr.bf16.mxu0 %v2411
          %3369 = vmatpush1.bf16.msra.mxu0 %v2410
          %3370 = vmatprep.subr.bf16.mxu0 %v2417
          %3371 = vmatpush1.bf16.msra.mxu0 %v2416
          %3372 = vmatprep.subr.bf16.mxu0 %v2423
          %3373 = vmatpush1.bf16.msra.mxu0 %v2422
          %3374 = vmatprep.subr.bf16.mxu0 %v2429
          %3375 = vmatpush1.bf16.msra.mxu0 %v2428
          %3376 = vmatprep.subr.bf16.mxu0 %v2435
          %3377 = vmatpush1.bf16.msra.mxu0 %v2434
          %3378 = vmatprep.subr.bf16.mxu0 %v2441
          %3379 = vmatpush1.bf16.msra.mxu0 %v2440
          %3380 = vmatprep.subr.bf16.mxu0 %v2447
          %3381 = vmatpush1.bf16.msra.mxu0 %v2446
          %3382 = vmatprep.subr.bf16.mxu0 %v2453
          %3383 = vmatpush1.bf16.msra.mxu0 %v2452
          %3384 = vmatprep.subr.bf16.mxu0 %v2459
          %3385 = vmatpush1.bf16.msra.mxu0 %v2458
          %3386 = vmatprep.subr.bf16.mxu0 %v2465
          %3387 = vmatpush1.bf16.msra.mxu0 %v2464
          %3388 = vmatprep.mubr.bf16.mxu0 %v607
          %3389 = vmatmul.mubr.bf16.gmra.mrb[0].mxu0 %v606
          %v3390 = vpop.f32.mrb[0].mxu0
          %v3391 = vadd.f32 %v3350, %v3390
          %v3392 = vpop.f32.mrb[0].mxu0
          %v3393 = vadd.f32 %v3352, %v3392
          %v3394 = vpop.f32.mrb[0].mxu0
          %v3395 = vpop.f32.mrb[0].mxu0
          %3396 = vdwg.mxu0
          %3397 = vmatprep.subr.bf16.mxu0 %v2471
          %3398 = vmatpush1.bf16.msra.mxu0 %v2470
          %3399 = vmatprep.subr.bf16.mxu0 %v2477
          %3400 = vmatpush1.bf16.msra.mxu0 %v2476
          %3401 = vmatprep.subr.bf16.mxu0 %v2483
          %3402 = vmatpush1.bf16.msra.mxu0 %v2482
          %3403 = vmatprep.subr.bf16.mxu0 %v2489
          %3404 = vmatpush1.bf16.msra.mxu0 %v2488
          %3405 = vmatprep.subr.bf16.mxu0 %v2495
          %3406 = vmatpush1.bf16.msra.mxu0 %v2494
          %3407 = vmatprep.subr.bf16.mxu0 %v2501
          %3408 = vmatpush1.bf16.msra.mxu0 %v2500
          %3409 = vmatprep.subr.bf16.mxu0 %v2507
          %3410 = vmatpush1.bf16.msra.mxu0 %v2506
          %3411 = vmatprep.subr.bf16.mxu0 %v2513
          %3412 = vmatpush1.bf16.msra.mxu0 %v2512
          %3413 = vmatprep.subr.bf16.mxu0 %v2519
          %3414 = vmatpush1.bf16.msra.mxu0 %v2518
          %3415 = vmatprep.subr.bf16.mxu0 %v2525
          %3416 = vmatpush1.bf16.msra.mxu0 %v2524
          %3417 = vmatprep.subr.bf16.mxu0 %v2531
          %3418 = vmatpush1.bf16.msra.mxu0 %v2530
          %3419 = vmatprep.subr.bf16.mxu0 %v2537
          %3420 = vmatpush1.bf16.msra.mxu0 %v2536
          %3421 = vmatprep.subr.bf16.mxu0 %v2543
          %3422 = vmatpush1.bf16.msra.mxu0 %v2542
          %3423 = vmatprep.subr.bf16.mxu0 %v2549
          %3424 = vmatpush1.bf16.msra.mxu0 %v2548
          %3425 = vmatprep.subr.bf16.mxu0 %v2555
          %3426 = vmatpush1.bf16.msra.mxu0 %v2554
          %3427 = vmatprep.subr.bf16.mxu0 %v2561
          %3428 = vmatpush1.bf16.msra.mxu0 %v2560
          %3429 = vmatprep.mubr.bf16.mxu0 %v609
          %3430 = vmatmul.mubr.bf16.gmra.mrb[0].mxu0 %v608
          %v3431 = vpop.f32.mrb[0].mxu0
          %v3432 = vadd.f32 %v3391, %v3431
          %v3433 = vpop.f32.mrb[0].mxu0
          %v3434 = vadd.f32 %v3393, %v3433
          %v3435 = vpop.f32.mrb[0].mxu0
          %v3436 = vpop.f32.mrb[0].mxu0
          %3437 = vdwg.mxu0
          %v3444 = vcombine.low %v3104, %v3106
          %v3445 = vcombine.low %v3268, %v3270
          %v3447 = vunpack.c.l.s4 1983009808
          %v3448 = vunpack.c.0.s8 %v3447
          %v3449 = vlaneseq
          %v3450 = vshrl.u32 %v3449, 7
          %v3451 = vsub.s32 %v3448, %v3450
          %v3452 = vrot.slane %v3444, %v3451
          %v3454 = vunpack.c.l.s4 1983009808
          %v3455 = vunpack.c.0.s8 %v3454
          %v3456 = vlaneseq
          %v3457 = vshrl.u32 %v3456, 7
          %v3458 = vsub.s32 %v3455, %v3457
          %v3459 = vrot.slane %v3445, %v3458
          %v3460 = vcombine.low %v3452, %v3459
          %v3461 = vcombine.low %v3432, %v3434
          %v3463 = vunpack.c.l.s4 1983009808
          %v3464 = vunpack.c.0.s8 %v3463
          %v3465 = vlaneseq
          %v3466 = vshrl.u32 %v3465, 7
          %v3467 = vsub.s32 %v3464, %v3466
          %v3468 = vrot.slane %v3461, %v3467
          %3471 = vst [vmem:[#allocation2] sm:$0xff] %v3460
          %3472 = vst [vmem:[#allocation2 + $0x8] sm:$0xf] %v3468
        $region108: #{depth_estimation_gaussian_forward.1} parent=67 // pred_fallthru
          _
        %v3473 = vld [vmem:[#allocation2] sm:$0xff]
        %v3474 = vld [vmem:[#allocation2 + $0x8] sm:$0xf]
        %v3475 = vld [vmem:[%s548] sm:$0xff]
        %v3477 = vcombine.high %v3475, %v3475
        %v3479 = vunpack.c.l.s4 1983009808
        %v3480 = vunpack.c.0.s8 %v3479
        %v3481 = vlaneseq
        %v3482 = vshrl.u32 %v3481, 7
        %v3483 = vsub.s32 %v3480, %v3482
        %v3484 = vrot.slane %v3475, %v3483
        %v3486 = vunpack.c.l.s4 1983009808
        %v3487 = vunpack.c.0.s8 %v3486
        %v3488 = vlaneseq
        %v3489 = vshrl.u32 %v3488, 7
        %v3490 = vsub.s32 %v3487, %v3489
        %v3491 = vrot.slane %v3477, %v3490
        %v3492 = vcombine.high %v3484, %v3484
        %v3493 = vcombine.high %v3491, %v3491
        %v3498 = vpack.c.bf16 %v3484, %v3484
        %v3499 = vpack.c.bf16 %v3492, %v3492
        %v3500 = vpack.c.bf16 %v3491, %v3491
        %v3501 = vpack.c.bf16 %v3493, %v3493
        %v3502 = vld [vmem:[%s475] sm:$0xff]
        %v3503 = vld [vmem:[%s475 + $0x8] sm:$0xff]
        %v3504 = vld [vmem:[%s475 + $0x10] sm:$0xff]
        %v3505 = vld [vmem:[%s475 + $0x18] sm:$0xff]
        %v3506 = vld [vmem:[%s475 + $0x20] sm:$0xff]
        %v3507 = vld [vmem:[%s475 + $0x28] sm:$0xff]
        %v3508 = vld [vmem:[%s475 + $0x30] sm:$0xff]
        %v3509 = vld [vmem:[%s475 + $0x38] sm:$0xff]
        %v3510 = vld [vmem:[%s475 + $0x40] sm:$0xff]
        %v3511 = vld [vmem:[%s475 + $0x48] sm:$0xff]
        %v3512 = vld [vmem:[%s475 + $0x50] sm:$0xff]
        %v3513 = vld [vmem:[%s475 + $0x58] sm:$0xff]
        %v3514 = vld [vmem:[%s475 + $0x60] sm:$0xff]
        %v3515 = vld [vmem:[%s475 + $0x68] sm:$0xff]
        %v3516 = vld [vmem:[%s475 + $0x70] sm:$0xff]
        %v3517 = vld [vmem:[%s475 + $0x78] sm:$0xff]
        %v3518 = vld [vmem:[%s475 + $0x80] sm:$0xff]
        %v3519 = vld [vmem:[%s475 + $0x88] sm:$0xff]
        %v3520 = vld [vmem:[%s475 + $0x90] sm:$0xff]
        %v3521 = vld [vmem:[%s475 + $0x98] sm:$0xff]
        %v3522 = vld [vmem:[%s475 + $0xa0] sm:$0xff]
        %v3523 = vld [vmem:[%s475 + $0xa8] sm:$0xff]
        %v3524 = vld [vmem:[%s475 + $0xb0] sm:$0xff]
        %v3525 = vld [vmem:[%s475 + $0xb8] sm:$0xff]
        %v3526 = vld [vmem:[%s475 + $0xc0] sm:$0xff]
        %v3527 = vld [vmem:[%s475 + $0xc8] sm:$0xff]
        %v3528 = vld [vmem:[%s475 + $0xd0] sm:$0xff]
        %v3529 = vld [vmem:[%s475 + $0xd8] sm:$0xff]
        %v3530 = vld [vmem:[%s475 + $0xe0] sm:$0xff]
        %v3531 = vld [vmem:[%s475 + $0xe8] sm:$0xff]
        %v3532 = vld [vmem:[%s475 + $0xf0] sm:$0xff]
        %v3533 = vld [vmem:[%s475 + $0xf8] sm:$0xff]
        %v3534 = vld [vmem:[%s475 + $0x100] sm:$0xff]
        %v3535 = vld [vmem:[%s475 + $0x108] sm:$0xff]
        %v3536 = vld [vmem:[%s475 + $0x110] sm:$0xff]
        %v3537 = vld [vmem:[%s475 + $0x118] sm:$0xff]
        %v3538 = vld [vmem:[%s475 + $0x120] sm:$0xff]
        %v3539 = vld [vmem:[%s475 + $0x128] sm:$0xff]
        %v3540 = vld [vmem:[%s475 + $0x130] sm:$0xff]
        %v3541 = vld [vmem:[%s475 + $0x138] sm:$0xff]
        %v3542 = vld [vmem:[%s475 + $0x140] sm:$0xff]
        %v3543 = vld [vmem:[%s475 + $0x148] sm:$0xff]
        %v3544 = vld [vmem:[%s475 + $0x150] sm:$0xff]
        %v3545 = vld [vmem:[%s475 + $0x158] sm:$0xff]
        %v3546 = vld [vmem:[%s475 + $0x160] sm:$0xff]
        %v3547 = vld [vmem:[%s475 + $0x168] sm:$0xff]
        %v3548 = vld [vmem:[%s475 + $0x170] sm:$0xff]
        %v3549 = vld [vmem:[%s475 + $0x178] sm:$0xff]
        %v3550 = vld [vmem:[%s475 + $0x180] sm:$0xff]
        %v3551 = vld [vmem:[%s475 + $0x188] sm:$0xff]
        %v3552 = vld [vmem:[%s475 + $0x190] sm:$0xff]
        %v3553 = vld [vmem:[%s475 + $0x198] sm:$0xff]
        %v3554 = vld [vmem:[%s475 + $0x1a0] sm:$0xff]
        %v3555 = vld [vmem:[%s475 + $0x1a8] sm:$0xff]
        %v3556 = vld [vmem:[%s475 + $0x1b0] sm:$0xff]
        %v3557 = vld [vmem:[%s475 + $0x1b8] sm:$0xff]
        %v3558 = vld [vmem:[%s475 + $0x1c0] sm:$0xff]
        %v3559 = vld [vmem:[%s475 + $0x1c8] sm:$0xff]
        %v3560 = vld [vmem:[%s475 + $0x1d0] sm:$0xff]
        %v3561 = vld [vmem:[%s475 + $0x1d8] sm:$0xff]
        %v3562 = vld [vmem:[%s475 + $0x1e0] sm:$0xff]
        %v3563 = vld [vmem:[%s475 + $0x1e8] sm:$0xff]
        %v3564 = vld [vmem:[%s475 + $0x1f0] sm:$0xff]
        %v3565 = vld [vmem:[%s475 + $0x1f8] sm:$0xff]
        %v3566 = vld [vmem:[%s475 + $0x200] sm:$0xff]
        %v3567 = vld [vmem:[%s475 + $0x208] sm:$0xff]
        %v3568 = vld [vmem:[%s475 + $0x210] sm:$0xff]
        %v3569 = vld [vmem:[%s475 + $0x218] sm:$0xff]
        %v3570 = vld [vmem:[%s475 + $0x220] sm:$0xff]
        %v3571 = vld [vmem:[%s475 + $0x228] sm:$0xff]
        %v3572 = vld [vmem:[%s475 + $0x230] sm:$0xff]
        %v3573 = vld [vmem:[%s475 + $0x238] sm:$0xff]
        %v3574 = vld [vmem:[%s475 + $0x240] sm:$0xff]
        %v3575 = vld [vmem:[%s475 + $0x248] sm:$0xff]
        %v3576 = vld [vmem:[%s475 + $0x250] sm:$0xff]
        %v3577 = vld [vmem:[%s475 + $0x258] sm:$0xff]
        %v3578 = vld [vmem:[%s475 + $0x260] sm:$0xff]
        %v3579 = vld [vmem:[%s475 + $0x268] sm:$0xff]
        %v3580 = vld [vmem:[%s475 + $0x270] sm:$0xff]
        %v3581 = vld [vmem:[%s475 + $0x278] sm:$0xff]
        %v3582 = vld [vmem:[%s475 + $0x280] sm:$0xff]
        %v3583 = vld [vmem:[%s475 + $0x288] sm:$0xff]
        %v3584 = vld [vmem:[%s475 + $0x290] sm:$0xff]
        %v3585 = vld [vmem:[%s475 + $0x298] sm:$0xff]
        %v3586 = vld [vmem:[%s475 + $0x2a0] sm:$0xff]
        %v3587 = vld [vmem:[%s475 + $0x2a8] sm:$0xff]
        %v3588 = vld [vmem:[%s475 + $0x2b0] sm:$0xff]
        %v3589 = vld [vmem:[%s475 + $0x2b8] sm:$0xff]
        %v3590 = vld [vmem:[%s475 + $0x2c0] sm:$0xff]
        %v3591 = vld [vmem:[%s475 + $0x2c8] sm:$0xff]
        %v3592 = vld [vmem:[%s475 + $0x2d0] sm:$0xff]
        %v3593 = vld [vmem:[%s475 + $0x2d8] sm:$0xff]
        %v3594 = vld [vmem:[%s475 + $0x2e0] sm:$0xff]
        %v3595 = vld [vmem:[%s475 + $0x2e8] sm:$0xff]
        %v3596 = vld [vmem:[%s475 + $0x2f0] sm:$0xff]
        %v3597 = vld [vmem:[%s475 + $0x2f8] sm:$0xff]
        %v3598 = vld [vmem:[%s475 + $0x300] sm:$0xff]
        %v3599 = vld [vmem:[%s475 + $0x308] sm:$0xff]
        %v3600 = vld [vmem:[%s475 + $0x310] sm:$0xff]
        %v3601 = vld [vmem:[%s475 + $0x318] sm:$0xff]
        %v3602 = vld [vmem:[%s475 + $0x320] sm:$0xff]
        %v3603 = vld [vmem:[%s475 + $0x328] sm:$0xff]
        %v3604 = vld [vmem:[%s475 + $0x330] sm:$0xff]
        %v3605 = vld [vmem:[%s475 + $0x338] sm:$0xff]
        %v3606 = vld [vmem:[%s475 + $0x340] sm:$0xff]
        %v3607 = vld [vmem:[%s475 + $0x348] sm:$0xff]
        %v3608 = vld [vmem:[%s475 + $0x350] sm:$0xff]
        %v3609 = vld [vmem:[%s475 + $0x358] sm:$0xff]
        %v3610 = vld [vmem:[%s475 + $0x360] sm:$0xff]
        %v3611 = vld [vmem:[%s475 + $0x368] sm:$0xff]
        %v3612 = vld [vmem:[%s475 + $0x370] sm:$0xff]
        %v3613 = vld [vmem:[%s475 + $0x378] sm:$0xff]
        %v3614 = vld [vmem:[%s475 + $0x380] sm:$0xff]
        %v3615 = vld [vmem:[%s475 + $0x388] sm:$0xff]
        %v3616 = vld [vmem:[%s475 + $0x390] sm:$0xff]
        %v3617 = vld [vmem:[%s475 + $0x398] sm:$0xff]
        %v3618 = vld [vmem:[%s475 + $0x3a0] sm:$0xff]
        %v3619 = vld [vmem:[%s475 + $0x3a8] sm:$0xff]
        %v3620 = vld [vmem:[%s475 + $0x3b0] sm:$0xff]
        %v3621 = vld [vmem:[%s475 + $0x3b8] sm:$0xff]
        %v3622 = vld [vmem:[%s475 + $0x3c0] sm:$0xff]
        %v3623 = vld [vmem:[%s475 + $0x3c8] sm:$0xff]
        %v3624 = vld [vmem:[%s475 + $0x3d0] sm:$0xff]
        %v3625 = vld [vmem:[%s475 + $0x3d8] sm:$0xff]
        %v3626 = vld [vmem:[%s475 + $0x3e0] sm:$0xff]
        %v3627 = vld [vmem:[%s475 + $0x3e8] sm:$0xff]
        %v3628 = vld [vmem:[%s475 + $0x3f0] sm:$0xff]
        %v3629 = vld [vmem:[%s475 + $0x3f8] sm:$0xff]
        %v3630 = vld [vmem:[%s475 + $0x400] sm:$0xff]
        %v3631 = vld [vmem:[%s475 + $0x408] sm:$0xff]
        %v3632 = vld [vmem:[%s475 + $0x410] sm:$0xff]
        %v3633 = vld [vmem:[%s475 + $0x418] sm:$0xff]
        %v3634 = vld [vmem:[%s475 + $0x420] sm:$0xff]
        %v3635 = vld [vmem:[%s475 + $0x428] sm:$0xff]
        %v3636 = vld [vmem:[%s475 + $0x430] sm:$0xff]
        %v3637 = vld [vmem:[%s475 + $0x438] sm:$0xff]
        %v3638 = vld [vmem:[%s475 + $0x440] sm:$0xff]
        %v3639 = vld [vmem:[%s475 + $0x448] sm:$0xff]
        %v3640 = vld [vmem:[%s475 + $0x450] sm:$0xff]
        %v3641 = vld [vmem:[%s475 + $0x458] sm:$0xff]
        %v3642 = vld [vmem:[%s475 + $0x460] sm:$0xff]
        %v3643 = vld [vmem:[%s475 + $0x468] sm:$0xff]
        %v3644 = vld [vmem:[%s475 + $0x470] sm:$0xff]
        %v3645 = vld [vmem:[%s475 + $0x478] sm:$0xff]
        %v3646 = vld [vmem:[%s475 + $0x480] sm:$0xff]
        %v3647 = vld [vmem:[%s475 + $0x488] sm:$0xff]
        %v3648 = vld [vmem:[%s475 + $0x490] sm:$0xff]
        %v3649 = vld [vmem:[%s475 + $0x498] sm:$0xff]
        %v3650 = vld [vmem:[%s475 + $0x4a0] sm:$0xff]
        %v3651 = vld [vmem:[%s475 + $0x4a8] sm:$0xff]
        %v3652 = vld [vmem:[%s475 + $0x4b0] sm:$0xff]
        %v3653 = vld [vmem:[%s475 + $0x4b8] sm:$0xff]
        %v3654 = vld [vmem:[%s475 + $0x4c0] sm:$0xff]
        %v3655 = vld [vmem:[%s475 + $0x4c8] sm:$0xff]
        %v3656 = vld [vmem:[%s475 + $0x4d0] sm:$0xff]
        %v3657 = vld [vmem:[%s475 + $0x4d8] sm:$0xff]
        %v3658 = vld [vmem:[%s475 + $0x4e0] sm:$0xff]
        %v3659 = vld [vmem:[%s475 + $0x4e8] sm:$0xff]
        %v3660 = vld [vmem:[%s475 + $0x4f0] sm:$0xff]
        %v3661 = vld [vmem:[%s475 + $0x4f8] sm:$0xff]
        %v3662 = vld [vmem:[%s475 + $0x500] sm:$0xff]
        %v3663 = vld [vmem:[%s475 + $0x508] sm:$0xff]
        %v3664 = vld [vmem:[%s475 + $0x510] sm:$0xff]
        %v3665 = vld [vmem:[%s475 + $0x518] sm:$0xff]
        %v3666 = vld [vmem:[%s475 + $0x520] sm:$0xff]
        %v3667 = vld [vmem:[%s475 + $0x528] sm:$0xff]
        %v3668 = vld [vmem:[%s475 + $0x530] sm:$0xff]
        %v3669 = vld [vmem:[%s475 + $0x538] sm:$0xff]
        %v3670 = vld [vmem:[%s475 + $0x540] sm:$0xff]
        %v3671 = vld [vmem:[%s475 + $0x548] sm:$0xff]
        %v3672 = vld [vmem:[%s475 + $0x550] sm:$0xff]
        %v3673 = vld [vmem:[%s475 + $0x558] sm:$0xff]
        %v3674 = vld [vmem:[%s475 + $0x560] sm:$0xff]
        %v3675 = vld [vmem:[%s475 + $0x568] sm:$0xff]
        %v3676 = vld [vmem:[%s475 + $0x570] sm:$0xff]
        %v3677 = vld [vmem:[%s475 + $0x578] sm:$0xff]
        %v3678 = vld [vmem:[%s475 + $0x580] sm:$0xff]
        %v3679 = vld [vmem:[%s475 + $0x588] sm:$0xff]
        %v3680 = vld [vmem:[%s475 + $0x590] sm:$0xff]
        %v3681 = vld [vmem:[%s475 + $0x598] sm:$0xff]
        %v3682 = vld [vmem:[%s475 + $0x5a0] sm:$0xff]
        %v3683 = vld [vmem:[%s475 + $0x5a8] sm:$0xff]
        %v3684 = vld [vmem:[%s475 + $0x5b0] sm:$0xff]
        %v3685 = vld [vmem:[%s475 + $0x5b8] sm:$0xff]
        %v3686 = vld [vmem:[%s475 + $0x5c0] sm:$0xff]
        %v3687 = vld [vmem:[%s475 + $0x5c8] sm:$0xff]
        %v3688 = vld [vmem:[%s475 + $0x5d0] sm:$0xff]
        %v3689 = vld [vmem:[%s475 + $0x5d8] sm:$0xff]
        %v3690 = vld [vmem:[%s475 + $0x5e0] sm:$0xff]
        %v3691 = vld [vmem:[%s475 + $0x5e8] sm:$0xff]
        %v3692 = vld [vmem:[%s475 + $0x5f0] sm:$0xff]
        %v3693 = vld [vmem:[%s475 + $0x5f8] sm:$0xff]
        %v3886 = vunpack.c.l.b16 %v3502
        %v3887 = vunpack.c.h.b16 %v3502
        %v3888 = vunpack.c.l.b16 %v3503
        %v3889 = vunpack.c.h.b16 %v3503
        %v3890 = vunpack.c.l.b16 %v3504
        %v3891 = vunpack.c.h.b16 %v3504
        %v3892 = vunpack.c.l.b16 %v3505
        %v3893 = vunpack.c.h.b16 %v3505
        %v3894 = vunpack.c.l.b16 %v3506
        %v3895 = vunpack.c.h.b16 %v3506
        %v3896 = vunpack.c.l.b16 %v3507
        %v3897 = vunpack.c.h.b16 %v3507
        %v3898 = vunpack.c.l.b16 %v3508
        %v3899 = vunpack.c.h.b16 %v3508
        %v3900 = vunpack.c.l.b16 %v3509
        %v3901 = vunpack.c.h.b16 %v3509
        %v3902 = vunpack.c.l.b16 %v3510
        %v3903 = vunpack.c.h.b16 %v3510
        %v3904 = vunpack.c.l.b16 %v3511
        %v3905 = vunpack.c.h.b16 %v3511
        %v3906 = vunpack.c.l.b16 %v3512
        %v3907 = vunpack.c.h.b16 %v3512
        %v3908 = vunpack.c.l.b16 %v3513
        %v3909 = vunpack.c.h.b16 %v3513
        %v3910 = vunpack.c.l.b16 %v3514
        %v3911 = vunpack.c.h.b16 %v3514
        %v3912 = vunpack.c.l.b16 %v3515
        %v3913 = vunpack.c.h.b16 %v3515
        %v3914 = vunpack.c.l.b16 %v3516
        %v3915 = vunpack.c.h.b16 %v3516
        %v3916 = vunpack.c.l.b16 %v3517
        %v3917 = vunpack.c.h.b16 %v3517
        %v3918 = vunpack.c.l.b16 %v3518
        %v3919 = vunpack.c.h.b16 %v3518
        %v3920 = vunpack.c.l.b16 %v3519
        %v3921 = vunpack.c.h.b16 %v3519
        %v3922 = vunpack.c.l.b16 %v3520
        %v3923 = vunpack.c.h.b16 %v3520
        %v3924 = vunpack.c.l.b16 %v3521
        %v3925 = vunpack.c.h.b16 %v3521
        %v3926 = vunpack.c.l.b16 %v3522
        %v3927 = vunpack.c.h.b16 %v3522
        %v3928 = vunpack.c.l.b16 %v3523
        %v3929 = vunpack.c.h.b16 %v3523
        %v3930 = vunpack.c.l.b16 %v3524
        %v3931 = vunpack.c.h.b16 %v3524
        %v3932 = vunpack.c.l.b16 %v3525
        %v3933 = vunpack.c.h.b16 %v3525
        %v3934 = vunpack.c.l.b16 %v3526
        %v3935 = vunpack.c.h.b16 %v3526
        %v3936 = vunpack.c.l.b16 %v3527
        %v3937 = vunpack.c.h.b16 %v3527
        %v3938 = vunpack.c.l.b16 %v3528
        %v3939 = vunpack.c.h.b16 %v3528
        %v3940 = vunpack.c.l.b16 %v3529
        %v3941 = vunpack.c.h.b16 %v3529
        %v3942 = vunpack.c.l.b16 %v3530
        %v3943 = vunpack.c.h.b16 %v3530
        %v3944 = vunpack.c.l.b16 %v3531
        %v3945 = vunpack.c.h.b16 %v3531
        %v3946 = vunpack.c.l.b16 %v3532
        %v3947 = vunpack.c.h.b16 %v3532
        %v3948 = vunpack.c.l.b16 %v3533
        %v3949 = vunpack.c.h.b16 %v3533
        %v3950 = vunpack.c.l.b16 %v3534
        %v3951 = vunpack.c.h.b16 %v3534
        %v3952 = vunpack.c.l.b16 %v3535
        %v3953 = vunpack.c.h.b16 %v3535
        %v3954 = vunpack.c.l.b16 %v3536
        %v3955 = vunpack.c.h.b16 %v3536
        %v3956 = vunpack.c.l.b16 %v3537
        %v3957 = vunpack.c.h.b16 %v3537
        %v3958 = vunpack.c.l.b16 %v3538
        %v3959 = vunpack.c.h.b16 %v3538
        %v3960 = vunpack.c.l.b16 %v3539
        %v3961 = vunpack.c.h.b16 %v3539
        %v3962 = vunpack.c.l.b16 %v3540
        %v3963 = vunpack.c.h.b16 %v3540
        %v3964 = vunpack.c.l.b16 %v3541
        %v3965 = vunpack.c.h.b16 %v3541
        %v3966 = vunpack.c.l.b16 %v3542
        %v3967 = vunpack.c.h.b16 %v3542
        %v3968 = vunpack.c.l.b16 %v3543
        %v3969 = vunpack.c.h.b16 %v3543
        %v3970 = vunpack.c.l.b16 %v3544
        %v3971 = vunpack.c.h.b16 %v3544
        %v3972 = vunpack.c.l.b16 %v3545
        %v3973 = vunpack.c.h.b16 %v3545
        %v3974 = vunpack.c.l.b16 %v3546
        %v3975 = vunpack.c.h.b16 %v3546
        %v3976 = vunpack.c.l.b16 %v3547
        %v3977 = vunpack.c.h.b16 %v3547
        %v3978 = vunpack.c.l.b16 %v3548
        %v3979 = vunpack.c.h.b16 %v3548
        %v3980 = vunpack.c.l.b16 %v3549
        %v3981 = vunpack.c.h.b16 %v3549
        %v3982 = vunpack.c.l.b16 %v3550
        %v3983 = vunpack.c.h.b16 %v3550
        %v3984 = vunpack.c.l.b16 %v3551
        %v3985 = vunpack.c.h.b16 %v3551
        %v3986 = vunpack.c.l.b16 %v3552
        %v3987 = vunpack.c.h.b16 %v3552
        %v3988 = vunpack.c.l.b16 %v3553
        %v3989 = vunpack.c.h.b16 %v3553
        %v3990 = vunpack.c.l.b16 %v3554
        %v3991 = vunpack.c.h.b16 %v3554
        %v3992 = vunpack.c.l.b16 %v3555
        %v3993 = vunpack.c.h.b16 %v3555
        %v3994 = vunpack.c.l.b16 %v3556
        %v3995 = vunpack.c.h.b16 %v3556
        %v3996 = vunpack.c.l.b16 %v3557
        %v3997 = vunpack.c.h.b16 %v3557
        %v3998 = vunpack.c.l.b16 %v3558
        %v3999 = vunpack.c.h.b16 %v3558
        %v4000 = vunpack.c.l.b16 %v3559
        %v4001 = vunpack.c.h.b16 %v3559
        %v4002 = vunpack.c.l.b16 %v3560
        %v4003 = vunpack.c.h.b16 %v3560
        %v4004 = vunpack.c.l.b16 %v3561
        %v4005 = vunpack.c.h.b16 %v3561
        %v4006 = vunpack.c.l.b16 %v3562
        %v4007 = vunpack.c.h.b16 %v3562
        %v4008 = vunpack.c.l.b16 %v3563
        %v4009 = vunpack.c.h.b16 %v3563
        %v4010 = vunpack.c.l.b16 %v3564
        %v4011 = vunpack.c.h.b16 %v3564
        %v4012 = vunpack.c.l.b16 %v3565
        %v4013 = vunpack.c.h.b16 %v3565
        %v4014 = vunpack.c.l.b16 %v3566
        %v4015 = vunpack.c.h.b16 %v3566
        %v4016 = vunpack.c.l.b16 %v3567
        %v4017 = vunpack.c.h.b16 %v3567
        %v4018 = vunpack.c.l.b16 %v3568
        %v4019 = vunpack.c.h.b16 %v3568
        %v4020 = vunpack.c.l.b16 %v3569
        %v4021 = vunpack.c.h.b16 %v3569
        %v4022 = vunpack.c.l.b16 %v3570
        %v4023 = vunpack.c.h.b16 %v3570
        %v4024 = vunpack.c.l.b16 %v3571
        %v4025 = vunpack.c.h.b16 %v3571
        %v4026 = vunpack.c.l.b16 %v3572
        %v4027 = vunpack.c.h.b16 %v3572
        %v4028 = vunpack.c.l.b16 %v3573
        %v4029 = vunpack.c.h.b16 %v3573
        %v4030 = vunpack.c.l.b16 %v3574
        %v4031 = vunpack.c.h.b16 %v3574
        %v4032 = vunpack.c.l.b16 %v3575
        %v4033 = vunpack.c.h.b16 %v3575
        %v4034 = vunpack.c.l.b16 %v3576
        %v4035 = vunpack.c.h.b16 %v3576
        %v4036 = vunpack.c.l.b16 %v3577
        %v4037 = vunpack.c.h.b16 %v3577
        %v4038 = vunpack.c.l.b16 %v3578
        %v4039 = vunpack.c.h.b16 %v3578
        %v4040 = vunpack.c.l.b16 %v3579
        %v4041 = vunpack.c.h.b16 %v3579
        %v4042 = vunpack.c.l.b16 %v3580
        %v4043 = vunpack.c.h.b16 %v3580
        %v4044 = vunpack.c.l.b16 %v3581
        %v4045 = vunpack.c.h.b16 %v3581
        %v4046 = vunpack.c.l.b16 %v3582
        %v4047 = vunpack.c.h.b16 %v3582
        %v4048 = vunpack.c.l.b16 %v3583
        %v4049 = vunpack.c.h.b16 %v3583
        %v4050 = vunpack.c.l.b16 %v3584
        %v4051 = vunpack.c.h.b16 %v3584
        %v4052 = vunpack.c.l.b16 %v3585
        %v4053 = vunpack.c.h.b16 %v3585
        %v4054 = vunpack.c.l.b16 %v3586
        %v4055 = vunpack.c.h.b16 %v3586
        %v4056 = vunpack.c.l.b16 %v3587
        %v4057 = vunpack.c.h.b16 %v3587
        %v4058 = vunpack.c.l.b16 %v3588
        %v4059 = vunpack.c.h.b16 %v3588
        %v4060 = vunpack.c.l.b16 %v3589
        %v4061 = vunpack.c.h.b16 %v3589
        %v4062 = vunpack.c.l.b16 %v3590
        %v4063 = vunpack.c.h.b16 %v3590
        %v4064 = vunpack.c.l.b16 %v3591
        %v4065 = vunpack.c.h.b16 %v3591
        %v4066 = vunpack.c.l.b16 %v3592
        %v4067 = vunpack.c.h.b16 %v3592
        %v4068 = vunpack.c.l.b16 %v3593
        %v4069 = vunpack.c.h.b16 %v3593
        %v4070 = vunpack.c.l.b16 %v3594
        %v4071 = vunpack.c.h.b16 %v3594
        %v4072 = vunpack.c.l.b16 %v3595
        %v4073 = vunpack.c.h.b16 %v3595
        %v4074 = vunpack.c.l.b16 %v3596
        %v4075 = vunpack.c.h.b16 %v3596
        %v4076 = vunpack.c.l.b16 %v3597
        %v4077 = vunpack.c.h.b16 %v3597
        %v4078 = vunpack.c.l.b16 %v3598
        %v4079 = vunpack.c.h.b16 %v3598
        %v4080 = vunpack.c.l.b16 %v3599
        %v4081 = vunpack.c.h.b16 %v3599
        %v4082 = vunpack.c.l.b16 %v3600
        %v4083 = vunpack.c.h.b16 %v3600
        %v4084 = vunpack.c.l.b16 %v3601
        %v4085 = vunpack.c.h.b16 %v3601
        %v4086 = vunpack.c.l.b16 %v3602
        %v4087 = vunpack.c.h.b16 %v3602
        %v4088 = vunpack.c.l.b16 %v3603
        %v4089 = vunpack.c.h.b16 %v3603
        %v4090 = vunpack.c.l.b16 %v3604
        %v4091 = vunpack.c.h.b16 %v3604
        %v4092 = vunpack.c.l.b16 %v3605
        %v4093 = vunpack.c.h.b16 %v3605
        %v4094 = vunpack.c.l.b16 %v3606
        %v4095 = vunpack.c.h.b16 %v3606
        %v4096 = vunpack.c.l.b16 %v3607
        %v4097 = vunpack.c.h.b16 %v3607
        %v4098 = vunpack.c.l.b16 %v3608
        %v4099 = vunpack.c.h.b16 %v3608
        %v4100 = vunpack.c.l.b16 %v3609
        %v4101 = vunpack.c.h.b16 %v3609
        %v4102 = vunpack.c.l.b16 %v3610
        %v4103 = vunpack.c.h.b16 %v3610
        %v4104 = vunpack.c.l.b16 %v3611
        %v4105 = vunpack.c.h.b16 %v3611
        %v4106 = vunpack.c.l.b16 %v3612
        %v4107 = vunpack.c.h.b16 %v3612
        %v4108 = vunpack.c.l.b16 %v3613
        %v4109 = vunpack.c.h.b16 %v3613
        %v4110 = vunpack.c.l.b16 %v3614
        %v4111 = vunpack.c.h.b16 %v3614
        %v4112 = vunpack.c.l.b16 %v3615
        %v4113 = vunpack.c.h.b16 %v3615
        %v4114 = vunpack.c.l.b16 %v3616
        %v4115 = vunpack.c.h.b16 %v3616
        %v4116 = vunpack.c.l.b16 %v3617
        %v4117 = vunpack.c.h.b16 %v3617
        %v4118 = vunpack.c.l.b16 %v3618
        %v4119 = vunpack.c.h.b16 %v3618
        %v4120 = vunpack.c.l.b16 %v3619
        %v4121 = vunpack.c.h.b16 %v3619
        %v4122 = vunpack.c.l.b16 %v3620
        %v4123 = vunpack.c.h.b16 %v3620
        %v4124 = vunpack.c.l.b16 %v3621
        %v4125 = vunpack.c.h.b16 %v3621
        %v4126 = vunpack.c.l.b16 %v3622
        %v4127 = vunpack.c.h.b16 %v3622
        %v4128 = vunpack.c.l.b16 %v3623
        %v4129 = vunpack.c.h.b16 %v3623
        %v4130 = vunpack.c.l.b16 %v3624
        %v4131 = vunpack.c.h.b16 %v3624
        %v4132 = vunpack.c.l.b16 %v3625
        %v4133 = vunpack.c.h.b16 %v3625
        %v4134 = vunpack.c.l.b16 %v3626
        %v4135 = vunpack.c.h.b16 %v3626
        %v4136 = vunpack.c.l.b16 %v3627
        %v4137 = vunpack.c.h.b16 %v3627
        %v4138 = vunpack.c.l.b16 %v3628
        %v4139 = vunpack.c.h.b16 %v3628
        %v4140 = vunpack.c.l.b16 %v3629
        %v4141 = vunpack.c.h.b16 %v3629
        %v4142 = vunpack.c.l.b16 %v3630
        %v4143 = vunpack.c.h.b16 %v3630
        %v4144 = vunpack.c.l.b16 %v3631
        %v4145 = vunpack.c.h.b16 %v3631
        %v4146 = vunpack.c.l.b16 %v3632
        %v4147 = vunpack.c.h.b16 %v3632
        %v4148 = vunpack.c.l.b16 %v3633
        %v4149 = vunpack.c.h.b16 %v3633
        %v4150 = vunpack.c.l.b16 %v3634
        %v4151 = vunpack.c.h.b16 %v3634
        %v4152 = vunpack.c.l.b16 %v3635
        %v4153 = vunpack.c.h.b16 %v3635
        %v4154 = vunpack.c.l.b16 %v3636
        %v4155 = vunpack.c.h.b16 %v3636
        %v4156 = vunpack.c.l.b16 %v3637
        %v4157 = vunpack.c.h.b16 %v3637
        %v4158 = vunpack.c.l.b16 %v3638
        %v4159 = vunpack.c.h.b16 %v3638
        %v4160 = vunpack.c.l.b16 %v3639
        %v4161 = vunpack.c.h.b16 %v3639
        %v4162 = vunpack.c.l.b16 %v3640
        %v4163 = vunpack.c.h.b16 %v3640
        %v4164 = vunpack.c.l.b16 %v3641
        %v4165 = vunpack.c.h.b16 %v3641
        %v4166 = vunpack.c.l.b16 %v3642
        %v4167 = vunpack.c.h.b16 %v3642
        %v4168 = vunpack.c.l.b16 %v3643
        %v4169 = vunpack.c.h.b16 %v3643
        %v4170 = vunpack.c.l.b16 %v3644
        %v4171 = vunpack.c.h.b16 %v3644
        %v4172 = vunpack.c.l.b16 %v3645
        %v4173 = vunpack.c.h.b16 %v3645
        %v4174 = vunpack.c.l.b16 %v3646
        %v4175 = vunpack.c.h.b16 %v3646
        %v4176 = vunpack.c.l.b16 %v3647
        %v4177 = vunpack.c.h.b16 %v3647
        %v4178 = vunpack.c.l.b16 %v3648
        %v4179 = vunpack.c.h.b16 %v3648
        %v4180 = vunpack.c.l.b16 %v3649
        %v4181 = vunpack.c.h.b16 %v3649
        %v4182 = vunpack.c.l.b16 %v3650
        %v4183 = vunpack.c.h.b16 %v3650
        %v4184 = vunpack.c.l.b16 %v3651
        %v4185 = vunpack.c.h.b16 %v3651
        %v4186 = vunpack.c.l.b16 %v3652
        %v4187 = vunpack.c.h.b16 %v3652
        %v4188 = vunpack.c.l.b16 %v3653
        %v4189 = vunpack.c.h.b16 %v3653
        %v4190 = vunpack.c.l.b16 %v3654
        %v4191 = vunpack.c.h.b16 %v3654
        %v4192 = vunpack.c.l.b16 %v3655
        %v4193 = vunpack.c.h.b16 %v3655
        %v4194 = vunpack.c.l.b16 %v3656
        %v4195 = vunpack.c.h.b16 %v3656
        %v4196 = vunpack.c.l.b16 %v3657
        %v4197 = vunpack.c.h.b16 %v3657
        %v4198 = vunpack.c.l.b16 %v3658
        %v4199 = vunpack.c.h.b16 %v3658
        %v4200 = vunpack.c.l.b16 %v3659
        %v4201 = vunpack.c.h.b16 %v3659
        %v4202 = vunpack.c.l.b16 %v3660
        %v4203 = vunpack.c.h.b16 %v3660
        %v4204 = vunpack.c.l.b16 %v3661
        %v4205 = vunpack.c.h.b16 %v3661
        %v4206 = vunpack.c.l.b16 %v3662
        %v4207 = vunpack.c.h.b16 %v3662
        %v4208 = vunpack.c.l.b16 %v3663
        %v4209 = vunpack.c.h.b16 %v3663
        %v4210 = vunpack.c.l.b16 %v3664
        %v4211 = vunpack.c.h.b16 %v3664
        %v4212 = vunpack.c.l.b16 %v3665
        %v4213 = vunpack.c.h.b16 %v3665
        %v4214 = vunpack.c.l.b16 %v3666
        %v4215 = vunpack.c.h.b16 %v3666
        %v4216 = vunpack.c.l.b16 %v3667
        %v4217 = vunpack.c.h.b16 %v3667
        %v4218 = vunpack.c.l.b16 %v3668
        %v4219 = vunpack.c.h.b16 %v3668
        %v4220 = vunpack.c.l.b16 %v3669
        %v4221 = vunpack.c.h.b16 %v3669
        %v4222 = vunpack.c.l.b16 %v3670
        %v4223 = vunpack.c.h.b16 %v3670
        %v4224 = vunpack.c.l.b16 %v3671
        %v4225 = vunpack.c.h.b16 %v3671
        %v4226 = vunpack.c.l.b16 %v3672
        %v4227 = vunpack.c.h.b16 %v3672
        %v4228 = vunpack.c.l.b16 %v3673
        %v4229 = vunpack.c.h.b16 %v3673
        %v4230 = vunpack.c.l.b16 %v3674
        %v4231 = vunpack.c.h.b16 %v3674
        %v4232 = vunpack.c.l.b16 %v3675
        %v4233 = vunpack.c.h.b16 %v3675
        %v4234 = vunpack.c.l.b16 %v3676
        %v4235 = vunpack.c.h.b16 %v3676
        %v4236 = vunpack.c.l.b16 %v3677
        %v4237 = vunpack.c.h.b16 %v3677
        %v4238 = vunpack.c.l.b16 %v3678
        %v4239 = vunpack.c.h.b16 %v3678
        %v4240 = vunpack.c.l.b16 %v3679
        %v4241 = vunpack.c.h.b16 %v3679
        %v4242 = vunpack.c.l.b16 %v3680
        %v4243 = vunpack.c.h.b16 %v3680
        %v4244 = vunpack.c.l.b16 %v3681
        %v4245 = vunpack.c.h.b16 %v3681
        %v4246 = vunpack.c.l.b16 %v3682
        %v4247 = vunpack.c.h.b16 %v3682
        %v4248 = vunpack.c.l.b16 %v3683
        %v4249 = vunpack.c.h.b16 %v3683
        %v4250 = vunpack.c.l.b16 %v3684
        %v4251 = vunpack.c.h.b16 %v3684
        %v4252 = vunpack.c.l.b16 %v3685
        %v4253 = vunpack.c.h.b16 %v3685
        %v4254 = vunpack.c.l.b16 %v3686
        %v4255 = vunpack.c.h.b16 %v3686
        %v4256 = vunpack.c.l.b16 %v3687
        %v4257 = vunpack.c.h.b16 %v3687
        %v4258 = vunpack.c.l.b16 %v3688
        %v4259 = vunpack.c.h.b16 %v3688
        %v4260 = vunpack.c.l.b16 %v3689
        %v4261 = vunpack.c.h.b16 %v3689
        %v4262 = vunpack.c.l.b16 %v3690
        %v4263 = vunpack.c.h.b16 %v3690
        %v4264 = vunpack.c.l.b16 %v3691
        %v4265 = vunpack.c.h.b16 %v3691
        %v4266 = vunpack.c.l.b16 %v3692
        %v4267 = vunpack.c.h.b16 %v3692
        %v4268 = vunpack.c.l.b16 %v3693
        %v4269 = vunpack.c.h.b16 %v3693
        %v4270 = vpack.c.b16 %v3892, %v3886
        %v4271 = vpack.c.b16 %v3893, %v3887
        %v4272 = vpack.c.b16 %v3894, %v3888
        %v4273 = vpack.c.b16 %v3895, %v3889
        %v4274 = vpack.c.b16 %v3896, %v3890
        %v4275 = vpack.c.b16 %v3897, %v3891
        %v4276 = vpack.c.b16 %v3904, %v3898
        %v4277 = vpack.c.b16 %v3905, %v3899
        %v4278 = vpack.c.b16 %v3906, %v3900
        %v4279 = vpack.c.b16 %v3907, %v3901
        %v4280 = vpack.c.b16 %v3908, %v3902
        %v4281 = vpack.c.b16 %v3909, %v3903
        %v4282 = vpack.c.b16 %v3916, %v3910
        %v4283 = vpack.c.b16 %v3917, %v3911
        %v4284 = vpack.c.b16 %v3918, %v3912
        %v4285 = vpack.c.b16 %v3919, %v3913
        %v4286 = vpack.c.b16 %v3920, %v3914
        %v4287 = vpack.c.b16 %v3921, %v3915
        %v4288 = vpack.c.b16 %v3928, %v3922
        %v4289 = vpack.c.b16 %v3929, %v3923
        %v4290 = vpack.c.b16 %v3930, %v3924
        %v4291 = vpack.c.b16 %v3931, %v3925
        %v4292 = vpack.c.b16 %v3932, %v3926
        %v4293 = vpack.c.b16 %v3933, %v3927
        %v4294 = vpack.c.b16 %v3940, %v3934
        %v4295 = vpack.c.b16 %v3941, %v3935
        %v4296 = vpack.c.b16 %v3942, %v3936
        %v4297 = vpack.c.b16 %v3943, %v3937
        %v4298 = vpack.c.b16 %v3944, %v3938
        %v4299 = vpack.c.b16 %v3945, %v3939
        %v4300 = vpack.c.b16 %v3952, %v3946
        %v4301 = vpack.c.b16 %v3953, %v3947
        %v4302 = vpack.c.b16 %v3954, %v3948
        %v4303 = vpack.c.b16 %v3955, %v3949
        %v4304 = vpack.c.b16 %v3956, %v3950
        %v4305 = vpack.c.b16 %v3957, %v3951
        %v4306 = vpack.c.b16 %v3964, %v3958
        %v4307 = vpack.c.b16 %v3965, %v3959
        %v4308 = vpack.c.b16 %v3966, %v3960
        %v4309 = vpack.c.b16 %v3967, %v3961
        %v4310 = vpack.c.b16 %v3968, %v3962
        %v4311 = vpack.c.b16 %v3969, %v3963
        %v4312 = vpack.c.b16 %v3976, %v3970
        %v4313 = vpack.c.b16 %v3977, %v3971
        %v4314 = vpack.c.b16 %v3978, %v3972
        %v4315 = vpack.c.b16 %v3979, %v3973
        %v4316 = vpack.c.b16 %v3980, %v3974
        %v4317 = vpack.c.b16 %v3981, %v3975
        %v4318 = vpack.c.b16 %v3988, %v3982
        %v4319 = vpack.c.b16 %v3989, %v3983
        %v4320 = vpack.c.b16 %v3990, %v3984
        %v4321 = vpack.c.b16 %v3991, %v3985
        %v4322 = vpack.c.b16 %v3992, %v3986
        %v4323 = vpack.c.b16 %v3993, %v3987
        %v4324 = vpack.c.b16 %v4000, %v3994
        %v4325 = vpack.c.b16 %v4001, %v3995
        %v4326 = vpack.c.b16 %v4002, %v3996
        %v4327 = vpack.c.b16 %v4003, %v3997
        %v4328 = vpack.c.b16 %v4004, %v3998
        %v4329 = vpack.c.b16 %v4005, %v3999
        %v4330 = vpack.c.b16 %v4012, %v4006
        %v4331 = vpack.c.b16 %v4013, %v4007
        %v4332 = vpack.c.b16 %v4014, %v4008
        %v4333 = vpack.c.b16 %v4015, %v4009
        %v4334 = vpack.c.b16 %v4016, %v4010
        %v4335 = vpack.c.b16 %v4017, %v4011
        %v4336 = vpack.c.b16 %v4024, %v4018
        %v4337 = vpack.c.b16 %v4025, %v4019
        %v4338 = vpack.c.b16 %v4026, %v4020
        %v4339 = vpack.c.b16 %v4027, %v4021
        %v4340 = vpack.c.b16 %v4028, %v4022
        %v4341 = vpack.c.b16 %v4029, %v4023
        %v4342 = vpack.c.b16 %v4036, %v4030
        %v4343 = vpack.c.b16 %v4037, %v4031
        %v4344 = vpack.c.b16 %v4038, %v4032
        %v4345 = vpack.c.b16 %v4039, %v4033
        %v4346 = vpack.c.b16 %v4040, %v4034
        %v4347 = vpack.c.b16 %v4041, %v4035
        %v4348 = vpack.c.b16 %v4048, %v4042
        %v4349 = vpack.c.b16 %v4049, %v4043
        %v4350 = vpack.c.b16 %v4050, %v4044
        %v4351 = vpack.c.b16 %v4051, %v4045
        %v4352 = vpack.c.b16 %v4052, %v4046
        %v4353 = vpack.c.b16 %v4053, %v4047
        %v4354 = vpack.c.b16 %v4060, %v4054
        %v4355 = vpack.c.b16 %v4061, %v4055
        %v4356 = vpack.c.b16 %v4062, %v4056
        %v4357 = vpack.c.b16 %v4063, %v4057
        %v4358 = vpack.c.b16 %v4064, %v4058
        %v4359 = vpack.c.b16 %v4065, %v4059
        %v4360 = vpack.c.b16 %v4072, %v4066
        %v4361 = vpack.c.b16 %v4073, %v4067
        %v4362 = vpack.c.b16 %v4074, %v4068
        %v4363 = vpack.c.b16 %v4075, %v4069
        %v4364 = vpack.c.b16 %v4076, %v4070
        %v4365 = vpack.c.b16 %v4077, %v4071
        %v4366 = vpack.c.b16 %v4084, %v4078
        %v4367 = vpack.c.b16 %v4085, %v4079
        %v4368 = vpack.c.b16 %v4086, %v4080
        %v4369 = vpack.c.b16 %v4087, %v4081
        %v4370 = vpack.c.b16 %v4088, %v4082
        %v4371 = vpack.c.b16 %v4089, %v4083
        %v4372 = vpack.c.b16 %v4096, %v4090
        %v4373 = vpack.c.b16 %v4097, %v4091
        %v4374 = vpack.c.b16 %v4098, %v4092
        %v4375 = vpack.c.b16 %v4099, %v4093
        %v4376 = vpack.c.b16 %v4100, %v4094
        %v4377 = vpack.c.b16 %v4101, %v4095
        %v4378 = vpack.c.b16 %v4108, %v4102
        %v4379 = vpack.c.b16 %v4109, %v4103
        %v4380 = vpack.c.b16 %v4110, %v4104
        %v4381 = vpack.c.b16 %v4111, %v4105
        %v4382 = vpack.c.b16 %v4112, %v4106
        %v4383 = vpack.c.b16 %v4113, %v4107
        %v4384 = vpack.c.b16 %v4120, %v4114
        %v4385 = vpack.c.b16 %v4121, %v4115
        %v4386 = vpack.c.b16 %v4122, %v4116
        %v4387 = vpack.c.b16 %v4123, %v4117
        %v4388 = vpack.c.b16 %v4124, %v4118
        %v4389 = vpack.c.b16 %v4125, %v4119
        %v4390 = vpack.c.b16 %v4132, %v4126
        %v4391 = vpack.c.b16 %v4133, %v4127
        %v4392 = vpack.c.b16 %v4134, %v4128
        %v4393 = vpack.c.b16 %v4135, %v4129
        %v4394 = vpack.c.b16 %v4136, %v4130
        %v4395 = vpack.c.b16 %v4137, %v4131
        %v4396 = vpack.c.b16 %v4144, %v4138
        %v4397 = vpack.c.b16 %v4145, %v4139
        %v4398 = vpack.c.b16 %v4146, %v4140
        %v4399 = vpack.c.b16 %v4147, %v4141
        %v4400 = vpack.c.b16 %v4148, %v4142
        %v4401 = vpack.c.b16 %v4149, %v4143
        %v4402 = vpack.c.b16 %v4156, %v4150
        %v4403 = vpack.c.b16 %v4157, %v4151
        %v4404 = vpack.c.b16 %v4158, %v4152
        %v4405 = vpack.c.b16 %v4159, %v4153
        %v4406 = vpack.c.b16 %v4160, %v4154
        %v4407 = vpack.c.b16 %v4161, %v4155
        %v4408 = vpack.c.b16 %v4168, %v4162
        %v4409 = vpack.c.b16 %v4169, %v4163
        %v4410 = vpack.c.b16 %v4170, %v4164
        %v4411 = vpack.c.b16 %v4171, %v4165
        %v4412 = vpack.c.b16 %v4172, %v4166
        %v4413 = vpack.c.b16 %v4173, %v4167
        %v4414 = vpack.c.b16 %v4180, %v4174
        %v4415 = vpack.c.b16 %v4181, %v4175
        %v4416 = vpack.c.b16 %v4182, %v4176
        %v4417 = vpack.c.b16 %v4183, %v4177
        %v4418 = vpack.c.b16 %v4184, %v4178
        %v4419 = vpack.c.b16 %v4185, %v4179
        %v4420 = vpack.c.b16 %v4192, %v4186
        %v4421 = vpack.c.b16 %v4193, %v4187
        %v4422 = vpack.c.b16 %v4194, %v4188
        %v4423 = vpack.c.b16 %v4195, %v4189
        %v4424 = vpack.c.b16 %v4196, %v4190
        %v4425 = vpack.c.b16 %v4197, %v4191
        %v4426 = vpack.c.b16 %v4204, %v4198
        %v4427 = vpack.c.b16 %v4205, %v4199
        %v4428 = vpack.c.b16 %v4206, %v4200
        %v4429 = vpack.c.b16 %v4207, %v4201
        %v4430 = vpack.c.b16 %v4208, %v4202
        %v4431 = vpack.c.b16 %v4209, %v4203
        %v4432 = vpack.c.b16 %v4216, %v4210
        %v4433 = vpack.c.b16 %v4217, %v4211
        %v4434 = vpack.c.b16 %v4218, %v4212
        %v4435 = vpack.c.b16 %v4219, %v4213
        %v4436 = vpack.c.b16 %v4220, %v4214
        %v4437 = vpack.c.b16 %v4221, %v4215
        %v4438 = vpack.c.b16 %v4228, %v4222
        %v4439 = vpack.c.b16 %v4229, %v4223
        %v4440 = vpack.c.b16 %v4230, %v4224
        %v4441 = vpack.c.b16 %v4231, %v4225
        %v4442 = vpack.c.b16 %v4232, %v4226
        %v4443 = vpack.c.b16 %v4233, %v4227
        %v4444 = vpack.c.b16 %v4240, %v4234
        %v4445 = vpack.c.b16 %v4241, %v4235
        %v4446 = vpack.c.b16 %v4242, %v4236
        %v4447 = vpack.c.b16 %v4243, %v4237
        %v4448 = vpack.c.b16 %v4244, %v4238
        %v4449 = vpack.c.b16 %v4245, %v4239
        %v4450 = vpack.c.b16 %v4252, %v4246
        %v4451 = vpack.c.b16 %v4253, %v4247
        %v4452 = vpack.c.b16 %v4254, %v4248
        %v4453 = vpack.c.b16 %v4255, %v4249
        %v4454 = vpack.c.b16 %v4256, %v4250
        %v4455 = vpack.c.b16 %v4257, %v4251
        %v4456 = vpack.c.b16 %v4264, %v4258
        %v4457 = vpack.c.b16 %v4265, %v4259
        %v4458 = vpack.c.b16 %v4266, %v4260
        %v4459 = vpack.c.b16 %v4267, %v4261
        %v4460 = vpack.c.b16 %v4268, %v4262
        %v4461 = vpack.c.b16 %v4269, %v4263
        %4654 = vmatprep.subr.bf16.mxu0 %v4271
        %4655 = vmatpush1.bf16.msra.mxu0 %v4270
        %4656 = vmatprep.subr.bf16.mxu0 %v4277
        %4657 = vmatpush1.bf16.msra.mxu0 %v4276
        %4658 = vmatprep.subr.bf16.mxu0 %v4283
        %4659 = vmatpush1.bf16.msra.mxu0 %v4282
        %4660 = vmatprep.subr.bf16.mxu0 %v4289
        %4661 = vmatpush1.bf16.msra.mxu0 %v4288
        %4662 = vmatprep.subr.bf16.mxu0 %v4295
        %4663 = vmatpush1.bf16.msra.mxu0 %v4294
        %4664 = vmatprep.subr.bf16.mxu0 %v4301
        %4665 = vmatpush1.bf16.msra.mxu0 %v4300
        %4666 = vmatprep.subr.bf16.mxu0 %v4307
        %4667 = vmatpush1.bf16.msra.mxu0 %v4306
        %4668 = vmatprep.subr.bf16.mxu0 %v4313
        %4669 = vmatpush1.bf16.msra.mxu0 %v4312
        %4670 = vmatprep.subr.bf16.mxu0 %v4319
        %4671 = vmatpush1.bf16.msra.mxu0 %v4318
        %4672 = vmatprep.subr.bf16.mxu0 %v4325
        %4673 = vmatpush1.bf16.msra.mxu0 %v4324
        %4674 = vmatprep.subr.bf16.mxu0 %v4331
        %4675 = vmatpush1.bf16.msra.mxu0 %v4330
        %4676 = vmatprep.subr.bf16.mxu0 %v4337
        %4677 = vmatpush1.bf16.msra.mxu0 %v4336
        %4678 = vmatprep.subr.bf16.mxu0 %v4343
        %4679 = vmatpush1.bf16.msra.mxu0 %v4342
        %4680 = vmatprep.subr.bf16.mxu0 %v4349
        %4681 = vmatpush1.bf16.msra.mxu0 %v4348
        %4682 = vmatprep.subr.bf16.mxu0 %v4355
        %4683 = vmatpush1.bf16.msra.mxu0 %v4354
        %4684 = vmatprep.subr.bf16.mxu0 %v4361
        %4685 = vmatpush1.bf16.msra.mxu0 %v4360
        %4686 = vmatprep.mubr.bf16.mxu0 %v3499
        %4687 = vmatmul.mubr.bf16.gmra.mrb[0].mxu0 %v3498
        %v4688 = vpop.f32.mrb[0].mxu0
        %v4689 = vadd.f32 0.0, %v4688
        %v4690 = vpop.f32.mrb[0].mxu0
        %v4691 = vadd.f32 0.0, %v4690
        %v4692 = vpop.f32.mrb[0].mxu0
        %v4693 = vpop.f32.mrb[0].mxu0
        %4694 = vdwg.mxu0
        %4695 = vmatprep.subr.bf16.mxu0 %v4367
        %4696 = vmatpush1.bf16.msra.mxu0 %v4366
        %4697 = vmatprep.subr.bf16.mxu0 %v4373
        %4698 = vmatpush1.bf16.msra.mxu0 %v4372
        %4699 = vmatprep.subr.bf16.mxu0 %v4379
        %4700 = vmatpush1.bf16.msra.mxu0 %v4378
        %4701 = vmatprep.subr.bf16.mxu0 %v4385
        %4702 = vmatpush1.bf16.msra.mxu0 %v4384
        %4703 = vmatprep.subr.bf16.mxu0 %v4391
        %4704 = vmatpush1.bf16.msra.mxu0 %v4390
        %4705 = vmatprep.subr.bf16.mxu0 %v4397
        %4706 = vmatpush1.bf16.msra.mxu0 %v4396
        %4707 = vmatprep.subr.bf16.mxu0 %v4403
        %4708 = vmatpush1.bf16.msra.mxu0 %v4402
        %4709 = vmatprep.subr.bf16.mxu0 %v4409
        %4710 = vmatpush1.bf16.msra.mxu0 %v4408
        %4711 = vmatprep.subr.bf16.mxu0 %v4415
        %4712 = vmatpush1.bf16.msra.mxu0 %v4414
        %4713 = vmatprep.subr.bf16.mxu0 %v4421
        %4714 = vmatpush1.bf16.msra.mxu0 %v4420
        %4715 = vmatprep.subr.bf16.mxu0 %v4427
        %4716 = vmatpush1.bf16.msra.mxu0 %v4426
        %4717 = vmatprep.subr.bf16.mxu0 %v4433
        %4718 = vmatpush1.bf16.msra.mxu0 %v4432
        %4719 = vmatprep.subr.bf16.mxu0 %v4439
        %4720 = vmatpush1.bf16.msra.mxu0 %v4438
        %4721 = vmatprep.subr.bf16.mxu0 %v4445
        %4722 = vmatpush1.bf16.msra.mxu0 %v4444
        %4723 = vmatprep.subr.bf16.mxu0 %v4451
        %4724 = vmatpush1.bf16.msra.mxu0 %v4450
        %4725 = vmatprep.subr.bf16.mxu0 %v4457
        %4726 = vmatpush1.bf16.msra.mxu0 %v4456
        %4727 = vmatprep.mubr.bf16.mxu0 %v3501
        %4728 = vmatmul.mubr.bf16.gmra.mrb[0].mxu0 %v3500
        %v4729 = vpop.f32.mrb[0].mxu0
        %v4730 = vadd.f32 %v4689, %v4729
        %v4731 = vpop.f32.mrb[0].mxu0
        %v4732 = vadd.f32 %v4691, %v4731
        %v4733 = vpop.f32.mrb[0].mxu0
        %v4734 = vpop.f32.mrb[0].mxu0
        %4735 = vdwg.mxu0
        %4736 = vmatprep.subr.bf16.mxu0 %v4273
        %4737 = vmatpush1.bf16.msra.mxu0 %v4272
        %4738 = vmatprep.subr.bf16.mxu0 %v4279
        %4739 = vmatpush1.bf16.msra.mxu0 %v4278
        %4740 = vmatprep.subr.bf16.mxu0 %v4285
        %4741 = vmatpush1.bf16.msra.mxu0 %v4284
        %4742 = vmatprep.subr.bf16.mxu0 %v4291
        %4743 = vmatpush1.bf16.msra.mxu0 %v4290
        %4744 = vmatprep.subr.bf16.mxu0 %v4297
        %4745 = vmatpush1.bf16.msra.mxu0 %v4296
        %4746 = vmatprep.subr.bf16.mxu0 %v4303
        %4747 = vmatpush1.bf16.msra.mxu0 %v4302
        %4748 = vmatprep.subr.bf16.mxu0 %v4309
        %4749 = vmatpush1.bf16.msra.mxu0 %v4308
        %4750 = vmatprep.subr.bf16.mxu0 %v4315
        %4751 = vmatpush1.bf16.msra.mxu0 %v4314
        %4752 = vmatprep.subr.bf16.mxu0 %v4321
        %4753 = vmatpush1.bf16.msra.mxu0 %v4320
        %4754 = vmatprep.subr.bf16.mxu0 %v4327
        %4755 = vmatpush1.bf16.msra.mxu0 %v4326
        %4756 = vmatprep.subr.bf16.mxu0 %v4333
        %4757 = vmatpush1.bf16.msra.mxu0 %v4332
        %4758 = vmatprep.subr.bf16.mxu0 %v4339
        %4759 = vmatpush1.bf16.msra.mxu0 %v4338
        %4760 = vmatprep.subr.bf16.mxu0 %v4345
        %4761 = vmatpush1.bf16.msra.mxu0 %v4344
        %4762 = vmatprep.subr.bf16.mxu0 %v4351
        %4763 = vmatpush1.bf16.msra.mxu0 %v4350
        %4764 = vmatprep.subr.bf16.mxu0 %v4357
        %4765 = vmatpush1.bf16.msra.mxu0 %v4356
        %4766 = vmatprep.subr.bf16.mxu0 %v4363
        %4767 = vmatpush1.bf16.msra.mxu0 %v4362
        %4768 = vmatprep.mubr.bf16.mxu0 %v3499
        %4769 = vmatmul.mubr.bf16.gmra.mrb[0].mxu0 %v3498
        %v4770 = vpop.f32.mrb[0].mxu0
        %v4771 = vadd.f32 0.0, %v4770
        %v4772 = vpop.f32.mrb[0].mxu0
        %v4773 = vadd.f32 0.0, %v4772
        %v4774 = vpop.f32.mrb[0].mxu0
        %v4775 = vpop.f32.mrb[0].mxu0
        %4776 = vdwg.mxu0
        %4777 = vmatprep.subr.bf16.mxu0 %v4369
        %4778 = vmatpush1.bf16.msra.mxu0 %v4368
        %4779 = vmatprep.subr.bf16.mxu0 %v4375
        %4780 = vmatpush1.bf16.msra.mxu0 %v4374
        %4781 = vmatprep.subr.bf16.mxu0 %v4381
        %4782 = vmatpush1.bf16.msra.mxu0 %v4380
        %4783 = vmatprep.subr.bf16.mxu0 %v4387
        %4784 = vmatpush1.bf16.msra.mxu0 %v4386
        %4785 = vmatprep.subr.bf16.mxu0 %v4393
        %4786 = vmatpush1.bf16.msra.mxu0 %v4392
        %4787 = vmatprep.subr.bf16.mxu0 %v4399
        %4788 = vmatpush1.bf16.msra.mxu0 %v4398
        %4789 = vmatprep.subr.bf16.mxu0 %v4405
        %4790 = vmatpush1.bf16.msra.mxu0 %v4404
        %4791 = vmatprep.subr.bf16.mxu0 %v4411
        %4792 = vmatpush1.bf16.msra.mxu0 %v4410
        %4793 = vmatprep.subr.bf16.mxu0 %v4417
        %4794 = vmatpush1.bf16.msra.mxu0 %v4416
        %4795 = vmatprep.subr.bf16.mxu0 %v4423
        %4796 = vmatpush1.bf16.msra.mxu0 %v4422
        %4797 = vmatprep.subr.bf16.mxu0 %v4429
        %4798 = vmatpush1.bf16.msra.mxu0 %v4428
        %4799 = vmatprep.subr.bf16.mxu0 %v4435
        %4800 = vmatpush1.bf16.msra.mxu0 %v4434
        %4801 = vmatprep.subr.bf16.mxu0 %v4441
        %4802 = vmatpush1.bf16.msra.mxu0 %v4440
        %4803 = vmatprep.subr.bf16.mxu0 %v4447
        %4804 = vmatpush1.bf16.msra.mxu0 %v4446
        %4805 = vmatprep.subr.bf16.mxu0 %v4453
        %4806 = vmatpush1.bf16.msra.mxu0 %v4452
        %4807 = vmatprep.subr.bf16.mxu0 %v4459
        %4808 = vmatpush1.bf16.msra.mxu0 %v4458
        %4809 = vmatprep.mubr.bf16.mxu0 %v3501
        %4810 = vmatmul.mubr.bf16.gmra.mrb[0].mxu0 %v3500
        %v4811 = vpop.f32.mrb[0].mxu0
        %v4812 = vadd.f32 %v4771, %v4811
        %v4813 = vpop.f32.mrb[0].mxu0
        %v4814 = vadd.f32 %v4773, %v4813
        %v4815 = vpop.f32.mrb[0].mxu0
        %v4816 = vpop.f32.mrb[0].mxu0
        %4817 = vdwg.mxu0
        %4818 = vmatprep.subr.bf16.mxu0 %v4275
        %4819 = vmatpush1.bf16.msra.mxu0 %v4274
        %4820 = vmatprep.subr.bf16.mxu0 %v4281
        %4821 = vmatpush1.bf16.msra.mxu0 %v4280
        %4822 = vmatprep.subr.bf16.mxu0 %v4287
        %4823 = vmatpush1.bf16.msra.mxu0 %v4286
        %4824 = vmatprep.subr.bf16.mxu0 %v4293
        %4825 = vmatpush1.bf16.msra.mxu0 %v4292
        %4826 = vmatprep.subr.bf16.mxu0 %v4299
        %4827 = vmatpush1.bf16.msra.mxu0 %v4298
        %4828 = vmatprep.subr.bf16.mxu0 %v4305
        %4829 = vmatpush1.bf16.msra.mxu0 %v4304
        %4830 = vmatprep.subr.bf16.mxu0 %v4311
        %4831 = vmatpush1.bf16.msra.mxu0 %v4310
        %4832 = vmatprep.subr.bf16.mxu0 %v4317
        %4833 = vmatpush1.bf16.msra.mxu0 %v4316
        %4834 = vmatprep.subr.bf16.mxu0 %v4323
        %4835 = vmatpush1.bf16.msra.mxu0 %v4322
        %4836 = vmatprep.subr.bf16.mxu0 %v4329
        %4837 = vmatpush1.bf16.msra.mxu0 %v4328
        %4838 = vmatprep.subr.bf16.mxu0 %v4335
        %4839 = vmatpush1.bf16.msra.mxu0 %v4334
        %4840 = vmatprep.subr.bf16.mxu0 %v4341
        %4841 = vmatpush1.bf16.msra.mxu0 %v4340
        %4842 = vmatprep.subr.bf16.mxu0 %v4347
        %4843 = vmatpush1.bf16.msra.mxu0 %v4346
        %4844 = vmatprep.subr.bf16.mxu0 %v4353
        %4845 = vmatpush1.bf16.msra.mxu0 %v4352
        %4846 = vmatprep.subr.bf16.mxu0 %v4359
        %4847 = vmatpush1.bf16.msra.mxu0 %v4358
        %4848 = vmatprep.subr.bf16.mxu0 %v4365
        %4849 = vmatpush1.bf16.msra.mxu0 %v4364
        %4850 = vmatprep.mubr.bf16.mxu0 %v3499
        %4851 = vmatmul.mubr.bf16.gmra.mrb[0].mxu0 %v3498
        %v4852 = vpop.f32.mrb[0].mxu0
        %v4853 = vadd.f32 0.0, %v4852
        %v4854 = vpop.f32.mrb[0].mxu0
        %v4855 = vadd.f32 0.0, %v4854
        %v4856 = vpop.f32.mrb[0].mxu0
        %v4857 = vpop.f32.mrb[0].mxu0
        %4858 = vdwg.mxu0
        %4859 = vmatprep.subr.bf16.mxu0 %v4371
        %4860 = vmatpush1.bf16.msra.mxu0 %v4370
        %4861 = vmatprep.subr.bf16.mxu0 %v4377
        %4862 = vmatpush1.bf16.msra.mxu0 %v4376
        %4863 = vmatprep.subr.bf16.mxu0 %v4383
        %4864 = vmatpush1.bf16.msra.mxu0 %v4382
        %4865 = vmatprep.subr.bf16.mxu0 %v4389
        %4866 = vmatpush1.bf16.msra.mxu0 %v4388
        %4867 = vmatprep.subr.bf16.mxu0 %v4395
        %4868 = vmatpush1.bf16.msra.mxu0 %v4394
        %4869 = vmatprep.subr.bf16.mxu0 %v4401
        %4870 = vmatpush1.bf16.msra.mxu0 %v4400
        %4871 = vmatprep.subr.bf16.mxu0 %v4407
        %4872 = vmatpush1.bf16.msra.mxu0 %v4406
        %4873 = vmatprep.subr.bf16.mxu0 %v4413
        %4874 = vmatpush1.bf16.msra.mxu0 %v4412
        %4875 = vmatprep.subr.bf16.mxu0 %v4419
        %4876 = vmatpush1.bf16.msra.mxu0 %v4418
        %4877 = vmatprep.subr.bf16.mxu0 %v4425
        %4878 = vmatpush1.bf16.msra.mxu0 %v4424
        %4879 = vmatprep.subr.bf16.mxu0 %v4431
        %4880 = vmatpush1.bf16.msra.mxu0 %v4430
        %4881 = vmatprep.subr.bf16.mxu0 %v4437
        %4882 = vmatpush1.bf16.msra.mxu0 %v4436
        %4883 = vmatprep.subr.bf16.mxu0 %v4443
        %4884 = vmatpush1.bf16.msra.mxu0 %v4442
        %4885 = vmatprep.subr.bf16.mxu0 %v4449
        %4886 = vmatpush1.bf16.msra.mxu0 %v4448
        %4887 = vmatprep.subr.bf16.mxu0 %v4455
        %4888 = vmatpush1.bf16.msra.mxu0 %v4454
        %4889 = vmatprep.subr.bf16.mxu0 %v4461
        %4890 = vmatpush1.bf16.msra.mxu0 %v4460
        %4891 = vmatprep.mubr.bf16.mxu0 %v3501
        %4892 = vmatmul.mubr.bf16.gmra.mrb[0].mxu0 %v3500
        %v4893 = vpop.f32.mrb[0].mxu0
        %v4894 = vadd.f32 %v4853, %v4893
        %v4895 = vpop.f32.mrb[0].mxu0
        %v4896 = vadd.f32 %v4855, %v4895
        %v4897 = vpop.f32.mrb[0].mxu0
        %v4898 = vpop.f32.mrb[0].mxu0
        %4899 = vdwg.mxu0
        %v4906 = vcombine.low %v4730, %v4732
        %v4907 = vcombine.low %v4812, %v4814
        %v4909 = vunpack.c.l.s4 1983009808
        %v4910 = vunpack.c.0.s8 %v4909
        %v4911 = vlaneseq
        %v4912 = vshrl.u32 %v4911, 7
        %v4913 = vsub.s32 %v4910, %v4912
        %v4914 = vrot.slane %v4906, %v4913
        %v4916 = vunpack.c.l.s4 1983009808
        %v4917 = vunpack.c.0.s8 %v4916
        %v4918 = vlaneseq
        %v4919 = vshrl.u32 %v4918, 7
        %v4920 = vsub.s32 %v4917, %v4919
        %v4921 = vrot.slane %v4907, %v4920
        %v4922 = vcombine.low %v4914, %v4921
        %v4923 = vcombine.low %v4894, %v4896
        %v4925 = vunpack.c.l.s4 1983009808
        %v4926 = vunpack.c.0.s8 %v4925
        %v4927 = vlaneseq
        %v4928 = vshrl.u32 %v4927, 7
        %v4929 = vsub.s32 %v4926, %v4928
        %v4930 = vrot.slane %v4923, %v4929
        %v4933 = vadd.f32 %v3473, %v4922
        %v4934 = vadd.f32 %v3474, %v4930
        %4935 = vst [vmem:[#allocation2] sm:$0xff] %v4933
        %4936 = vst [vmem:[#allocation2 + $0x8] sm:$0xf] %v4934
        %p4937 = scmp.eq.s32.totalorder %s30, 1
        // Predicated region
        $region109: #{depth_estimation_gaussian_forward.1} parent=67 // pred_check
          %p4938 = pneg %p4937
        $region110: #{depth_estimation_gaussian_forward.1} parent=67 // pred_check_branch
          %4940 = sbr.rel (%p4938) target = $region112
        $region111: #{depth_estimation_gaussian_forward.1} parent=67 // pred_region
          %v4941 = vld [vmem:[#allocation3] sm:$0xff]
          %v4942 = vld [vmem:[#allocation3 + $0x8] sm:$0xff]
          %v4945 = vcombine.high %v4941, %v4941
          %v4947 = vunpack.c.l.s4 1983009808
          %v4948 = vunpack.c.0.s8 %v4947
          %v4949 = vlaneseq
          %v4950 = vshrl.u32 %v4949, 7
          %v4951 = vsub.s32 %v4948, %v4950
          %v4952 = vrot.slane %v4941, %v4951
          %v4954 = vunpack.c.l.s4 1983009808
          %v4955 = vunpack.c.0.s8 %v4954
          %v4956 = vlaneseq
          %v4957 = vshrl.u32 %v4956, 7
          %v4958 = vsub.s32 %v4955, %v4957
          %v4959 = vrot.slane %v4945, %v4958
          %v4960 = vcombine.high %v4952, %v4952
          %v4961 = vcombine.high %v4959, %v4959
          %v4962 = vcombine.high %v4942, %v4942
          %v4964 = vunpack.c.l.s4 1983009808
          %v4965 = vunpack.c.0.s8 %v4964
          %v4966 = vlaneseq
          %v4967 = vshrl.u32 %v4966, 7
          %v4968 = vsub.s32 %v4965, %v4967
          %v4969 = vrot.slane %v4942, %v4968
          %v4971 = vunpack.c.l.s4 1983009808
          %v4972 = vunpack.c.0.s8 %v4971
          %v4973 = vlaneseq
          %v4974 = vshrl.u32 %v4973, 7
          %v4975 = vsub.s32 %v4972, %v4974
          %v4976 = vrot.slane %v4962, %v4975
          %v4977 = vcombine.high %v4969, %v4969
          %v4978 = vcombine.high %v4976, %v4976
          %v4987 = vpack.c.bf16 %v4952, %v4952
          %v4988 = vpack.c.bf16 %v4960, %v4960
          %v4989 = vpack.c.bf16 %v4959, %v4959
          %v4990 = vpack.c.bf16 %v4961, %v4961
          %v4991 = vpack.c.bf16 %v4969, %v4969
          %v4992 = vpack.c.bf16 %v4977, %v4977
          %v4993 = vpack.c.bf16 %v4976, %v4976
          %v4994 = vpack.c.bf16 %v4978, %v4978
          %v4995 = vld [vmem:[#allocation2] sm:$0xff]
          %v4996 = vld [vmem:[#allocation2 + $0x8] sm:$0xf]
          %v4997 = vmax.f32 %v4995, 0.0
          %v4998 = vmax.f32 %v4996, 0.0
          %v5001 = vcombine.high %v4997, %v4997
          %v5003 = vunpack.c.l.s4 1983009808
          %v5004 = vunpack.c.0.s8 %v5003
          %v5005 = vlaneseq
          %v5006 = vshrl.u32 %v5005, 7
          %v5007 = vsub.s32 %v5004, %v5006
          %v5008 = vrot.slane %v4997, %v5007
          %v5010 = vunpack.c.l.s4 1983009808
          %v5011 = vunpack.c.0.s8 %v5010
          %v5012 = vlaneseq
          %v5013 = vshrl.u32 %v5012, 7
          %v5014 = vsub.s32 %v5011, %v5013
          %v5015 = vrot.slane %v5001, %v5014
          %v5016 = vcombine.high %v5008, %v5008
          %v5017 = vcombine.high %v5015, %v5015
          %v5019 = vunpack.c.l.s4 1983009808
          %v5020 = vunpack.c.0.s8 %v5019
          %v5021 = vlaneseq
          %v5022 = vshrl.u32 %v5021, 7
          %v5023 = vsub.s32 %v5020, %v5022
          %v5024 = vrot.slane %v4998, %v5023
          %v5025 = vcombine.high %v5024, %v5024
          %v5032 = vpack.c.bf16 %v5008, %v5008
          %v5033 = vpack.c.bf16 %v5016, %v5016
          %v5034 = vpack.c.bf16 %v5015, %v5015
          %v5035 = vpack.c.bf16 %v5017, %v5017
          %v5036 = vpack.c.bf16 %v5024, %v5024
          %v5037 = vpack.c.bf16 %v5025, %v5025
          %v5038 = vld [vmem:[#allocation10] sm:$0xff]
          %v5039 = vld [vmem:[#allocation10 + $0x8] sm:$0xff]
          %v5040 = vld [vmem:[#allocation10 + $0x10] sm:$0xff]
          %v5041 = vld [vmem:[#allocation10 + $0x18] sm:$0xff]
          %v5042 = vld [vmem:[#allocation10 + $0x20] sm:$0xff]
          %v5043 = vld [vmem:[#allocation10 + $0x28] sm:$0xff]
          %v5044 = vld [vmem:[#allocation10 + $0x30] sm:$0xff]
          %v5045 = vld [vmem:[#allocation10 + $0x38] sm:$0xff]
          %v5046 = vld [vmem:[#allocation10 + $0x40] sm:$0xff]
          %v5047 = vld [vmem:[#allocation10 + $0x48] sm:$0xff]
          %v5048 = vld [vmem:[#allocation10 + $0x50] sm:$0xff]
          %v5049 = vld [vmem:[#allocation10 + $0x58] sm:$0xff]
          %v5050 = vld [vmem:[#allocation10 + $0x60] sm:$0xff]
          %v5051 = vld [vmem:[#allocation10 + $0x68] sm:$0xff]
          %v5052 = vld [vmem:[#allocation10 + $0x70] sm:$0xff]
          %v5053 = vld [vmem:[#allocation10 + $0x78] sm:$0xff]
          %v5054 = vld [vmem:[#allocation10 + $0x80] sm:$0xff]
          %v5055 = vld [vmem:[#allocation10 + $0x88] sm:$0xff]
          %v5056 = vld [vmem:[#allocation10 + $0x90] sm:$0xff]
          %v5057 = vld [vmem:[#allocation10 + $0x98] sm:$0xff]
          %v5058 = vld [vmem:[#allocation10 + $0xa0] sm:$0xff]
          %v5059 = vld [vmem:[#allocation10 + $0xa8] sm:$0xff]
          %v5060 = vld [vmem:[#allocation10 + $0xb0] sm:$0xff]
          %v5061 = vld [vmem:[#allocation10 + $0xb8] sm:$0xff]
          %v5062 = vld [vmem:[#allocation10 + $0xc0] sm:$0xff]
          %v5063 = vld [vmem:[#allocation10 + $0xc8] sm:$0xff]
          %v5064 = vld [vmem:[#allocation10 + $0xd0] sm:$0xff]
          %v5065 = vld [vmem:[#allocation10 + $0xd8] sm:$0xff]
          %v5066 = vld [vmem:[#allocation10 + $0xe0] sm:$0xff]
          %v5067 = vld [vmem:[#allocation10 + $0xe8] sm:$0xff]
          %v5068 = vld [vmem:[#allocation10 + $0xf0] sm:$0xff]
          %v5069 = vld [vmem:[#allocation10 + $0xf8] sm:$0xff]
          %v5070 = vld [vmem:[#allocation10 + $0x100] sm:$0xff]
          %v5071 = vld [vmem:[#allocation10 + $0x108] sm:$0xff]
          %v5072 = vld [vmem:[#allocation10 + $0x110] sm:$0xff]
          %v5073 = vld [vmem:[#allocation10 + $0x118] sm:$0xff]
          %v5074 = vld [vmem:[#allocation10 + $0x120] sm:$0xff]
          %v5075 = vld [vmem:[#allocation10 + $0x128] sm:$0xff]
          %v5076 = vld [vmem:[#allocation10 + $0x130] sm:$0xff]
          %v5077 = vld [vmem:[#allocation10 + $0x138] sm:$0xff]
          %v5078 = vld [vmem:[#allocation10 + $0x140] sm:$0xff]
          %v5079 = vld [vmem:[#allocation10 + $0x148] sm:$0xff]
          %v5080 = vld [vmem:[#allocation10 + $0x150] sm:$0xff]
          %v5081 = vld [vmem:[#allocation10 + $0x158] sm:$0xff]
          %v5082 = vld [vmem:[#allocation10 + $0x160] sm:$0xff]
          %v5083 = vld [vmem:[#allocation10 + $0x168] sm:$0xff]
          %v5084 = vld [vmem:[#allocation10 + $0x170] sm:$0xff]
          %v5085 = vld [vmem:[#allocation10 + $0x178] sm:$0xff]
          %v5086 = vld [vmem:[#allocation10 + $0x180] sm:$0xff]
          %v5087 = vld [vmem:[#allocation10 + $0x188] sm:$0xff]
          %v5088 = vld [vmem:[#allocation10 + $0x190] sm:$0xff]
          %v5089 = vld [vmem:[#allocation10 + $0x198] sm:$0xff]
          %v5090 = vld [vmem:[#allocation10 + $0x1a0] sm:$0xff]
          %v5091 = vld [vmem:[#allocation10 + $0x1a8] sm:$0xff]
          %v5092 = vld [vmem:[#allocation10 + $0x1b0] sm:$0xff]
          %v5093 = vld [vmem:[#allocation10 + $0x1b8] sm:$0xff]
          %v5094 = vld [vmem:[#allocation10 + $0x1c0] sm:$0xff]
          %v5095 = vld [vmem:[#allocation10 + $0x1c8] sm:$0xff]
          %v5096 = vld [vmem:[#allocation10 + $0x1d0] sm:$0xff]
          %v5097 = vld [vmem:[#allocation10 + $0x1d8] sm:$0xff]
          %v5098 = vld [vmem:[#allocation10 + $0x1e0] sm:$0xff]
          %v5099 = vld [vmem:[#allocation10 + $0x1e8] sm:$0xff]
          %v5100 = vld [vmem:[#allocation10 + $0x1f0] sm:$0xff]
          %v5101 = vld [vmem:[#allocation10 + $0x1f8] sm:$0xff]
          %v5102 = vld [vmem:[#allocation10 + $0x200] sm:$0xff]
          %v5103 = vld [vmem:[#allocation10 + $0x208] sm:$0xff]
          %v5104 = vld [vmem:[#allocation10 + $0x210] sm:$0xff]
          %v5105 = vld [vmem:[#allocation10 + $0x218] sm:$0xff]
          %v5106 = vld [vmem:[#allocation10 + $0x220] sm:$0xff]
          %v5107 = vld [vmem:[#allocation10 + $0x228] sm:$0xff]
          %v5108 = vld [vmem:[#allocation10 + $0x230] sm:$0xff]
          %v5109 = vld [vmem:[#allocation10 + $0x238] sm:$0xff]
          %v5110 = vld [vmem:[#allocation10 + $0x240] sm:$0xff]
          %v5111 = vld [vmem:[#allocation10 + $0x248] sm:$0xff]
          %v5112 = vld [vmem:[#allocation10 + $0x250] sm:$0xff]
          %v5113 = vld [vmem:[#allocation10 + $0x258] sm:$0xff]
          %v5114 = vld [vmem:[#allocation10 + $0x260] sm:$0xff]
          %v5115 = vld [vmem:[#allocation10 + $0x268] sm:$0xff]
          %v5116 = vld [vmem:[#allocation10 + $0x270] sm:$0xff]
          %v5117 = vld [vmem:[#allocation10 + $0x278] sm:$0xff]
          %v5118 = vld [vmem:[#allocation10 + $0x280] sm:$0xff]
          %v5119 = vld [vmem:[#allocation10 + $0x288] sm:$0xff]
          %v5120 = vld [vmem:[#allocation10 + $0x290] sm:$0xff]
          %v5121 = vld [vmem:[#allocation10 + $0x298] sm:$0xff]
          %v5122 = vld [vmem:[#allocation10 + $0x2a0] sm:$0xff]
          %v5123 = vld [vmem:[#allocation10 + $0x2a8] sm:$0xff]
          %v5124 = vld [vmem:[#allocation10 + $0x2b0] sm:$0xff]
          %v5125 = vld [vmem:[#allocation10 + $0x2b8] sm:$0xff]
          %v5126 = vld [vmem:[#allocation10 + $0x2c0] sm:$0xff]
          %v5127 = vld [vmem:[#allocation10 + $0x2c8] sm:$0xff]
          %v5128 = vld [vmem:[#allocation10 + $0x2d0] sm:$0xff]
          %v5129 = vld [vmem:[#allocation10 + $0x2d8] sm:$0xff]
          %v5130 = vld [vmem:[#allocation10 + $0x2e0] sm:$0xff]
          %v5131 = vld [vmem:[#allocation10 + $0x2e8] sm:$0xff]
          %v5132 = vld [vmem:[#allocation10 + $0x2f0] sm:$0xff]
          %v5133 = vld [vmem:[#allocation10 + $0x2f8] sm:$0xff]
          %v5134 = vld [vmem:[#allocation10 + $0x300] sm:$0xff]
          %v5135 = vld [vmem:[#allocation10 + $0x308] sm:$0xff]
          %v5136 = vld [vmem:[#allocation10 + $0x310] sm:$0xff]
          %v5137 = vld [vmem:[#allocation10 + $0x318] sm:$0xff]
          %v5138 = vld [vmem:[#allocation10 + $0x320] sm:$0xff]
          %v5139 = vld [vmem:[#allocation10 + $0x328] sm:$0xff]
          %v5140 = vld [vmem:[#allocation10 + $0x330] sm:$0xff]
          %v5141 = vld [vmem:[#allocation10 + $0x338] sm:$0xff]
          %v5142 = vld [vmem:[#allocation10 + $0x340] sm:$0xff]
          %v5143 = vld [vmem:[#allocation10 + $0x348] sm:$0xff]
          %v5144 = vld [vmem:[#allocation10 + $0x350] sm:$0xff]
          %v5145 = vld [vmem:[#allocation10 + $0x358] sm:$0xff]
          %v5146 = vld [vmem:[#allocation10 + $0x360] sm:$0xff]
          %v5147 = vld [vmem:[#allocation10 + $0x368] sm:$0xff]
          %v5148 = vld [vmem:[#allocation10 + $0x370] sm:$0xff]
          %v5149 = vld [vmem:[#allocation10 + $0x378] sm:$0xff]
          %v5150 = vld [vmem:[#allocation10 + $0x380] sm:$0xff]
          %v5151 = vld [vmem:[#allocation10 + $0x388] sm:$0xff]
          %v5152 = vld [vmem:[#allocation10 + $0x390] sm:$0xff]
          %v5153 = vld [vmem:[#allocation10 + $0x398] sm:$0xff]
          %v5154 = vld [vmem:[#allocation10 + $0x3a0] sm:$0xff]
          %v5155 = vld [vmem:[#allocation10 + $0x3a8] sm:$0xff]
          %v5156 = vld [vmem:[#allocation10 + $0x3b0] sm:$0xff]
          %v5157 = vld [vmem:[#allocation10 + $0x3b8] sm:$0xff]
          %v5158 = vld [vmem:[#allocation10 + $0x3c0] sm:$0xff]
          %v5159 = vld [vmem:[#allocation10 + $0x3c8] sm:$0xff]
          %v5160 = vld [vmem:[#allocation10 + $0x3d0] sm:$0xff]
          %v5161 = vld [vmem:[#allocation10 + $0x3d8] sm:$0xff]
          %v5162 = vld [vmem:[#allocation10 + $0x3e0] sm:$0xff]
          %v5163 = vld [vmem:[#allocation10 + $0x3e8] sm:$0xff]
          %v5164 = vld [vmem:[#allocation10 + $0x3f0] sm:$0xff]
          %v5165 = vld [vmem:[#allocation10 + $0x3f8] sm:$0xff]
          %v5166 = vld [vmem:[#allocation10 + $0x400] sm:$0xff]
          %v5167 = vld [vmem:[#allocation10 + $0x408] sm:$0xff]
          %v5168 = vld [vmem:[#allocation10 + $0x410] sm:$0xff]
          %v5169 = vld [vmem:[#allocation10 + $0x418] sm:$0xff]
          %v5170 = vld [vmem:[#allocation10 + $0x420] sm:$0xff]
          %v5171 = vld [vmem:[#allocation10 + $0x428] sm:$0xff]
          %v5172 = vld [vmem:[#allocation10 + $0x430] sm:$0xff]
          %v5173 = vld [vmem:[#allocation10 + $0x438] sm:$0xff]
          %v5174 = vld [vmem:[#allocation10 + $0x440] sm:$0xff]
          %v5175 = vld [vmem:[#allocation10 + $0x448] sm:$0xff]
          %v5176 = vld [vmem:[#allocation10 + $0x450] sm:$0xff]
          %v5177 = vld [vmem:[#allocation10 + $0x458] sm:$0xff]
          %v5178 = vld [vmem:[#allocation10 + $0x460] sm:$0xff]
          %v5179 = vld [vmem:[#allocation10 + $0x468] sm:$0xff]
          %v5180 = vld [vmem:[#allocation10 + $0x470] sm:$0xff]
          %v5181 = vld [vmem:[#allocation10 + $0x478] sm:$0xff]
          %v5182 = vld [vmem:[#allocation10 + $0x480] sm:$0xff]
          %v5183 = vld [vmem:[#allocation10 + $0x488] sm:$0xff]
          %v5184 = vld [vmem:[#allocation10 + $0x490] sm:$0xff]
          %v5185 = vld [vmem:[#allocation10 + $0x498] sm:$0xff]
          %v5186 = vld [vmem:[#allocation10 + $0x4a0] sm:$0xff]
          %v5187 = vld [vmem:[#allocation10 + $0x4a8] sm:$0xff]
          %v5188 = vld [vmem:[#allocation10 + $0x4b0] sm:$0xff]
          %v5189 = vld [vmem:[#allocation10 + $0x4b8] sm:$0xff]
          %v5190 = vld [vmem:[#allocation10 + $0x4c0] sm:$0xff]
          %v5191 = vld [vmem:[#allocation10 + $0x4c8] sm:$0xff]
          %v5192 = vld [vmem:[#allocation10 + $0x4d0] sm:$0xff]
          %v5193 = vld [vmem:[#allocation10 + $0x4d8] sm:$0xff]
          %v5194 = vld [vmem:[#allocation10 + $0x4e0] sm:$0xff]
          %v5195 = vld [vmem:[#allocation10 + $0x4e8] sm:$0xff]
          %v5196 = vld [vmem:[#allocation10 + $0x4f0] sm:$0xff]
          %v5197 = vld [vmem:[#allocation10 + $0x4f8] sm:$0xff]
          %v5198 = vld [vmem:[#allocation10 + $0x500] sm:$0xff]
          %v5199 = vld [vmem:[#allocation10 + $0x508] sm:$0xff]
          %v5200 = vld [vmem:[#allocation10 + $0x510] sm:$0xff]
          %v5201 = vld [vmem:[#allocation10 + $0x518] sm:$0xff]
          %v5202 = vld [vmem:[#allocation10 + $0x520] sm:$0xff]
          %v5203 = vld [vmem:[#allocation10 + $0x528] sm:$0xff]
          %v5204 = vld [vmem:[#allocation10 + $0x530] sm:$0xff]
          %v5205 = vld [vmem:[#allocation10 + $0x538] sm:$0xff]
          %v5206 = vld [vmem:[#allocation10 + $0x540] sm:$0xff]
          %v5207 = vld [vmem:[#allocation10 + $0x548] sm:$0xff]
          %v5208 = vld [vmem:[#allocation10 + $0x550] sm:$0xff]
          %v5209 = vld [vmem:[#allocation10 + $0x558] sm:$0xff]
          %v5210 = vld [vmem:[#allocation10 + $0x560] sm:$0xff]
          %v5211 = vld [vmem:[#allocation10 + $0x568] sm:$0xff]
          %v5212 = vld [vmem:[#allocation10 + $0x570] sm:$0xff]
          %v5213 = vld [vmem:[#allocation10 + $0x578] sm:$0xff]
          %v5214 = vld [vmem:[#allocation10 + $0x580] sm:$0xff]
          %v5215 = vld [vmem:[#allocation10 + $0x588] sm:$0xff]
          %v5216 = vld [vmem:[#allocation10 + $0x590] sm:$0xff]
          %v5217 = vld [vmem:[#allocation10 + $0x598] sm:$0xff]
          %v5218 = vld [vmem:[#allocation10 + $0x5a0] sm:$0xff]
          %v5219 = vld [vmem:[#allocation10 + $0x5a8] sm:$0xff]
          %v5220 = vld [vmem:[#allocation10 + $0x5b0] sm:$0xff]
          %v5221 = vld [vmem:[#allocation10 + $0x5b8] sm:$0xff]
          %v5222 = vld [vmem:[#allocation10 + $0x5c0] sm:$0xff]
          %v5223 = vld [vmem:[#allocation10 + $0x5c8] sm:$0xff]
          %v5224 = vld [vmem:[#allocation10 + $0x5d0] sm:$0xff]
          %v5225 = vld [vmem:[#allocation10 + $0x5d8] sm:$0xff]
          %v5226 = vld [vmem:[#allocation10 + $0x5e0] sm:$0xff]
          %v5227 = vld [vmem:[#allocation10 + $0x5e8] sm:$0xff]
          %v5228 = vld [vmem:[#allocation10 + $0x5f0] sm:$0xff]
          %v5229 = vld [vmem:[#allocation10 + $0x5f8] sm:$0xff]
          %v5230 = vld [vmem:[#allocation11] sm:$0xff]
          %v5231 = vld [vmem:[#allocation11 + $0x8] sm:$0xff]
          %v5232 = vld [vmem:[#allocation11 + $0x10] sm:$0xff]
          %v5233 = vld [vmem:[#allocation11 + $0x18] sm:$0xff]
          %v5234 = vld [vmem:[#allocation11 + $0x20] sm:$0xff]
          %v5235 = vld [vmem:[#allocation11 + $0x28] sm:$0xff]
          %v5236 = vld [vmem:[#allocation11 + $0x30] sm:$0xff]
          %v5237 = vld [vmem:[#allocation11 + $0x38] sm:$0xff]
          %v5238 = vld [vmem:[#allocation11 + $0x40] sm:$0xff]
          %v5239 = vld [vmem:[#allocation11 + $0x48] sm:$0xff]
          %v5240 = vld [vmem:[#allocation11 + $0x50] sm:$0xff]
          %v5241 = vld [vmem:[#allocation11 + $0x58] sm:$0xff]
          %v5242 = vld [vmem:[#allocation11 + $0x60] sm:$0xff]
          %v5243 = vld [vmem:[#allocation11 + $0x68] sm:$0xff]
          %v5244 = vld [vmem:[#allocation11 + $0x70] sm:$0xff]
          %v5245 = vld [vmem:[#allocation11 + $0x78] sm:$0xff]
          %v5246 = vld [vmem:[#allocation11 + $0x80] sm:$0xff]
          %v5247 = vld [vmem:[#allocation11 + $0x88] sm:$0xff]
          %v5248 = vld [vmem:[#allocation11 + $0x90] sm:$0xff]
          %v5249 = vld [vmem:[#allocation11 + $0x98] sm:$0xff]
          %v5250 = vld [vmem:[#allocation11 + $0xa0] sm:$0xff]
          %v5251 = vld [vmem:[#allocation11 + $0xa8] sm:$0xff]
          %v5252 = vld [vmem:[#allocation11 + $0xb0] sm:$0xff]
          %v5253 = vld [vmem:[#allocation11 + $0xb8] sm:$0xff]
          %v5254 = vld [vmem:[#allocation11 + $0xc0] sm:$0xff]
          %v5255 = vld [vmem:[#allocation11 + $0xc8] sm:$0xff]
          %v5256 = vld [vmem:[#allocation11 + $0xd0] sm:$0xff]
          %v5257 = vld [vmem:[#allocation11 + $0xd8] sm:$0xff]
          %v5258 = vld [vmem:[#allocation11 + $0xe0] sm:$0xff]
          %v5259 = vld [vmem:[#allocation11 + $0xe8] sm:$0xff]
          %v5260 = vld [vmem:[#allocation11 + $0xf0] sm:$0xff]
          %v5261 = vld [vmem:[#allocation11 + $0xf8] sm:$0xff]
          %v5262 = vld [vmem:[#allocation11 + $0x100] sm:$0xff]
          %v5263 = vld [vmem:[#allocation11 + $0x108] sm:$0xff]
          %v5264 = vld [vmem:[#allocation11 + $0x110] sm:$0xff]
          %v5265 = vld [vmem:[#allocation11 + $0x118] sm:$0xff]
          %v5266 = vld [vmem:[#allocation11 + $0x120] sm:$0xff]
          %v5267 = vld [vmem:[#allocation11 + $0x128] sm:$0xff]
          %v5268 = vld [vmem:[#allocation11 + $0x130] sm:$0xff]
          %v5269 = vld [vmem:[#allocation11 + $0x138] sm:$0xff]
          %v5270 = vld [vmem:[#allocation11 + $0x140] sm:$0xff]
          %v5271 = vld [vmem:[#allocation11 + $0x148] sm:$0xff]
          %v5272 = vld [vmem:[#allocation11 + $0x150] sm:$0xff]
          %v5273 = vld [vmem:[#allocation11 + $0x158] sm:$0xff]
          %v5274 = vld [vmem:[#allocation11 + $0x160] sm:$0xff]
          %v5275 = vld [vmem:[#allocation11 + $0x168] sm:$0xff]
          %v5276 = vld [vmem:[#allocation11 + $0x170] sm:$0xff]
          %v5277 = vld [vmem:[#allocation11 + $0x178] sm:$0xff]
          %v5278 = vld [vmem:[#allocation11 + $0x180] sm:$0xff]
          %v5279 = vld [vmem:[#allocation11 + $0x188] sm:$0xff]
          %v5280 = vld [vmem:[#allocation11 + $0x190] sm:$0xff]
          %v5281 = vld [vmem:[#allocation11 + $0x198] sm:$0xff]
          %v5282 = vld [vmem:[#allocation11 + $0x1a0] sm:$0xff]
          %v5283 = vld [vmem:[#allocation11 + $0x1a8] sm:$0xff]
          %v5284 = vld [vmem:[#allocation11 + $0x1b0] sm:$0xff]
          %v5285 = vld [vmem:[#allocation11 + $0x1b8] sm:$0xff]
          %v5286 = vld [vmem:[#allocation11 + $0x1c0] sm:$0xff]
          %v5287 = vld [vmem:[#allocation11 + $0x1c8] sm:$0xff]
          %v5288 = vld [vmem:[#allocation11 + $0x1d0] sm:$0xff]
          %v5289 = vld [vmem:[#allocation11 + $0x1d8] sm:$0xff]
          %v5290 = vld [vmem:[#allocation11 + $0x1e0] sm:$0xff]
          %v5291 = vld [vmem:[#allocation11 + $0x1e8] sm:$0xff]
          %v5292 = vld [vmem:[#allocation11 + $0x1f0] sm:$0xff]
          %v5293 = vld [vmem:[#allocation11 + $0x1f8] sm:$0xff]
          %v5294 = vld [vmem:[#allocation11 + $0x200] sm:$0xff]
          %v5295 = vld [vmem:[#allocation11 + $0x208] sm:$0xff]
          %v5296 = vld [vmem:[#allocation11 + $0x210] sm:$0xff]
          %v5297 = vld [vmem:[#allocation11 + $0x218] sm:$0xff]
          %v5298 = vld [vmem:[#allocation11 + $0x220] sm:$0xff]
          %v5299 = vld [vmem:[#allocation11 + $0x228] sm:$0xff]
          %v5300 = vld [vmem:[#allocation11 + $0x230] sm:$0xff]
          %v5301 = vld [vmem:[#allocation11 + $0x238] sm:$0xff]
          %v5302 = vld [vmem:[#allocation11 + $0x240] sm:$0xff]
          %v5303 = vld [vmem:[#allocation11 + $0x248] sm:$0xff]
          %v5304 = vld [vmem:[#allocation11 + $0x250] sm:$0xff]
          %v5305 = vld [vmem:[#allocation11 + $0x258] sm:$0xff]
          %v5306 = vld [vmem:[#allocation11 + $0x260] sm:$0xff]
          %v5307 = vld [vmem:[#allocation11 + $0x268] sm:$0xff]
          %v5308 = vld [vmem:[#allocation11 + $0x270] sm:$0xff]
          %v5309 = vld [vmem:[#allocation11 + $0x278] sm:$0xff]
          %v5310 = vld [vmem:[#allocation11 + $0x280] sm:$0xff]
          %v5311 = vld [vmem:[#allocation11 + $0x288] sm:$0xff]
          %v5312 = vld [vmem:[#allocation11 + $0x290] sm:$0xff]
          %v5313 = vld [vmem:[#allocation11 + $0x298] sm:$0xff]
          %v5314 = vld [vmem:[#allocation11 + $0x2a0] sm:$0xff]
          %v5315 = vld [vmem:[#allocation11 + $0x2a8] sm:$0xff]
          %v5316 = vld [vmem:[#allocation11 + $0x2b0] sm:$0xff]
          %v5317 = vld [vmem:[#allocation11 + $0x2b8] sm:$0xff]
          %v5318 = vld [vmem:[#allocation11 + $0x2c0] sm:$0xff]
          %v5319 = vld [vmem:[#allocation11 + $0x2c8] sm:$0xff]
          %v5320 = vld [vmem:[#allocation11 + $0x2d0] sm:$0xff]
          %v5321 = vld [vmem:[#allocation11 + $0x2d8] sm:$0xff]
          %v5322 = vld [vmem:[#allocation11 + $0x2e0] sm:$0xff]
          %v5323 = vld [vmem:[#allocation11 + $0x2e8] sm:$0xff]
          %v5324 = vld [vmem:[#allocation11 + $0x2f0] sm:$0xff]
          %v5325 = vld [vmem:[#allocation11 + $0x2f8] sm:$0xff]
          %v5326 = vld [vmem:[#allocation11 + $0x300] sm:$0xff]
          %v5327 = vld [vmem:[#allocation11 + $0x308] sm:$0xff]
          %v5328 = vld [vmem:[#allocation11 + $0x310] sm:$0xff]
          %v5329 = vld [vmem:[#allocation11 + $0x318] sm:$0xff]
          %v5330 = vld [vmem:[#allocation11 + $0x320] sm:$0xff]
          %v5331 = vld [vmem:[#allocation11 + $0x328] sm:$0xff]
          %v5332 = vld [vmem:[#allocation11 + $0x330] sm:$0xff]
          %v5333 = vld [vmem:[#allocation11 + $0x338] sm:$0xff]
          %v5334 = vld [vmem:[#allocation11 + $0x340] sm:$0xff]
          %v5335 = vld [vmem:[#allocation11 + $0x348] sm:$0xff]
          %v5336 = vld [vmem:[#allocation11 + $0x350] sm:$0xff]
          %v5337 = vld [vmem:[#allocation11 + $0x358] sm:$0xff]
          %v5338 = vld [vmem:[#allocation11 + $0x360] sm:$0xff]
          %v5339 = vld [vmem:[#allocation11 + $0x368] sm:$0xff]
          %v5340 = vld [vmem:[#allocation11 + $0x370] sm:$0xff]
          %v5341 = vld [vmem:[#allocation11 + $0x378] sm:$0xff]
          %v5342 = vld [vmem:[#allocation11 + $0x380] sm:$0xff]
          %v5343 = vld [vmem:[#allocation11 + $0x388] sm:$0xff]
          %v5344 = vld [vmem:[#allocation11 + $0x390] sm:$0xff]
          %v5345 = vld [vmem:[#allocation11 + $0x398] sm:$0xff]
          %v5346 = vld [vmem:[#allocation11 + $0x3a0] sm:$0xff]
          %v5347 = vld [vmem:[#allocation11 + $0x3a8] sm:$0xff]
          %v5348 = vld [vmem:[#allocation11 + $0x3b0] sm:$0xff]
          %v5349 = vld [vmem:[#allocation11 + $0x3b8] sm:$0xff]
          %v5350 = vld [vmem:[#allocation11 + $0x3c0] sm:$0xff]
          %v5351 = vld [vmem:[#allocation11 + $0x3c8] sm:$0xff]
          %v5352 = vld [vmem:[#allocation11 + $0x3d0] sm:$0xff]
          %v5353 = vld [vmem:[#allocation11 + $0x3d8] sm:$0xff]
          %v5354 = vld [vmem:[#allocation11 + $0x3e0] sm:$0xff]
          %v5355 = vld [vmem:[#allocation11 + $0x3e8] sm:$0xff]
          %v5356 = vld [vmem:[#allocation11 + $0x3f0] sm:$0xff]
          %v5357 = vld [vmem:[#allocation11 + $0x3f8] sm:$0xff]
          %v5358 = vld [vmem:[#allocation11 + $0x400] sm:$0xff]
          %v5359 = vld [vmem:[#allocation11 + $0x408] sm:$0xff]
          %v5360 = vld [vmem:[#allocation11 + $0x410] sm:$0xff]
          %v5361 = vld [vmem:[#allocation11 + $0x418] sm:$0xff]
          %v5362 = vld [vmem:[#allocation11 + $0x420] sm:$0xff]
          %v5363 = vld [vmem:[#allocation11 + $0x428] sm:$0xff]
          %v5364 = vld [vmem:[#allocation11 + $0x430] sm:$0xff]
          %v5365 = vld [vmem:[#allocation11 + $0x438] sm:$0xff]
          %v5366 = vld [vmem:[#allocation11 + $0x440] sm:$0xff]
          %v5367 = vld [vmem:[#allocation11 + $0x448] sm:$0xff]
          %v5368 = vld [vmem:[#allocation11 + $0x450] sm:$0xff]
          %v5369 = vld [vmem:[#allocation11 + $0x458] sm:$0xff]
          %v5370 = vld [vmem:[#allocation11 + $0x460] sm:$0xff]
          %v5371 = vld [vmem:[#allocation11 + $0x468] sm:$0xff]
          %v5372 = vld [vmem:[#allocation11 + $0x470] sm:$0xff]
          %v5373 = vld [vmem:[#allocation11 + $0x478] sm:$0xff]
          %v5374 = vld [vmem:[#allocation11 + $0x480] sm:$0xff]
          %v5375 = vld [vmem:[#allocation11 + $0x488] sm:$0xff]
          %v5376 = vld [vmem:[#allocation11 + $0x490] sm:$0xff]
          %v5377 = vld [vmem:[#allocation11 + $0x498] sm:$0xff]
          %v5378 = vld [vmem:[#allocation11 + $0x4a0] sm:$0xff]
          %v5379 = vld [vmem:[#allocation11 + $0x4a8] sm:$0xff]
          %v5380 = vld [vmem:[#allocation11 + $0x4b0] sm:$0xff]
          %v5381 = vld [vmem:[#allocation11 + $0x4b8] sm:$0xff]
          %v5382 = vld [vmem:[#allocation11 + $0x4c0] sm:$0xff]
          %v5383 = vld [vmem:[#allocation11 + $0x4c8] sm:$0xff]
          %v5384 = vld [vmem:[#allocation11 + $0x4d0] sm:$0xff]
          %v5385 = vld [vmem:[#allocation11 + $0x4d8] sm:$0xff]
          %v5386 = vld [vmem:[#allocation11 + $0x4e0] sm:$0xff]
          %v5387 = vld [vmem:[#allocation11 + $0x4e8] sm:$0xff]
          %v5388 = vld [vmem:[#allocation11 + $0x4f0] sm:$0xff]
          %v5389 = vld [vmem:[#allocation11 + $0x4f8] sm:$0xff]
          %v5390 = vld [vmem:[#allocation11 + $0x500] sm:$0xff]
          %v5391 = vld [vmem:[#allocation11 + $0x508] sm:$0xff]
          %v5392 = vld [vmem:[#allocation11 + $0x510] sm:$0xff]
          %v5393 = vld [vmem:[#allocation11 + $0x518] sm:$0xff]
          %v5394 = vld [vmem:[#allocation11 + $0x520] sm:$0xff]
          %v5395 = vld [vmem:[#allocation11 + $0x528] sm:$0xff]
          %v5396 = vld [vmem:[#allocation11 + $0x530] sm:$0xff]
          %v5397 = vld [vmem:[#allocation11 + $0x538] sm:$0xff]
          %v5398 = vld [vmem:[#allocation11 + $0x540] sm:$0xff]
          %v5399 = vld [vmem:[#allocation11 + $0x548] sm:$0xff]
          %v5400 = vld [vmem:[#allocation11 + $0x550] sm:$0xff]
          %v5401 = vld [vmem:[#allocation11 + $0x558] sm:$0xff]
          %v5402 = vld [vmem:[#allocation11 + $0x560] sm:$0xff]
          %v5403 = vld [vmem:[#allocation11 + $0x568] sm:$0xff]
          %v5404 = vld [vmem:[#allocation11 + $0x570] sm:$0xff]
          %v5405 = vld [vmem:[#allocation11 + $0x578] sm:$0xff]
          %v5406 = vld [vmem:[#allocation11 + $0x580] sm:$0xff]
          %v5407 = vld [vmem:[#allocation11 + $0x588] sm:$0xff]
          %v5408 = vld [vmem:[#allocation11 + $0x590] sm:$0xff]
          %v5409 = vld [vmem:[#allocation11 + $0x598] sm:$0xff]
          %v5410 = vld [vmem:[#allocation11 + $0x5a0] sm:$0xff]
          %v5411 = vld [vmem:[#allocation11 + $0x5a8] sm:$0xff]
          %v5412 = vld [vmem:[#allocation11 + $0x5b0] sm:$0xff]
          %v5413 = vld [vmem:[#allocation11 + $0x5b8] sm:$0xff]
          %v5414 = vld [vmem:[#allocation11 + $0x5c0] sm:$0xff]
          %v5415 = vld [vmem:[#allocation11 + $0x5c8] sm:$0xff]
          %v5416 = vld [vmem:[#allocation11 + $0x5d0] sm:$0xff]
          %v5417 = vld [vmem:[#allocation11 + $0x5d8] sm:$0xff]
          %v5418 = vld [vmem:[#allocation11 + $0x5e0] sm:$0xff]
          %v5419 = vld [vmem:[#allocation11 + $0x5e8] sm:$0xff]
          %v5420 = vld [vmem:[#allocation11 + $0x5f0] sm:$0xff]
          %v5421 = vld [vmem:[#allocation11 + $0x5f8] sm:$0xff]
          %v5422 = vld [vmem:[#allocation11 + $0x600] sm:$0xff]
          %v5423 = vld [vmem:[#allocation11 + $0x608] sm:$0xff]
          %v5424 = vld [vmem:[#allocation11 + $0x610] sm:$0xff]
          %v5425 = vld [vmem:[#allocation11 + $0x618] sm:$0xff]
          %v5426 = vld [vmem:[#allocation11 + $0x620] sm:$0xff]
          %v5427 = vld [vmem:[#allocation11 + $0x628] sm:$0xff]
          %v5428 = vld [vmem:[#allocation11 + $0x630] sm:$0xff]
          %v5429 = vld [vmem:[#allocation11 + $0x638] sm:$0xff]
          %v5430 = vld [vmem:[#allocation11 + $0x640] sm:$0xff]
          %v5431 = vld [vmem:[#allocation11 + $0x648] sm:$0xff]
          %v5432 = vld [vmem:[#allocation11 + $0x650] sm:$0xff]
          %v5433 = vld [vmem:[#allocation11 + $0x658] sm:$0xff]
          %v5434 = vld [vmem:[#allocation11 + $0x660] sm:$0xff]
          %v5435 = vld [vmem:[#allocation11 + $0x668] sm:$0xff]
          %v5436 = vld [vmem:[#allocation11 + $0x670] sm:$0xff]
          %v5437 = vld [vmem:[#allocation11 + $0x678] sm:$0xff]
          %v5438 = vld [vmem:[#allocation11 + $0x680] sm:$0xff]
          %v5439 = vld [vmem:[#allocation11 + $0x688] sm:$0xff]
          %v5440 = vld [vmem:[#allocation11 + $0x690] sm:$0xff]
          %v5441 = vld [vmem:[#allocation11 + $0x698] sm:$0xff]
          %v5442 = vld [vmem:[#allocation11 + $0x6a0] sm:$0xff]
          %v5443 = vld [vmem:[#allocation11 + $0x6a8] sm:$0xff]
          %v5444 = vld [vmem:[#allocation11 + $0x6b0] sm:$0xff]
          %v5445 = vld [vmem:[#allocation11 + $0x6b8] sm:$0xff]
          %v5446 = vld [vmem:[#allocation11 + $0x6c0] sm:$0xff]
          %v5447 = vld [vmem:[#allocation11 + $0x6c8] sm:$0xff]
          %v5448 = vld [vmem:[#allocation11 + $0x6d0] sm:$0xff]
          %v5449 = vld [vmem:[#allocation11 + $0x6d8] sm:$0xff]
          %v5450 = vld [vmem:[#allocation11 + $0x6e0] sm:$0xff]
          %v5451 = vld [vmem:[#allocation11 + $0x6e8] sm:$0xff]
          %v5452 = vld [vmem:[#allocation11 + $0x6f0] sm:$0xff]
          %v5453 = vld [vmem:[#allocation11 + $0x6f8] sm:$0xff]
          %v5454 = vld [vmem:[#allocation11 + $0x700] sm:$0xff]
          %v5455 = vld [vmem:[#allocation11 + $0x708] sm:$0xff]
          %v5456 = vld [vmem:[#allocation11 + $0x710] sm:$0xff]
          %v5457 = vld [vmem:[#allocation11 + $0x718] sm:$0xff]
          %v5458 = vld [vmem:[#allocation11 + $0x720] sm:$0xff]
          %v5459 = vld [vmem:[#allocation11 + $0x728] sm:$0xff]
          %v5460 = vld [vmem:[#allocation11 + $0x730] sm:$0xff]
          %v5461 = vld [vmem:[#allocation11 + $0x738] sm:$0xff]
          %v5462 = vld [vmem:[#allocation11 + $0x740] sm:$0xff]
          %v5463 = vld [vmem:[#allocation11 + $0x748] sm:$0xff]
          %v5464 = vld [vmem:[#allocation11 + $0x750] sm:$0xff]
          %v5465 = vld [vmem:[#allocation11 + $0x758] sm:$0xff]
          %v5466 = vld [vmem:[#allocation11 + $0x760] sm:$0xff]
          %v5467 = vld [vmem:[#allocation11 + $0x768] sm:$0xff]
          %v5468 = vld [vmem:[#allocation11 + $0x770] sm:$0xff]
          %v5469 = vld [vmem:[#allocation11 + $0x778] sm:$0xff]
          %v5470 = vld [vmem:[#allocation11 + $0x780] sm:$0xff]
          %v5471 = vld [vmem:[#allocation11 + $0x788] sm:$0xff]
          %v5472 = vld [vmem:[#allocation11 + $0x790] sm:$0xff]
          %v5473 = vld [vmem:[#allocation11 + $0x798] sm:$0xff]
          %v5474 = vld [vmem:[#allocation11 + $0x7a0] sm:$0xff]
          %v5475 = vld [vmem:[#allocation11 + $0x7a8] sm:$0xff]
          %v5476 = vld [vmem:[#allocation11 + $0x7b0] sm:$0xff]
          %v5477 = vld [vmem:[#allocation11 + $0x7b8] sm:$0xff]
          %v5478 = vld [vmem:[#allocation11 + $0x7c0] sm:$0xff]
          %v5479 = vld [vmem:[#allocation11 + $0x7c8] sm:$0xff]
          %v5480 = vld [vmem:[#allocation11 + $0x7d0] sm:$0xff]
          %v5481 = vld [vmem:[#allocation11 + $0x7d8] sm:$0xff]
          %v5482 = vld [vmem:[#allocation11 + $0x7e0] sm:$0xff]
          %v5483 = vld [vmem:[#allocation11 + $0x7e8] sm:$0xff]
          %v5484 = vld [vmem:[#allocation11 + $0x7f0] sm:$0xff]
          %v5485 = vld [vmem:[#allocation11 + $0x7f8] sm:$0xff]
          %v5742 = vunpack.c.l.b16 %v5230
          %v5743 = vunpack.c.h.b16 %v5230
          %v5744 = vunpack.c.l.b16 %v5231
          %v5745 = vunpack.c.h.b16 %v5231
          %v5746 = vunpack.c.l.b16 %v5232
          %v5747 = vunpack.c.h.b16 %v5232
          %v5748 = vunpack.c.l.b16 %v5233
          %v5749 = vunpack.c.h.b16 %v5233
          %v5750 = vunpack.c.l.b16 %v5234
          %v5751 = vunpack.c.h.b16 %v5234
          %v5752 = vunpack.c.l.b16 %v5235
          %v5753 = vunpack.c.h.b16 %v5235
          %v5754 = vunpack.c.l.b16 %v5236
          %v5755 = vunpack.c.h.b16 %v5236
          %v5756 = vunpack.c.l.b16 %v5237
          %v5757 = vunpack.c.h.b16 %v5237
          %v5758 = vunpack.c.l.b16 %v5238
          %v5759 = vunpack.c.h.b16 %v5238
          %v5760 = vunpack.c.l.b16 %v5239
          %v5761 = vunpack.c.h.b16 %v5239
          %v5762 = vunpack.c.l.b16 %v5240
          %v5763 = vunpack.c.h.b16 %v5240
          %v5764 = vunpack.c.l.b16 %v5241
          %v5765 = vunpack.c.h.b16 %v5241
          %v5766 = vunpack.c.l.b16 %v5242
          %v5767 = vunpack.c.h.b16 %v5242
          %v5768 = vunpack.c.l.b16 %v5243
          %v5769 = vunpack.c.h.b16 %v5243
          %v5770 = vunpack.c.l.b16 %v5244
          %v5771 = vunpack.c.h.b16 %v5244
          %v5772 = vunpack.c.l.b16 %v5245
          %v5773 = vunpack.c.h.b16 %v5245
          %v5774 = vunpack.c.l.b16 %v5246
          %v5775 = vunpack.c.h.b16 %v5246
          %v5776 = vunpack.c.l.b16 %v5247
          %v5777 = vunpack.c.h.b16 %v5247
          %v5778 = vunpack.c.l.b16 %v5248
          %v5779 = vunpack.c.h.b16 %v5248
          %v5780 = vunpack.c.l.b16 %v5249
          %v5781 = vunpack.c.h.b16 %v5249
          %v5782 = vunpack.c.l.b16 %v5250
          %v5783 = vunpack.c.h.b16 %v5250
          %v5784 = vunpack.c.l.b16 %v5251
          %v5785 = vunpack.c.h.b16 %v5251
          %v5786 = vunpack.c.l.b16 %v5252
          %v5787 = vunpack.c.h.b16 %v5252
          %v5788 = vunpack.c.l.b16 %v5253
          %v5789 = vunpack.c.h.b16 %v5253
          %v5790 = vunpack.c.l.b16 %v5254
          %v5791 = vunpack.c.h.b16 %v5254
          %v5792 = vunpack.c.l.b16 %v5255
          %v5793 = vunpack.c.h.b16 %v5255
          %v5794 = vunpack.c.l.b16 %v5256
          %v5795 = vunpack.c.h.b16 %v5256
          %v5796 = vunpack.c.l.b16 %v5257
          %v5797 = vunpack.c.h.b16 %v5257
          %v5798 = vunpack.c.l.b16 %v5258
          %v5799 = vunpack.c.h.b16 %v5258
          %v5800 = vunpack.c.l.b16 %v5259
          %v5801 = vunpack.c.h.b16 %v5259
          %v5802 = vunpack.c.l.b16 %v5260
          %v5803 = vunpack.c.h.b16 %v5260
          %v5804 = vunpack.c.l.b16 %v5261
          %v5805 = vunpack.c.h.b16 %v5261
          %v5806 = vunpack.c.l.b16 %v5262
          %v5807 = vunpack.c.h.b16 %v5262
          %v5808 = vunpack.c.l.b16 %v5263
          %v5809 = vunpack.c.h.b16 %v5263
          %v5810 = vunpack.c.l.b16 %v5264
          %v5811 = vunpack.c.h.b16 %v5264
          %v5812 = vunpack.c.l.b16 %v5265
          %v5813 = vunpack.c.h.b16 %v5265
          %v5814 = vunpack.c.l.b16 %v5266
          %v5815 = vunpack.c.h.b16 %v5266
          %v5816 = vunpack.c.l.b16 %v5267
          %v5817 = vunpack.c.h.b16 %v5267
          %v5818 = vunpack.c.l.b16 %v5268
          %v5819 = vunpack.c.h.b16 %v5268
          %v5820 = vunpack.c.l.b16 %v5269
          %v5821 = vunpack.c.h.b16 %v5269
          %v5822 = vunpack.c.l.b16 %v5270
          %v5823 = vunpack.c.h.b16 %v5270
          %v5824 = vunpack.c.l.b16 %v5271
          %v5825 = vunpack.c.h.b16 %v5271
          %v5826 = vunpack.c.l.b16 %v5272
          %v5827 = vunpack.c.h.b16 %v5272
          %v5828 = vunpack.c.l.b16 %v5273
          %v5829 = vunpack.c.h.b16 %v5273
          %v5830 = vunpack.c.l.b16 %v5274
          %v5831 = vunpack.c.h.b16 %v5274
          %v5832 = vunpack.c.l.b16 %v5275
          %v5833 = vunpack.c.h.b16 %v5275
          %v5834 = vunpack.c.l.b16 %v5276
          %v5835 = vunpack.c.h.b16 %v5276
          %v5836 = vunpack.c.l.b16 %v5277
          %v5837 = vunpack.c.h.b16 %v5277
          %v5838 = vunpack.c.l.b16 %v5278
          %v5839 = vunpack.c.h.b16 %v5278
          %v5840 = vunpack.c.l.b16 %v5279
          %v5841 = vunpack.c.h.b16 %v5279
          %v5842 = vunpack.c.l.b16 %v5280
          %v5843 = vunpack.c.h.b16 %v5280
          %v5844 = vunpack.c.l.b16 %v5281
          %v5845 = vunpack.c.h.b16 %v5281
          %v5846 = vunpack.c.l.b16 %v5282
          %v5847 = vunpack.c.h.b16 %v5282
          %v5848 = vunpack.c.l.b16 %v5283
          %v5849 = vunpack.c.h.b16 %v5283
          %v5850 = vunpack.c.l.b16 %v5284
          %v5851 = vunpack.c.h.b16 %v5284
          %v5852 = vunpack.c.l.b16 %v5285
          %v5853 = vunpack.c.h.b16 %v5285
          %v5854 = vunpack.c.l.b16 %v5286
          %v5855 = vunpack.c.h.b16 %v5286
          %v5856 = vunpack.c.l.b16 %v5287
          %v5857 = vunpack.c.h.b16 %v5287
          %v5858 = vunpack.c.l.b16 %v5288
          %v5859 = vunpack.c.h.b16 %v5288
          %v5860 = vunpack.c.l.b16 %v5289
          %v5861 = vunpack.c.h.b16 %v5289
          %v5862 = vunpack.c.l.b16 %v5290
          %v5863 = vunpack.c.h.b16 %v5290
          %v5864 = vunpack.c.l.b16 %v5291
          %v5865 = vunpack.c.h.b16 %v5291
          %v5866 = vunpack.c.l.b16 %v5292
          %v5867 = vunpack.c.h.b16 %v5292
          %v5868 = vunpack.c.l.b16 %v5293
          %v5869 = vunpack.c.h.b16 %v5293
          %v5870 = vunpack.c.l.b16 %v5294
          %v5871 = vunpack.c.h.b16 %v5294
          %v5872 = vunpack.c.l.b16 %v5295
          %v5873 = vunpack.c.h.b16 %v5295
          %v5874 = vunpack.c.l.b16 %v5296
          %v5875 = vunpack.c.h.b16 %v5296
          %v5876 = vunpack.c.l.b16 %v5297
          %v5877 = vunpack.c.h.b16 %v5297
          %v5878 = vunpack.c.l.b16 %v5298
          %v5879 = vunpack.c.h.b16 %v5298
          %v5880 = vunpack.c.l.b16 %v5299
          %v5881 = vunpack.c.h.b16 %v5299
          %v5882 = vunpack.c.l.b16 %v5300
          %v5883 = vunpack.c.h.b16 %v5300
          %v5884 = vunpack.c.l.b16 %v5301
          %v5885 = vunpack.c.h.b16 %v5301
          %v5886 = vunpack.c.l.b16 %v5302
          %v5887 = vunpack.c.h.b16 %v5302
          %v5888 = vunpack.c.l.b16 %v5303
          %v5889 = vunpack.c.h.b16 %v5303
          %v5890 = vunpack.c.l.b16 %v5304
          %v5891 = vunpack.c.h.b16 %v5304
          %v5892 = vunpack.c.l.b16 %v5305
          %v5893 = vunpack.c.h.b16 %v5305
          %v5894 = vunpack.c.l.b16 %v5306
          %v5895 = vunpack.c.h.b16 %v5306
          %v5896 = vunpack.c.l.b16 %v5307
          %v5897 = vunpack.c.h.b16 %v5307
          %v5898 = vunpack.c.l.b16 %v5308
          %v5899 = vunpack.c.h.b16 %v5308
          %v5900 = vunpack.c.l.b16 %v5309
          %v5901 = vunpack.c.h.b16 %v5309
          %v5902 = vunpack.c.l.b16 %v5310
          %v5903 = vunpack.c.h.b16 %v5310
          %v5904 = vunpack.c.l.b16 %v5311
          %v5905 = vunpack.c.h.b16 %v5311
          %v5906 = vunpack.c.l.b16 %v5312
          %v5907 = vunpack.c.h.b16 %v5312
          %v5908 = vunpack.c.l.b16 %v5313
          %v5909 = vunpack.c.h.b16 %v5313
          %v5910 = vunpack.c.l.b16 %v5314
          %v5911 = vunpack.c.h.b16 %v5314
          %v5912 = vunpack.c.l.b16 %v5315
          %v5913 = vunpack.c.h.b16 %v5315
          %v5914 = vunpack.c.l.b16 %v5316
          %v5915 = vunpack.c.h.b16 %v5316
          %v5916 = vunpack.c.l.b16 %v5317
          %v5917 = vunpack.c.h.b16 %v5317
          %v5918 = vunpack.c.l.b16 %v5318
          %v5919 = vunpack.c.h.b16 %v5318
          %v5920 = vunpack.c.l.b16 %v5319
          %v5921 = vunpack.c.h.b16 %v5319
          %v5922 = vunpack.c.l.b16 %v5320
          %v5923 = vunpack.c.h.b16 %v5320
          %v5924 = vunpack.c.l.b16 %v5321
          %v5925 = vunpack.c.h.b16 %v5321
          %v5926 = vunpack.c.l.b16 %v5322
          %v5927 = vunpack.c.h.b16 %v5322
          %v5928 = vunpack.c.l.b16 %v5323
          %v5929 = vunpack.c.h.b16 %v5323
          %v5930 = vunpack.c.l.b16 %v5324
          %v5931 = vunpack.c.h.b16 %v5324
          %v5932 = vunpack.c.l.b16 %v5325
          %v5933 = vunpack.c.h.b16 %v5325
          %v5934 = vunpack.c.l.b16 %v5326
          %v5935 = vunpack.c.h.b16 %v5326
          %v5936 = vunpack.c.l.b16 %v5327
          %v5937 = vunpack.c.h.b16 %v5327
          %v5938 = vunpack.c.l.b16 %v5328
          %v5939 = vunpack.c.h.b16 %v5328
          %v5940 = vunpack.c.l.b16 %v5329
          %v5941 = vunpack.c.h.b16 %v5329
          %v5942 = vunpack.c.l.b16 %v5330
          %v5943 = vunpack.c.h.b16 %v5330
          %v5944 = vunpack.c.l.b16 %v5331
          %v5945 = vunpack.c.h.b16 %v5331
          %v5946 = vunpack.c.l.b16 %v5332
          %v5947 = vunpack.c.h.b16 %v5332
          %v5948 = vunpack.c.l.b16 %v5333
          %v5949 = vunpack.c.h.b16 %v5333
          %v5950 = vunpack.c.l.b16 %v5334
          %v5951 = vunpack.c.h.b16 %v5334
          %v5952 = vunpack.c.l.b16 %v5335
          %v5953 = vunpack.c.h.b16 %v5335
          %v5954 = vunpack.c.l.b16 %v5336
          %v5955 = vunpack.c.h.b16 %v5336
          %v5956 = vunpack.c.l.b16 %v5337
          %v5957 = vunpack.c.h.b16 %v5337
          %v5958 = vunpack.c.l.b16 %v5338
          %v5959 = vunpack.c.h.b16 %v5338
          %v5960 = vunpack.c.l.b16 %v5339
          %v5961 = vunpack.c.h.b16 %v5339
          %v5962 = vunpack.c.l.b16 %v5340
          %v5963 = vunpack.c.h.b16 %v5340
          %v5964 = vunpack.c.l.b16 %v5341
          %v5965 = vunpack.c.h.b16 %v5341
          %v5966 = vunpack.c.l.b16 %v5342
          %v5967 = vunpack.c.h.b16 %v5342
          %v5968 = vunpack.c.l.b16 %v5343
          %v5969 = vunpack.c.h.b16 %v5343
          %v5970 = vunpack.c.l.b16 %v5344
          %v5971 = vunpack.c.h.b16 %v5344
          %v5972 = vunpack.c.l.b16 %v5345
          %v5973 = vunpack.c.h.b16 %v5345
          %v5974 = vunpack.c.l.b16 %v5346
          %v5975 = vunpack.c.h.b16 %v5346
          %v5976 = vunpack.c.l.b16 %v5347
          %v5977 = vunpack.c.h.b16 %v5347
          %v5978 = vunpack.c.l.b16 %v5348
          %v5979 = vunpack.c.h.b16 %v5348
          %v5980 = vunpack.c.l.b16 %v5349
          %v5981 = vunpack.c.h.b16 %v5349
          %v5982 = vunpack.c.l.b16 %v5350
          %v5983 = vunpack.c.h.b16 %v5350
          %v5984 = vunpack.c.l.b16 %v5351
          %v5985 = vunpack.c.h.b16 %v5351
          %v5986 = vunpack.c.l.b16 %v5352
          %v5987 = vunpack.c.h.b16 %v5352
          %v5988 = vunpack.c.l.b16 %v5353
          %v5989 = vunpack.c.h.b16 %v5353
          %v5990 = vunpack.c.l.b16 %v5354
          %v5991 = vunpack.c.h.b16 %v5354
          %v5992 = vunpack.c.l.b16 %v5355
          %v5993 = vunpack.c.h.b16 %v5355
          %v5994 = vunpack.c.l.b16 %v5356
          %v5995 = vunpack.c.h.b16 %v5356
          %v5996 = vunpack.c.l.b16 %v5357
          %v5997 = vunpack.c.h.b16 %v5357
          %v5998 = vunpack.c.l.b16 %v5358
          %v5999 = vunpack.c.h.b16 %v5358
          %v6000 = vunpack.c.l.b16 %v5359
          %v6001 = vunpack.c.h.b16 %v5359
          %v6002 = vunpack.c.l.b16 %v5360
          %v6003 = vunpack.c.h.b16 %v5360
          %v6004 = vunpack.c.l.b16 %v5361
          %v6005 = vunpack.c.h.b16 %v5361
          %v6006 = vunpack.c.l.b16 %v5362
          %v6007 = vunpack.c.h.b16 %v5362
          %v6008 = vunpack.c.l.b16 %v5363
          %v6009 = vunpack.c.h.b16 %v5363
          %v6010 = vunpack.c.l.b16 %v5364
          %v6011 = vunpack.c.h.b16 %v5364
          %v6012 = vunpack.c.l.b16 %v5365
          %v6013 = vunpack.c.h.b16 %v5365
          %v6014 = vunpack.c.l.b16 %v5366
          %v6015 = vunpack.c.h.b16 %v5366
          %v6016 = vunpack.c.l.b16 %v5367
          %v6017 = vunpack.c.h.b16 %v5367
          %v6018 = vunpack.c.l.b16 %v5368
          %v6019 = vunpack.c.h.b16 %v5368
          %v6020 = vunpack.c.l.b16 %v5369
          %v6021 = vunpack.c.h.b16 %v5369
          %v6022 = vunpack.c.l.b16 %v5370
          %v6023 = vunpack.c.h.b16 %v5370
          %v6024 = vunpack.c.l.b16 %v5371
          %v6025 = vunpack.c.h.b16 %v5371
          %v6026 = vunpack.c.l.b16 %v5372
          %v6027 = vunpack.c.h.b16 %v5372
          %v6028 = vunpack.c.l.b16 %v5373
          %v6029 = vunpack.c.h.b16 %v5373
          %v6030 = vunpack.c.l.b16 %v5374
          %v6031 = vunpack.c.h.b16 %v5374
          %v6032 = vunpack.c.l.b16 %v5375
          %v6033 = vunpack.c.h.b16 %v5375
          %v6034 = vunpack.c.l.b16 %v5376
          %v6035 = vunpack.c.h.b16 %v5376
          %v6036 = vunpack.c.l.b16 %v5377
          %v6037 = vunpack.c.h.b16 %v5377
          %v6038 = vunpack.c.l.b16 %v5378
          %v6039 = vunpack.c.h.b16 %v5378
          %v6040 = vunpack.c.l.b16 %v5379
          %v6041 = vunpack.c.h.b16 %v5379
          %v6042 = vunpack.c.l.b16 %v5380
          %v6043 = vunpack.c.h.b16 %v5380
          %v6044 = vunpack.c.l.b16 %v5381
          %v6045 = vunpack.c.h.b16 %v5381
          %v6046 = vunpack.c.l.b16 %v5382
          %v6047 = vunpack.c.h.b16 %v5382
          %v6048 = vunpack.c.l.b16 %v5383
          %v6049 = vunpack.c.h.b16 %v5383
          %v6050 = vunpack.c.l.b16 %v5384
          %v6051 = vunpack.c.h.b16 %v5384
          %v6052 = vunpack.c.l.b16 %v5385
          %v6053 = vunpack.c.h.b16 %v5385
          %v6054 = vunpack.c.l.b16 %v5386
          %v6055 = vunpack.c.h.b16 %v5386
          %v6056 = vunpack.c.l.b16 %v5387
          %v6057 = vunpack.c.h.b16 %v5387
          %v6058 = vunpack.c.l.b16 %v5388
          %v6059 = vunpack.c.h.b16 %v5388
          %v6060 = vunpack.c.l.b16 %v5389
          %v6061 = vunpack.c.h.b16 %v5389
          %v6062 = vunpack.c.l.b16 %v5390
          %v6063 = vunpack.c.h.b16 %v5390
          %v6064 = vunpack.c.l.b16 %v5391
          %v6065 = vunpack.c.h.b16 %v5391
          %v6066 = vunpack.c.l.b16 %v5392
          %v6067 = vunpack.c.h.b16 %v5392
          %v6068 = vunpack.c.l.b16 %v5393
          %v6069 = vunpack.c.h.b16 %v5393
          %v6070 = vunpack.c.l.b16 %v5394
          %v6071 = vunpack.c.h.b16 %v5394
          %v6072 = vunpack.c.l.b16 %v5395
          %v6073 = vunpack.c.h.b16 %v5395
          %v6074 = vunpack.c.l.b16 %v5396
          %v6075 = vunpack.c.h.b16 %v5396
          %v6076 = vunpack.c.l.b16 %v5397
          %v6077 = vunpack.c.h.b16 %v5397
          %v6078 = vunpack.c.l.b16 %v5398
          %v6079 = vunpack.c.h.b16 %v5398
          %v6080 = vunpack.c.l.b16 %v5399
          %v6081 = vunpack.c.h.b16 %v5399
          %v6082 = vunpack.c.l.b16 %v5400
          %v6083 = vunpack.c.h.b16 %v5400
          %v6084 = vunpack.c.l.b16 %v5401
          %v6085 = vunpack.c.h.b16 %v5401
          %v6086 = vunpack.c.l.b16 %v5402
          %v6087 = vunpack.c.h.b16 %v5402
          %v6088 = vunpack.c.l.b16 %v5403
          %v6089 = vunpack.c.h.b16 %v5403
          %v6090 = vunpack.c.l.b16 %v5404
          %v6091 = vunpack.c.h.b16 %v5404
          %v6092 = vunpack.c.l.b16 %v5405
          %v6093 = vunpack.c.h.b16 %v5405
          %v6094 = vunpack.c.l.b16 %v5406
          %v6095 = vunpack.c.h.b16 %v5406
          %v6096 = vunpack.c.l.b16 %v5407
          %v6097 = vunpack.c.h.b16 %v5407
          %v6098 = vunpack.c.l.b16 %v5408
          %v6099 = vunpack.c.h.b16 %v5408
          %v6100 = vunpack.c.l.b16 %v5409
          %v6101 = vunpack.c.h.b16 %v5409
          %v6102 = vunpack.c.l.b16 %v5410
          %v6103 = vunpack.c.h.b16 %v5410
          %v6104 = vunpack.c.l.b16 %v5411
          %v6105 = vunpack.c.h.b16 %v5411
          %v6106 = vunpack.c.l.b16 %v5412
          %v6107 = vunpack.c.h.b16 %v5412
          %v6108 = vunpack.c.l.b16 %v5413
          %v6109 = vunpack.c.h.b16 %v5413
          %v6110 = vunpack.c.l.b16 %v5414
          %v6111 = vunpack.c.h.b16 %v5414
          %v6112 = vunpack.c.l.b16 %v5415
          %v6113 = vunpack.c.h.b16 %v5415
          %v6114 = vunpack.c.l.b16 %v5416
          %v6115 = vunpack.c.h.b16 %v5416
          %v6116 = vunpack.c.l.b16 %v5417
          %v6117 = vunpack.c.h.b16 %v5417
          %v6118 = vunpack.c.l.b16 %v5418
          %v6119 = vunpack.c.h.b16 %v5418
          %v6120 = vunpack.c.l.b16 %v5419
          %v6121 = vunpack.c.h.b16 %v5419
          %v6122 = vunpack.c.l.b16 %v5420
          %v6123 = vunpack.c.h.b16 %v5420
          %v6124 = vunpack.c.l.b16 %v5421
          %v6125 = vunpack.c.h.b16 %v5421
          %v6126 = vunpack.c.l.b16 %v5422
          %v6127 = vunpack.c.h.b16 %v5422
          %v6128 = vunpack.c.l.b16 %v5423
          %v6129 = vunpack.c.h.b16 %v5423
          %v6130 = vunpack.c.l.b16 %v5424
          %v6131 = vunpack.c.h.b16 %v5424
          %v6132 = vunpack.c.l.b16 %v5425
          %v6133 = vunpack.c.h.b16 %v5425
          %v6134 = vunpack.c.l.b16 %v5426
          %v6135 = vunpack.c.h.b16 %v5426
          %v6136 = vunpack.c.l.b16 %v5427
          %v6137 = vunpack.c.h.b16 %v5427
          %v6138 = vunpack.c.l.b16 %v5428
          %v6139 = vunpack.c.h.b16 %v5428
          %v6140 = vunpack.c.l.b16 %v5429
          %v6141 = vunpack.c.h.b16 %v5429
          %v6142 = vunpack.c.l.b16 %v5430
          %v6143 = vunpack.c.h.b16 %v5430
          %v6144 = vunpack.c.l.b16 %v5431
          %v6145 = vunpack.c.h.b16 %v5431
          %v6146 = vunpack.c.l.b16 %v5432
          %v6147 = vunpack.c.h.b16 %v5432
          %v6148 = vunpack.c.l.b16 %v5433
          %v6149 = vunpack.c.h.b16 %v5433
          %v6150 = vunpack.c.l.b16 %v5434
          %v6151 = vunpack.c.h.b16 %v5434
          %v6152 = vunpack.c.l.b16 %v5435
          %v6153 = vunpack.c.h.b16 %v5435
          %v6154 = vunpack.c.l.b16 %v5436
          %v6155 = vunpack.c.h.b16 %v5436
          %v6156 = vunpack.c.l.b16 %v5437
          %v6157 = vunpack.c.h.b16 %v5437
          %v6158 = vunpack.c.l.b16 %v5438
          %v6159 = vunpack.c.h.b16 %v5438
          %v6160 = vunpack.c.l.b16 %v5439
          %v6161 = vunpack.c.h.b16 %v5439
          %v6162 = vunpack.c.l.b16 %v5440
          %v6163 = vunpack.c.h.b16 %v5440
          %v6164 = vunpack.c.l.b16 %v5441
          %v6165 = vunpack.c.h.b16 %v5441
          %v6166 = vunpack.c.l.b16 %v5442
          %v6167 = vunpack.c.h.b16 %v5442
          %v6168 = vunpack.c.l.b16 %v5443
          %v6169 = vunpack.c.h.b16 %v5443
          %v6170 = vunpack.c.l.b16 %v5444
          %v6171 = vunpack.c.h.b16 %v5444
          %v6172 = vunpack.c.l.b16 %v5445
          %v6173 = vunpack.c.h.b16 %v5445
          %v6174 = vunpack.c.l.b16 %v5446
          %v6175 = vunpack.c.h.b16 %v5446
          %v6176 = vunpack.c.l.b16 %v5447
          %v6177 = vunpack.c.h.b16 %v5447
          %v6178 = vunpack.c.l.b16 %v5448
          %v6179 = vunpack.c.h.b16 %v5448
          %v6180 = vunpack.c.l.b16 %v5449
          %v6181 = vunpack.c.h.b16 %v5449
          %v6182 = vunpack.c.l.b16 %v5450
          %v6183 = vunpack.c.h.b16 %v5450
          %v6184 = vunpack.c.l.b16 %v5451
          %v6185 = vunpack.c.h.b16 %v5451
          %v6186 = vunpack.c.l.b16 %v5452
          %v6187 = vunpack.c.h.b16 %v5452
          %v6188 = vunpack.c.l.b16 %v5453
          %v6189 = vunpack.c.h.b16 %v5453
          %v6190 = vunpack.c.l.b16 %v5454
          %v6191 = vunpack.c.h.b16 %v5454
          %v6192 = vunpack.c.l.b16 %v5455
          %v6193 = vunpack.c.h.b16 %v5455
          %v6194 = vunpack.c.l.b16 %v5456
          %v6195 = vunpack.c.h.b16 %v5456
          %v6196 = vunpack.c.l.b16 %v5457
          %v6197 = vunpack.c.h.b16 %v5457
          %v6198 = vunpack.c.l.b16 %v5458
          %v6199 = vunpack.c.h.b16 %v5458
          %v6200 = vunpack.c.l.b16 %v5459
          %v6201 = vunpack.c.h.b16 %v5459
          %v6202 = vunpack.c.l.b16 %v5460
          %v6203 = vunpack.c.h.b16 %v5460
          %v6204 = vunpack.c.l.b16 %v5461
          %v6205 = vunpack.c.h.b16 %v5461
          %v6206 = vunpack.c.l.b16 %v5462
          %v6207 = vunpack.c.h.b16 %v5462
          %v6208 = vunpack.c.l.b16 %v5463
          %v6209 = vunpack.c.h.b16 %v5463
          %v6210 = vunpack.c.l.b16 %v5464
          %v6211 = vunpack.c.h.b16 %v5464
          %v6212 = vunpack.c.l.b16 %v5465
          %v6213 = vunpack.c.h.b16 %v5465
          %v6214 = vunpack.c.l.b16 %v5466
          %v6215 = vunpack.c.h.b16 %v5466
          %v6216 = vunpack.c.l.b16 %v5467
          %v6217 = vunpack.c.h.b16 %v5467
          %v6218 = vunpack.c.l.b16 %v5468
          %v6219 = vunpack.c.h.b16 %v5468
          %v6220 = vunpack.c.l.b16 %v5469
          %v6221 = vunpack.c.h.b16 %v5469
          %v6222 = vunpack.c.l.b16 %v5470
          %v6223 = vunpack.c.h.b16 %v5470
          %v6224 = vunpack.c.l.b16 %v5471
          %v6225 = vunpack.c.h.b16 %v5471
          %v6226 = vunpack.c.l.b16 %v5472
          %v6227 = vunpack.c.h.b16 %v5472
          %v6228 = vunpack.c.l.b16 %v5473
          %v6229 = vunpack.c.h.b16 %v5473
          %v6230 = vunpack.c.l.b16 %v5474
          %v6231 = vunpack.c.h.b16 %v5474
          %v6232 = vunpack.c.l.b16 %v5475
          %v6233 = vunpack.c.h.b16 %v5475
          %v6234 = vunpack.c.l.b16 %v5476
          %v6235 = vunpack.c.h.b16 %v5476
          %v6236 = vunpack.c.l.b16 %v5477
          %v6237 = vunpack.c.h.b16 %v5477
          %v6238 = vunpack.c.l.b16 %v5478
          %v6239 = vunpack.c.h.b16 %v5478
          %v6240 = vunpack.c.l.b16 %v5479
          %v6241 = vunpack.c.h.b16 %v5479
          %v6242 = vunpack.c.l.b16 %v5480
          %v6243 = vunpack.c.h.b16 %v5480
          %v6244 = vunpack.c.l.b16 %v5481
          %v6245 = vunpack.c.h.b16 %v5481
          %v6246 = vunpack.c.l.b16 %v5482
          %v6247 = vunpack.c.h.b16 %v5482
          %v6248 = vunpack.c.l.b16 %v5483
          %v6249 = vunpack.c.h.b16 %v5483
          %v6250 = vunpack.c.l.b16 %v5484
          %v6251 = vunpack.c.h.b16 %v5484
          %v6252 = vunpack.c.l.b16 %v5485
          %v6253 = vunpack.c.h.b16 %v5485
          %v6254 = vpack.c.b16 %v5746, %v5742
          %v6255 = vpack.c.b16 %v5747, %v5743
          %v6256 = vpack.c.b16 %v5748, %v5744
          %v6257 = vpack.c.b16 %v5749, %v5745
          %v6258 = vpack.c.b16 %v5754, %v5750
          %v6259 = vpack.c.b16 %v5755, %v5751
          %v6260 = vpack.c.b16 %v5756, %v5752
          %v6261 = vpack.c.b16 %v5757, %v5753
          %v6262 = vpack.c.b16 %v5762, %v5758
          %v6263 = vpack.c.b16 %v5763, %v5759
          %v6264 = vpack.c.b16 %v5764, %v5760
          %v6265 = vpack.c.b16 %v5765, %v5761
          %v6266 = vpack.c.b16 %v5770, %v5766
          %v6267 = vpack.c.b16 %v5771, %v5767
          %v6268 = vpack.c.b16 %v5772, %v5768
          %v6269 = vpack.c.b16 %v5773, %v5769
          %v6270 = vpack.c.b16 %v5778, %v5774
          %v6271 = vpack.c.b16 %v5779, %v5775
          %v6272 = vpack.c.b16 %v5780, %v5776
          %v6273 = vpack.c.b16 %v5781, %v5777
          %v6274 = vpack.c.b16 %v5786, %v5782
          %v6275 = vpack.c.b16 %v5787, %v5783
          %v6276 = vpack.c.b16 %v5788, %v5784
          %v6277 = vpack.c.b16 %v5789, %v5785
          %v6278 = vpack.c.b16 %v5794, %v5790
          %v6279 = vpack.c.b16 %v5795, %v5791
          %v6280 = vpack.c.b16 %v5796, %v5792
          %v6281 = vpack.c.b16 %v5797, %v5793
          %v6282 = vpack.c.b16 %v5802, %v5798
          %v6283 = vpack.c.b16 %v5803, %v5799
          %v6284 = vpack.c.b16 %v5804, %v5800
          %v6285 = vpack.c.b16 %v5805, %v5801
          %v6286 = vpack.c.b16 %v5810, %v5806
          %v6287 = vpack.c.b16 %v5811, %v5807
          %v6288 = vpack.c.b16 %v5812, %v5808
          %v6289 = vpack.c.b16 %v5813, %v5809
          %v6290 = vpack.c.b16 %v5818, %v5814
          %v6291 = vpack.c.b16 %v5819, %v5815
          %v6292 = vpack.c.b16 %v5820, %v5816
          %v6293 = vpack.c.b16 %v5821, %v5817
          %v6294 = vpack.c.b16 %v5826, %v5822
          %v6295 = vpack.c.b16 %v5827, %v5823
          %v6296 = vpack.c.b16 %v5828, %v5824
          %v6297 = vpack.c.b16 %v5829, %v5825
          %v6298 = vpack.c.b16 %v5834, %v5830
          %v6299 = vpack.c.b16 %v5835, %v5831
          %v6300 = vpack.c.b16 %v5836, %v5832
          %v6301 = vpack.c.b16 %v5837, %v5833
          %v6302 = vpack.c.b16 %v5842, %v5838
          %v6303 = vpack.c.b16 %v5843, %v5839
          %v6304 = vpack.c.b16 %v5844, %v5840
          %v6305 = vpack.c.b16 %v5845, %v5841
          %v6306 = vpack.c.b16 %v5850, %v5846
          %v6307 = vpack.c.b16 %v5851, %v5847
          %v6308 = vpack.c.b16 %v5852, %v5848
          %v6309 = vpack.c.b16 %v5853, %v5849
          %v6310 = vpack.c.b16 %v5858, %v5854
          %v6311 = vpack.c.b16 %v5859, %v5855
          %v6312 = vpack.c.b16 %v5860, %v5856
          %v6313 = vpack.c.b16 %v5861, %v5857
          %v6314 = vpack.c.b16 %v5866, %v5862
          %v6315 = vpack.c.b16 %v5867, %v5863
          %v6316 = vpack.c.b16 %v5868, %v5864
          %v6317 = vpack.c.b16 %v5869, %v5865
          %v6318 = vpack.c.b16 %v5874, %v5870
          %v6319 = vpack.c.b16 %v5875, %v5871
          %v6320 = vpack.c.b16 %v5876, %v5872
          %v6321 = vpack.c.b16 %v5877, %v5873
          %v6322 = vpack.c.b16 %v5882, %v5878
          %v6323 = vpack.c.b16 %v5883, %v5879
          %v6324 = vpack.c.b16 %v5884, %v5880
          %v6325 = vpack.c.b16 %v5885, %v5881
          %v6326 = vpack.c.b16 %v5890, %v5886
          %v6327 = vpack.c.b16 %v5891, %v5887
          %v6328 = vpack.c.b16 %v5892, %v5888
          %v6329 = vpack.c.b16 %v5893, %v5889
          %v6330 = vpack.c.b16 %v5898, %v5894
          %v6331 = vpack.c.b16 %v5899, %v5895
          %v6332 = vpack.c.b16 %v5900, %v5896
          %v6333 = vpack.c.b16 %v5901, %v5897
          %v6334 = vpack.c.b16 %v5906, %v5902
          %v6335 = vpack.c.b16 %v5907, %v5903
          %v6336 = vpack.c.b16 %v5908, %v5904
          %v6337 = vpack.c.b16 %v5909, %v5905
          %v6338 = vpack.c.b16 %v5914, %v5910
          %v6339 = vpack.c.b16 %v5915, %v5911
          %v6340 = vpack.c.b16 %v5916, %v5912
          %v6341 = vpack.c.b16 %v5917, %v5913
          %v6342 = vpack.c.b16 %v5922, %v5918
          %v6343 = vpack.c.b16 %v5923, %v5919
          %v6344 = vpack.c.b16 %v5924, %v5920
          %v6345 = vpack.c.b16 %v5925, %v5921
          %v6346 = vpack.c.b16 %v5930, %v5926
          %v6347 = vpack.c.b16 %v5931, %v5927
          %v6348 = vpack.c.b16 %v5932, %v5928
          %v6349 = vpack.c.b16 %v5933, %v5929
          %v6350 = vpack.c.b16 %v5938, %v5934
          %v6351 = vpack.c.b16 %v5939, %v5935
          %v6352 = vpack.c.b16 %v5940, %v5936
          %v6353 = vpack.c.b16 %v5941, %v5937
          %v6354 = vpack.c.b16 %v5946, %v5942
          %v6355 = vpack.c.b16 %v5947, %v5943
          %v6356 = vpack.c.b16 %v5948, %v5944
          %v6357 = vpack.c.b16 %v5949, %v5945
          %v6358 = vpack.c.b16 %v5954, %v5950
          %v6359 = vpack.c.b16 %v5955, %v5951
          %v6360 = vpack.c.b16 %v5956, %v5952
          %v6361 = vpack.c.b16 %v5957, %v5953
          %v6362 = vpack.c.b16 %v5962, %v5958
          %v6363 = vpack.c.b16 %v5963, %v5959
          %v6364 = vpack.c.b16 %v5964, %v5960
          %v6365 = vpack.c.b16 %v5965, %v5961
          %v6366 = vpack.c.b16 %v5970, %v5966
          %v6367 = vpack.c.b16 %v5971, %v5967
          %v6368 = vpack.c.b16 %v5972, %v5968
          %v6369 = vpack.c.b16 %v5973, %v5969
          %v6370 = vpack.c.b16 %v5978, %v5974
          %v6371 = vpack.c.b16 %v5979, %v5975
          %v6372 = vpack.c.b16 %v5980, %v5976
          %v6373 = vpack.c.b16 %v5981, %v5977
          %v6374 = vpack.c.b16 %v5986, %v5982
          %v6375 = vpack.c.b16 %v5987, %v5983
          %v6376 = vpack.c.b16 %v5988, %v5984
          %v6377 = vpack.c.b16 %v5989, %v5985
          %v6378 = vpack.c.b16 %v5994, %v5990
          %v6379 = vpack.c.b16 %v5995, %v5991
          %v6380 = vpack.c.b16 %v5996, %v5992
          %v6381 = vpack.c.b16 %v5997, %v5993
          %v6382 = vpack.c.b16 %v6002, %v5998
          %v6383 = vpack.c.b16 %v6003, %v5999
          %v6384 = vpack.c.b16 %v6004, %v6000
          %v6385 = vpack.c.b16 %v6005, %v6001
          %v6386 = vpack.c.b16 %v6010, %v6006
          %v6387 = vpack.c.b16 %v6011, %v6007
          %v6388 = vpack.c.b16 %v6012, %v6008
          %v6389 = vpack.c.b16 %v6013, %v6009
          %v6390 = vpack.c.b16 %v6018, %v6014
          %v6391 = vpack.c.b16 %v6019, %v6015
          %v6392 = vpack.c.b16 %v6020, %v6016
          %v6393 = vpack.c.b16 %v6021, %v6017
          %v6394 = vpack.c.b16 %v6026, %v6022
          %v6395 = vpack.c.b16 %v6027, %v6023
          %v6396 = vpack.c.b16 %v6028, %v6024
          %v6397 = vpack.c.b16 %v6029, %v6025
          %v6398 = vpack.c.b16 %v6034, %v6030
          %v6399 = vpack.c.b16 %v6035, %v6031
          %v6400 = vpack.c.b16 %v6036, %v6032
          %v6401 = vpack.c.b16 %v6037, %v6033
          %v6402 = vpack.c.b16 %v6042, %v6038
          %v6403 = vpack.c.b16 %v6043, %v6039
          %v6404 = vpack.c.b16 %v6044, %v6040
          %v6405 = vpack.c.b16 %v6045, %v6041
          %v6406 = vpack.c.b16 %v6050, %v6046
          %v6407 = vpack.c.b16 %v6051, %v6047
          %v6408 = vpack.c.b16 %v6052, %v6048
          %v6409 = vpack.c.b16 %v6053, %v6049
          %v6410 = vpack.c.b16 %v6058, %v6054
          %v6411 = vpack.c.b16 %v6059, %v6055
          %v6412 = vpack.c.b16 %v6060, %v6056
          %v6413 = vpack.c.b16 %v6061, %v6057
          %v6414 = vpack.c.b16 %v6066, %v6062
          %v6415 = vpack.c.b16 %v6067, %v6063
          %v6416 = vpack.c.b16 %v6068, %v6064
          %v6417 = vpack.c.b16 %v6069, %v6065
          %v6418 = vpack.c.b16 %v6074, %v6070
          %v6419 = vpack.c.b16 %v6075, %v6071
          %v6420 = vpack.c.b16 %v6076, %v6072
          %v6421 = vpack.c.b16 %v6077, %v6073
          %v6422 = vpack.c.b16 %v6082, %v6078
          %v6423 = vpack.c.b16 %v6083, %v6079
          %v6424 = vpack.c.b16 %v6084, %v6080
          %v6425 = vpack.c.b16 %v6085, %v6081
          %v6426 = vpack.c.b16 %v6090, %v6086
          %v6427 = vpack.c.b16 %v6091, %v6087
          %v6428 = vpack.c.b16 %v6092, %v6088
          %v6429 = vpack.c.b16 %v6093, %v6089
          %v6430 = vpack.c.b16 %v6098, %v6094
          %v6431 = vpack.c.b16 %v6099, %v6095
          %v6432 = vpack.c.b16 %v6100, %v6096
          %v6433 = vpack.c.b16 %v6101, %v6097
          %v6434 = vpack.c.b16 %v6106, %v6102
          %v6435 = vpack.c.b16 %v6107, %v6103
          %v6436 = vpack.c.b16 %v6108, %v6104
          %v6437 = vpack.c.b16 %v6109, %v6105
          %v6438 = vpack.c.b16 %v6114, %v6110
          %v6439 = vpack.c.b16 %v6115, %v6111
          %v6440 = vpack.c.b16 %v6116, %v6112
          %v6441 = vpack.c.b16 %v6117, %v6113
          %v6442 = vpack.c.b16 %v6122, %v6118
          %v6443 = vpack.c.b16 %v6123, %v6119
          %v6444 = vpack.c.b16 %v6124, %v6120
          %v6445 = vpack.c.b16 %v6125, %v6121
          %v6446 = vpack.c.b16 %v6130, %v6126
          %v6447 = vpack.c.b16 %v6131, %v6127
          %v6448 = vpack.c.b16 %v6132, %v6128
          %v6449 = vpack.c.b16 %v6133, %v6129
          %v6450 = vpack.c.b16 %v6138, %v6134
          %v6451 = vpack.c.b16 %v6139, %v6135
          %v6452 = vpack.c.b16 %v6140, %v6136
          %v6453 = vpack.c.b16 %v6141, %v6137
          %v6454 = vpack.c.b16 %v6146, %v6142
          %v6455 = vpack.c.b16 %v6147, %v6143
          %v6456 = vpack.c.b16 %v6148, %v6144
          %v6457 = vpack.c.b16 %v6149, %v6145
          %v6458 = vpack.c.b16 %v6154, %v6150
          %v6459 = vpack.c.b16 %v6155, %v6151
          %v6460 = vpack.c.b16 %v6156, %v6152
          %v6461 = vpack.c.b16 %v6157, %v6153
          %v6462 = vpack.c.b16 %v6162, %v6158
          %v6463 = vpack.c.b16 %v6163, %v6159
          %v6464 = vpack.c.b16 %v6164, %v6160
          %v6465 = vpack.c.b16 %v6165, %v6161
          %v6466 = vpack.c.b16 %v6170, %v6166
          %v6467 = vpack.c.b16 %v6171, %v6167
          %v6468 = vpack.c.b16 %v6172, %v6168
          %v6469 = vpack.c.b16 %v6173, %v6169
          %v6470 = vpack.c.b16 %v6178, %v6174
          %v6471 = vpack.c.b16 %v6179, %v6175
          %v6472 = vpack.c.b16 %v6180, %v6176
          %v6473 = vpack.c.b16 %v6181, %v6177
          %v6474 = vpack.c.b16 %v6186, %v6182
          %v6475 = vpack.c.b16 %v6187, %v6183
          %v6476 = vpack.c.b16 %v6188, %v6184
          %v6477 = vpack.c.b16 %v6189, %v6185
          %v6478 = vpack.c.b16 %v6194, %v6190
          %v6479 = vpack.c.b16 %v6195, %v6191
          %v6480 = vpack.c.b16 %v6196, %v6192
          %v6481 = vpack.c.b16 %v6197, %v6193
          %v6482 = vpack.c.b16 %v6202, %v6198
          %v6483 = vpack.c.b16 %v6203, %v6199
          %v6484 = vpack.c.b16 %v6204, %v6200
          %v6485 = vpack.c.b16 %v6205, %v6201
          %v6486 = vpack.c.b16 %v6210, %v6206
          %v6487 = vpack.c.b16 %v6211, %v6207
          %v6488 = vpack.c.b16 %v6212, %v6208
          %v6489 = vpack.c.b16 %v6213, %v6209
          %v6490 = vpack.c.b16 %v6218, %v6214
          %v6491 = vpack.c.b16 %v6219, %v6215
          %v6492 = vpack.c.b16 %v6220, %v6216
          %v6493 = vpack.c.b16 %v6221, %v6217
          %v6494 = vpack.c.b16 %v6226, %v6222
          %v6495 = vpack.c.b16 %v6227, %v6223
          %v6496 = vpack.c.b16 %v6228, %v6224
          %v6497 = vpack.c.b16 %v6229, %v6225
          %v6498 = vpack.c.b16 %v6234, %v6230
          %v6499 = vpack.c.b16 %v6235, %v6231
          %v6500 = vpack.c.b16 %v6236, %v6232
          %v6501 = vpack.c.b16 %v6237, %v6233
          %v6502 = vpack.c.b16 %v6242, %v6238
          %v6503 = vpack.c.b16 %v6243, %v6239
          %v6504 = vpack.c.b16 %v6244, %v6240
          %v6505 = vpack.c.b16 %v6245, %v6241
          %v6506 = vpack.c.b16 %v6250, %v6246
          %v6507 = vpack.c.b16 %v6251, %v6247
          %v6508 = vpack.c.b16 %v6252, %v6248
          %v6509 = vpack.c.b16 %v6253, %v6249
          %6766 = vmatprep.subr.bf16.mxu0 %v6255
          %6767 = vmatpush1.bf16.msra.mxu0 %v6254
          %6768 = vmatprep.subr.bf16.mxu0 %v6259
          %6769 = vmatpush1.bf16.msra.mxu0 %v6258
          %6770 = vmatprep.subr.bf16.mxu0 %v6263
          %6771 = vmatpush1.bf16.msra.mxu0 %v6262
          %6772 = vmatprep.subr.bf16.mxu0 %v6267
          %6773 = vmatpush1.bf16.msra.mxu0 %v6266
          %6774 = vmatprep.subr.bf16.mxu0 %v6271
          %6775 = vmatpush1.bf16.msra.mxu0 %v6270
          %6776 = vmatprep.subr.bf16.mxu0 %v6275
          %6777 = vmatpush1.bf16.msra.mxu0 %v6274
          %6778 = vmatprep.subr.bf16.mxu0 %v6279
          %6779 = vmatpush1.bf16.msra.mxu0 %v6278
          %6780 = vmatprep.subr.bf16.mxu0 %v6283
          %6781 = vmatpush1.bf16.msra.mxu0 %v6282
          %6782 = vmatprep.subr.bf16.mxu0 %v6287
          %6783 = vmatpush1.bf16.msra.mxu0 %v6286
          %6784 = vmatprep.subr.bf16.mxu0 %v6291
          %6785 = vmatpush1.bf16.msra.mxu0 %v6290
          %6786 = vmatprep.subr.bf16.mxu0 %v6295
          %6787 = vmatpush1.bf16.msra.mxu0 %v6294
          %6788 = vmatprep.subr.bf16.mxu0 %v6299
          %6789 = vmatpush1.bf16.msra.mxu0 %v6298
          %6790 = vmatprep.subr.bf16.mxu0 %v6303
          %6791 = vmatpush1.bf16.msra.mxu0 %v6302
          %6792 = vmatprep.subr.bf16.mxu0 %v6307
          %6793 = vmatpush1.bf16.msra.mxu0 %v6306
          %6794 = vmatprep.subr.bf16.mxu0 %v6311
          %6795 = vmatpush1.bf16.msra.mxu0 %v6310
          %6796 = vmatprep.subr.bf16.mxu0 %v6315
          %6797 = vmatpush1.bf16.msra.mxu0 %v6314
          %6798 = vmatprep.mubr.bf16.mxu0 %v4988
          %6799 = vmatmul.mubr.bf16.gmra.mrb[0].mxu0 %v4987
          %v6800 = vpop.f32.mrb[0].mxu0
          %v6801 = vadd.f32 0.0, %v6800
          %v6802 = vpop.f32.mrb[0].mxu0
          %v6803 = vadd.f32 0.0, %v6802
          %v6804 = vpop.f32.mrb[0].mxu0
          %v6805 = vpop.f32.mrb[0].mxu0
          %6806 = vdwg.mxu0
          %6807 = vmatprep.subr.bf16.mxu0 %v6319
          %6808 = vmatpush1.bf16.msra.mxu0 %v6318
          %6809 = vmatprep.subr.bf16.mxu0 %v6323
          %6810 = vmatpush1.bf16.msra.mxu0 %v6322
          %6811 = vmatprep.subr.bf16.mxu0 %v6327
          %6812 = vmatpush1.bf16.msra.mxu0 %v6326
          %6813 = vmatprep.subr.bf16.mxu0 %v6331
          %6814 = vmatpush1.bf16.msra.mxu0 %v6330
          %6815 = vmatprep.subr.bf16.mxu0 %v6335
          %6816 = vmatpush1.bf16.msra.mxu0 %v6334
          %6817 = vmatprep.subr.bf16.mxu0 %v6339
          %6818 = vmatpush1.bf16.msra.mxu0 %v6338
          %6819 = vmatprep.subr.bf16.mxu0 %v6343
          %6820 = vmatpush1.bf16.msra.mxu0 %v6342
          %6821 = vmatprep.subr.bf16.mxu0 %v6347
          %6822 = vmatpush1.bf16.msra.mxu0 %v6346
          %6823 = vmatprep.subr.bf16.mxu0 %v6351
          %6824 = vmatpush1.bf16.msra.mxu0 %v6350
          %6825 = vmatprep.subr.bf16.mxu0 %v6355
          %6826 = vmatpush1.bf16.msra.mxu0 %v6354
          %6827 = vmatprep.subr.bf16.mxu0 %v6359
          %6828 = vmatpush1.bf16.msra.mxu0 %v6358
          %6829 = vmatprep.subr.bf16.mxu0 %v6363
          %6830 = vmatpush1.bf16.msra.mxu0 %v6362
          %6831 = vmatprep.subr.bf16.mxu0 %v6367
          %6832 = vmatpush1.bf16.msra.mxu0 %v6366
          %6833 = vmatprep.subr.bf16.mxu0 %v6371
          %6834 = vmatpush1.bf16.msra.mxu0 %v6370
          %6835 = vmatprep.subr.bf16.mxu0 %v6375
          %6836 = vmatpush1.bf16.msra.mxu0 %v6374
          %6837 = vmatprep.subr.bf16.mxu0 %v6379
          %6838 = vmatpush1.bf16.msra.mxu0 %v6378
          %6839 = vmatprep.mubr.bf16.mxu0 %v4990
          %6840 = vmatmul.mubr.bf16.gmra.mrb[0].mxu0 %v4989
          %v6841 = vpop.f32.mrb[0].mxu0
          %v6842 = vadd.f32 %v6801, %v6841
          %v6843 = vpop.f32.mrb[0].mxu0
          %v6844 = vadd.f32 %v6803, %v6843
          %v6845 = vpop.f32.mrb[0].mxu0
          %v6846 = vpop.f32.mrb[0].mxu0
          %6847 = vdwg.mxu0
          %6848 = vmatprep.subr.bf16.mxu0 %v6383
          %6849 = vmatpush1.bf16.msra.mxu0 %v6382
          %6850 = vmatprep.subr.bf16.mxu0 %v6387
          %6851 = vmatpush1.bf16.msra.mxu0 %v6386
          %6852 = vmatprep.subr.bf16.mxu0 %v6391
          %6853 = vmatpush1.bf16.msra.mxu0 %v6390
          %6854 = vmatprep.subr.bf16.mxu0 %v6395
          %6855 = vmatpush1.bf16.msra.mxu0 %v6394
          %6856 = vmatprep.subr.bf16.mxu0 %v6399
          %6857 = vmatpush1.bf16.msra.mxu0 %v6398
          %6858 = vmatprep.subr.bf16.mxu0 %v6403
          %6859 = vmatpush1.bf16.msra.mxu0 %v6402
          %6860 = vmatprep.subr.bf16.mxu0 %v6407
          %6861 = vmatpush1.bf16.msra.mxu0 %v6406
          %6862 = vmatprep.subr.bf16.mxu0 %v6411
          %6863 = vmatpush1.bf16.msra.mxu0 %v6410
          %6864 = vmatprep.subr.bf16.mxu0 %v6415
          %6865 = vmatpush1.bf16.msra.mxu0 %v6414
          %6866 = vmatprep.subr.bf16.mxu0 %v6419
          %6867 = vmatpush1.bf16.msra.mxu0 %v6418
          %6868 = vmatprep.subr.bf16.mxu0 %v6423
          %6869 = vmatpush1.bf16.msra.mxu0 %v6422
          %6870 = vmatprep.subr.bf16.mxu0 %v6427
          %6871 = vmatpush1.bf16.msra.mxu0 %v6426
          %6872 = vmatprep.subr.bf16.mxu0 %v6431
          %6873 = vmatpush1.bf16.msra.mxu0 %v6430
          %6874 = vmatprep.subr.bf16.mxu0 %v6435
          %6875 = vmatpush1.bf16.msra.mxu0 %v6434
          %6876 = vmatprep.subr.bf16.mxu0 %v6439
          %6877 = vmatpush1.bf16.msra.mxu0 %v6438
          %6878 = vmatprep.subr.bf16.mxu0 %v6443
          %6879 = vmatpush1.bf16.msra.mxu0 %v6442
          %6880 = vmatprep.mubr.bf16.mxu0 %v4992
          %6881 = vmatmul.mubr.bf16.gmra.mrb[0].mxu0 %v4991
          %v6882 = vpop.f32.mrb[0].mxu0
          %v6883 = vadd.f32 %v6842, %v6882
          %v6884 = vpop.f32.mrb[0].mxu0
          %v6885 = vadd.f32 %v6844, %v6884
          %v6886 = vpop.f32.mrb[0].mxu0
          %v6887 = vpop.f32.mrb[0].mxu0
          %6888 = vdwg.mxu0
          %6889 = vmatprep.subr.bf16.mxu0 %v6447
          %6890 = vmatpush1.bf16.msra.mxu0 %v6446
          %6891 = vmatprep.subr.bf16.mxu0 %v6451
          %6892 = vmatpush1.bf16.msra.mxu0 %v6450
          %6893 = vmatprep.subr.bf16.mxu0 %v6455
          %6894 = vmatpush1.bf16.msra.mxu0 %v6454
          %6895 = vmatprep.subr.bf16.mxu0 %v6459
          %6896 = vmatpush1.bf16.msra.mxu0 %v6458
          %6897 = vmatprep.subr.bf16.mxu0 %v6463
          %6898 = vmatpush1.bf16.msra.mxu0 %v6462
          %6899 = vmatprep.subr.bf16.mxu0 %v6467
          %6900 = vmatpush1.bf16.msra.mxu0 %v6466
          %6901 = vmatprep.subr.bf16.mxu0 %v6471
          %6902 = vmatpush1.bf16.msra.mxu0 %v6470
          %6903 = vmatprep.subr.bf16.mxu0 %v6475
          %6904 = vmatpush1.bf16.msra.mxu0 %v6474
          %6905 = vmatprep.subr.bf16.mxu0 %v6479
          %6906 = vmatpush1.bf16.msra.mxu0 %v6478
          %6907 = vmatprep.subr.bf16.mxu0 %v6483
          %6908 = vmatpush1.bf16.msra.mxu0 %v6482
          %6909 = vmatprep.subr.bf16.mxu0 %v6487
          %6910 = vmatpush1.bf16.msra.mxu0 %v6486
          %6911 = vmatprep.subr.bf16.mxu0 %v6491
          %6912 = vmatpush1.bf16.msra.mxu0 %v6490
          %6913 = vmatprep.subr.bf16.mxu0 %v6495
          %6914 = vmatpush1.bf16.msra.mxu0 %v6494
          %6915 = vmatprep.subr.bf16.mxu0 %v6499
          %6916 = vmatpush1.bf16.msra.mxu0 %v6498
          %6917 = vmatprep.subr.bf16.mxu0 %v6503
          %6918 = vmatpush1.bf16.msra.mxu0 %v6502
          %6919 = vmatprep.subr.bf16.mxu0 %v6507
          %6920 = vmatpush1.bf16.msra.mxu0 %v6506
          %6921 = vmatprep.mubr.bf16.mxu0 %v4994
          %6922 = vmatmul.mubr.bf16.gmra.mrb[0].mxu0 %v4993
          %v6923 = vpop.f32.mrb[0].mxu0
          %v6924 = vadd.f32 %v6883, %v6923
          %v6925 = vpop.f32.mrb[0].mxu0
          %v6926 = vadd.f32 %v6885, %v6925
          %v6927 = vpop.f32.mrb[0].mxu0
          %v6928 = vpop.f32.mrb[0].mxu0
          %6929 = vdwg.mxu0
          %6930 = vmatprep.subr.bf16.mxu0 %v6257
          %6931 = vmatpush1.bf16.msra.mxu0 %v6256
          %6932 = vmatprep.subr.bf16.mxu0 %v6261
          %6933 = vmatpush1.bf16.msra.mxu0 %v6260
          %6934 = vmatprep.subr.bf16.mxu0 %v6265
          %6935 = vmatpush1.bf16.msra.mxu0 %v6264
          %6936 = vmatprep.subr.bf16.mxu0 %v6269
          %6937 = vmatpush1.bf16.msra.mxu0 %v6268
          %6938 = vmatprep.subr.bf16.mxu0 %v6273
          %6939 = vmatpush1.bf16.msra.mxu0 %v6272
          %6940 = vmatprep.subr.bf16.mxu0 %v6277
          %6941 = vmatpush1.bf16.msra.mxu0 %v6276
          %6942 = vmatprep.subr.bf16.mxu0 %v6281
          %6943 = vmatpush1.bf16.msra.mxu0 %v6280
          %6944 = vmatprep.subr.bf16.mxu0 %v6285
          %6945 = vmatpush1.bf16.msra.mxu0 %v6284
          %6946 = vmatprep.subr.bf16.mxu0 %v6289
          %6947 = vmatpush1.bf16.msra.mxu0 %v6288
          %6948 = vmatprep.subr.bf16.mxu0 %v6293
          %6949 = vmatpush1.bf16.msra.mxu0 %v6292
          %6950 = vmatprep.subr.bf16.mxu0 %v6297
          %6951 = vmatpush1.bf16.msra.mxu0 %v6296
          %6952 = vmatprep.subr.bf16.mxu0 %v6301
          %6953 = vmatpush1.bf16.msra.mxu0 %v6300
          %6954 = vmatprep.subr.bf16.mxu0 %v6305
          %6955 = vmatpush1.bf16.msra.mxu0 %v6304
          %6956 = vmatprep.subr.bf16.mxu0 %v6309
          %6957 = vmatpush1.bf16.msra.mxu0 %v6308
          %6958 = vmatprep.subr.bf16.mxu0 %v6313
          %6959 = vmatpush1.bf16.msra.mxu0 %v6312
          %6960 = vmatprep.subr.bf16.mxu0 %v6317
          %6961 = vmatpush1.bf16.msra.mxu0 %v6316
          %6962 = vmatprep.mubr.bf16.mxu0 %v4988
          %6963 = vmatmul.mubr.bf16.gmra.mrb[0].mxu0 %v4987
          %v6964 = vpop.f32.mrb[0].mxu0
          %v6965 = vadd.f32 0.0, %v6964
          %v6966 = vpop.f32.mrb[0].mxu0
          %v6967 = vadd.f32 0.0, %v6966
          %v6968 = vpop.f32.mrb[0].mxu0
          %v6969 = vpop.f32.mrb[0].mxu0
          %6970 = vdwg.mxu0
          %6971 = vmatprep.subr.bf16.mxu0 %v6321
          %6972 = vmatpush1.bf16.msra.mxu0 %v6320
          %6973 = vmatprep.subr.bf16.mxu0 %v6325
          %6974 = vmatpush1.bf16.msra.mxu0 %v6324
          %6975 = vmatprep.subr.bf16.mxu0 %v6329
          %6976 = vmatpush1.bf16.msra.mxu0 %v6328
          %6977 = vmatprep.subr.bf16.mxu0 %v6333
          %6978 = vmatpush1.bf16.msra.mxu0 %v6332
          %6979 = vmatprep.subr.bf16.mxu0 %v6337
          %6980 = vmatpush1.bf16.msra.mxu0 %v6336
          %6981 = vmatprep.subr.bf16.mxu0 %v6341
          %6982 = vmatpush1.bf16.msra.mxu0 %v6340
          %6983 = vmatprep.subr.bf16.mxu0 %v6345
          %6984 = vmatpush1.bf16.msra.mxu0 %v6344
          %6985 = vmatprep.subr.bf16.mxu0 %v6349
          %6986 = vmatpush1.bf16.msra.mxu0 %v6348
          %6987 = vmatprep.subr.bf16.mxu0 %v6353
          %6988 = vmatpush1.bf16.msra.mxu0 %v6352
          %6989 = vmatprep.subr.bf16.mxu0 %v6357
          %6990 = vmatpush1.bf16.msra.mxu0 %v6356
          %6991 = vmatprep.subr.bf16.mxu0 %v6361
          %6992 = vmatpush1.bf16.msra.mxu0 %v6360
          %6993 = vmatprep.subr.bf16.mxu0 %v6365
          %6994 = vmatpush1.bf16.msra.mxu0 %v6364
          %6995 = vmatprep.subr.bf16.mxu0 %v6369
          %6996 = vmatpush1.bf16.msra.mxu0 %v6368
          %6997 = vmatprep.subr.bf16.mxu0 %v6373
          %6998 = vmatpush1.bf16.msra.mxu0 %v6372
          %6999 = vmatprep.subr.bf16.mxu0 %v6377
          %7000 = vmatpush1.bf16.msra.mxu0 %v6376
          %7001 = vmatprep.subr.bf16.mxu0 %v6381
          %7002 = vmatpush1.bf16.msra.mxu0 %v6380
          %7003 = vmatprep.mubr.bf16.mxu0 %v4990
          %7004 = vmatmul.mubr.bf16.gmra.mrb[0].mxu0 %v4989
          %v7005 = vpop.f32.mrb[0].mxu0
          %v7006 = vadd.f32 %v6965, %v7005
          %v7007 = vpop.f32.mrb[0].mxu0
          %v7008 = vadd.f32 %v6967, %v7007
          %v7009 = vpop.f32.mrb[0].mxu0
          %v7010 = vpop.f32.mrb[0].mxu0
          %7011 = vdwg.mxu0
          %7012 = vmatprep.subr.bf16.mxu0 %v6385
          %7013 = vmatpush1.bf16.msra.mxu0 %v6384
          %7014 = vmatprep.subr.bf16.mxu0 %v6389
          %7015 = vmatpush1.bf16.msra.mxu0 %v6388
          %7016 = vmatprep.subr.bf16.mxu0 %v6393
          %7017 = vmatpush1.bf16.msra.mxu0 %v6392
          %7018 = vmatprep.subr.bf16.mxu0 %v6397
          %7019 = vmatpush1.bf16.msra.mxu0 %v6396
          %7020 = vmatprep.subr.bf16.mxu0 %v6401
          %7021 = vmatpush1.bf16.msra.mxu0 %v6400
          %7022 = vmatprep.subr.bf16.mxu0 %v6405
          %7023 = vmatpush1.bf16.msra.mxu0 %v6404
          %7024 = vmatprep.subr.bf16.mxu0 %v6409
          %7025 = vmatpush1.bf16.msra.mxu0 %v6408
          %7026 = vmatprep.subr.bf16.mxu0 %v6413
          %7027 = vmatpush1.bf16.msra.mxu0 %v6412
          %7028 = vmatprep.subr.bf16.mxu0 %v6417
          %7029 = vmatpush1.bf16.msra.mxu0 %v6416
          %7030 = vmatprep.subr.bf16.mxu0 %v6421
          %7031 = vmatpush1.bf16.msra.mxu0 %v6420
          %7032 = vmatprep.subr.bf16.mxu0 %v6425
          %7033 = vmatpush1.bf16.msra.mxu0 %v6424
          %7034 = vmatprep.subr.bf16.mxu0 %v6429
          %7035 = vmatpush1.bf16.msra.mxu0 %v6428
          %7036 = vmatprep.subr.bf16.mxu0 %v6433
          %7037 = vmatpush1.bf16.msra.mxu0 %v6432
          %7038 = vmatprep.subr.bf16.mxu0 %v6437
          %7039 = vmatpush1.bf16.msra.mxu0 %v6436
          %7040 = vmatprep.subr.bf16.mxu0 %v6441
          %7041 = vmatpush1.bf16.msra.mxu0 %v6440
          %7042 = vmatprep.subr.bf16.mxu0 %v6445
          %7043 = vmatpush1.bf16.msra.mxu0 %v6444
          %7044 = vmatprep.mubr.bf16.mxu0 %v4992
          %7045 = vmatmul.mubr.bf16.gmra.mrb[0].mxu0 %v4991
          %v7046 = vpop.f32.mrb[0].mxu0
          %v7047 = vadd.f32 %v7006, %v7046
          %v7048 = vpop.f32.mrb[0].mxu0
          %v7049 = vadd.f32 %v7008, %v7048
          %v7050 = vpop.f32.mrb[0].mxu0
          %v7051 = vpop.f32.mrb[0].mxu0
          %7052 = vdwg.mxu0
          %7053 = vmatprep.subr.bf16.mxu0 %v6449
          %7054 = vmatpush1.bf16.msra.mxu0 %v6448
          %7055 = vmatprep.subr.bf16.mxu0 %v6453
          %7056 = vmatpush1.bf16.msra.mxu0 %v6452
          %7057 = vmatprep.subr.bf16.mxu0 %v6457
          %7058 = vmatpush1.bf16.msra.mxu0 %v6456
          %7059 = vmatprep.subr.bf16.mxu0 %v6461
          %7060 = vmatpush1.bf16.msra.mxu0 %v6460
          %7061 = vmatprep.subr.bf16.mxu0 %v6465
          %7062 = vmatpush1.bf16.msra.mxu0 %v6464
          %7063 = vmatprep.subr.bf16.mxu0 %v6469
          %7064 = vmatpush1.bf16.msra.mxu0 %v6468
          %7065 = vmatprep.subr.bf16.mxu0 %v6473
          %7066 = vmatpush1.bf16.msra.mxu0 %v6472
          %7067 = vmatprep.subr.bf16.mxu0 %v6477
          %7068 = vmatpush1.bf16.msra.mxu0 %v6476
          %7069 = vmatprep.subr.bf16.mxu0 %v6481
          %7070 = vmatpush1.bf16.msra.mxu0 %v6480
          %7071 = vmatprep.subr.bf16.mxu0 %v6485
          %7072 = vmatpush1.bf16.msra.mxu0 %v6484
          %7073 = vmatprep.subr.bf16.mxu0 %v6489
          %7074 = vmatpush1.bf16.msra.mxu0 %v6488
          %7075 = vmatprep.subr.bf16.mxu0 %v6493
          %7076 = vmatpush1.bf16.msra.mxu0 %v6492
          %7077 = vmatprep.subr.bf16.mxu0 %v6497
          %7078 = vmatpush1.bf16.msra.mxu0 %v6496
          %7079 = vmatprep.subr.bf16.mxu0 %v6501
          %7080 = vmatpush1.bf16.msra.mxu0 %v6500
          %7081 = vmatprep.subr.bf16.mxu0 %v6505
          %7082 = vmatpush1.bf16.msra.mxu0 %v6504
          %7083 = vmatprep.subr.bf16.mxu0 %v6509
          %7084 = vmatpush1.bf16.msra.mxu0 %v6508
          %7085 = vmatprep.mubr.bf16.mxu0 %v4994
          %7086 = vmatmul.mubr.bf16.gmra.mrb[0].mxu0 %v4993
          %v7087 = vpop.f32.mrb[0].mxu0
          %v7088 = vadd.f32 %v7047, %v7087
          %v7089 = vpop.f32.mrb[0].mxu0
          %v7090 = vadd.f32 %v7049, %v7089
          %v7091 = vpop.f32.mrb[0].mxu0
          %v7092 = vpop.f32.mrb[0].mxu0
          %7093 = vdwg.mxu0
          %v7286 = vunpack.c.l.b16 %v5038
          %v7287 = vunpack.c.h.b16 %v5038
          %v7288 = vunpack.c.l.b16 %v5039
          %v7289 = vunpack.c.h.b16 %v5039
          %v7290 = vunpack.c.l.b16 %v5040
          %v7291 = vunpack.c.h.b16 %v5040
          %v7292 = vunpack.c.l.b16 %v5041
          %v7293 = vunpack.c.h.b16 %v5041
          %v7294 = vunpack.c.l.b16 %v5042
          %v7295 = vunpack.c.h.b16 %v5042
          %v7296 = vunpack.c.l.b16 %v5043
          %v7297 = vunpack.c.h.b16 %v5043
          %v7298 = vunpack.c.l.b16 %v5044
          %v7299 = vunpack.c.h.b16 %v5044
          %v7300 = vunpack.c.l.b16 %v5045
          %v7301 = vunpack.c.h.b16 %v5045
          %v7302 = vunpack.c.l.b16 %v5046
          %v7303 = vunpack.c.h.b16 %v5046
          %v7304 = vunpack.c.l.b16 %v5047
          %v7305 = vunpack.c.h.b16 %v5047
          %v7306 = vunpack.c.l.b16 %v5048
          %v7307 = vunpack.c.h.b16 %v5048
          %v7308 = vunpack.c.l.b16 %v5049
          %v7309 = vunpack.c.h.b16 %v5049
          %v7310 = vunpack.c.l.b16 %v5050
          %v7311 = vunpack.c.h.b16 %v5050
          %v7312 = vunpack.c.l.b16 %v5051
          %v7313 = vunpack.c.h.b16 %v5051
          %v7314 = vunpack.c.l.b16 %v5052
          %v7315 = vunpack.c.h.b16 %v5052
          %v7316 = vunpack.c.l.b16 %v5053
          %v7317 = vunpack.c.h.b16 %v5053
          %v7318 = vunpack.c.l.b16 %v5054
          %v7319 = vunpack.c.h.b16 %v5054
          %v7320 = vunpack.c.l.b16 %v5055
          %v7321 = vunpack.c.h.b16 %v5055
          %v7322 = vunpack.c.l.b16 %v5056
          %v7323 = vunpack.c.h.b16 %v5056
          %v7324 = vunpack.c.l.b16 %v5057
          %v7325 = vunpack.c.h.b16 %v5057
          %v7326 = vunpack.c.l.b16 %v5058
          %v7327 = vunpack.c.h.b16 %v5058
          %v7328 = vunpack.c.l.b16 %v5059
          %v7329 = vunpack.c.h.b16 %v5059
          %v7330 = vunpack.c.l.b16 %v5060
          %v7331 = vunpack.c.h.b16 %v5060
          %v7332 = vunpack.c.l.b16 %v5061
          %v7333 = vunpack.c.h.b16 %v5061
          %v7334 = vunpack.c.l.b16 %v5062
          %v7335 = vunpack.c.h.b16 %v5062
          %v7336 = vunpack.c.l.b16 %v5063
          %v7337 = vunpack.c.h.b16 %v5063
          %v7338 = vunpack.c.l.b16 %v5064
          %v7339 = vunpack.c.h.b16 %v5064
          %v7340 = vunpack.c.l.b16 %v5065
          %v7341 = vunpack.c.h.b16 %v5065
          %v7342 = vunpack.c.l.b16 %v5066
          %v7343 = vunpack.c.h.b16 %v5066
          %v7344 = vunpack.c.l.b16 %v5067
          %v7345 = vunpack.c.h.b16 %v5067
          %v7346 = vunpack.c.l.b16 %v5068
          %v7347 = vunpack.c.h.b16 %v5068
          %v7348 = vunpack.c.l.b16 %v5069
          %v7349 = vunpack.c.h.b16 %v5069
          %v7350 = vunpack.c.l.b16 %v5070
          %v7351 = vunpack.c.h.b16 %v5070
          %v7352 = vunpack.c.l.b16 %v5071
          %v7353 = vunpack.c.h.b16 %v5071
          %v7354 = vunpack.c.l.b16 %v5072
          %v7355 = vunpack.c.h.b16 %v5072
          %v7356 = vunpack.c.l.b16 %v5073
          %v7357 = vunpack.c.h.b16 %v5073
          %v7358 = vunpack.c.l.b16 %v5074
          %v7359 = vunpack.c.h.b16 %v5074
          %v7360 = vunpack.c.l.b16 %v5075
          %v7361 = vunpack.c.h.b16 %v5075
          %v7362 = vunpack.c.l.b16 %v5076
          %v7363 = vunpack.c.h.b16 %v5076
          %v7364 = vunpack.c.l.b16 %v5077
          %v7365 = vunpack.c.h.b16 %v5077
          %v7366 = vunpack.c.l.b16 %v5078
          %v7367 = vunpack.c.h.b16 %v5078
          %v7368 = vunpack.c.l.b16 %v5079
          %v7369 = vunpack.c.h.b16 %v5079
          %v7370 = vunpack.c.l.b16 %v5080
          %v7371 = vunpack.c.h.b16 %v5080
          %v7372 = vunpack.c.l.b16 %v5081
          %v7373 = vunpack.c.h.b16 %v5081
          %v7374 = vunpack.c.l.b16 %v5082
          %v7375 = vunpack.c.h.b16 %v5082
          %v7376 = vunpack.c.l.b16 %v5083
          %v7377 = vunpack.c.h.b16 %v5083
          %v7378 = vunpack.c.l.b16 %v5084
          %v7379 = vunpack.c.h.b16 %v5084
          %v7380 = vunpack.c.l.b16 %v5085
          %v7381 = vunpack.c.h.b16 %v5085
          %v7382 = vunpack.c.l.b16 %v5086
          %v7383 = vunpack.c.h.b16 %v5086
          %v7384 = vunpack.c.l.b16 %v5087
          %v7385 = vunpack.c.h.b16 %v5087
          %v7386 = vunpack.c.l.b16 %v5088
          %v7387 = vunpack.c.h.b16 %v5088
          %v7388 = vunpack.c.l.b16 %v5089
          %v7389 = vunpack.c.h.b16 %v5089
          %v7390 = vunpack.c.l.b16 %v5090
          %v7391 = vunpack.c.h.b16 %v5090
          %v7392 = vunpack.c.l.b16 %v5091
          %v7393 = vunpack.c.h.b16 %v5091
          %v7394 = vunpack.c.l.b16 %v5092
          %v7395 = vunpack.c.h.b16 %v5092
          %v7396 = vunpack.c.l.b16 %v5093
          %v7397 = vunpack.c.h.b16 %v5093
          %v7398 = vunpack.c.l.b16 %v5094
          %v7399 = vunpack.c.h.b16 %v5094
          %v7400 = vunpack.c.l.b16 %v5095
          %v7401 = vunpack.c.h.b16 %v5095
          %v7402 = vunpack.c.l.b16 %v5096
          %v7403 = vunpack.c.h.b16 %v5096
          %v7404 = vunpack.c.l.b16 %v5097
          %v7405 = vunpack.c.h.b16 %v5097
          %v7406 = vunpack.c.l.b16 %v5098
          %v7407 = vunpack.c.h.b16 %v5098
          %v7408 = vunpack.c.l.b16 %v5099
          %v7409 = vunpack.c.h.b16 %v5099
          %v7410 = vunpack.c.l.b16 %v5100
          %v7411 = vunpack.c.h.b16 %v5100
          %v7412 = vunpack.c.l.b16 %v5101
          %v7413 = vunpack.c.h.b16 %v5101
          %v7414 = vunpack.c.l.b16 %v5102
          %v7415 = vunpack.c.h.b16 %v5102
          %v7416 = vunpack.c.l.b16 %v5103
          %v7417 = vunpack.c.h.b16 %v5103
          %v7418 = vunpack.c.l.b16 %v5104
          %v7419 = vunpack.c.h.b16 %v5104
          %v7420 = vunpack.c.l.b16 %v5105
          %v7421 = vunpack.c.h.b16 %v5105
          %v7422 = vunpack.c.l.b16 %v5106
          %v7423 = vunpack.c.h.b16 %v5106
          %v7424 = vunpack.c.l.b16 %v5107
          %v7425 = vunpack.c.h.b16 %v5107
          %v7426 = vunpack.c.l.b16 %v5108
          %v7427 = vunpack.c.h.b16 %v5108
          %v7428 = vunpack.c.l.b16 %v5109
          %v7429 = vunpack.c.h.b16 %v5109
          %v7430 = vunpack.c.l.b16 %v5110
          %v7431 = vunpack.c.h.b16 %v5110
          %v7432 = vunpack.c.l.b16 %v5111
          %v7433 = vunpack.c.h.b16 %v5111
          %v7434 = vunpack.c.l.b16 %v5112
          %v7435 = vunpack.c.h.b16 %v5112
          %v7436 = vunpack.c.l.b16 %v5113
          %v7437 = vunpack.c.h.b16 %v5113
          %v7438 = vunpack.c.l.b16 %v5114
          %v7439 = vunpack.c.h.b16 %v5114
          %v7440 = vunpack.c.l.b16 %v5115
          %v7441 = vunpack.c.h.b16 %v5115
          %v7442 = vunpack.c.l.b16 %v5116
          %v7443 = vunpack.c.h.b16 %v5116
          %v7444 = vunpack.c.l.b16 %v5117
          %v7445 = vunpack.c.h.b16 %v5117
          %v7446 = vunpack.c.l.b16 %v5118
          %v7447 = vunpack.c.h.b16 %v5118
          %v7448 = vunpack.c.l.b16 %v5119
          %v7449 = vunpack.c.h.b16 %v5119
          %v7450 = vunpack.c.l.b16 %v5120
          %v7451 = vunpack.c.h.b16 %v5120
          %v7452 = vunpack.c.l.b16 %v5121
          %v7453 = vunpack.c.h.b16 %v5121
          %v7454 = vunpack.c.l.b16 %v5122
          %v7455 = vunpack.c.h.b16 %v5122
          %v7456 = vunpack.c.l.b16 %v5123
          %v7457 = vunpack.c.h.b16 %v5123
          %v7458 = vunpack.c.l.b16 %v5124
          %v7459 = vunpack.c.h.b16 %v5124
          %v7460 = vunpack.c.l.b16 %v5125
          %v7461 = vunpack.c.h.b16 %v5125
          %v7462 = vunpack.c.l.b16 %v5126
          %v7463 = vunpack.c.h.b16 %v5126
          %v7464 = vunpack.c.l.b16 %v5127
          %v7465 = vunpack.c.h.b16 %v5127
          %v7466 = vunpack.c.l.b16 %v5128
          %v7467 = vunpack.c.h.b16 %v5128
          %v7468 = vunpack.c.l.b16 %v5129
          %v7469 = vunpack.c.h.b16 %v5129
          %v7470 = vunpack.c.l.b16 %v5130
          %v7471 = vunpack.c.h.b16 %v5130
          %v7472 = vunpack.c.l.b16 %v5131
          %v7473 = vunpack.c.h.b16 %v5131
          %v7474 = vunpack.c.l.b16 %v5132
          %v7475 = vunpack.c.h.b16 %v5132
          %v7476 = vunpack.c.l.b16 %v5133
          %v7477 = vunpack.c.h.b16 %v5133
          %v7478 = vunpack.c.l.b16 %v5134
          %v7479 = vunpack.c.h.b16 %v5134
          %v7480 = vunpack.c.l.b16 %v5135
          %v7481 = vunpack.c.h.b16 %v5135
          %v7482 = vunpack.c.l.b16 %v5136
          %v7483 = vunpack.c.h.b16 %v5136
          %v7484 = vunpack.c.l.b16 %v5137
          %v7485 = vunpack.c.h.b16 %v5137
          %v7486 = vunpack.c.l.b16 %v5138
          %v7487 = vunpack.c.h.b16 %v5138
          %v7488 = vunpack.c.l.b16 %v5139
          %v7489 = vunpack.c.h.b16 %v5139
          %v7490 = vunpack.c.l.b16 %v5140
          %v7491 = vunpack.c.h.b16 %v5140
          %v7492 = vunpack.c.l.b16 %v5141
          %v7493 = vunpack.c.h.b16 %v5141
          %v7494 = vunpack.c.l.b16 %v5142
          %v7495 = vunpack.c.h.b16 %v5142
          %v7496 = vunpack.c.l.b16 %v5143
          %v7497 = vunpack.c.h.b16 %v5143
          %v7498 = vunpack.c.l.b16 %v5144
          %v7499 = vunpack.c.h.b16 %v5144
          %v7500 = vunpack.c.l.b16 %v5145
          %v7501 = vunpack.c.h.b16 %v5145
          %v7502 = vunpack.c.l.b16 %v5146
          %v7503 = vunpack.c.h.b16 %v5146
          %v7504 = vunpack.c.l.b16 %v5147
          %v7505 = vunpack.c.h.b16 %v5147
          %v7506 = vunpack.c.l.b16 %v5148
          %v7507 = vunpack.c.h.b16 %v5148
          %v7508 = vunpack.c.l.b16 %v5149
          %v7509 = vunpack.c.h.b16 %v5149
          %v7510 = vunpack.c.l.b16 %v5150
          %v7511 = vunpack.c.h.b16 %v5150
          %v7512 = vunpack.c.l.b16 %v5151
          %v7513 = vunpack.c.h.b16 %v5151
          %v7514 = vunpack.c.l.b16 %v5152
          %v7515 = vunpack.c.h.b16 %v5152
          %v7516 = vunpack.c.l.b16 %v5153
          %v7517 = vunpack.c.h.b16 %v5153
          %v7518 = vunpack.c.l.b16 %v5154
          %v7519 = vunpack.c.h.b16 %v5154
          %v7520 = vunpack.c.l.b16 %v5155
          %v7521 = vunpack.c.h.b16 %v5155
          %v7522 = vunpack.c.l.b16 %v5156
          %v7523 = vunpack.c.h.b16 %v5156
          %v7524 = vunpack.c.l.b16 %v5157
          %v7525 = vunpack.c.h.b16 %v5157
          %v7526 = vunpack.c.l.b16 %v5158
          %v7527 = vunpack.c.h.b16 %v5158
          %v7528 = vunpack.c.l.b16 %v5159
          %v7529 = vunpack.c.h.b16 %v5159
          %v7530 = vunpack.c.l.b16 %v5160
          %v7531 = vunpack.c.h.b16 %v5160
          %v7532 = vunpack.c.l.b16 %v5161
          %v7533 = vunpack.c.h.b16 %v5161
          %v7534 = vunpack.c.l.b16 %v5162
          %v7535 = vunpack.c.h.b16 %v5162
          %v7536 = vunpack.c.l.b16 %v5163
          %v7537 = vunpack.c.h.b16 %v5163
          %v7538 = vunpack.c.l.b16 %v5164
          %v7539 = vunpack.c.h.b16 %v5164
          %v7540 = vunpack.c.l.b16 %v5165
          %v7541 = vunpack.c.h.b16 %v5165
          %v7542 = vunpack.c.l.b16 %v5166
          %v7543 = vunpack.c.h.b16 %v5166
          %v7544 = vunpack.c.l.b16 %v5167
          %v7545 = vunpack.c.h.b16 %v5167
          %v7546 = vunpack.c.l.b16 %v5168
          %v7547 = vunpack.c.h.b16 %v5168
          %v7548 = vunpack.c.l.b16 %v5169
          %v7549 = vunpack.c.h.b16 %v5169
          %v7550 = vunpack.c.l.b16 %v5170
          %v7551 = vunpack.c.h.b16 %v5170
          %v7552 = vunpack.c.l.b16 %v5171
          %v7553 = vunpack.c.h.b16 %v5171
          %v7554 = vunpack.c.l.b16 %v5172
          %v7555 = vunpack.c.h.b16 %v5172
          %v7556 = vunpack.c.l.b16 %v5173
          %v7557 = vunpack.c.h.b16 %v5173
          %v7558 = vunpack.c.l.b16 %v5174
          %v7559 = vunpack.c.h.b16 %v5174
          %v7560 = vunpack.c.l.b16 %v5175
          %v7561 = vunpack.c.h.b16 %v5175
          %v7562 = vunpack.c.l.b16 %v5176
          %v7563 = vunpack.c.h.b16 %v5176
          %v7564 = vunpack.c.l.b16 %v5177
          %v7565 = vunpack.c.h.b16 %v5177
          %v7566 = vunpack.c.l.b16 %v5178
          %v7567 = vunpack.c.h.b16 %v5178
          %v7568 = vunpack.c.l.b16 %v5179
          %v7569 = vunpack.c.h.b16 %v5179
          %v7570 = vunpack.c.l.b16 %v5180
          %v7571 = vunpack.c.h.b16 %v5180
          %v7572 = vunpack.c.l.b16 %v5181
          %v7573 = vunpack.c.h.b16 %v5181
          %v7574 = vunpack.c.l.b16 %v5182
          %v7575 = vunpack.c.h.b16 %v5182
          %v7576 = vunpack.c.l.b16 %v5183
          %v7577 = vunpack.c.h.b16 %v5183
          %v7578 = vunpack.c.l.b16 %v5184
          %v7579 = vunpack.c.h.b16 %v5184
          %v7580 = vunpack.c.l.b16 %v5185
          %v7581 = vunpack.c.h.b16 %v5185
          %v7582 = vunpack.c.l.b16 %v5186
          %v7583 = vunpack.c.h.b16 %v5186
          %v7584 = vunpack.c.l.b16 %v5187
          %v7585 = vunpack.c.h.b16 %v5187
          %v7586 = vunpack.c.l.b16 %v5188
          %v7587 = vunpack.c.h.b16 %v5188
          %v7588 = vunpack.c.l.b16 %v5189
          %v7589 = vunpack.c.h.b16 %v5189
          %v7590 = vunpack.c.l.b16 %v5190
          %v7591 = vunpack.c.h.b16 %v5190
          %v7592 = vunpack.c.l.b16 %v5191
          %v7593 = vunpack.c.h.b16 %v5191
          %v7594 = vunpack.c.l.b16 %v5192
          %v7595 = vunpack.c.h.b16 %v5192
          %v7596 = vunpack.c.l.b16 %v5193
          %v7597 = vunpack.c.h.b16 %v5193
          %v7598 = vunpack.c.l.b16 %v5194
          %v7599 = vunpack.c.h.b16 %v5194
          %v7600 = vunpack.c.l.b16 %v5195
          %v7601 = vunpack.c.h.b16 %v5195
          %v7602 = vunpack.c.l.b16 %v5196
          %v7603 = vunpack.c.h.b16 %v5196
          %v7604 = vunpack.c.l.b16 %v5197
          %v7605 = vunpack.c.h.b16 %v5197
          %v7606 = vunpack.c.l.b16 %v5198
          %v7607 = vunpack.c.h.b16 %v5198
          %v7608 = vunpack.c.l.b16 %v5199
          %v7609 = vunpack.c.h.b16 %v5199
          %v7610 = vunpack.c.l.b16 %v5200
          %v7611 = vunpack.c.h.b16 %v5200
          %v7612 = vunpack.c.l.b16 %v5201
          %v7613 = vunpack.c.h.b16 %v5201
          %v7614 = vunpack.c.l.b16 %v5202
          %v7615 = vunpack.c.h.b16 %v5202
          %v7616 = vunpack.c.l.b16 %v5203
          %v7617 = vunpack.c.h.b16 %v5203
          %v7618 = vunpack.c.l.b16 %v5204
          %v7619 = vunpack.c.h.b16 %v5204
          %v7620 = vunpack.c.l.b16 %v5205
          %v7621 = vunpack.c.h.b16 %v5205
          %v7622 = vunpack.c.l.b16 %v5206
          %v7623 = vunpack.c.h.b16 %v5206
          %v7624 = vunpack.c.l.b16 %v5207
          %v7625 = vunpack.c.h.b16 %v5207
          %v7626 = vunpack.c.l.b16 %v5208
          %v7627 = vunpack.c.h.b16 %v5208
          %v7628 = vunpack.c.l.b16 %v5209
          %v7629 = vunpack.c.h.b16 %v5209
          %v7630 = vunpack.c.l.b16 %v5210
          %v7631 = vunpack.c.h.b16 %v5210
          %v7632 = vunpack.c.l.b16 %v5211
          %v7633 = vunpack.c.h.b16 %v5211
          %v7634 = vunpack.c.l.b16 %v5212
          %v7635 = vunpack.c.h.b16 %v5212
          %v7636 = vunpack.c.l.b16 %v5213
          %v7637 = vunpack.c.h.b16 %v5213
          %v7638 = vunpack.c.l.b16 %v5214
          %v7639 = vunpack.c.h.b16 %v5214
          %v7640 = vunpack.c.l.b16 %v5215
          %v7641 = vunpack.c.h.b16 %v5215
          %v7642 = vunpack.c.l.b16 %v5216
          %v7643 = vunpack.c.h.b16 %v5216
          %v7644 = vunpack.c.l.b16 %v5217
          %v7645 = vunpack.c.h.b16 %v5217
          %v7646 = vunpack.c.l.b16 %v5218
          %v7647 = vunpack.c.h.b16 %v5218
          %v7648 = vunpack.c.l.b16 %v5219
          %v7649 = vunpack.c.h.b16 %v5219
          %v7650 = vunpack.c.l.b16 %v5220
          %v7651 = vunpack.c.h.b16 %v5220
          %v7652 = vunpack.c.l.b16 %v5221
          %v7653 = vunpack.c.h.b16 %v5221
          %v7654 = vunpack.c.l.b16 %v5222
          %v7655 = vunpack.c.h.b16 %v5222
          %v7656 = vunpack.c.l.b16 %v5223
          %v7657 = vunpack.c.h.b16 %v5223
          %v7658 = vunpack.c.l.b16 %v5224
          %v7659 = vunpack.c.h.b16 %v5224
          %v7660 = vunpack.c.l.b16 %v5225
          %v7661 = vunpack.c.h.b16 %v5225
          %v7662 = vunpack.c.l.b16 %v5226
          %v7663 = vunpack.c.h.b16 %v5226
          %v7664 = vunpack.c.l.b16 %v5227
          %v7665 = vunpack.c.h.b16 %v5227
          %v7666 = vunpack.c.l.b16 %v5228
          %v7667 = vunpack.c.h.b16 %v5228
          %v7668 = vunpack.c.l.b16 %v5229
          %v7669 = vunpack.c.h.b16 %v5229
          %v7670 = vpack.c.b16 %v7290, %v7286
          %v7671 = vpack.c.b16 %v7291, %v7287
          %v7672 = vpack.c.b16 %v7292, %v7288
          %v7673 = vpack.c.b16 %v7293, %v7289
          %v7674 = vpack.c.b16 %v7298, %v7294
          %v7675 = vpack.c.b16 %v7299, %v7295
          %v7676 = vpack.c.b16 %v7300, %v7296
          %v7677 = vpack.c.b16 %v7301, %v7297
          %v7678 = vpack.c.b16 %v7306, %v7302
          %v7679 = vpack.c.b16 %v7307, %v7303
          %v7680 = vpack.c.b16 %v7308, %v7304
          %v7681 = vpack.c.b16 %v7309, %v7305
          %v7682 = vpack.c.b16 %v7314, %v7310
          %v7683 = vpack.c.b16 %v7315, %v7311
          %v7684 = vpack.c.b16 %v7316, %v7312
          %v7685 = vpack.c.b16 %v7317, %v7313
          %v7686 = vpack.c.b16 %v7322, %v7318
          %v7687 = vpack.c.b16 %v7323, %v7319
          %v7688 = vpack.c.b16 %v7324, %v7320
          %v7689 = vpack.c.b16 %v7325, %v7321
          %v7690 = vpack.c.b16 %v7330, %v7326
          %v7691 = vpack.c.b16 %v7331, %v7327
          %v7692 = vpack.c.b16 %v7332, %v7328
          %v7693 = vpack.c.b16 %v7333, %v7329
          %v7694 = vpack.c.b16 %v7338, %v7334
          %v7695 = vpack.c.b16 %v7339, %v7335
          %v7696 = vpack.c.b16 %v7340, %v7336
          %v7697 = vpack.c.b16 %v7341, %v7337
          %v7698 = vpack.c.b16 %v7346, %v7342
          %v7699 = vpack.c.b16 %v7347, %v7343
          %v7700 = vpack.c.b16 %v7348, %v7344
          %v7701 = vpack.c.b16 %v7349, %v7345
          %v7702 = vpack.c.b16 %v7354, %v7350
          %v7703 = vpack.c.b16 %v7355, %v7351
          %v7704 = vpack.c.b16 %v7356, %v7352
          %v7705 = vpack.c.b16 %v7357, %v7353
          %v7706 = vpack.c.b16 %v7362, %v7358
          %v7707 = vpack.c.b16 %v7363, %v7359
          %v7708 = vpack.c.b16 %v7364, %v7360
          %v7709 = vpack.c.b16 %v7365, %v7361
          %v7710 = vpack.c.b16 %v7370, %v7366
          %v7711 = vpack.c.b16 %v7371, %v7367
          %v7712 = vpack.c.b16 %v7372, %v7368
          %v7713 = vpack.c.b16 %v7373, %v7369
          %v7714 = vpack.c.b16 %v7378, %v7374
          %v7715 = vpack.c.b16 %v7379, %v7375
          %v7716 = vpack.c.b16 %v7380, %v7376
          %v7717 = vpack.c.b16 %v7381, %v7377
          %v7718 = vpack.c.b16 %v7386, %v7382
          %v7719 = vpack.c.b16 %v7387, %v7383
          %v7720 = vpack.c.b16 %v7388, %v7384
          %v7721 = vpack.c.b16 %v7389, %v7385
          %v7722 = vpack.c.b16 %v7394, %v7390
          %v7723 = vpack.c.b16 %v7395, %v7391
          %v7724 = vpack.c.b16 %v7396, %v7392
          %v7725 = vpack.c.b16 %v7397, %v7393
          %v7726 = vpack.c.b16 %v7402, %v7398
          %v7727 = vpack.c.b16 %v7403, %v7399
          %v7728 = vpack.c.b16 %v7404, %v7400
          %v7729 = vpack.c.b16 %v7405, %v7401
          %v7730 = vpack.c.b16 %v7410, %v7406
          %v7731 = vpack.c.b16 %v7411, %v7407
          %v7732 = vpack.c.b16 %v7412, %v7408
          %v7733 = vpack.c.b16 %v7413, %v7409
          %v7734 = vpack.c.b16 %v7418, %v7414
          %v7735 = vpack.c.b16 %v7419, %v7415
          %v7736 = vpack.c.b16 %v7420, %v7416
          %v7737 = vpack.c.b16 %v7421, %v7417
          %v7738 = vpack.c.b16 %v7426, %v7422
          %v7739 = vpack.c.b16 %v7427, %v7423
          %v7740 = vpack.c.b16 %v7428, %v7424
          %v7741 = vpack.c.b16 %v7429, %v7425
          %v7742 = vpack.c.b16 %v7434, %v7430
          %v7743 = vpack.c.b16 %v7435, %v7431
          %v7744 = vpack.c.b16 %v7436, %v7432
          %v7745 = vpack.c.b16 %v7437, %v7433
          %v7746 = vpack.c.b16 %v7442, %v7438
          %v7747 = vpack.c.b16 %v7443, %v7439
          %v7748 = vpack.c.b16 %v7444, %v7440
          %v7749 = vpack.c.b16 %v7445, %v7441
          %v7750 = vpack.c.b16 %v7450, %v7446
          %v7751 = vpack.c.b16 %v7451, %v7447
          %v7752 = vpack.c.b16 %v7452, %v7448
          %v7753 = vpack.c.b16 %v7453, %v7449
          %v7754 = vpack.c.b16 %v7458, %v7454
          %v7755 = vpack.c.b16 %v7459, %v7455
          %v7756 = vpack.c.b16 %v7460, %v7456
          %v7757 = vpack.c.b16 %v7461, %v7457
          %v7758 = vpack.c.b16 %v7466, %v7462
          %v7759 = vpack.c.b16 %v7467, %v7463
          %v7760 = vpack.c.b16 %v7468, %v7464
          %v7761 = vpack.c.b16 %v7469, %v7465
          %v7762 = vpack.c.b16 %v7474, %v7470
          %v7763 = vpack.c.b16 %v7475, %v7471
          %v7764 = vpack.c.b16 %v7476, %v7472
          %v7765 = vpack.c.b16 %v7477, %v7473
          %v7766 = vpack.c.b16 %v7482, %v7478
          %v7767 = vpack.c.b16 %v7483, %v7479
          %v7768 = vpack.c.b16 %v7484, %v7480
          %v7769 = vpack.c.b16 %v7485, %v7481
          %v7770 = vpack.c.b16 %v7490, %v7486
          %v7771 = vpack.c.b16 %v7491, %v7487
          %v7772 = vpack.c.b16 %v7492, %v7488
          %v7773 = vpack.c.b16 %v7493, %v7489
          %v7774 = vpack.c.b16 %v7498, %v7494
          %v7775 = vpack.c.b16 %v7499, %v7495
          %v7776 = vpack.c.b16 %v7500, %v7496
          %v7777 = vpack.c.b16 %v7501, %v7497
          %v7778 = vpack.c.b16 %v7506, %v7502
          %v7779 = vpack.c.b16 %v7507, %v7503
          %v7780 = vpack.c.b16 %v7508, %v7504
          %v7781 = vpack.c.b16 %v7509, %v7505
          %v7782 = vpack.c.b16 %v7514, %v7510
          %v7783 = vpack.c.b16 %v7515, %v7511
          %v7784 = vpack.c.b16 %v7516, %v7512
          %v7785 = vpack.c.b16 %v7517, %v7513
          %v7786 = vpack.c.b16 %v7522, %v7518
          %v7787 = vpack.c.b16 %v7523, %v7519
          %v7788 = vpack.c.b16 %v7524, %v7520
          %v7789 = vpack.c.b16 %v7525, %v7521
          %v7790 = vpack.c.b16 %v7530, %v7526
          %v7791 = vpack.c.b16 %v7531, %v7527
          %v7792 = vpack.c.b16 %v7532, %v7528
          %v7793 = vpack.c.b16 %v7533, %v7529
          %v7794 = vpack.c.b16 %v7538, %v7534
          %v7795 = vpack.c.b16 %v7539, %v7535
          %v7796 = vpack.c.b16 %v7540, %v7536
          %v7797 = vpack.c.b16 %v7541, %v7537
          %v7798 = vpack.c.b16 %v7546, %v7542
          %v7799 = vpack.c.b16 %v7547, %v7543
          %v7800 = vpack.c.b16 %v7548, %v7544
          %v7801 = vpack.c.b16 %v7549, %v7545
          %v7802 = vpack.c.b16 %v7554, %v7550
          %v7803 = vpack.c.b16 %v7555, %v7551
          %v7804 = vpack.c.b16 %v7556, %v7552
          %v7805 = vpack.c.b16 %v7557, %v7553
          %v7806 = vpack.c.b16 %v7562, %v7558
          %v7807 = vpack.c.b16 %v7563, %v7559
          %v7808 = vpack.c.b16 %v7564, %v7560
          %v7809 = vpack.c.b16 %v7565, %v7561
          %v7810 = vpack.c.b16 %v7570, %v7566
          %v7811 = vpack.c.b16 %v7571, %v7567
          %v7812 = vpack.c.b16 %v7572, %v7568
          %v7813 = vpack.c.b16 %v7573, %v7569
          %v7814 = vpack.c.b16 %v7578, %v7574
          %v7815 = vpack.c.b16 %v7579, %v7575
          %v7816 = vpack.c.b16 %v7580, %v7576
          %v7817 = vpack.c.b16 %v7581, %v7577
          %v7818 = vpack.c.b16 %v7586, %v7582
          %v7819 = vpack.c.b16 %v7587, %v7583
          %v7820 = vpack.c.b16 %v7588, %v7584
          %v7821 = vpack.c.b16 %v7589, %v7585
          %v7822 = vpack.c.b16 %v7594, %v7590
          %v7823 = vpack.c.b16 %v7595, %v7591
          %v7824 = vpack.c.b16 %v7596, %v7592
          %v7825 = vpack.c.b16 %v7597, %v7593
          %v7826 = vpack.c.b16 %v7602, %v7598
          %v7827 = vpack.c.b16 %v7603, %v7599
          %v7828 = vpack.c.b16 %v7604, %v7600
          %v7829 = vpack.c.b16 %v7605, %v7601
          %v7830 = vpack.c.b16 %v7610, %v7606
          %v7831 = vpack.c.b16 %v7611, %v7607
          %v7832 = vpack.c.b16 %v7612, %v7608
          %v7833 = vpack.c.b16 %v7613, %v7609
          %v7834 = vpack.c.b16 %v7618, %v7614
          %v7835 = vpack.c.b16 %v7619, %v7615
          %v7836 = vpack.c.b16 %v7620, %v7616
          %v7837 = vpack.c.b16 %v7621, %v7617
          %v7838 = vpack.c.b16 %v7626, %v7622
          %v7839 = vpack.c.b16 %v7627, %v7623
          %v7840 = vpack.c.b16 %v7628, %v7624
          %v7841 = vpack.c.b16 %v7629, %v7625
          %v7842 = vpack.c.b16 %v7634, %v7630
          %v7843 = vpack.c.b16 %v7635, %v7631
          %v7844 = vpack.c.b16 %v7636, %v7632
          %v7845 = vpack.c.b16 %v7637, %v7633
          %v7846 = vpack.c.b16 %v7642, %v7638
          %v7847 = vpack.c.b16 %v7643, %v7639
          %v7848 = vpack.c.b16 %v7644, %v7640
          %v7849 = vpack.c.b16 %v7645, %v7641
          %v7850 = vpack.c.b16 %v7650, %v7646
          %v7851 = vpack.c.b16 %v7651, %v7647
          %v7852 = vpack.c.b16 %v7652, %v7648
          %v7853 = vpack.c.b16 %v7653, %v7649
          %v7854 = vpack.c.b16 %v7658, %v7654
          %v7855 = vpack.c.b16 %v7659, %v7655
          %v7856 = vpack.c.b16 %v7660, %v7656
          %v7857 = vpack.c.b16 %v7661, %v7657
          %v7858 = vpack.c.b16 %v7666, %v7662
          %v7859 = vpack.c.b16 %v7667, %v7663
          %v7860 = vpack.c.b16 %v7668, %v7664
          %v7861 = vpack.c.b16 %v7669, %v7665
          %8054 = vmatprep.subr.bf16.mxu0 %v7671
          %8055 = vmatpush1.bf16.msra.mxu0 %v7670
          %8056 = vmatprep.subr.bf16.mxu0 %v7675
          %8057 = vmatpush1.bf16.msra.mxu0 %v7674
          %8058 = vmatprep.subr.bf16.mxu0 %v7679
          %8059 = vmatpush1.bf16.msra.mxu0 %v7678
          %8060 = vmatprep.subr.bf16.mxu0 %v7683
          %8061 = vmatpush1.bf16.msra.mxu0 %v7682
          %8062 = vmatprep.subr.bf16.mxu0 %v7687
          %8063 = vmatpush1.bf16.msra.mxu0 %v7686
          %8064 = vmatprep.subr.bf16.mxu0 %v7691
          %8065 = vmatpush1.bf16.msra.mxu0 %v7690
          %8066 = vmatprep.subr.bf16.mxu0 %v7695
          %8067 = vmatpush1.bf16.msra.mxu0 %v7694
          %8068 = vmatprep.subr.bf16.mxu0 %v7699
          %8069 = vmatpush1.bf16.msra.mxu0 %v7698
          %8070 = vmatprep.subr.bf16.mxu0 %v7703
          %8071 = vmatpush1.bf16.msra.mxu0 %v7702
          %8072 = vmatprep.subr.bf16.mxu0 %v7707
          %8073 = vmatpush1.bf16.msra.mxu0 %v7706
          %8074 = vmatprep.subr.bf16.mxu0 %v7711
          %8075 = vmatpush1.bf16.msra.mxu0 %v7710
          %8076 = vmatprep.subr.bf16.mxu0 %v7715
          %8077 = vmatpush1.bf16.msra.mxu0 %v7714
          %8078 = vmatprep.subr.bf16.mxu0 %v7719
          %8079 = vmatpush1.bf16.msra.mxu0 %v7718
          %8080 = vmatprep.subr.bf16.mxu0 %v7723
          %8081 = vmatpush1.bf16.msra.mxu0 %v7722
          %8082 = vmatprep.subr.bf16.mxu0 %v7727
          %8083 = vmatpush1.bf16.msra.mxu0 %v7726
          %8084 = vmatprep.subr.bf16.mxu0 %v7731
          %8085 = vmatpush1.bf16.msra.mxu0 %v7730
          %8086 = vmatprep.mubr.bf16.mxu0 %v5033
          %8087 = vmatmul.mubr.bf16.gmra.mrb[0].mxu0 %v5032
          %v8088 = vpop.f32.mrb[0].mxu0
          %v8089 = vadd.f32 %v6924, %v8088
          %v8090 = vpop.f32.mrb[0].mxu0
          %v8091 = vadd.f32 %v6926, %v8090
          %v8092 = vpop.f32.mrb[0].mxu0
          %v8093 = vpop.f32.mrb[0].mxu0
          %8094 = vdwg.mxu0
          %8095 = vmatprep.subr.bf16.mxu0 %v7735
          %8096 = vmatpush1.bf16.msra.mxu0 %v7734
          %8097 = vmatprep.subr.bf16.mxu0 %v7739
          %8098 = vmatpush1.bf16.msra.mxu0 %v7738
          %8099 = vmatprep.subr.bf16.mxu0 %v7743
          %8100 = vmatpush1.bf16.msra.mxu0 %v7742
          %8101 = vmatprep.subr.bf16.mxu0 %v7747
          %8102 = vmatpush1.bf16.msra.mxu0 %v7746
          %8103 = vmatprep.subr.bf16.mxu0 %v7751
          %8104 = vmatpush1.bf16.msra.mxu0 %v7750
          %8105 = vmatprep.subr.bf16.mxu0 %v7755
          %8106 = vmatpush1.bf16.msra.mxu0 %v7754
          %8107 = vmatprep.subr.bf16.mxu0 %v7759
          %8108 = vmatpush1.bf16.msra.mxu0 %v7758
          %8109 = vmatprep.subr.bf16.mxu0 %v7763
          %8110 = vmatpush1.bf16.msra.mxu0 %v7762
          %8111 = vmatprep.subr.bf16.mxu0 %v7767
          %8112 = vmatpush1.bf16.msra.mxu0 %v7766
          %8113 = vmatprep.subr.bf16.mxu0 %v7771
          %8114 = vmatpush1.bf16.msra.mxu0 %v7770
          %8115 = vmatprep.subr.bf16.mxu0 %v7775
          %8116 = vmatpush1.bf16.msra.mxu0 %v7774
          %8117 = vmatprep.subr.bf16.mxu0 %v7779
          %8118 = vmatpush1.bf16.msra.mxu0 %v7778
          %8119 = vmatprep.subr.bf16.mxu0 %v7783
          %8120 = vmatpush1.bf16.msra.mxu0 %v7782
          %8121 = vmatprep.subr.bf16.mxu0 %v7787
          %8122 = vmatpush1.bf16.msra.mxu0 %v7786
          %8123 = vmatprep.subr.bf16.mxu0 %v7791
          %8124 = vmatpush1.bf16.msra.mxu0 %v7790
          %8125 = vmatprep.subr.bf16.mxu0 %v7795
          %8126 = vmatpush1.bf16.msra.mxu0 %v7794
          %8127 = vmatprep.mubr.bf16.mxu0 %v5035
          %8128 = vmatmul.mubr.bf16.gmra.mrb[0].mxu0 %v5034
          %v8129 = vpop.f32.mrb[0].mxu0
          %v8130 = vadd.f32 %v8089, %v8129
          %v8131 = vpop.f32.mrb[0].mxu0
          %v8132 = vadd.f32 %v8091, %v8131
          %v8133 = vpop.f32.mrb[0].mxu0
          %v8134 = vpop.f32.mrb[0].mxu0
          %8135 = vdwg.mxu0
          %8136 = vmatprep.subr.bf16.mxu0 %v7799
          %8137 = vmatpush1.bf16.msra.mxu0 %v7798
          %8138 = vmatprep.subr.bf16.mxu0 %v7803
          %8139 = vmatpush1.bf16.msra.mxu0 %v7802
          %8140 = vmatprep.subr.bf16.mxu0 %v7807
          %8141 = vmatpush1.bf16.msra.mxu0 %v7806
          %8142 = vmatprep.subr.bf16.mxu0 %v7811
          %8143 = vmatpush1.bf16.msra.mxu0 %v7810
          %8144 = vmatprep.subr.bf16.mxu0 %v7815
          %8145 = vmatpush1.bf16.msra.mxu0 %v7814
          %8146 = vmatprep.subr.bf16.mxu0 %v7819
          %8147 = vmatpush1.bf16.msra.mxu0 %v7818
          %8148 = vmatprep.subr.bf16.mxu0 %v7823
          %8149 = vmatpush1.bf16.msra.mxu0 %v7822
          %8150 = vmatprep.subr.bf16.mxu0 %v7827
          %8151 = vmatpush1.bf16.msra.mxu0 %v7826
          %8152 = vmatprep.subr.bf16.mxu0 %v7831
          %8153 = vmatpush1.bf16.msra.mxu0 %v7830
          %8154 = vmatprep.subr.bf16.mxu0 %v7835
          %8155 = vmatpush1.bf16.msra.mxu0 %v7834
          %8156 = vmatprep.subr.bf16.mxu0 %v7839
          %8157 = vmatpush1.bf16.msra.mxu0 %v7838
          %8158 = vmatprep.subr.bf16.mxu0 %v7843
          %8159 = vmatpush1.bf16.msra.mxu0 %v7842
          %8160 = vmatprep.subr.bf16.mxu0 %v7847
          %8161 = vmatpush1.bf16.msra.mxu0 %v7846
          %8162 = vmatprep.subr.bf16.mxu0 %v7851
          %8163 = vmatpush1.bf16.msra.mxu0 %v7850
          %8164 = vmatprep.subr.bf16.mxu0 %v7855
          %8165 = vmatpush1.bf16.msra.mxu0 %v7854
          %8166 = vmatprep.subr.bf16.mxu0 %v7859
          %8167 = vmatpush1.bf16.msra.mxu0 %v7858
          %8168 = vmatprep.mubr.bf16.mxu0 %v5037
          %8169 = vmatmul.mubr.bf16.gmra.mrb[0].mxu0 %v5036
          %v8170 = vpop.f32.mrb[0].mxu0
          %v8171 = vadd.f32 %v8130, %v8170
          %v8172 = vpop.f32.mrb[0].mxu0
          %v8173 = vadd.f32 %v8132, %v8172
          %v8174 = vpop.f32.mrb[0].mxu0
          %v8175 = vpop.f32.mrb[0].mxu0
          %8176 = vdwg.mxu0
          %8177 = vmatprep.subr.bf16.mxu0 %v7673
          %8178 = vmatpush1.bf16.msra.mxu0 %v7672
          %8179 = vmatprep.subr.bf16.mxu0 %v7677
          %8180 = vmatpush1.bf16.msra.mxu0 %v7676
          %8181 = vmatprep.subr.bf16.mxu0 %v7681
          %8182 = vmatpush1.bf16.msra.mxu0 %v7680
          %8183 = vmatprep.subr.bf16.mxu0 %v7685
          %8184 = vmatpush1.bf16.msra.mxu0 %v7684
          %8185 = vmatprep.subr.bf16.mxu0 %v7689
          %8186 = vmatpush1.bf16.msra.mxu0 %v7688
          %8187 = vmatprep.subr.bf16.mxu0 %v7693
          %8188 = vmatpush1.bf16.msra.mxu0 %v7692
          %8189 = vmatprep.subr.bf16.mxu0 %v7697
          %8190 = vmatpush1.bf16.msra.mxu0 %v7696
          %8191 = vmatprep.subr.bf16.mxu0 %v7701
          %8192 = vmatpush1.bf16.msra.mxu0 %v7700
          %8193 = vmatprep.subr.bf16.mxu0 %v7705
          %8194 = vmatpush1.bf16.msra.mxu0 %v7704
          %8195 = vmatprep.subr.bf16.mxu0 %v7709
          %8196 = vmatpush1.bf16.msra.mxu0 %v7708
          %8197 = vmatprep.subr.bf16.mxu0 %v7713
          %8198 = vmatpush1.bf16.msra.mxu0 %v7712
          %8199 = vmatprep.subr.bf16.mxu0 %v7717
          %8200 = vmatpush1.bf16.msra.mxu0 %v7716
          %8201 = vmatprep.subr.bf16.mxu0 %v7721
          %8202 = vmatpush1.bf16.msra.mxu0 %v7720
          %8203 = vmatprep.subr.bf16.mxu0 %v7725
          %8204 = vmatpush1.bf16.msra.mxu0 %v7724
          %8205 = vmatprep.subr.bf16.mxu0 %v7729
          %8206 = vmatpush1.bf16.msra.mxu0 %v7728
          %8207 = vmatprep.subr.bf16.mxu0 %v7733
          %8208 = vmatpush1.bf16.msra.mxu0 %v7732
          %8209 = vmatprep.mubr.bf16.mxu0 %v5033
          %8210 = vmatmul.mubr.bf16.gmra.mrb[0].mxu0 %v5032
          %v8211 = vpop.f32.mrb[0].mxu0
          %v8212 = vadd.f32 %v7088, %v8211
          %v8213 = vpop.f32.mrb[0].mxu0
          %v8214 = vadd.f32 %v7090, %v8213
          %v8215 = vpop.f32.mrb[0].mxu0
          %v8216 = vpop.f32.mrb[0].mxu0
          %8217 = vdwg.mxu0
          %8218 = vmatprep.subr.bf16.mxu0 %v7737
          %8219 = vmatpush1.bf16.msra.mxu0 %v7736
          %8220 = vmatprep.subr.bf16.mxu0 %v7741
          %8221 = vmatpush1.bf16.msra.mxu0 %v7740
          %8222 = vmatprep.subr.bf16.mxu0 %v7745
          %8223 = vmatpush1.bf16.msra.mxu0 %v7744
          %8224 = vmatprep.subr.bf16.mxu0 %v7749
          %8225 = vmatpush1.bf16.msra.mxu0 %v7748
          %8226 = vmatprep.subr.bf16.mxu0 %v7753
          %8227 = vmatpush1.bf16.msra.mxu0 %v7752
          %8228 = vmatprep.subr.bf16.mxu0 %v7757
          %8229 = vmatpush1.bf16.msra.mxu0 %v7756
          %8230 = vmatprep.subr.bf16.mxu0 %v7761
          %8231 = vmatpush1.bf16.msra.mxu0 %v7760
          %8232 = vmatprep.subr.bf16.mxu0 %v7765
          %8233 = vmatpush1.bf16.msra.mxu0 %v7764
          %8234 = vmatprep.subr.bf16.mxu0 %v7769
          %8235 = vmatpush1.bf16.msra.mxu0 %v7768
          %8236 = vmatprep.subr.bf16.mxu0 %v7773
          %8237 = vmatpush1.bf16.msra.mxu0 %v7772
          %8238 = vmatprep.subr.bf16.mxu0 %v7777
          %8239 = vmatpush1.bf16.msra.mxu0 %v7776
          %8240 = vmatprep.subr.bf16.mxu0 %v7781
          %8241 = vmatpush1.bf16.msra.mxu0 %v7780
          %8242 = vmatprep.subr.bf16.mxu0 %v7785
          %8243 = vmatpush1.bf16.msra.mxu0 %v7784
          %8244 = vmatprep.subr.bf16.mxu0 %v7789
          %8245 = vmatpush1.bf16.msra.mxu0 %v7788
          %8246 = vmatprep.subr.bf16.mxu0 %v7793
          %8247 = vmatpush1.bf16.msra.mxu0 %v7792
          %8248 = vmatprep.subr.bf16.mxu0 %v7797
          %8249 = vmatpush1.bf16.msra.mxu0 %v7796
          %8250 = vmatprep.mubr.bf16.mxu0 %v5035
          %8251 = vmatmul.mubr.bf16.gmra.mrb[0].mxu0 %v5034
          %v8252 = vpop.f32.mrb[0].mxu0
          %v8253 = vadd.f32 %v8212, %v8252
          %v8254 = vpop.f32.mrb[0].mxu0
          %v8255 = vadd.f32 %v8214, %v8254
          %v8256 = vpop.f32.mrb[0].mxu0
          %v8257 = vpop.f32.mrb[0].mxu0
          %8258 = vdwg.mxu0
          %8259 = vmatprep.subr.bf16.mxu0 %v7801
          %8260 = vmatpush1.bf16.msra.mxu0 %v7800
          %8261 = vmatprep.subr.bf16.mxu0 %v7805
          %8262 = vmatpush1.bf16.msra.mxu0 %v7804
          %8263 = vmatprep.subr.bf16.mxu0 %v7809
          %8264 = vmatpush1.bf16.msra.mxu0 %v7808
          %8265 = vmatprep.subr.bf16.mxu0 %v7813
          %8266 = vmatpush1.bf16.msra.mxu0 %v7812
          %8267 = vmatprep.subr.bf16.mxu0 %v7817
          %8268 = vmatpush1.bf16.msra.mxu0 %v7816
          %8269 = vmatprep.subr.bf16.mxu0 %v7821
          %8270 = vmatpush1.bf16.msra.mxu0 %v7820
          %8271 = vmatprep.subr.bf16.mxu0 %v7825
          %8272 = vmatpush1.bf16.msra.mxu0 %v7824
          %8273 = vmatprep.subr.bf16.mxu0 %v7829
          %8274 = vmatpush1.bf16.msra.mxu0 %v7828
          %8275 = vmatprep.subr.bf16.mxu0 %v7833
          %8276 = vmatpush1.bf16.msra.mxu0 %v7832
          %8277 = vmatprep.subr.bf16.mxu0 %v7837
          %8278 = vmatpush1.bf16.msra.mxu0 %v7836
          %8279 = vmatprep.subr.bf16.mxu0 %v7841
          %8280 = vmatpush1.bf16.msra.mxu0 %v7840
          %8281 = vmatprep.subr.bf16.mxu0 %v7845
          %8282 = vmatpush1.bf16.msra.mxu0 %v7844
          %8283 = vmatprep.subr.bf16.mxu0 %v7849
          %8284 = vmatpush1.bf16.msra.mxu0 %v7848
          %8285 = vmatprep.subr.bf16.mxu0 %v7853
          %8286 = vmatpush1.bf16.msra.mxu0 %v7852
          %8287 = vmatprep.subr.bf16.mxu0 %v7857
          %8288 = vmatpush1.bf16.msra.mxu0 %v7856
          %8289 = vmatprep.subr.bf16.mxu0 %v7861
          %8290 = vmatpush1.bf16.msra.mxu0 %v7860
          %8291 = vmatprep.mubr.bf16.mxu0 %v5037
          %8292 = vmatmul.mubr.bf16.gmra.mrb[0].mxu0 %v5036
          %v8293 = vpop.f32.mrb[0].mxu0
          %v8294 = vadd.f32 %v8253, %v8293
          %v8295 = vpop.f32.mrb[0].mxu0
          %v8296 = vadd.f32 %v8255, %v8295
          %v8297 = vpop.f32.mrb[0].mxu0
          %v8298 = vpop.f32.mrb[0].mxu0
          %8299 = vdwg.mxu0
          %v8300 = vld [vmem:[#allocation13] sm:$0xf]
          %v8302 = vlaneseq
          %v8303 = vshrl.u32 %v8302, 7
          %v8304 = vsub.s32 0, %v8303
          %v8305 = vrot.slane %v8300, %v8304
          %v8306 = vlaneseq
          %v8307 = vshrl.u32 %v8306, 7
          %v8308 = vsub.s32 1, %v8307
          %v8309 = vrot.slane %v8300, %v8308
          %v8310 = vlaneseq
          %v8311 = vshrl.u32 %v8310, 7
          %v8312 = vsub.s32 2, %v8311
          %v8313 = vrot.slane %v8300, %v8312
          %v8314 = vlaneseq
          %v8315 = vshrl.u32 %v8314, 7
          %v8316 = vsub.s32 3, %v8315
          %v8317 = vrot.slane %v8300, %v8316
          %v8322 = vadd.f32 %v8171, %v8305
          %v8323 = vadd.f32 %v8173, %v8309
          %v8324 = vadd.f32 %v8294, %v8313
          %v8325 = vadd.f32 %v8296, %v8317
          %v8326 = vmax.f32 %v8322, 0.0
          %v8327 = vmax.f32 %v8323, 0.0
          %v8328 = vmax.f32 %v8324, 0.0
          %v8329 = vmax.f32 %v8325, 0.0
          %v8330 = vpack.c.bf16 %v8326, %v8326
          %v8331 = vpack.c.bf16 %v8327, %v8327
          %v8332 = vpack.c.bf16 %v8328, %v8328
          %v8333 = vpack.c.bf16 %v8329, %v8329
          %v8334 = vld [vmem:[#allocation14] sm:$0xff]
          %v8335 = vld [vmem:[#allocation14 + $0x8] sm:$0xff]
          %v8336 = vld [vmem:[#allocation14 + $0x10] sm:$0xff]
          %v8337 = vld [vmem:[#allocation14 + $0x18] sm:$0xff]
          %v8338 = vld [vmem:[#allocation14 + $0x20] sm:$0xff]
          %v8339 = vld [vmem:[#allocation14 + $0x28] sm:$0xff]
          %v8340 = vld [vmem:[#allocation14 + $0x30] sm:$0xff]
          %v8341 = vld [vmem:[#allocation14 + $0x38] sm:$0xff]
          %v8342 = vld [vmem:[#allocation14 + $0x40] sm:$0xff]
          %v8343 = vld [vmem:[#allocation14 + $0x48] sm:$0xff]
          %v8344 = vld [vmem:[#allocation14 + $0x50] sm:$0xff]
          %v8345 = vld [vmem:[#allocation14 + $0x58] sm:$0xff]
          %v8346 = vld [vmem:[#allocation14 + $0x60] sm:$0xff]
          %v8347 = vld [vmem:[#allocation14 + $0x68] sm:$0xff]
          %v8348 = vld [vmem:[#allocation14 + $0x70] sm:$0xff]
          %v8349 = vld [vmem:[#allocation14 + $0x78] sm:$0xff]
          %v8350 = vld [vmem:[#allocation14 + $0x80] sm:$0xff]
          %v8351 = vld [vmem:[#allocation14 + $0x88] sm:$0xff]
          %v8352 = vld [vmem:[#allocation14 + $0x90] sm:$0xff]
          %v8353 = vld [vmem:[#allocation14 + $0x98] sm:$0xff]
          %v8354 = vld [vmem:[#allocation14 + $0xa0] sm:$0xff]
          %v8355 = vld [vmem:[#allocation14 + $0xa8] sm:$0xff]
          %v8356 = vld [vmem:[#allocation14 + $0xb0] sm:$0xff]
          %v8357 = vld [vmem:[#allocation14 + $0xb8] sm:$0xff]
          %v8358 = vld [vmem:[#allocation14 + $0xc0] sm:$0xff]
          %v8359 = vld [vmem:[#allocation14 + $0xc8] sm:$0xff]
          %v8360 = vld [vmem:[#allocation14 + $0xd0] sm:$0xff]
          %v8361 = vld [vmem:[#allocation14 + $0xd8] sm:$0xff]
          %v8362 = vld [vmem:[#allocation14 + $0xe0] sm:$0xff]
          %v8363 = vld [vmem:[#allocation14 + $0xe8] sm:$0xff]
          %v8364 = vld [vmem:[#allocation14 + $0xf0] sm:$0xff]
          %v8365 = vld [vmem:[#allocation14 + $0xf8] sm:$0xff]
          %v8366 = vld [vmem:[#allocation14 + $0x100] sm:$0xff]
          %v8367 = vld [vmem:[#allocation14 + $0x108] sm:$0xff]
          %v8368 = vld [vmem:[#allocation14 + $0x110] sm:$0xff]
          %v8369 = vld [vmem:[#allocation14 + $0x118] sm:$0xff]
          %v8370 = vld [vmem:[#allocation14 + $0x120] sm:$0xff]
          %v8371 = vld [vmem:[#allocation14 + $0x128] sm:$0xff]
          %v8372 = vld [vmem:[#allocation14 + $0x130] sm:$0xff]
          %v8373 = vld [vmem:[#allocation14 + $0x138] sm:$0xff]
          %v8374 = vld [vmem:[#allocation14 + $0x140] sm:$0xff]
          %v8375 = vld [vmem:[#allocation14 + $0x148] sm:$0xff]
          %v8376 = vld [vmem:[#allocation14 + $0x150] sm:$0xff]
          %v8377 = vld [vmem:[#allocation14 + $0x158] sm:$0xff]
          %v8378 = vld [vmem:[#allocation14 + $0x160] sm:$0xff]
          %v8379 = vld [vmem:[#allocation14 + $0x168] sm:$0xff]
          %v8380 = vld [vmem:[#allocation14 + $0x170] sm:$0xff]
          %v8381 = vld [vmem:[#allocation14 + $0x178] sm:$0xff]
          %v8382 = vld [vmem:[#allocation14 + $0x180] sm:$0xff]
          %v8383 = vld [vmem:[#allocation14 + $0x188] sm:$0xff]
          %v8384 = vld [vmem:[#allocation14 + $0x190] sm:$0xff]
          %v8385 = vld [vmem:[#allocation14 + $0x198] sm:$0xff]
          %v8386 = vld [vmem:[#allocation14 + $0x1a0] sm:$0xff]
          %v8387 = vld [vmem:[#allocation14 + $0x1a8] sm:$0xff]
          %v8388 = vld [vmem:[#allocation14 + $0x1b0] sm:$0xff]
          %v8389 = vld [vmem:[#allocation14 + $0x1b8] sm:$0xff]
          %v8390 = vld [vmem:[#allocation14 + $0x1c0] sm:$0xff]
          %v8391 = vld [vmem:[#allocation14 + $0x1c8] sm:$0xff]
          %v8392 = vld [vmem:[#allocation14 + $0x1d0] sm:$0xff]
          %v8393 = vld [vmem:[#allocation14 + $0x1d8] sm:$0xff]
          %v8394 = vld [vmem:[#allocation14 + $0x1e0] sm:$0xff]
          %v8395 = vld [vmem:[#allocation14 + $0x1e8] sm:$0xff]
          %v8396 = vld [vmem:[#allocation14 + $0x1f0] sm:$0xff]
          %v8397 = vld [vmem:[#allocation14 + $0x1f8] sm:$0xff]
          %v8398 = vld [vmem:[#allocation16] sm:$0x3]
          %v8400 = vlaneseq
          %v8401 = vshrl.u32 %v8400, 7
          %v8402 = vsub.s32 0, %v8401
          %v8403 = vrot.slane %v8398, %v8402
          %v8404 = vlaneseq
          %v8405 = vshrl.u32 %v8404, 7
          %v8406 = vsub.s32 1, %v8405
          %v8407 = vrot.slane %v8398, %v8406
          %v8474 = vunpack.c.l.b16 %v8334
          %v8475 = vunpack.c.h.b16 %v8334
          %v8476 = vunpack.c.l.b16 %v8335
          %v8477 = vunpack.c.h.b16 %v8335
          %v8478 = vunpack.c.l.b16 %v8336
          %v8479 = vunpack.c.h.b16 %v8336
          %v8480 = vunpack.c.l.b16 %v8337
          %v8481 = vunpack.c.h.b16 %v8337
          %v8482 = vunpack.c.l.b16 %v8338
          %v8483 = vunpack.c.h.b16 %v8338
          %v8484 = vunpack.c.l.b16 %v8339
          %v8485 = vunpack.c.h.b16 %v8339
          %v8486 = vunpack.c.l.b16 %v8340
          %v8487 = vunpack.c.h.b16 %v8340
          %v8488 = vunpack.c.l.b16 %v8341
          %v8489 = vunpack.c.h.b16 %v8341
          %v8490 = vunpack.c.l.b16 %v8342
          %v8491 = vunpack.c.h.b16 %v8342
          %v8492 = vunpack.c.l.b16 %v8343
          %v8493 = vunpack.c.h.b16 %v8343
          %v8494 = vunpack.c.l.b16 %v8344
          %v8495 = vunpack.c.h.b16 %v8344
          %v8496 = vunpack.c.l.b16 %v8345
          %v8497 = vunpack.c.h.b16 %v8345
          %v8498 = vunpack.c.l.b16 %v8346
          %v8499 = vunpack.c.h.b16 %v8346
          %v8500 = vunpack.c.l.b16 %v8347
          %v8501 = vunpack.c.h.b16 %v8347
          %v8502 = vunpack.c.l.b16 %v8348
          %v8503 = vunpack.c.h.b16 %v8348
          %v8504 = vunpack.c.l.b16 %v8349
          %v8505 = vunpack.c.h.b16 %v8349
          %v8506 = vunpack.c.l.b16 %v8350
          %v8507 = vunpack.c.h.b16 %v8350
          %v8508 = vunpack.c.l.b16 %v8351
          %v8509 = vunpack.c.h.b16 %v8351
          %v8510 = vunpack.c.l.b16 %v8352
          %v8511 = vunpack.c.h.b16 %v8352
          %v8512 = vunpack.c.l.b16 %v8353
          %v8513 = vunpack.c.h.b16 %v8353
          %v8514 = vunpack.c.l.b16 %v8354
          %v8515 = vunpack.c.h.b16 %v8354
          %v8516 = vunpack.c.l.b16 %v8355
          %v8517 = vunpack.c.h.b16 %v8355
          %v8518 = vunpack.c.l.b16 %v8356
          %v8519 = vunpack.c.h.b16 %v8356
          %v8520 = vunpack.c.l.b16 %v8357
          %v8521 = vunpack.c.h.b16 %v8357
          %v8522 = vunpack.c.l.b16 %v8358
          %v8523 = vunpack.c.h.b16 %v8358
          %v8524 = vunpack.c.l.b16 %v8359
          %v8525 = vunpack.c.h.b16 %v8359
          %v8526 = vunpack.c.l.b16 %v8360
          %v8527 = vunpack.c.h.b16 %v8360
          %v8528 = vunpack.c.l.b16 %v8361
          %v8529 = vunpack.c.h.b16 %v8361
          %v8530 = vunpack.c.l.b16 %v8362
          %v8531 = vunpack.c.h.b16 %v8362
          %v8532 = vunpack.c.l.b16 %v8363
          %v8533 = vunpack.c.h.b16 %v8363
          %v8534 = vunpack.c.l.b16 %v8364
          %v8535 = vunpack.c.h.b16 %v8364
          %v8536 = vunpack.c.l.b16 %v8365
          %v8537 = vunpack.c.h.b16 %v8365
          %v8538 = vunpack.c.l.b16 %v8366
          %v8539 = vunpack.c.h.b16 %v8366
          %v8540 = vunpack.c.l.b16 %v8367
          %v8541 = vunpack.c.h.b16 %v8367
          %v8542 = vunpack.c.l.b16 %v8368
          %v8543 = vunpack.c.h.b16 %v8368
          %v8544 = vunpack.c.l.b16 %v8369
          %v8545 = vunpack.c.h.b16 %v8369
          %v8546 = vunpack.c.l.b16 %v8370
          %v8547 = vunpack.c.h.b16 %v8370
          %v8548 = vunpack.c.l.b16 %v8371
          %v8549 = vunpack.c.h.b16 %v8371
          %v8550 = vunpack.c.l.b16 %v8372
          %v8551 = vunpack.c.h.b16 %v8372
          %v8552 = vunpack.c.l.b16 %v8373
          %v8553 = vunpack.c.h.b16 %v8373
          %v8554 = vunpack.c.l.b16 %v8374
          %v8555 = vunpack.c.h.b16 %v8374
          %v8556 = vunpack.c.l.b16 %v8375
          %v8557 = vunpack.c.h.b16 %v8375
          %v8558 = vunpack.c.l.b16 %v8376
          %v8559 = vunpack.c.h.b16 %v8376
          %v8560 = vunpack.c.l.b16 %v8377
          %v8561 = vunpack.c.h.b16 %v8377
          %v8562 = vunpack.c.l.b16 %v8378
          %v8563 = vunpack.c.h.b16 %v8378
          %v8564 = vunpack.c.l.b16 %v8379
          %v8565 = vunpack.c.h.b16 %v8379
          %v8566 = vunpack.c.l.b16 %v8380
          %v8567 = vunpack.c.h.b16 %v8380
          %v8568 = vunpack.c.l.b16 %v8381
          %v8569 = vunpack.c.h.b16 %v8381
          %v8570 = vunpack.c.l.b16 %v8382
          %v8571 = vunpack.c.h.b16 %v8382
          %v8572 = vunpack.c.l.b16 %v8383
          %v8573 = vunpack.c.h.b16 %v8383
          %v8574 = vunpack.c.l.b16 %v8384
          %v8575 = vunpack.c.h.b16 %v8384
          %v8576 = vunpack.c.l.b16 %v8385
          %v8577 = vunpack.c.h.b16 %v8385
          %v8578 = vunpack.c.l.b16 %v8386
          %v8579 = vunpack.c.h.b16 %v8386
          %v8580 = vunpack.c.l.b16 %v8387
          %v8581 = vunpack.c.h.b16 %v8387
          %v8582 = vunpack.c.l.b16 %v8388
          %v8583 = vunpack.c.h.b16 %v8388
          %v8584 = vunpack.c.l.b16 %v8389
          %v8585 = vunpack.c.h.b16 %v8389
          %v8586 = vunpack.c.l.b16 %v8390
          %v8587 = vunpack.c.h.b16 %v8390
          %v8588 = vunpack.c.l.b16 %v8391
          %v8589 = vunpack.c.h.b16 %v8391
          %v8590 = vunpack.c.l.b16 %v8392
          %v8591 = vunpack.c.h.b16 %v8392
          %v8592 = vunpack.c.l.b16 %v8393
          %v8593 = vunpack.c.h.b16 %v8393
          %v8594 = vunpack.c.l.b16 %v8394
          %v8595 = vunpack.c.h.b16 %v8394
          %v8596 = vunpack.c.l.b16 %v8395
          %v8597 = vunpack.c.h.b16 %v8395
          %v8598 = vunpack.c.l.b16 %v8396
          %v8599 = vunpack.c.h.b16 %v8396
          %v8600 = vunpack.c.l.b16 %v8397
          %v8601 = vunpack.c.h.b16 %v8397
          %v8602 = vpack.c.b16 %v8476, %v8474
          %v8603 = vpack.c.b16 %v8477, %v8475
          %v8604 = vpack.c.b16 %v8480, %v8478
          %v8605 = vpack.c.b16 %v8481, %v8479
          %v8606 = vpack.c.b16 %v8484, %v8482
          %v8607 = vpack.c.b16 %v8485, %v8483
          %v8608 = vpack.c.b16 %v8488, %v8486
          %v8609 = vpack.c.b16 %v8489, %v8487
          %v8610 = vpack.c.b16 %v8492, %v8490
          %v8611 = vpack.c.b16 %v8493, %v8491
          %v8612 = vpack.c.b16 %v8496, %v8494
          %v8613 = vpack.c.b16 %v8497, %v8495
          %v8614 = vpack.c.b16 %v8500, %v8498
          %v8615 = vpack.c.b16 %v8501, %v8499
          %v8616 = vpack.c.b16 %v8504, %v8502
          %v8617 = vpack.c.b16 %v8505, %v8503
          %v8618 = vpack.c.b16 %v8508, %v8506
          %v8619 = vpack.c.b16 %v8509, %v8507
          %v8620 = vpack.c.b16 %v8512, %v8510
          %v8621 = vpack.c.b16 %v8513, %v8511
          %v8622 = vpack.c.b16 %v8516, %v8514
          %v8623 = vpack.c.b16 %v8517, %v8515
          %v8624 = vpack.c.b16 %v8520, %v8518
          %v8625 = vpack.c.b16 %v8521, %v8519
          %v8626 = vpack.c.b16 %v8524, %v8522
          %v8627 = vpack.c.b16 %v8525, %v8523
          %v8628 = vpack.c.b16 %v8528, %v8526
          %v8629 = vpack.c.b16 %v8529, %v8527
          %v8630 = vpack.c.b16 %v8532, %v8530
          %v8631 = vpack.c.b16 %v8533, %v8531
          %v8632 = vpack.c.b16 %v8536, %v8534
          %v8633 = vpack.c.b16 %v8537, %v8535
          %v8634 = vpack.c.b16 %v8540, %v8538
          %v8635 = vpack.c.b16 %v8541, %v8539
          %v8636 = vpack.c.b16 %v8544, %v8542
          %v8637 = vpack.c.b16 %v8545, %v8543
          %v8638 = vpack.c.b16 %v8548, %v8546
          %v8639 = vpack.c.b16 %v8549, %v8547
          %v8640 = vpack.c.b16 %v8552, %v8550
          %v8641 = vpack.c.b16 %v8553, %v8551
          %v8642 = vpack.c.b16 %v8556, %v8554
          %v8643 = vpack.c.b16 %v8557, %v8555
          %v8644 = vpack.c.b16 %v8560, %v8558
          %v8645 = vpack.c.b16 %v8561, %v8559
          %v8646 = vpack.c.b16 %v8564, %v8562
          %v8647 = vpack.c.b16 %v8565, %v8563
          %v8648 = vpack.c.b16 %v8568, %v8566
          %v8649 = vpack.c.b16 %v8569, %v8567
          %v8650 = vpack.c.b16 %v8572, %v8570
          %v8651 = vpack.c.b16 %v8573, %v8571
          %v8652 = vpack.c.b16 %v8576, %v8574
          %v8653 = vpack.c.b16 %v8577, %v8575
          %v8654 = vpack.c.b16 %v8580, %v8578
          %v8655 = vpack.c.b16 %v8581, %v8579
          %v8656 = vpack.c.b16 %v8584, %v8582
          %v8657 = vpack.c.b16 %v8585, %v8583
          %v8658 = vpack.c.b16 %v8588, %v8586
          %v8659 = vpack.c.b16 %v8589, %v8587
          %v8660 = vpack.c.b16 %v8592, %v8590
          %v8661 = vpack.c.b16 %v8593, %v8591
          %v8662 = vpack.c.b16 %v8596, %v8594
          %v8663 = vpack.c.b16 %v8597, %v8595
          %v8664 = vpack.c.b16 %v8600, %v8598
          %v8665 = vpack.c.b16 %v8601, %v8599
          %8730 = vmatprep.subr.bf16.mxu0 %v8603
          %8731 = vmatpush1.bf16.msra.mxu0 %v8602
          %8732 = vmatprep.subr.bf16.mxu0 %v8605
          %8733 = vmatpush1.bf16.msra.mxu0 %v8604
          %8734 = vmatprep.subr.bf16.mxu0 %v8607
          %8735 = vmatpush1.bf16.msra.mxu0 %v8606
          %8736 = vmatprep.subr.bf16.mxu0 %v8609
          %8737 = vmatpush1.bf16.msra.mxu0 %v8608
          %8738 = vmatprep.subr.bf16.mxu0 %v8611
          %8739 = vmatpush1.bf16.msra.mxu0 %v8610
          %8740 = vmatprep.subr.bf16.mxu0 %v8613
          %8741 = vmatpush1.bf16.msra.mxu0 %v8612
          %8742 = vmatprep.subr.bf16.mxu0 %v8615
          %8743 = vmatpush1.bf16.msra.mxu0 %v8614
          %8744 = vmatprep.subr.bf16.mxu0 %v8617
          %8745 = vmatpush1.bf16.msra.mxu0 %v8616
          %8746 = vmatprep.subr.bf16.mxu0 %v8619
          %8747 = vmatpush1.bf16.msra.mxu0 %v8618
          %8748 = vmatprep.subr.bf16.mxu0 %v8621
          %8749 = vmatpush1.bf16.msra.mxu0 %v8620
          %8750 = vmatprep.subr.bf16.mxu0 %v8623
          %8751 = vmatpush1.bf16.msra.mxu0 %v8622
          %8752 = vmatprep.subr.bf16.mxu0 %v8625
          %8753 = vmatpush1.bf16.msra.mxu0 %v8624
          %8754 = vmatprep.subr.bf16.mxu0 %v8627
          %8755 = vmatpush1.bf16.msra.mxu0 %v8626
          %8756 = vmatprep.subr.bf16.mxu0 %v8629
          %8757 = vmatpush1.bf16.msra.mxu0 %v8628
          %8758 = vmatprep.subr.bf16.mxu0 %v8631
          %8759 = vmatpush1.bf16.msra.mxu0 %v8630
          %8760 = vmatprep.subr.bf16.mxu0 %v8633
          %8761 = vmatpush1.bf16.msra.mxu0 %v8632
          %8762 = vmatprep.mubr.bf16.mxu0 %v8331
          %8763 = vmatmul.mubr.bf16.gmra.mrb[0].mxu0 %v8330
          %v8764 = vpop.f32.mrb[0].mxu0
          %v8765 = vadd.f32 %v8403, %v8764
          %v8766 = vpop.f32.mrb[0].mxu0
          %v8767 = vadd.f32 %v8407, %v8766
          %v8768 = vpop.f32.mrb[0].mxu0
          %v8769 = vpop.f32.mrb[0].mxu0
          %8770 = vdwg.mxu0
          %8771 = vmatprep.subr.bf16.mxu0 %v8635
          %8772 = vmatpush1.bf16.msra.mxu0 %v8634
          %8773 = vmatprep.subr.bf16.mxu0 %v8637
          %8774 = vmatpush1.bf16.msra.mxu0 %v8636
          %8775 = vmatprep.subr.bf16.mxu0 %v8639
          %8776 = vmatpush1.bf16.msra.mxu0 %v8638
          %8777 = vmatprep.subr.bf16.mxu0 %v8641
          %8778 = vmatpush1.bf16.msra.mxu0 %v8640
          %8779 = vmatprep.subr.bf16.mxu0 %v8643
          %8780 = vmatpush1.bf16.msra.mxu0 %v8642
          %8781 = vmatprep.subr.bf16.mxu0 %v8645
          %8782 = vmatpush1.bf16.msra.mxu0 %v8644
          %8783 = vmatprep.subr.bf16.mxu0 %v8647
          %8784 = vmatpush1.bf16.msra.mxu0 %v8646
          %8785 = vmatprep.subr.bf16.mxu0 %v8649
          %8786 = vmatpush1.bf16.msra.mxu0 %v8648
          %8787 = vmatprep.subr.bf16.mxu0 %v8651
          %8788 = vmatpush1.bf16.msra.mxu0 %v8650
          %8789 = vmatprep.subr.bf16.mxu0 %v8653
          %8790 = vmatpush1.bf16.msra.mxu0 %v8652
          %8791 = vmatprep.subr.bf16.mxu0 %v8655
          %8792 = vmatpush1.bf16.msra.mxu0 %v8654
          %8793 = vmatprep.subr.bf16.mxu0 %v8657
          %8794 = vmatpush1.bf16.msra.mxu0 %v8656
          %8795 = vmatprep.subr.bf16.mxu0 %v8659
          %8796 = vmatpush1.bf16.msra.mxu0 %v8658
          %8797 = vmatprep.subr.bf16.mxu0 %v8661
          %8798 = vmatpush1.bf16.msra.mxu0 %v8660
          %8799 = vmatprep.subr.bf16.mxu0 %v8663
          %8800 = vmatpush1.bf16.msra.mxu0 %v8662
          %8801 = vmatprep.subr.bf16.mxu0 %v8665
          %8802 = vmatpush1.bf16.msra.mxu0 %v8664
          %8803 = vmatprep.mubr.bf16.mxu0 %v8333
          %8804 = vmatmul.mubr.bf16.gmra.mrb[0].mxu0 %v8332
          %v8805 = vpop.f32.mrb[0].mxu0
          %v8806 = vadd.f32 %v8765, %v8805
          %v8807 = vpop.f32.mrb[0].mxu0
          %v8808 = vadd.f32 %v8767, %v8807
          %v8809 = vpop.f32.mrb[0].mxu0
          %v8810 = vpop.f32.mrb[0].mxu0
          %8811 = vdwg.mxu0
          %v8812 = vmax.f32 %v8806, 0.0
          %v8813 = vmax.f32 %v8808, 0.0
          %v8814 = vpack.c.bf16 %v8812, %v8812
          %v8815 = vpack.c.bf16 %v8813, %v8813
          %v8816 = vld [vmem:[%s10] sm:$0xf]
          %v8817 = vld [vmem:[%s10 + $0x4] sm:$0xf]
          %v8818 = vld [vmem:[%s10 + $0x8] sm:$0xf]
          %v8819 = vld [vmem:[%s10 + $0xc] sm:$0xf]
          %v8820 = vld [vmem:[%s10 + $0x10] sm:$0xf]
          %v8821 = vld [vmem:[%s10 + $0x14] sm:$0xf]
          %v8822 = vld [vmem:[%s10 + $0x18] sm:$0xf]
          %v8823 = vld [vmem:[%s10 + $0x1c] sm:$0xf]
          %v8824 = vld [vmem:[%s10 + $0x20] sm:$0xf]
          %v8825 = vld [vmem:[%s10 + $0x24] sm:$0xf]
          %v8826 = vld [vmem:[%s10 + $0x28] sm:$0xf]
          %v8827 = vld [vmem:[%s10 + $0x2c] sm:$0xf]
          %v8828 = vld [vmem:[%s10 + $0x30] sm:$0xf]
          %v8829 = vld [vmem:[%s10 + $0x34] sm:$0xf]
          %v8830 = vld [vmem:[%s10 + $0x38] sm:$0xf]
          %v8831 = vld [vmem:[%s10 + $0x3c] sm:$0xf]
          %v8832 = vld [vmem:[%s10 + $0x40] sm:$0xf]
          %v8833 = vld [vmem:[%s10 + $0x44] sm:$0xf]
          %v8834 = vld [vmem:[%s10 + $0x48] sm:$0xf]
          %v8835 = vld [vmem:[%s10 + $0x4c] sm:$0xf]
          %v8836 = vld [vmem:[%s10 + $0x50] sm:$0xf]
          %v8837 = vld [vmem:[%s10 + $0x54] sm:$0xf]
          %v8838 = vld [vmem:[%s10 + $0x58] sm:$0xf]
          %v8839 = vld [vmem:[%s10 + $0x5c] sm:$0xf]
          %v8840 = vld [vmem:[%s10 + $0x60] sm:$0xf]
          %v8841 = vld [vmem:[%s10 + $0x64] sm:$0xf]
          %v8842 = vld [vmem:[%s10 + $0x68] sm:$0xf]
          %v8843 = vld [vmem:[%s10 + $0x6c] sm:$0xf]
          %v8844 = vld [vmem:[%s10 + $0x70] sm:$0xf]
          %v8845 = vld [vmem:[%s10 + $0x74] sm:$0xf]
          %v8846 = vld [vmem:[%s10 + $0x78] sm:$0xf]
          %v8847 = vld [vmem:[%s10 + $0x7c] sm:$0xf]
          %v8848 = vld [vmem:[%s11] sm:$0x1]
          %v8850 = vlaneseq
          %v8851 = vshrl.u32 %v8850, 7
          %v8852 = vsub.s32 0, %v8851
          %v8853 = vrot.slane %v8848, %v8852
          %v8887 = vunpack.c.l.b16 %v8816
          %v8888 = vunpack.c.l.b16 %v8817
          %v8889 = vunpack.c.l.b16 %v8818
          %v8890 = vunpack.c.l.b16 %v8819
          %v8891 = vunpack.c.l.b16 %v8820
          %v8892 = vunpack.c.l.b16 %v8821
          %v8893 = vunpack.c.l.b16 %v8822
          %v8894 = vunpack.c.l.b16 %v8823
          %v8895 = vunpack.c.l.b16 %v8824
          %v8896 = vunpack.c.l.b16 %v8825
          %v8897 = vunpack.c.l.b16 %v8826
          %v8898 = vunpack.c.l.b16 %v8827
          %v8899 = vunpack.c.l.b16 %v8828
          %v8900 = vunpack.c.l.b16 %v8829
          %v8901 = vunpack.c.l.b16 %v8830
          %v8902 = vunpack.c.l.b16 %v8831
          %v8903 = vunpack.c.l.b16 %v8832
          %v8904 = vunpack.c.l.b16 %v8833
          %v8905 = vunpack.c.l.b16 %v8834
          %v8906 = vunpack.c.l.b16 %v8835
          %v8907 = vunpack.c.l.b16 %v8836
          %v8908 = vunpack.c.l.b16 %v8837
          %v8909 = vunpack.c.l.b16 %v8838
          %v8910 = vunpack.c.l.b16 %v8839
          %v8911 = vunpack.c.l.b16 %v8840
          %v8912 = vunpack.c.l.b16 %v8841
          %v8913 = vunpack.c.l.b16 %v8842
          %v8914 = vunpack.c.l.b16 %v8843
          %v8915 = vunpack.c.l.b16 %v8844
          %v8916 = vunpack.c.l.b16 %v8845
          %v8917 = vunpack.c.l.b16 %v8846
          %v8918 = vunpack.c.l.b16 %v8847
          %v8919 = vpack.c.b16 %v8888, %v8887
          %v8920 = vpack.c.b16 %v8890, %v8889
          %v8921 = vpack.c.b16 %v8892, %v8891
          %v8922 = vpack.c.b16 %v8894, %v8893
          %v8923 = vpack.c.b16 %v8896, %v8895
          %v8924 = vpack.c.b16 %v8898, %v8897
          %v8925 = vpack.c.b16 %v8900, %v8899
          %v8926 = vpack.c.b16 %v8902, %v8901
          %v8927 = vpack.c.b16 %v8904, %v8903
          %v8928 = vpack.c.b16 %v8906, %v8905
          %v8929 = vpack.c.b16 %v8908, %v8907
          %v8930 = vpack.c.b16 %v8910, %v8909
          %v8931 = vpack.c.b16 %v8912, %v8911
          %v8932 = vpack.c.b16 %v8914, %v8913
          %v8933 = vpack.c.b16 %v8916, %v8915
          %v8934 = vpack.c.b16 %v8918, %v8917
          %8951 = vmatprep.subr.bf16.mxu0 0
          %8952 = vmatpush1.bf16.msra.mxu0 %v8919
          %8953 = vmatprep.subr.bf16.mxu0 0
          %8954 = vmatpush1.bf16.msra.mxu0 %v8920
          %8955 = vmatprep.subr.bf16.mxu0 0
          %8956 = vmatpush1.bf16.msra.mxu0 %v8921
          %8957 = vmatprep.subr.bf16.mxu0 0
          %8958 = vmatpush1.bf16.msra.mxu0 %v8922
          %8959 = vmatprep.subr.bf16.mxu0 0
          %8960 = vmatpush1.bf16.msra.mxu0 %v8923
          %8961 = vmatprep.subr.bf16.mxu0 0
          %8962 = vmatpush1.bf16.msra.mxu0 %v8924
          %8963 = vmatprep.subr.bf16.mxu0 0
          %8964 = vmatpush1.bf16.msra.mxu0 %v8925
          %8965 = vmatprep.subr.bf16.mxu0 0
          %8966 = vmatpush1.bf16.msra.mxu0 %v8926
          %8967 = vmatprep.subr.bf16.mxu0 0
          %8968 = vmatpush1.bf16.msra.mxu0 %v8927
          %8969 = vmatprep.subr.bf16.mxu0 0
          %8970 = vmatpush1.bf16.msra.mxu0 %v8928
          %8971 = vmatprep.subr.bf16.mxu0 0
          %8972 = vmatpush1.bf16.msra.mxu0 %v8929
          %8973 = vmatprep.subr.bf16.mxu0 0
          %8974 = vmatpush1.bf16.msra.mxu0 %v8930
          %8975 = vmatprep.subr.bf16.mxu0 0
          %8976 = vmatpush1.bf16.msra.mxu0 %v8931
          %8977 = vmatprep.subr.bf16.mxu0 0
          %8978 = vmatpush1.bf16.msra.mxu0 %v8932
          %8979 = vmatprep.subr.bf16.mxu0 0
          %8980 = vmatpush1.bf16.msra.mxu0 %v8933
          %8981 = vmatprep.subr.bf16.mxu0 0
          %8982 = vmatpush1.bf16.msra.mxu0 %v8934
          %8983 = vmatprep.mubr.bf16.mxu0 %v8815
          %8984 = vmatmul.mubr.bf16.gmra.mrb[0].mxu0 %v8814
          %v8985 = vpop.f32.mrb[0].mxu0
          %v8986 = vadd.f32 %v8853, %v8985
          %v8987 = vpop.f32.mrb[0].mxu0
          %v8988 = vpop.f32.mrb[0].mxu0
          %v8989 = vpop.f32.mrb[0].mxu0
          %8990 = vdwg.mxu0
          %v8991 = vlaneseq
          %v8992 = vand.u32 %v8991, 127
          %v8993 = vmax.f32 %v8986, -20.0
          %v8994 = vmin.f32 %v8993, 2.0
          %v8995 = vmul.f32 %v8994, 1.442695
          %v8996 = vpow.pop %v8995
          %vm8997 = vcmp.eq.s32.totalorder %v8992, 0
          %v8998 = vsel %vm8997, %v8986, %v8996
          %vm8999 = vcmask 9216
          %9000 = vst.msk [vmem:[%s12] sm:$0x3] %vm8999, %v8998
        $region112: #{depth_estimation_gaussian_forward.1} parent=67 // pred_fallthru
          _
        // Predicated region
        $region113: #{depth_estimation_gaussian_forward.1} parent=67 // pred_check
          %p9001 = pneg %p305
        $region114: #{depth_estimation_gaussian_forward.1} parent=67 // pred_check_branch
          %9003 = sbr.rel (%p9001) target = $region116
        $region115: #{depth_estimation_gaussian_forward.1} parent=67 // pred_region
          _
        $region116: #{depth_estimation_gaussian_forward.1} parent=67 // pred_fallthru
          _
        // Predicated region
        $region117: #{depth_estimation_gaussian_forward.1} parent=67 // pred_check
          %p9004 = pneg %p305
        $region118: #{depth_estimation_gaussian_forward.1} parent=67 // pred_check_branch
          %9006 = sbr.rel (%p9004) target = $region120
        $region119: #{depth_estimation_gaussian_forward.1} parent=67 // pred_region
          _
        $region120: #{depth_estimation_gaussian_forward.1} parent=67 // pred_fallthru
          _
      $region68: #{depth_estimation_gaussian_forward.1} parent=5 // pred_fallthru
        _
      %p9007 = scmp.le.s32.totalorder 2, %s25
      // Predicated region
      $region121: #{depth_estimation_gaussian_forward.1} parent=5 // pred_check
        %p9008 = pneg %p9007
      $region122: #{depth_estimation_gaussian_forward.1} parent=5 // pred_check_branch
        %9010 = sbr.rel (%p9008) target = $region124
      $region123: #{depth_estimation_gaussian_forward.1} parent=5 // pred_region
        %s9011 = ssub.s32 %s25, 2
      $region124: #{depth_estimation_gaussian_forward.1} parent=5 // pred_fallthru
        _
    $region6: #{depth_estimation_gaussian_forward.1} parent=1 // loop_footer
      %s29 = sadd.s32 1, %s25
    $region7: #{depth_estimation_gaussian_forward.1} parent=1 // loop_footer_branch
      %24 = sbr.rel target = $region3
    $region8: #{depth_estimation_gaussian_forward.1} parent=1 // loop_exit
      _
    %9012 = vsyncpa [#allocation4], 1
    %s9013 = scalar_lea.sflag [#allocation4], 1
    %9014 = vsyncpa %s9013, 1
    %9015 = vsyncpa [#allocation6], 1
    %s9016 = scalar_lea.sflag [#allocation6], 1
    %9017 = vsyncpa %s9016, 1
    %9018 = vsyncpa [#allocation9], 1
    %9019 = vsyncpa [#allocation12], 1
    %9020 = vsyncpa [#allocation15], 1

</llo_original>
